<compile_context>
chip_gen: v7x
topology: tpu7x:2x2x1
jax: 0.10.0
libtpu: 0.0.40
codegen_flags: <defaults>
</compile_context>

<pallas_src>
import functools

import jax
import jax.numpy as jnp
import numpy as np
from jax.experimental import pallas as pl
from jax.experimental.pallas import tpu as pltpu


# ------------------------------ Pallas kernel ------------------------------ #

def bert_block_kernel(
    # inputs ----------------------------------------------------------------
    x_tile_ref, x_full_ref,                       # (TM,H) tile / (T,H) full
    wq_t_ref, wk_t_ref, wv_t_ref,                 # (H,H) each, pre-transposed
    bq_ref, bk_ref, bv_ref,                       # (1,H)
    cos_q_ref, sin_q_ref,                         # (TM,D)  sin has +/-1 folded in
    cos_k_ref, sin_k_ref,                         # (T ,D)
    wo_t_ref, bo_ref,                             # (H,H), (1,H)
    g1_ref, b1_ref,                               # attn_ln
    wr_t_ref,                                     # (H,E) router, f32
    w1t_ref, w2_ref, expand_ref,                  # (H,TEF), (TEF,H), (E,TEF)
    moe_b_ref, g2_ref, b2_ref,                    # (1,H) x3
    # outputs / scratch -------------------------------------------------------
    out_ref,                                      # (TM,H)
    h1_s, gate_s, acc_s,                          # VMEM scratch (f32)
    *, num_heads, head_dim, moe_top_k, eps,
):
    f32 = jnp.float32
    cd = wq_t_ref.dtype                 # MXU compute dtype (bf16 in production)
    ef = pl.program_id(1)
    n_ef = pl.num_programs(1)
    half = head_dim // 2

    def softmax_last(s):
        m = jnp.max(s, axis=-1, keepdims=True)
        e = jnp.exp(s - m)
        d = jnp.sum(e, axis=-1, keepdims=True)
        # EUP reciprocal + one Newton step: divide off the VPU, full f32 accuracy
        # (routing decisions depend on these values).
        r = pl.reciprocal(d, approx=True)
        r = r * (2.0 - d * r)
        return e * r

    def layer_norm(v, g, b):
        mu = jnp.mean(v, axis=-1, keepdims=True)
        var = jnp.mean((v - mu) ** 2, axis=-1, keepdims=True)
        return (v - mu) * jax.lax.rsqrt(var + eps) * g + b

    # --------- phase 1 (ef == 0): attention + attn_ln + router gate --------- #
    @pl.when(ef == 0)
    def _():
        x_t = x_tile_ref[...].astype(f32)          # (TM, H)  queries / residual
        x_f = x_full_ref[...].astype(f32)          # (T,  H)  keys / values
        TM, H = x_t.shape
        scale = head_dim ** -0.5

        q = jnp.dot(x_t.astype(cd), wq_t_ref[...], preferred_element_type=f32) + bq_ref[...]
        k = jnp.dot(x_f.astype(cd), wk_t_ref[...], preferred_element_type=f32) + bk_ref[...]
        v = jnp.dot(x_f.astype(cd), wv_t_ref[...], preferred_element_type=f32) + bv_ref[...]

        cos_q = cos_q_ref[...]; sin_q = sin_q_ref[...]     # sign folded into sin
        cos_k = cos_k_ref[...]; sin_k = sin_k_ref[...]

        def rope(u, cos, sin_signed):
            # neox rotate-half as a single XLU lane roll; +/-1 sign lives in sin.
            return u * cos + pltpu.roll(u, half, axis=1) * sin_signed

        attn = jnp.zeros((TM, H), f32)
        for h in range(num_heads):                 # static unroll, few heads
            sl = slice(h * head_dim, (h + 1) * head_dim)   # 128-lane aligned
            qh = rope(q[:, sl], cos_q, sin_q)
            kh = rope(k[:, sl], cos_k, sin_k)
            vh = v[:, sl]
            s = jax.lax.dot_general(qh.astype(cd), kh.astype(cd),
                                    (((1,), (1,)), ((), ())),
                                    preferred_element_type=f32) * scale  # (TM,T)
            p = softmax_last(s)
            oh = jnp.dot(p.astype(cd), vh.astype(cd),
                         preferred_element_type=f32)                     # (TM,D)
            # per-head partial output projection -> no concat / relayout
            attn = attn + jnp.dot(oh.astype(cd), wo_t_ref[sl, :],
                                  preferred_element_type=f32)
        attn = attn + bo_ref[...]
        h1 = layer_norm(x_t + attn, g1_ref[...], b1_ref[...])
        h1_s[...] = h1

        # ----- router: softmax over experts + top-k threshold gate (f32) ----- #
        logits = jnp.dot(h1, wr_t_ref[...], preferred_element_type=f32)   # (TM,E)
        probs = softmax_last(logits)
        remaining = probs
        thresh = None
        for _ in range(moe_top_k):            # iterated max == K-th largest
            thresh = jnp.max(remaining, axis=-1, keepdims=True)
            remaining = jnp.where(remaining >= thresh, -jnp.inf, remaining)
        gate_s[...] = jnp.where(probs >= thresh, probs, 0.0)
        acc_s[...] = jnp.zeros_like(acc_s)

    # ------- phase 2 (every ef): one EF tile of the fused dense experts ------ #
    h1 = h1_s[...]
    a = jax.nn.gelu(
        jnp.dot(h1.astype(cd), w1t_ref[...], preferred_element_type=f32),
        approximate=True)                                              # (TM,TEF)
    # broadcast gate[:, e] over expert e's lanes via a tiny block-diag matmul
    gate_tile = jnp.dot(gate_s[...], expand_ref[...],
                        preferred_element_type=f32)                    # (TM,TEF)
    acc_s[...] += jnp.dot((a * gate_tile).astype(cd), w2_ref[...],
                          preferred_element_type=f32)

    # --------- phase 3 (ef == last): bias + residual + mlp_ln -> out --------- #
    @pl.when(ef == n_ef - 1)
    def _():
        y = acc_s[...] + moe_b_ref[...]
        out = layer_norm(h1_s[...] + y, g2_ref[...], b2_ref[...])
        out_ref[...] = out.astype(out_ref.dtype)


# -------------------------------- wrappers ---------------------------------- #

def _rope_half_tables(positions, head_dim, base):
    half = head_dim // 2
    inv_freq = 1.0 / (base ** (jnp.arange(half, dtype=jnp.float32) * 2.0 / head_dim))
    freqs = positions.astype(jnp.float32)[:, None] * inv_freq[None, :]   # (T, half)
    return jnp.cos(freqs), jnp.sin(freqs)


def prepare_block_params(params, *, compute_dtype=jnp.bfloat16):
    """One-time weight-layout plumbing (NOT per forward): pre-split & pre-transpose
    weights so every in-kernel dot contracts on a lane-contiguous inner dim."""
    f32 = jnp.float32
    cd = compute_dtype
    H = params["wo"].shape[0]
    E = params["wr"].shape[0]
    EF = params["w1"].shape[0]
    F = EF // E
    wq, wk, wv = jnp.split(params["wqkv"], 3, axis=0)     # rows = [q; k; v]
    bq, bk, bv = jnp.split(params["bqkv"], 3)
    # block-diagonal expansion matrix: gate (T,E) @ expand (E,EF) broadcasts
    # each token's gate over its expert's F lanes.
    expand = ((jnp.arange(EF) // F)[None, :] == jnp.arange(E)[:, None]).astype(f32)
    return dict(
        wq_t=wq.T.astype(cd), wk_t=wk.T.astype(cd), wv_t=wv.T.astype(cd),
        bq=bq.reshape(1, H).astype(f32),
        bk=bk.reshape(1, H).astype(f32),
        bv=bv.reshape(1, H).astype(f32),
        wo_t=params["wo"].T.astype(cd),
        bo=params["bo"].reshape(1, H).astype(f32),
        attn_ln_g=params["attn_ln_g"].reshape(1, H).astype(f32),
        attn_ln_b=params["attn_ln_b"].reshape(1, H).astype(f32),
        wr_t=params["wr"].T.astype(f32),                 # router kept in f32
        w1_t=params["w1"].T.astype(cd),                  # (H, E*F)
        w2=params["w2"].astype(cd),                      # (E*F, H)
        expand=expand,
        moe_bias=params["moe_bias"].reshape(1, H).astype(f32),
        mlp_ln_g=params["mlp_ln_g"].reshape(1, H).astype(f32),
        mlp_ln_b=params["mlp_ln_b"].reshape(1, H).astype(f32),
    )


def bert_with_rope_block_forward(positions, x, prep, *, num_heads, moe_top_k,
                                 rope_base=10000.0, eps=1e-12,
                                 token_tile=128, ef_tile=256):
    T, H = x.shape
    head_dim = H // num_heads
    E = prep["wr_t"].shape[1]
    EF = prep["w1_t"].shape[1]
    assert T % token_tile == 0 and EF % ef_tile == 0
    assert head_dim % 128 == 0, "per-head slices must be 128-lane aligned"
    n_tok, n_ef = T // token_tile, EF // ef_tile

    cos_half, sin_half = _rope_half_tables(positions, head_dim, rope_base)
    cos = jnp.concatenate([cos_half, cos_half], axis=-1)            # (T, D)
    sin_signed = jnp.concatenate([-sin_half, sin_half], axis=-1)    # sign folded

    inputs = (
        x, x,                                             # query tile / full (K,V)
        prep["wq_t"], prep["wk_t"], prep["wv_t"],
        prep["bq"], prep["bk"], prep["bv"],
        cos, sin_signed, cos, sin_signed,
        prep["wo_t"], prep["bo"], prep["attn_ln_g"], prep["attn_ln_b"],
        prep["wr_t"],
        prep["w1_t"], prep["w2"], prep["expand"],
        prep["moe_bias"], prep["mlp_ln_g"], prep["mlp_ln_b"],
    )

    tok_map = lambda i, j: (i, 0)
    const2 = lambda i, j: (0, 0)
    row_spec = pl.BlockSpec((1, H), const2)
    in_specs = [
        pl.BlockSpec((token_tile, H), tok_map),           # x  (query/residual tile)
        pl.BlockSpec((T, H), const2),                     # x  (full, for K/V)
        pl.BlockSpec((H, H), const2),                     # wq_t
        pl.BlockSpec((H, H), const2),                     # wk_t
        pl.BlockSpec((H, H), const2),                     # wv_t
        row_spec, row_spec, row_spec,                     # bq, bk, bv
        pl.BlockSpec((token_tile, head_dim), tok_map),    # cos  (queries)
        pl.BlockSpec((token_tile, head_dim), tok_map),    # sin+- (queries)
        pl.BlockSpec((T, head_dim), const2),              # cos  (keys, full)
        pl.BlockSpec((T, head_dim), const2),              # sin+- (keys, full)
        pl.BlockSpec((H, H), const2),                     # wo_t
        row_spec,                                         # bo
        row_spec, row_spec,                               # attn_ln g, b
        pl.BlockSpec((H, E), const2),                     # wr_t (router)
        pl.BlockSpec((H, ef_tile), lambda i, j: (0, j)),  # w1_t EF tile
        pl.BlockSpec((ef_tile, H), lambda i, j: (j, 0)),  # w2   EF tile
        pl.BlockSpec((E, ef_tile), lambda i, j: (0, j)),  # gate expansion tile
        row_spec,                                         # moe bias
        row_spec, row_spec,                               # mlp_ln g, b
    ]

    grid_spec = pltpu.PrefetchScalarGridSpec(
        num_scalar_prefetch=0,
        grid=(n_tok, n_ef),
        in_specs=in_specs,
        out_specs=pl.BlockSpec((token_tile, H), tok_map),
        scratch_shapes=[
            pltpu.VMEM((token_tile, H), jnp.float32),     # h1 (post attn_ln)
            pltpu.VMEM((token_tile, E), jnp.float32),     # top-k gate
            pltpu.VMEM((token_tile, H), jnp.float32),     # expert accumulator
        ],
    )

    flops = int(
        2 * T * H * H                       # Q projection
        + 4 * n_tok * T * H * H             # K,V (recomputed per token tile)
        + 4 * T * T * H                     # scores + P@V over all heads
        + 2 * T * H * H                     # output projection
        + 2 * T * H * E                     # router
        + 4 * T * H * EF                    # expert up + down matmuls
        + 2 * T * E * EF)                   # gate expansion
    transcendentals = int(T * T * num_heads + T * E + T * EF)
    bytes_accessed = int(sum(int(a.size) * a.dtype.itemsize for a in inputs)
                         + T * H * x.dtype.itemsize)

    kernel = functools.partial(
        bert_block_kernel, num_heads=num_heads, head_dim=head_dim,
        moe_top_k=moe_top_k, eps=eps)

    return pl.pallas_call(
        kernel,
        out_shape=jax.ShapeDtypeStruct((T, H), x.dtype),
        grid_spec=grid_spec,
        compiler_params=pltpu.CompilerParams(
            dimension_semantics=("parallel", "arbitrary"),
            vmem_limit_bytes=48 * 1024 * 1024),
        cost_estimate=pl.CostEstimate(flops=flops,
                                      transcendentals=transcendentals,
                                      bytes_accessed=bytes_accessed),
    )(*inputs)


# ---------------------------- pure-JAX reference ----------------------------- #

def _layer_norm_ref(v, g, b, eps):
    mu = jnp.mean(v, axis=-1, keepdims=True)
    var = jnp.mean((v - mu) ** 2, axis=-1, keepdims=True)
    return (v - mu) * jax.lax.rsqrt(var + eps) * g + b


def ref_block_forward(positions, x, params, *, num_heads, moe_top_k,
                      rope_base=10000.0, eps=1e-12):
    T, H = x.shape
    D = H // num_heads
    ch, sh = _rope_half_tables(positions, D, rope_base)
    cos = jnp.concatenate([ch, ch], -1)
    sin = jnp.concatenate([sh, sh], -1)

    qkv = x @ params["wqkv"].T + params["bqkv"]
    q, k, v = jnp.split(qkv, 3, axis=-1)

    def rope(u):
        u = u.reshape(T, num_heads, D)
        u1, u2 = u[..., :D // 2], u[..., D // 2:]
        rot = jnp.concatenate([-u2, u1], axis=-1)
        return u * cos[:, None, :] + rot * sin[:, None, :]

    qh, kh = rope(q), rope(k)
    vh = v.reshape(T, num_heads, D)
    s = jnp.einsum("tnd,snd->nts", qh, kh) * (D ** -0.5)
    p = jax.nn.softmax(s, axis=-1)
    o = jnp.einsum("nts,snd->tnd", p, vh).reshape(T, H)
    attn = o @ params["wo"].T + params["bo"]
    h1 = _layer_norm_ref(x + attn, params["attn_ln_g"], params["attn_ln_b"], eps)

    E = params["wr"].shape[0]
    EF = params["w1"].shape[0]
    F = EF // E
    logits = h1 @ params["wr"].T
    probs = jax.nn.softmax(logits.astype(jnp.float32), axis=-1)
    top_w, top_e = jax.lax.top_k(probs, moe_top_k)
    w1 = params["w1"].reshape(E, F, H)
    w2 = params["w2"].reshape(E, F, H)
    out = jnp.zeros_like(h1)
    for e in range(E):
        a = jax.nn.gelu(h1 @ w1[e].T, approximate=True)
        y = a @ w2[e]
        g = jnp.sum(jnp.where(top_e == e, top_w, 0.0), axis=-1)
        out = out + y * g[:, None]
    out = out + params["moe_bias"]
    return _layer_norm_ref(h1 + out, params["mlp_ln_g"], params["mlp_ln_b"], eps)


# ----------------------------------- main ------------------------------------ #

if __name__ == "__main__":
    # Small config consistent with the module (hidden=256, 2 heads of 128,
    # n_inner=256, 4 experts top-2, 256 tokens -> 2 token tiles x 4 EF tiles).
    T, H, NH, F, E, K = 256, 256, 2, 256, 4, 2

    keys = jax.random.split(jax.random.PRNGKey(0), 13)
    s = 0.05
    params = dict(
        wqkv=s * jax.random.normal(keys[0], (3 * H, H), jnp.float32),
        bqkv=s * jax.random.normal(keys[1], (3 * H,), jnp.float32),
        wo=s * jax.random.normal(keys[2], (H, H), jnp.float32),
        bo=s * jax.random.normal(keys[3], (H,), jnp.float32),
        attn_ln_g=1.0 + 0.1 * jax.random.normal(keys[4], (H,), jnp.float32),
        attn_ln_b=0.05 * jax.random.normal(keys[5], (H,), jnp.float32),
        wr=0.3 * jax.random.normal(keys[6], (E, H), jnp.float32),      # router
        w1=s * jax.random.normal(keys[7], (E * F, H), jnp.float32),    # experts.mlp.w1
        w2=s * jax.random.normal(keys[8], (E * F, H), jnp.float32),    # experts.mlp.w2
        moe_bias=0.02 * jax.random.normal(keys[9], (H,), jnp.float32),
        mlp_ln_g=1.0 + 0.1 * jax.random.normal(keys[10], (H,), jnp.float32),
        mlp_ln_b=0.05 * jax.random.normal(keys[11], (H,), jnp.float32),
    )
    x = jax.random.normal(keys[12], (T, H), dtype=jnp.float32)
    positions = jnp.arange(T, dtype=jnp.int32)

    ref = jax.block_until_ready(
        ref_block_forward(positions, x, params, num_heads=NH, moe_top_k=K))

    # 1) exact-precision path (f32 MXU operands): strict correctness check.
    prep_f32 = prepare_block_params(params, compute_dtype=jnp.float32)
    out_f32 = jax.block_until_ready(bert_with_rope_block_forward(
        positions, x, prep_f32, num_heads=NH, moe_top_k=K))
    np.testing.assert_allclose(np.asarray(out_f32), np.asarray(ref),
                               rtol=2e-3, atol=2e-3)

    # 2) production path (bf16 MXU operands, f32 accumulation / LN / routing):
    #    loose statistical check (bf16 rounding can flip near-tied top-k picks
    #    for isolated tokens, so element-wise comparison is not meaningful).
    prep_bf16 = prepare_block_params(params, compute_dtype=jnp.bfloat16)
    out_bf16 = jax.block_until_ready(bert_with_rope_block_forward(
        positions, x, prep_bf16, num_heads=NH, moe_top_k=K))
    assert np.isfinite(np.asarray(out_bf16)).all()
    assert np.mean(np.abs(np.asarray(out_bf16) - np.asarray(ref))) < 3e-2

    print("KERNEL_OK")
</pallas_src>

<mosaic_0001>
module attributes {stable_mosaic.version = 11 : i64} {
  func.func @bert_block_kernel(%arg0: i32, %arg1: i32, %arg2: memref<128x256xf32, #tpu.memory_space<vmem>>, %arg3: memref<256x256xf32, #tpu.memory_space<vmem>>, %arg4: memref<256x256xf32, #tpu.memory_space<vmem>>, %arg5: memref<256x256xf32, #tpu.memory_space<vmem>>, %arg6: memref<256x256xf32, #tpu.memory_space<vmem>>, %arg7: memref<1x256xf32, #tpu.memory_space<vmem>>, %arg8: memref<1x256xf32, #tpu.memory_space<vmem>>, %arg9: memref<1x256xf32, #tpu.memory_space<vmem>>, %arg10: memref<128x128xf32, #tpu.memory_space<vmem>>, %arg11: memref<128x128xf32, #tpu.memory_space<vmem>>, %arg12: memref<256x128xf32, #tpu.memory_space<vmem>>, %arg13: memref<256x128xf32, #tpu.memory_space<vmem>>, %arg14: memref<256x256xf32, #tpu.memory_space<vmem>>, %arg15: memref<1x256xf32, #tpu.memory_space<vmem>>, %arg16: memref<1x256xf32, #tpu.memory_space<vmem>>, %arg17: memref<1x256xf32, #tpu.memory_space<vmem>>, %arg18: memref<256x4xf32, #tpu.memory_space<vmem>>, %arg19: memref<256x256xf32, #tpu.memory_space<vmem>>, %arg20: memref<256x256xf32, #tpu.memory_space<vmem>>, %arg21: memref<4x256xf32, #tpu.memory_space<vmem>>, %arg22: memref<1x256xf32, #tpu.memory_space<vmem>>, %arg23: memref<1x256xf32, #tpu.memory_space<vmem>>, %arg24: memref<1x256xf32, #tpu.memory_space<vmem>>, %arg25: memref<128x256xf32, #tpu.memory_space<vmem>>, %arg26: memref<128x256xf32, #tpu.memory_space<vmem>>, %arg27: memref<128x4xf32, #tpu.memory_space<vmem>>, %arg28: memref<128x256xf32, #tpu.memory_space<vmem>>) attributes {dimension_semantics = [#tpu.dimension_semantics<parallel>, #tpu.dimension_semantics<arbitrary>], iteration_bounds = array<i64: 2, 4>, scalar_prefetch = 0 : i64, scratch_operands = 3 : i64, tpu.core_type = #tpu.core_type<tc>, window_params = [{transform_indices = @transform_0, window_bounds = array<i64: 128, 256>}, {pipeline_mode = #tpu.pipeline_mode<synchronous>, transform_indices = @transform_1, window_bounds = array<i64: 256, 256>}, {pipeline_mode = #tpu.pipeline_mode<synchronous>, transform_indices = @transform_2, window_bounds = array<i64: 256, 256>}, {pipeline_mode = #tpu.pipeline_mode<synchronous>, transform_indices = @transform_3, window_bounds = array<i64: 256, 256>}, {pipeline_mode = #tpu.pipeline_mode<synchronous>, transform_indices = @transform_4, window_bounds = array<i64: 256, 256>}, {pipeline_mode = #tpu.pipeline_mode<synchronous>, transform_indices = @transform_5, window_bounds = array<i64: 1, 256>}, {pipeline_mode = #tpu.pipeline_mode<synchronous>, transform_indices = @transform_6, window_bounds = array<i64: 1, 256>}, {pipeline_mode = #tpu.pipeline_mode<synchronous>, transform_indices = @transform_7, window_bounds = array<i64: 1, 256>}, {transform_indices = @transform_8, window_bounds = array<i64: 128, 128>}, {transform_indices = @transform_9, window_bounds = array<i64: 128, 128>}, {pipeline_mode = #tpu.pipeline_mode<synchronous>, transform_indices = @transform_10, window_bounds = array<i64: 256, 128>}, {pipeline_mode = #tpu.pipeline_mode<synchronous>, transform_indices = @transform_11, window_bounds = array<i64: 256, 128>}, {pipeline_mode = #tpu.pipeline_mode<synchronous>, transform_indices = @transform_12, window_bounds = array<i64: 256, 256>}, {pipeline_mode = #tpu.pipeline_mode<synchronous>, transform_indices = @transform_13, window_bounds = array<i64: 1, 256>}, {pipeline_mode = #tpu.pipeline_mode<synchronous>, transform_indices = @transform_14, window_bounds = array<i64: 1, 256>}, {pipeline_mode = #tpu.pipeline_mode<synchronous>, transform_indices = @transform_15, window_bounds = array<i64: 1, 256>}, {pipeline_mode = #tpu.pipeline_mode<synchronous>, transform_indices = @transform_16, window_bounds = array<i64: 256, 4>}, {transform_indices = @transform_17, window_bounds = array<i64: 256, 256>}, {transform_indices = @transform_18, window_bounds = array<i64: 256, 256>}, {transform_indices = @transform_19, window_bounds = array<i64: 4, 256>}, {pipeline_mode = #tpu.pipeline_mode<synchronous>, transform_indices = @transform_20, window_bounds = array<i64: 1, 256>}, {pipeline_mode = #tpu.pipeline_mode<synchronous>, transform_indices = @transform_21, window_bounds = array<i64: 1, 256>}, {pipeline_mode = #tpu.pipeline_mode<synchronous>, transform_indices = @transform_22, window_bounds = array<i64: 1, 256>}, {transform_indices = @transform_23, window_bounds = array<i64: 128, 256>}]} {
    %c0_i32 = arith.constant 0 : i32
    %0 = arith.cmpi eq, %arg1, %c0_i32 : i32
    %1 = arith.extui %0 : i1 to i32
    %c0_i32_0 = arith.constant 0 : i32
    %2 = arith.cmpi ne, %1, %c0_i32_0 : i32
    scf.if %2 {
      %c0_21 = arith.constant 0 : index
      %c0_22 = arith.constant 0 : index
      %31 = vector.load %arg2[%c0_21, %c0_22] : memref<128x256xf32, #tpu.memory_space<vmem>>, vector<128x256xf32>
      %c0_23 = arith.constant 0 : index
      %c0_24 = arith.constant 0 : index
      %32 = vector.load %arg3[%c0_23, %c0_24] : memref<256x256xf32, #tpu.memory_space<vmem>>, vector<256x256xf32>
      %c0_25 = arith.constant 0 : index
      %c0_26 = arith.constant 0 : index
      %33 = vector.load %arg4[%c0_25, %c0_26] : memref<256x256xf32, #tpu.memory_space<vmem>>, vector<256x256xf32>
      %cst_27 = arith.constant dense<0.000000e+00> : vector<128x256xf32>
      %34 = tpu.matmul %31, %33, %cst_27 {dimension_numbers = #tpu.dot_dimension_numbers<[1], [0], [0], [1], [0, 0, 1, 1], [], []>} : vector<128x256xf32>, vector<256x256xf32>, vector<128x256xf32> -> vector<128x256xf32>
      %c0_28 = arith.constant 0 : index
      %c0_29 = arith.constant 0 : index
      %35 = vector.load %arg7[%c0_28, %c0_29] : memref<1x256xf32, #tpu.memory_space<vmem>>, vector<1x256xf32>
      %36 = vector.broadcast %35 : vector<1x256xf32> to vector<128x256xf32>
      %37 = arith.addf %34, %36 : vector<128x256xf32>
      %c0_30 = arith.constant 0 : index
      %c0_31 = arith.constant 0 : index
      %38 = vector.load %arg5[%c0_30, %c0_31] : memref<256x256xf32, #tpu.memory_space<vmem>>, vector<256x256xf32>
      %cst_32 = arith.constant dense<0.000000e+00> : vector<256x256xf32>
      %39 = tpu.matmul %32, %38, %cst_32 {dimension_numbers = #tpu.dot_dimension_numbers<[1], [0], [0], [1], [0, 0, 1, 1], [], []>} : vector<256x256xf32>, vector<256x256xf32>, vector<256x256xf32> -> vector<256x256xf32>
      %c0_33 = arith.constant 0 : index
      %c0_34 = arith.constant 0 : index
      %40 = vector.load %arg8[%c0_33, %c0_34] : memref<1x256xf32, #tpu.memory_space<vmem>>, vector<1x256xf32>
      %41 = vector.broadcast %40 : vector<1x256xf32> to vector<256x256xf32>
      %42 = arith.addf %39, %41 : vector<256x256xf32>
      %c0_35 = arith.constant 0 : index
      %c0_36 = arith.constant 0 : index
      %43 = vector.load %arg6[%c0_35, %c0_36] : memref<256x256xf32, #tpu.memory_space<vmem>>, vector<256x256xf32>
      %cst_37 = arith.constant dense<0.000000e+00> : vector<256x256xf32>
      %44 = tpu.matmul %32, %43, %cst_37 {dimension_numbers = #tpu.dot_dimension_numbers<[1], [0], [0], [1], [0, 0, 1, 1], [], []>} : vector<256x256xf32>, vector<256x256xf32>, vector<256x256xf32> -> vector<256x256xf32>
      %c0_38 = arith.constant 0 : index
      %c0_39 = arith.constant 0 : index
      %45 = vector.load %arg9[%c0_38, %c0_39] : memref<1x256xf32, #tpu.memory_space<vmem>>, vector<1x256xf32>
      %46 = vector.broadcast %45 : vector<1x256xf32> to vector<256x256xf32>
      %47 = arith.addf %44, %46 : vector<256x256xf32>
      %c0_40 = arith.constant 0 : index
      %c0_41 = arith.constant 0 : index
      %48 = vector.load %arg10[%c0_40, %c0_41] : memref<128x128xf32, #tpu.memory_space<vmem>>, vector<128x128xf32>
      %c0_42 = arith.constant 0 : index
      %c0_43 = arith.constant 0 : index
      %49 = vector.load %arg11[%c0_42, %c0_43] : memref<128x128xf32, #tpu.memory_space<vmem>>, vector<128x128xf32>
      %c0_44 = arith.constant 0 : index
      %c0_45 = arith.constant 0 : index
      %50 = vector.load %arg12[%c0_44, %c0_45] : memref<256x128xf32, #tpu.memory_space<vmem>>, vector<256x128xf32>
      %c0_46 = arith.constant 0 : index
      %c0_47 = arith.constant 0 : index
      %51 = vector.load %arg13[%c0_46, %c0_47] : memref<256x128xf32, #tpu.memory_space<vmem>>, vector<256x128xf32>
      %cst_48 = arith.constant 0.000000e+00 : f32
      %52 = vector.broadcast %cst_48 : f32 to vector<128x256xf32>
      %53 = vector.extract_strided_slice %37 {offsets = [0, 0], sizes = [128, 128], strides = [1, 1]} : vector<128x256xf32> to vector<128x128xf32>
      %54 = arith.mulf %53, %48 : vector<128x128xf32>
      %c64_i32 = arith.constant 64 : i32
      %55 = tpu.dynamic_rotate %53 by %c64_i32 dim 1 : vector<128x128xf32>, i32 -> vector<128x128xf32>
      %56 = arith.mulf %55, %49 : vector<128x128xf32>
      %57 = arith.addf %54, %56 : vector<128x128xf32>
      %58 = vector.extract_strided_slice %42 {offsets = [0, 0], sizes = [256, 128], strides = [1, 1]} : vector<256x256xf32> to vector<256x128xf32>
      %59 = arith.mulf %58, %50 : vector<256x128xf32>
      %c64_i32_49 = arith.constant 64 : i32
      %60 = tpu.dynamic_rotate %58 by %c64_i32_49 dim 1 : vector<256x128xf32>, i32 -> vector<256x128xf32>
      %61 = arith.mulf %60, %51 : vector<256x128xf32>
      %62 = arith.addf %59, %61 : vector<256x128xf32>
      %63 = vector.extract_strided_slice %47 {offsets = [0, 0], sizes = [256, 128], strides = [1, 1]} : vector<256x256xf32> to vector<256x128xf32>
      %cst_50 = arith.constant dense<0.000000e+00> : vector<128x256xf32>
      %64 = tpu.matmul %57, %62, %cst_50 {dimension_numbers = #tpu.dot_dimension_numbers<[1], [1], [0], [0], [0, 0, 1, 0], [], []>} : vector<128x128xf32>, vector<256x128xf32>, vector<128x256xf32> -> vector<128x256xf32>
      %cst_51 = arith.constant 0.0883883461 : f32
      %65 = vector.broadcast %cst_51 : f32 to vector<128x256xf32>
      %66 = arith.mulf %64, %65 : vector<128x256xf32>
      %cst_52 = arith.constant dense<0xFF800000> : vector<128xf32>
      %67 = vector.multi_reduction <maximumf>, %66, %cst_52 [1] : vector<128x256xf32> to vector<128xf32>
      %68 = vector.shape_cast %67 : vector<128xf32> to vector<128x1xf32>
      %69 = vector.broadcast %68 : vector<128x1xf32> to vector<128x256xf32>
      %70 = arith.subf %66, %69 : vector<128x256xf32>
      %71 = math.exp %70 : vector<128x256xf32>
      %cst_53 = arith.constant dense<0.000000e+00> : vector<128xf32>
      %72 = vector.multi_reduction <add>, %71, %cst_53 [1] : vector<128x256xf32> to vector<128xf32>
      %73 = vector.shape_cast %72 : vector<128xf32> to vector<128x1xf32>
      %74 = tpu.reciprocal %73 {approx = true} : vector<128x1xf32> -> vector<128x1xf32>
      %75 = arith.mulf %73, %74 : vector<128x1xf32>
      %cst_54 = arith.constant 2.000000e+00 : f32
      %76 = vector.broadcast %cst_54 : f32 to vector<128x1xf32>
      %77 = arith.subf %76, %75 : vector<128x1xf32>
      %78 = arith.mulf %74, %77 : vector<128x1xf32>
      %79 = vector.broadcast %78 : vector<128x1xf32> to vector<128x256xf32>
      %80 = arith.mulf %71, %79 : vector<128x256xf32>
      %cst_55 = arith.constant dense<0.000000e+00> : vector<128x128xf32>
      %81 = tpu.matmul %80, %63, %cst_55 {dimension_numbers = #tpu.dot_dimension_numbers<[1], [0], [0], [1], [0, 0, 1, 1], [], []>} : vector<128x256xf32>, vector<256x128xf32>, vector<128x128xf32> -> vector<128x128xf32>
      %c0_56 = arith.constant 0 : index
      %c0_57 = arith.constant 0 : index
      %82 = vector.load %arg14[%c0_56, %c0_57] : memref<256x256xf32, #tpu.memory_space<vmem>>, vector<128x256xf32>
      %cst_58 = arith.constant dense<0.000000e+00> : vector<128x256xf32>
      %83 = tpu.matmul %81, %82, %cst_58 {dimension_numbers = #tpu.dot_dimension_numbers<[1], [0], [0], [1], [0, 0, 1, 1], [], []>} : vector<128x128xf32>, vector<128x256xf32>, vector<128x256xf32> -> vector<128x256xf32>
      %84 = arith.addf %52, %83 : vector<128x256xf32>
      %85 = vector.extract_strided_slice %37 {offsets = [0, 128], sizes = [128, 128], strides = [1, 1]} : vector<128x256xf32> to vector<128x128xf32>
      %86 = arith.mulf %85, %48 : vector<128x128xf32>
      %c64_i32_59 = arith.constant 64 : i32
      %87 = tpu.dynamic_rotate %85 by %c64_i32_59 dim 1 : vector<128x128xf32>, i32 -> vector<128x128xf32>
      %88 = arith.mulf %87, %49 : vector<128x128xf32>
      %89 = arith.addf %86, %88 : vector<128x128xf32>
      %90 = vector.extract_strided_slice %42 {offsets = [0, 128], sizes = [256, 128], strides = [1, 1]} : vector<256x256xf32> to vector<256x128xf32>
      %91 = arith.mulf %90, %50 : vector<256x128xf32>
      %c64_i32_60 = arith.constant 64 : i32
      %92 = tpu.dynamic_rotate %90 by %c64_i32_60 dim 1 : vector<256x128xf32>, i32 -> vector<256x128xf32>
      %93 = arith.mulf %92, %51 : vector<256x128xf32>
      %94 = arith.addf %91, %93 : vector<256x128xf32>
      %95 = vector.extract_strided_slice %47 {offsets = [0, 128], sizes = [256, 128], strides = [1, 1]} : vector<256x256xf32> to vector<256x128xf32>
      %cst_61 = arith.constant dense<0.000000e+00> : vector<128x256xf32>
      %96 = tpu.matmul %89, %94, %cst_61 {dimension_numbers = #tpu.dot_dimension_numbers<[1], [1], [0], [0], [0, 0, 1, 0], [], []>} : vector<128x128xf32>, vector<256x128xf32>, vector<128x256xf32> -> vector<128x256xf32>
      %cst_62 = arith.constant 0.0883883461 : f32
      %97 = vector.broadcast %cst_62 : f32 to vector<128x256xf32>
      %98 = arith.mulf %96, %97 : vector<128x256xf32>
      %cst_63 = arith.constant dense<0xFF800000> : vector<128xf32>
      %99 = vector.multi_reduction <maximumf>, %98, %cst_63 [1] : vector<128x256xf32> to vector<128xf32>
      %100 = vector.shape_cast %99 : vector<128xf32> to vector<128x1xf32>
      %101 = vector.broadcast %100 : vector<128x1xf32> to vector<128x256xf32>
      %102 = arith.subf %98, %101 : vector<128x256xf32>
      %103 = math.exp %102 : vector<128x256xf32>
      %cst_64 = arith.constant dense<0.000000e+00> : vector<128xf32>
      %104 = vector.multi_reduction <add>, %103, %cst_64 [1] : vector<128x256xf32> to vector<128xf32>
      %105 = vector.shape_cast %104 : vector<128xf32> to vector<128x1xf32>
      %106 = tpu.reciprocal %105 {approx = true} : vector<128x1xf32> -> vector<128x1xf32>
      %107 = arith.mulf %105, %106 : vector<128x1xf32>
      %cst_65 = arith.constant 2.000000e+00 : f32
      %108 = vector.broadcast %cst_65 : f32 to vector<128x1xf32>
      %109 = arith.subf %108, %107 : vector<128x1xf32>
      %110 = arith.mulf %106, %109 : vector<128x1xf32>
      %111 = vector.broadcast %110 : vector<128x1xf32> to vector<128x256xf32>
      %112 = arith.mulf %103, %111 : vector<128x256xf32>
      %cst_66 = arith.constant dense<0.000000e+00> : vector<128x128xf32>
      %113 = tpu.matmul %112, %95, %cst_66 {dimension_numbers = #tpu.dot_dimension_numbers<[1], [0], [0], [1], [0, 0, 1, 1], [], []>} : vector<128x256xf32>, vector<256x128xf32>, vector<128x128xf32> -> vector<128x128xf32>
      %c128 = arith.constant 128 : index
      %c0_67 = arith.constant 0 : index
      %114 = vector.load %arg14[%c128, %c0_67] : memref<256x256xf32, #tpu.memory_space<vmem>>, vector<128x256xf32>
      %cst_68 = arith.constant dense<0.000000e+00> : vector<128x256xf32>
      %115 = tpu.matmul %113, %114, %cst_68 {dimension_numbers = #tpu.dot_dimension_numbers<[1], [0], [0], [1], [0, 0, 1, 1], [], []>} : vector<128x128xf32>, vector<128x256xf32>, vector<128x256xf32> -> vector<128x256xf32>
      %116 = arith.addf %84, %115 : vector<128x256xf32>
      %c0_69 = arith.constant 0 : index
      %c0_70 = arith.constant 0 : index
      %117 = vector.load %arg15[%c0_69, %c0_70] : memref<1x256xf32, #tpu.memory_space<vmem>>, vector<1x256xf32>
      %118 = vector.broadcast %117 : vector<1x256xf32> to vector<128x256xf32>
      %119 = arith.addf %116, %118 : vector<128x256xf32>
      %120 = arith.addf %31, %119 : vector<128x256xf32>
      %c0_71 = arith.constant 0 : index
      %c0_72 = arith.constant 0 : index
      %121 = vector.load %arg16[%c0_71, %c0_72] : memref<1x256xf32, #tpu.memory_space<vmem>>, vector<1x256xf32>
      %c0_73 = arith.constant 0 : index
      %c0_74 = arith.constant 0 : index
      %122 = vector.load %arg17[%c0_73, %c0_74] : memref<1x256xf32, #tpu.memory_space<vmem>>, vector<1x256xf32>
      %cst_75 = arith.constant dense<0.000000e+00> : vector<128xf32>
      %123 = vector.multi_reduction <add>, %120, %cst_75 [1] : vector<128x256xf32> to vector<128xf32>
      %124 = vector.shape_cast %123 : vector<128xf32> to vector<128x1xf32>
      %cst_76 = arith.constant 2.560000e+02 : f32
      %125 = vector.broadcast %cst_76 : f32 to vector<128x1xf32>
      %126 = arith.divf %124, %125 : vector<128x1xf32>
      %127 = vector.broadcast %126 : vector<128x1xf32> to vector<128x256xf32>
      %128 = arith.subf %120, %127 : vector<128x256xf32>
      %129 = arith.mulf %128, %128 : vector<128x256xf32>
      %cst_77 = arith.constant dense<0.000000e+00> : vector<128xf32>
      %130 = vector.multi_reduction <add>, %129, %cst_77 [1] : vector<128x256xf32> to vector<128xf32>
      %131 = vector.shape_cast %130 : vector<128xf32> to vector<128x1xf32>
      %cst_78 = arith.constant 2.560000e+02 : f32
      %132 = vector.broadcast %cst_78 : f32 to vector<128x1xf32>
      %133 = arith.divf %131, %132 : vector<128x1xf32>
      %134 = vector.broadcast %126 : vector<128x1xf32> to vector<128x256xf32>
      %135 = arith.subf %120, %134 : vector<128x256xf32>
      %cst_79 = arith.constant 9.99999996E-13 : f32
      %136 = vector.broadcast %cst_79 : f32 to vector<128x1xf32>
      %137 = arith.addf %133, %136 : vector<128x1xf32>
      %138 = math.rsqrt %137 : vector<128x1xf32>
      %139 = vector.broadcast %138 : vector<128x1xf32> to vector<128x256xf32>
      %140 = arith.mulf %135, %139 : vector<128x256xf32>
      %141 = vector.broadcast %121 : vector<1x256xf32> to vector<128x256xf32>
      %142 = arith.mulf %140, %141 : vector<128x256xf32>
      %143 = vector.broadcast %122 : vector<1x256xf32> to vector<128x256xf32>
      %144 = arith.addf %142, %143 : vector<128x256xf32>
      %c0_80 = arith.constant 0 : index
      %c0_81 = arith.constant 0 : index
      %145 = vector.load %arg26[%c0_80, %c0_81] : memref<128x256xf32, #tpu.memory_space<vmem>>, vector<128x256xf32>
      tpu.vector_store %arg26[%c0_80, %c0_81], %144 {strides = array<i32>} : memref<128x256xf32, #tpu.memory_space<vmem>>, vector<128x256xf32>,
      %c0_82 = arith.constant 0 : index
      %c0_83 = arith.constant 0 : index
      %146 = vector.load %arg18[%c0_82, %c0_83] : memref<256x4xf32, #tpu.memory_space<vmem>>, vector<256x4xf32>
      %cst_84 = arith.constant dense<0.000000e+00> : vector<128x4xf32>
      %147 = tpu.matmul %144, %146, %cst_84 {dimension_numbers = #tpu.dot_dimension_numbers<[1], [0], [0], [1], [0, 0, 1, 1], [], []>} : vector<128x256xf32>, vector<256x4xf32>, vector<128x4xf32> -> vector<128x4xf32>
      %cst_85 = arith.constant dense<0xFF800000> : vector<128xf32>
      %148 = vector.multi_reduction <maximumf>, %147, %cst_85 [1] : vector<128x4xf32> to vector<128xf32>
      %149 = vector.shape_cast %148 : vector<128xf32> to vector<128x1xf32>
      %150 = vector.broadcast %149 : vector<128x1xf32> to vector<128x4xf32>
      %151 = arith.subf %147, %150 : vector<128x4xf32>
      %152 = math.exp %151 : vector<128x4xf32>
      %cst_86 = arith.constant dense<0.000000e+00> : vector<128xf32>
      %153 = vector.multi_reduction <add>, %152, %cst_86 [1] : vector<128x4xf32> to vector<128xf32>
      %154 = vector.shape_cast %153 : vector<128xf32> to vector<128x1xf32>
      %155 = tpu.reciprocal %154 {approx = true} : vector<128x1xf32> -> vector<128x1xf32>
      %156 = arith.mulf %154, %155 : vector<128x1xf32>
      %cst_87 = arith.constant 2.000000e+00 : f32
      %157 = vector.broadcast %cst_87 : f32 to vector<128x1xf32>
      %158 = arith.subf %157, %156 : vector<128x1xf32>
      %159 = arith.mulf %155, %158 : vector<128x1xf32>
      %160 = vector.broadcast %159 : vector<128x1xf32> to vector<128x4xf32>
      %161 = arith.mulf %152, %160 : vector<128x4xf32>
      %cst_88 = arith.constant dense<0xFF800000> : vector<128xf32>
      %162 = vector.multi_reduction <maximumf>, %161, %cst_88 [1] : vector<128x4xf32> to vector<128xf32>
      %163 = vector.shape_cast %162 : vector<128xf32> to vector<128x1xf32>
      %164 = vector.broadcast %163 : vector<128x1xf32> to vector<128x4xf32>
      %165 = arith.cmpf oge, %161, %164 : vector<128x4xf32>
      %cst_89 = arith.constant 0xFF800000 : f32
      %166 = vector.broadcast %cst_89 : f32 to vector<128x4xf32>
      %167 = arith.select %165, %166, %161 : vector<128x4xi1>, vector<128x4xf32>
      %cst_90 = arith.constant dense<0xFF800000> : vector<128xf32>
      %168 = vector.multi_reduction <maximumf>, %167, %cst_90 [1] : vector<128x4xf32> to vector<128xf32>
      %169 = vector.shape_cast %168 : vector<128xf32> to vector<128x1xf32>
      %170 = vector.broadcast %169 : vector<128x1xf32> to vector<128x4xf32>
      %171 = arith.cmpf oge, %161, %170 : vector<128x4xf32>
      %cst_91 = arith.constant 0.000000e+00 : f32
      %172 = vector.broadcast %cst_91 : f32 to vector<128x4xf32>
      %173 = arith.select %171, %161, %172 : vector<128x4xi1>, vector<128x4xf32>
      %c0_92 = arith.constant 0 : index
      %c0_93 = arith.constant 0 : index
      %174 = vector.load %arg27[%c0_92, %c0_93] : memref<128x4xf32, #tpu.memory_space<vmem>>, vector<128x4xf32>
      tpu.vector_store %arg27[%c0_92, %c0_93], %173 {strides = array<i32>} : memref<128x4xf32, #tpu.memory_space<vmem>>, vector<128x4xf32>,
      %cst_94 = arith.constant 0.000000e+00 : f32
      %175 = vector.broadcast %cst_94 : f32 to vector<128x256xf32>
      %c0_95 = arith.constant 0 : index
      %c0_96 = arith.constant 0 : index
      %176 = vector.load %arg28[%c0_95, %c0_96] : memref<128x256xf32, #tpu.memory_space<vmem>>, vector<128x256xf32>
      tpu.vector_store %arg28[%c0_95, %c0_96], %175 {strides = array<i32>} : memref<128x256xf32, #tpu.memory_space<vmem>>, vector<128x256xf32>,
    } else {
    }
    %c0 = arith.constant 0 : index
    %c0_1 = arith.constant 0 : index
    %3 = vector.load %arg26[%c0, %c0_1] : memref<128x256xf32, #tpu.memory_space<vmem>>, vector<128x256xf32>
    %c0_2 = arith.constant 0 : index
    %c0_3 = arith.constant 0 : index
    %4 = vector.load %arg19[%c0_2, %c0_3] : memref<256x256xf32, #tpu.memory_space<vmem>>, vector<256x256xf32>
    %cst = arith.constant dense<0.000000e+00> : vector<128x256xf32>
    %5 = tpu.matmul %3, %4, %cst {dimension_numbers = #tpu.dot_dimension_numbers<[1], [0], [0], [1], [0, 0, 1, 1], [], []>} : vector<128x256xf32>, vector<256x256xf32>, vector<128x256xf32> -> vector<128x256xf32>
    %6 = arith.mulf %5, %5 : vector<128x256xf32>
    %7 = arith.mulf %5, %6 : vector<128x256xf32>
    %cst_4 = arith.constant 4.471500e-02 : f32
    %8 = vector.broadcast %cst_4 : f32 to vector<128x256xf32>
    %9 = arith.mulf %8, %7 : vector<128x256xf32>
    %10 = arith.addf %5, %9 : vector<128x256xf32>
    %cst_5 = arith.constant 0.797884583 : f32
    %11 = vector.broadcast %cst_5 : f32 to vector<128x256xf32>
    %12 = arith.mulf %11, %10 : vector<128x256xf32>
    %13 = math.tanh %12 : vector<128x256xf32>
    %cst_6 = arith.constant 1.000000e+00 : f32
    %14 = vector.broadcast %cst_6 : f32 to vector<128x256xf32>
    %15 = arith.addf %14, %13 : vector<128x256xf32>
    %cst_7 = arith.constant 5.000000e-01 : f32
    %16 = vector.broadcast %cst_7 : f32 to vector<128x256xf32>
    %17 = arith.mulf %16, %15 : vector<128x256xf32>
    %18 = arith.mulf %5, %17 : vector<128x256xf32>
    %c0_8 = arith.constant 0 : index
    %c0_9 = arith.constant 0 : index
    %19 = vector.load %arg27[%c0_8, %c0_9] : memref<128x4xf32, #tpu.memory_space<vmem>>, vector<128x4xf32>
    %c0_10 = arith.constant 0 : index
    %c0_11 = arith.constant 0 : index
    %20 = vector.load %arg21[%c0_10, %c0_11] : memref<4x256xf32, #tpu.memory_space<vmem>>, vector<4x256xf32>
    %cst_12 = arith.constant dense<0.000000e+00> : vector<128x256xf32>
    %21 = tpu.matmul %19, %20, %cst_12 {dimension_numbers = #tpu.dot_dimension_numbers<[1], [0], [0], [1], [0, 0, 1, 1], [], []>} : vector<128x4xf32>, vector<4x256xf32>, vector<128x256xf32> -> vector<128x256xf32>
    %c0_13 = arith.constant 0 : index
    %c0_14 = arith.constant 0 : index
    %22 = vector.load %arg28[%c0_13, %c0_14] : memref<128x256xf32, #tpu.memory_space<vmem>>, vector<128x256xf32>
    %23 = arith.mulf %18, %21 : vector<128x256xf32>
    %c0_15 = arith.constant 0 : index
    %c0_16 = arith.constant 0 : index
    %24 = vector.load %arg20[%c0_15, %c0_16] : memref<256x256xf32, #tpu.memory_space<vmem>>, vector<256x256xf32>
    %cst_17 = arith.constant dense<0.000000e+00> : vector<128x256xf32>
    %25 = tpu.matmul %23, %24, %cst_17 {dimension_numbers = #tpu.dot_dimension_numbers<[1], [0], [0], [1], [0, 0, 1, 1], [], []>} : vector<128x256xf32>, vector<256x256xf32>, vector<128x256xf32> -> vector<128x256xf32>
    %26 = arith.addf %22, %25 : vector<128x256xf32>
    %c0_18 = arith.constant 0 : index
    %c0_19 = arith.constant 0 : index
    %27 = vector.load %arg28[%c0_18, %c0_19] : memref<128x256xf32, #tpu.memory_space<vmem>>, vector<128x256xf32>
    tpu.vector_store %arg28[%c0_18, %c0_19], %26 {strides = array<i32>} : memref<128x256xf32, #tpu.memory_space<vmem>>, vector<128x256xf32>,
    %c3_i32 = arith.constant 3 : i32
    %28 = arith.cmpi eq, %arg1, %c3_i32 : i32
    %29 = arith.extui %28 : i1 to i32
    %c0_i32_20 = arith.constant 0 : i32
    %30 = arith.cmpi ne, %29, %c0_i32_20 : i32
    scf.if %30 {
      %c0_21 = arith.constant 0 : index
      %c0_22 = arith.constant 0 : index
      %31 = vector.load %arg28[%c0_21, %c0_22] : memref<128x256xf32, #tpu.memory_space<vmem>>, vector<128x256xf32>
      %c0_23 = arith.constant 0 : index
      %c0_24 = arith.constant 0 : index
      %32 = vector.load %arg22[%c0_23, %c0_24] : memref<1x256xf32, #tpu.memory_space<vmem>>, vector<1x256xf32>
      %33 = vector.broadcast %32 : vector<1x256xf32> to vector<128x256xf32>
      %34 = arith.addf %31, %33 : vector<128x256xf32>
      %c0_25 = arith.constant 0 : index
      %c0_26 = arith.constant 0 : index
      %35 = vector.load %arg26[%c0_25, %c0_26] : memref<128x256xf32, #tpu.memory_space<vmem>>, vector<128x256xf32>
      %36 = arith.addf %35, %34 : vector<128x256xf32>
      %c0_27 = arith.constant 0 : index
      %c0_28 = arith.constant 0 : index
      %37 = vector.load %arg23[%c0_27, %c0_28] : memref<1x256xf32, #tpu.memory_space<vmem>>, vector<1x256xf32>
      %c0_29 = arith.constant 0 : index
      %c0_30 = arith.constant 0 : index
      %38 = vector.load %arg24[%c0_29, %c0_30] : memref<1x256xf32, #tpu.memory_space<vmem>>, vector<1x256xf32>
      %cst_31 = arith.constant dense<0.000000e+00> : vector<128xf32>
      %39 = vector.multi_reduction <add>, %36, %cst_31 [1] : vector<128x256xf32> to vector<128xf32>
      %40 = vector.shape_cast %39 : vector<128xf32> to vector<128x1xf32>
      %cst_32 = arith.constant 2.560000e+02 : f32
      %41 = vector.broadcast %cst_32 : f32 to vector<128x1xf32>
      %42 = arith.divf %40, %41 : vector<128x1xf32>
      %43 = vector.broadcast %42 : vector<128x1xf32> to vector<128x256xf32>
      %44 = arith.subf %36, %43 : vector<128x256xf32>
      %45 = arith.mulf %44, %44 : vector<128x256xf32>
      %cst_33 = arith.constant dense<0.000000e+00> : vector<128xf32>
      %46 = vector.multi_reduction <add>, %45, %cst_33 [1] : vector<128x256xf32> to vector<128xf32>
      %47 = vector.shape_cast %46 : vector<128xf32> to vector<128x1xf32>
      %cst_34 = arith.constant 2.560000e+02 : f32
      %48 = vector.broadcast %cst_34 : f32 to vector<128x1xf32>
      %49 = arith.divf %47, %48 : vector<128x1xf32>
      %50 = vector.broadcast %42 : vector<128x1xf32> to vector<128x256xf32>
      %51 = arith.subf %36, %50 : vector<128x256xf32>
      %cst_35 = arith.constant 9.99999996E-13 : f32
      %52 = vector.broadcast %cst_35 : f32 to vector<128x1xf32>
      %53 = arith.addf %49, %52 : vector<128x1xf32>
      %54 = math.rsqrt %53 : vector<128x1xf32>
      %55 = vector.broadcast %54 : vector<128x1xf32> to vector<128x256xf32>
      %56 = arith.mulf %51, %55 : vector<128x256xf32>
      %57 = vector.broadcast %37 : vector<1x256xf32> to vector<128x256xf32>
      %58 = arith.mulf %56, %57 : vector<128x256xf32>
      %59 = vector.broadcast %38 : vector<1x256xf32> to vector<128x256xf32>
      %60 = arith.addf %58, %59 : vector<128x256xf32>
      %c0_36 = arith.constant 0 : index
      %c0_37 = arith.constant 0 : index
      %61 = vector.load %arg25[%c0_36, %c0_37] : memref<128x256xf32, #tpu.memory_space<vmem>>, vector<128x256xf32>
      tpu.vector_store %arg25[%c0_36, %c0_37], %60 {strides = array<i32>} : memref<128x256xf32, #tpu.memory_space<vmem>>, vector<128x256xf32>,
    } else {
    }
    return
  }
  func.func @transform_0(%arg0: i32, %arg1: i32) -> (i32, i32) {
    %c0_i32 = arith.constant 0 : i32
    %c0_i32_0 = arith.constant 0 : i32
    return %arg0, %c0_i32 : i32, i32
  }
  func.func @transform_1(%arg0: i32, %arg1: i32) -> (i32, i32) {
    %c0_i32 = arith.constant 0 : i32
    %c0_i32_0 = arith.constant 0 : i32
    %c0_i32_1 = arith.constant 0 : i32
    return %c0_i32, %c0_i32_0 : i32, i32
  }
  func.func @transform_2(%arg0: i32, %arg1: i32) -> (i32, i32) {
    %c0_i32 = arith.constant 0 : i32
    %c0_i32_0 = arith.constant 0 : i32
    %c0_i32_1 = arith.constant 0 : i32
    return %c0_i32, %c0_i32_0 : i32, i32
  }
  func.func @transform_3(%arg0: i32, %arg1: i32) -> (i32, i32) {
    %c0_i32 = arith.constant 0 : i32
    %c0_i32_0 = arith.constant 0 : i32
    %c0_i32_1 = arith.constant 0 : i32
    return %c0_i32, %c0_i32_0 : i32, i32
  }
  func.func @transform_4(%arg0: i32, %arg1: i32) -> (i32, i32) {
    %c0_i32 = arith.constant 0 : i32
    %c0_i32_0 = arith.constant 0 : i32
    %c0_i32_1 = arith.constant 0 : i32
    return %c0_i32, %c0_i32_0 : i32, i32
  }
  func.func @transform_5(%arg0: i32, %arg1: i32) -> (i32, i32) {
    %c0_i32 = arith.constant 0 : i32
    %c0_i32_0 = arith.constant 0 : i32
    %c0_i32_1 = arith.constant 0 : i32
    return %c0_i32, %c0_i32_0 : i32, i32
  }
  func.func @transform_6(%arg0: i32, %arg1: i32) -> (i32, i32) {
    %c0_i32 = arith.constant 0 : i32
    %c0_i32_0 = arith.constant 0 : i32
    %c0_i32_1 = arith.constant 0 : i32
    return %c0_i32, %c0_i32_0 : i32, i32
  }
  func.func @transform_7(%arg0: i32, %arg1: i32) -> (i32, i32) {
    %c0_i32 = arith.constant 0 : i32
    %c0_i32_0 = arith.constant 0 : i32
    %c0_i32_1 = arith.constant 0 : i32
    return %c0_i32, %c0_i32_0 : i32, i32
  }
  func.func @transform_8(%arg0: i32, %arg1: i32) -> (i32, i32) {
    %c0_i32 = arith.constant 0 : i32
    %c0_i32_0 = arith.constant 0 : i32
    return %arg0, %c0_i32 : i32, i32
  }
  func.func @transform_9(%arg0: i32, %arg1: i32) -> (i32, i32) {
    %c0_i32 = arith.constant 0 : i32
    %c0_i32_0 = arith.constant 0 : i32
    return %arg0, %c0_i32 : i32, i32
  }
  func.func @transform_10(%arg0: i32, %arg1: i32) -> (i32, i32) {
    %c0_i32 = arith.constant 0 : i32
    %c0_i32_0 = arith.constant 0 : i32
    %c0_i32_1 = arith.constant 0 : i32
    return %c0_i32, %c0_i32_0 : i32, i32
  }
  func.func @transform_11(%arg0: i32, %arg1: i32) -> (i32, i32) {
    %c0_i32 = arith.constant 0 : i32
    %c0_i32_0 = arith.constant 0 : i32
    %c0_i32_1 = arith.constant 0 : i32
    return %c0_i32, %c0_i32_0 : i32, i32
  }
  func.func @transform_12(%arg0: i32, %arg1: i32) -> (i32, i32) {
    %c0_i32 = arith.constant 0 : i32
    %c0_i32_0 = arith.constant 0 : i32
    %c0_i32_1 = arith.constant 0 : i32
    return %c0_i32, %c0_i32_0 : i32, i32
  }
  func.func @transform_13(%arg0: i32, %arg1: i32) -> (i32, i32) {
    %c0_i32 = arith.constant 0 : i32
    %c0_i32_0 = arith.constant 0 : i32
    %c0_i32_1 = arith.constant 0 : i32
    return %c0_i32, %c0_i32_0 : i32, i32
  }
  func.func @transform_14(%arg0: i32, %arg1: i32) -> (i32, i32) {
    %c0_i32 = arith.constant 0 : i32
    %c0_i32_0 = arith.constant 0 : i32
    %c0_i32_1 = arith.constant 0 : i32
    return %c0_i32, %c0_i32_0 : i32, i32
  }
  func.func @transform_15(%arg0: i32, %arg1: i32) -> (i32, i32) {
    %c0_i32 = arith.constant 0 : i32
    %c0_i32_0 = arith.constant 0 : i32
    %c0_i32_1 = arith.constant 0 : i32
    return %c0_i32, %c0_i32_0 : i32, i32
  }
  func.func @transform_16(%arg0: i32, %arg1: i32) -> (i32, i32) {
    %c0_i32 = arith.constant 0 : i32
    %c0_i32_0 = arith.constant 0 : i32
    %c0_i32_1 = arith.constant 0 : i32
    return %c0_i32, %c0_i32_0 : i32, i32
  }
  func.func @transform_17(%arg0: i32, %arg1: i32) -> (i32, i32) {
    %c0_i32 = arith.constant 0 : i32
    %c0_i32_0 = arith.constant 0 : i32
    return %c0_i32, %arg1 : i32, i32
  }
  func.func @transform_18(%arg0: i32, %arg1: i32) -> (i32, i32) {
    %c0_i32 = arith.constant 0 : i32
    %c0_i32_0 = arith.constant 0 : i32
    return %arg1, %c0_i32 : i32, i32
  }
  func.func @transform_19(%arg0: i32, %arg1: i32) -> (i32, i32) {
    %c0_i32 = arith.constant 0 : i32
    %c0_i32_0 = arith.constant 0 : i32
    return %c0_i32, %arg1 : i32, i32
  }
  func.func @transform_20(%arg0: i32, %arg1: i32) -> (i32, i32) {
    %c0_i32 = arith.constant 0 : i32
    %c0_i32_0 = arith.constant 0 : i32
    %c0_i32_1 = arith.constant 0 : i32
    return %c0_i32, %c0_i32_0 : i32, i32
  }
  func.func @transform_21(%arg0: i32, %arg1: i32) -> (i32, i32) {
    %c0_i32 = arith.constant 0 : i32
    %c0_i32_0 = arith.constant 0 : i32
    %c0_i32_1 = arith.constant 0 : i32
    return %c0_i32, %c0_i32_0 : i32, i32
  }
  func.func @transform_22(%arg0: i32, %arg1: i32) -> (i32, i32) {
    %c0_i32 = arith.constant 0 : i32
    %c0_i32_0 = arith.constant 0 : i32
    %c0_i32_1 = arith.constant 0 : i32
    return %c0_i32, %c0_i32_0 : i32, i32
  }
  func.func @transform_23(%arg0: i32, %arg1: i32) -> (i32, i32) {
    %c0_i32 = arith.constant 0 : i32
    %c0_i32_0 = arith.constant 0 : i32
    return %arg0, %c0_i32 : i32, i32
  }
}

</mosaic_0001>

<llo_original>
// kernel: tpu_custom_call.1
$region0: #{tpu_custom_call.1}
  #allocation0 [shape = 'u32[]', space=smem, size = 0x4, offset = 0x4, fixed_abs, tag = 'smem constant byte address 0x4 - core index']
  #allocation1 [shape = 'u32[144,128]{1,0:T(1,128)}', space=vmem, size = 0x12000, scoped, tag = 'internal scratch']
  #allocation2 [shape = 'f32[128,256]{1,0:T(8,128)}', space=vmem, size = 0x20000, scoped, tag = 'scratch operand']
  #allocation3 [shape = 'f32[128,4]{1,0:T(8,128)}', space=vmem, size = 0x10000, scoped, tag = 'scratch operand']
  #allocation4 [shape = 'f32[128,256]{1,0:T(8,128)}', space=vmem, size = 0x20000, scoped, tag = 'scratch operand']
  %s0 = inlined_call_operand.hbm [shape: f32[256,256], index: 0, kind: input, shape index: {}]
  %s1 = inlined_call_operand.hbm [shape: f32[256,256], index: 1, kind: input, shape index: {}]
  %s2 = inlined_call_operand.hbm [shape: f32[256,256], index: 2, kind: input, shape index: {}]
  %s3 = inlined_call_operand.hbm [shape: f32[256,256], index: 3, kind: input, shape index: {}]
  %s4 = inlined_call_operand.hbm [shape: f32[256,256], index: 4, kind: input, shape index: {}]
  %s5 = inlined_call_operand.vmem [shape: f32[1,256], index: 5, kind: input, shape index: {}]
  %s6 = inlined_call_operand.hbm [shape: f32[1,256], index: 6, kind: input, shape index: {}]
  %s7 = inlined_call_operand.hbm [shape: f32[1,256], index: 7, kind: input, shape index: {}]
  %s8 = inlined_call_operand.vmem [shape: f32[256,128], index: 8, kind: input, shape index: {}]
  %s9 = inlined_call_operand.hbm [shape: f32[256,128], index: 9, kind: input, shape index: {}]
  %s10 = inlined_call_operand.hbm [shape: f32[256,128], index: 10, kind: input, shape index: {}]
  %s11 = inlined_call_operand.hbm [shape: f32[256,128], index: 11, kind: input, shape index: {}]
  %s12 = inlined_call_operand.hbm [shape: f32[256,256], index: 12, kind: input, shape index: {}]
  %s13 = inlined_call_operand.vmem [shape: f32[1,256], index: 13, kind: input, shape index: {}]
  %s14 = inlined_call_operand.vmem [shape: f32[1,256], index: 14, kind: input, shape index: {}]
  %s15 = inlined_call_operand.vmem [shape: f32[1,256], index: 15, kind: input, shape index: {}]
  %s16 = inlined_call_operand.vmem [shape: f32[256,4], index: 16, kind: input, shape index: {}]
  %s17 = inlined_call_operand.hbm [shape: f32[256,1024], index: 17, kind: input, shape index: {}]
  %s18 = inlined_call_operand.hbm [shape: f32[1024,256], index: 18, kind: input, shape index: {}]
  %s19 = inlined_call_operand.vmem [shape: f32[4,1024], index: 19, kind: input, shape index: {}]
  %s20 = inlined_call_operand.vmem [shape: f32[1,256], index: 20, kind: input, shape index: {}]
  %s21 = inlined_call_operand.vmem [shape: f32[1,256], index: 21, kind: input, shape index: {}]
  %s22 = inlined_call_operand.vmem [shape: f32[1,256], index: 22, kind: input, shape index: {}]
  %s23 = inlined_call_operand.hbm [shape: f32[256,256], index: 23, kind: output, shape index: {}]
  %s24 = sld [smem:[#allocation0]]
  $region185: #{tpu_custom_call.1} parent=0
    _
  %s26 = ssub.s32 1, %s24
  %s27 = scalar_select 0, %s26, %s24
  $region1: #{tpu_custom_call.1} parent=0
    #allocation5 [shape = 'u8[262144]{0}', space=vmem, size = 0x40000, scoped, tag = 'input window, operand 0']
    #allocation6 [shape = 's32[2]{0}', space=sflag, size = 0x8, scoped, tag = 'scoped memory for tpu_custom_call.1']
    #allocation7 [shape = 's32[2]{0}', space=sflag, size = 0x8, scoped, tag = 'scoped memory for tpu_custom_call.1']
    #allocation8 [shape = 'u8[262144]{0}', space=vmem, size = 0x40000, scoped, tag = 'input window, operand 1, single buffered']
    #allocation9 [shape = 's32[1]{0}', space=sflag, size = 0x4, scoped, tag = 'scoped memory for tpu_custom_call.1']
    #allocation10 [shape = 'u8[262144]{0}', space=vmem, size = 0x40000, scoped, tag = 'input window, operand 2, single buffered']
    #allocation11 [shape = 'u8[262144]{0}', space=vmem, size = 0x40000, scoped, tag = 'input window, operand 3, single buffered']
    #allocation12 [shape = 's32[1]{0}', space=sflag, size = 0x4, scoped, tag = 'scoped memory for tpu_custom_call.1']
    #allocation13 [shape = 'u8[262144]{0}', space=vmem, size = 0x40000, scoped, tag = 'input window, operand 4, single buffered']
    #allocation14 [shape = 'u8[1024]{0}', space=vmem, size = 0x400, scoped, tag = 'input window, operand 6, single buffered']
    #allocation15 [shape = 's32[1]{0}', space=sflag, size = 0x4, scoped, tag = 'scoped memory for tpu_custom_call.1']
    #allocation16 [shape = 'u8[1024]{0}', space=vmem, size = 0x400, scoped, tag = 'input window, operand 7, single buffered']
    #allocation17 [shape = 'u8[131072]{0}', space=vmem, size = 0x20000, scoped, tag = 'input window, operand 9']
    #allocation18 [shape = 's32[2]{0}', space=sflag, size = 0x8, scoped, tag = 'scoped memory for tpu_custom_call.1']
    #allocation19 [shape = 'u8[131072]{0}', space=vmem, size = 0x20000, scoped, tag = 'input window, operand 10, single buffered']
    #allocation20 [shape = 'u8[131072]{0}', space=vmem, size = 0x20000, scoped, tag = 'input window, operand 11, single buffered']
    #allocation21 [shape = 's32[1]{0}', space=sflag, size = 0x4, scoped, tag = 'scoped memory for tpu_custom_call.1']
    #allocation22 [shape = 'u8[262144]{0}', space=vmem, size = 0x40000, scoped, tag = 'input window, operand 12, single buffered']
    #allocation23 [shape = 'u8[524288]{0}', space=vmem, size = 0x80000, scoped, tag = 'input window, operand 17']
    #allocation24 [shape = 's32[2]{0}', space=sflag, size = 0x8, scoped, tag = 'scoped memory for tpu_custom_call.1']
    #allocation25 [shape = 'u8[524288]{0}', space=vmem, size = 0x80000, scoped, tag = 'input window, operand 18']
    #allocation26 [shape = 'u8[262144]{0}', space=vmem, size = 0x40000, scoped, tag = 'output window, operand 0']
    %28 = vsyncpa [#allocation6], 0
    %s29 = scalar_lea.sflag [#allocation6], 1
    %30 = vsyncpa %s29, 0
    %31 = vsyncpa [#allocation9], 0
    %32 = vsyncpa [#allocation12], 0
    %33 = vsyncpa [#allocation15], 0
    %34 = vsyncpa [#allocation18], 0
    %s35 = scalar_lea.sflag [#allocation18], 1
    %36 = vsyncpa %s35, 0
    %37 = vsyncpa [#allocation21], 0
    %38 = vsyncpa [#allocation24], 0
    %s39 = scalar_lea.sflag [#allocation24], 1
    %40 = vsyncpa %s39, 0
    %41 = vsyncpa [#allocation7], 0
    %s42 = scalar_lea.sflag [#allocation7], 1
    %43 = vsyncpa %s42, 0
    loop: start=0, step=1, limit=10
    $region2: #{tpu_custom_call.1} parent=1 // loop_pre_header
      _
    $region3: #{tpu_custom_call.1} parent=1 // loop_header
      %s45 = sphi 0, %s49
      %p46 = scmp.ge.s32.totalorder %s45, 10
      %s52 = sphi 0, %s64
      %s53 = sphi 0, %s60
      %s54 = sphi 0, %s52
      %s55 = sphi 0, %s53
      %s56 = sphi 0, %s54
      %s57 = sphi 0, %s55
      %s67 = sphi 0, %s69
      %s70 = sphi 0, %s67
      %s71 = sphi 0, %s70
      %s87 = sphi 0, %s71
      %s91 = sphi 0, %s91
      %s93 = sphi 0, %s91
      %s94 = sphi 0, %s93
      %s108 = sphi 0, %s94
      %s112 = sphi 0, %s112
      %s114 = sphi 0, %s112
      %s115 = sphi 0, %s114
      %s129 = sphi 0, %s115
      %s133 = sphi 0, %s133
      %s135 = sphi 0, %s133
      %s136 = sphi 0, %s135
      %s150 = sphi 0, %s136
      %s154 = sphi 0, %s154
      %s156 = sphi 0, %s154
      %s157 = sphi 0, %s156
      %s171 = sphi 0, %s157
      %s175 = sphi 0, %s175
      %s177 = sphi 0, %s175
      %s178 = sphi 0, %s177
      %s192 = sphi 0, %s178
      %s196 = sphi 0, %s196
      %s198 = sphi 0, %s196
      %s199 = sphi 0, %s198
      %s213 = sphi 0, %s199
      %s217 = sphi 0, %s217
      %s219 = sphi 0, %s217
      %s220 = sphi 0, %s219
      %s234 = sphi 0, %s220
      %s240 = sphi 0, %s242
      %s243 = sphi 0, %s240
      %s244 = sphi 0, %s243
      %s260 = sphi 0, %s244
      %s266 = sphi 0, %s268
      %s269 = sphi 0, %s266
      %s270 = sphi 0, %s269
      %s286 = sphi 0, %s270
      %s290 = sphi 0, %s290
      %s292 = sphi 0, %s290
      %s293 = sphi 0, %s292
      %s307 = sphi 0, %s293
      %s311 = sphi 0, %s311
      %s313 = sphi 0, %s311
      %s314 = sphi 0, %s313
      %s328 = sphi 0, %s314
      %s332 = sphi 0, %s332
      %s334 = sphi 0, %s332
      %s335 = sphi 0, %s334
      %s349 = sphi 0, %s335
      %s353 = sphi 0, %s353
      %s355 = sphi 0, %s353
      %s356 = sphi 0, %s355
      %s370 = sphi 0, %s356
      %s374 = sphi 0, %s374
      %s376 = sphi 0, %s374
      %s377 = sphi 0, %s376
      %s391 = sphi 0, %s377
      %s395 = sphi 0, %s395
      %s397 = sphi 0, %s395
      %s398 = sphi 0, %s397
      %s412 = sphi 0, %s398
      %s416 = sphi 0, %s416
      %s418 = sphi 0, %s416
      %s419 = sphi 0, %s418
      %s433 = sphi 0, %s419
      %s439 = sphi 0, %s441
      %s442 = sphi 0, %s439
      %s443 = sphi 0, %s442
      %s459 = sphi 0, %s443
      %s465 = sphi 0, %s467
      %s468 = sphi 0, %s465
      %s469 = sphi 0, %s468
      %s485 = sphi 0, %s469
      %s491 = sphi 0, %s493
      %s494 = sphi 0, %s491
      %s495 = sphi 0, %s494
      %s511 = sphi 0, %s495
      %s515 = sphi 0, %s515
      %s517 = sphi 0, %s515
      %s518 = sphi 0, %s517
      %s532 = sphi 0, %s518
      %s536 = sphi 0, %s536
      %s538 = sphi 0, %s536
      %s539 = sphi 0, %s538
      %s553 = sphi 0, %s539
      %s557 = sphi 0, %s557
      %s559 = sphi 0, %s557
      %s560 = sphi 0, %s559
      %s574 = sphi 0, %s560
      %s580 = sphi 0, %s582
      %s583 = sphi 0, %s580
      %s584 = sphi 0, %s583
      %s600 = sphi 0, %s584
    $region4: #{tpu_custom_call.1} parent=1 // loop_header_branch
      %48 = sbr.rel (%p46) target = $region8
    $region5: #{tpu_custom_call.1} parent=1 // loop_body
      %s50 = ssub.s32 %s45, 1
      %s51 = ssub.s32 %s45, 2
      %s58 = sadd.s32 1, %s53
      %p59 = scmp.ge.s32.totalorder %s58, 4
      %s60 = scalar_select %p59, 0, %s58
      %s61 = sadd.s32 1, %s52
      %s62 = scalar_select %p59, %s61, %s52
      %p63 = scmp.ge.s32.totalorder %s62, 2
      %s64 = scalar_select %p63, 0, %s62
      %s65 = ssub.s32 %s52, %s64
      %p66 = scmp.eq.s32.totalorder %s65, 0
      %s68 = sadd.s32 %s67, 1
      %s69 = scalar_select %p66, %s67, %s68
      %p72 = pneg %p66
      %p73 = scmp.eq.s32.totalorder %s45, 7
      %p74 = por %p72, %p73
      %p75 = scmp.ne.s32.totalorder %s67, %s70
      %p76 = scmp.eq.s32.totalorder %s45, 0
      %p77 = por %p75, %p76
      %p78 = scmp.ne.s32.totalorder %s67, %s70
      %p79 = scmp.eq.s32.totalorder %s50, 7
      %p80 = por %p78, %p79
      %p81 = scmp.ne.s32.totalorder %s70, %s71
      %p82 = scmp.eq.s32.totalorder %s50, 0
      %p83 = por %p81, %p82
      %p84 = scmp.ne.s32.totalorder %s70, %s71
      %p85 = scmp.eq.s32.totalorder %s51, 7
      %p86 = por %p84, %p85
      %p88 = scmp.ne.s32.totalorder %s71, %s87
      %p89 = scmp.eq.s32.totalorder %s51, 0
      %p90 = por %p88, %p89
      %s92 = sadd.s32 %s91, 1
      %p95 = scmp.eq.s32.totalorder %s45, 7
      %p96 = scmp.ne.s32.totalorder %s91, %s93
      %p97 = scmp.eq.s32.totalorder %s45, 0
      %p98 = por %p96, %p97
      %p99 = scmp.ne.s32.totalorder %s91, %s93
      %p100 = scmp.eq.s32.totalorder %s50, 7
      %p101 = por %p99, %p100
      %p102 = scmp.ne.s32.totalorder %s93, %s94
      %p103 = scmp.eq.s32.totalorder %s50, 0
      %p104 = por %p102, %p103
      %p105 = scmp.ne.s32.totalorder %s93, %s94
      %p106 = scmp.eq.s32.totalorder %s51, 7
      %p107 = por %p105, %p106
      %p109 = scmp.ne.s32.totalorder %s94, %s108
      %p110 = scmp.eq.s32.totalorder %s51, 0
      %p111 = por %p109, %p110
      %s113 = sadd.s32 %s112, 1
      %p116 = scmp.eq.s32.totalorder %s45, 7
      %p117 = scmp.ne.s32.totalorder %s112, %s114
      %p118 = scmp.eq.s32.totalorder %s45, 0
      %p119 = por %p117, %p118
      %p120 = scmp.ne.s32.totalorder %s112, %s114
      %p121 = scmp.eq.s32.totalorder %s50, 7
      %p122 = por %p120, %p121
      %p123 = scmp.ne.s32.totalorder %s114, %s115
      %p124 = scmp.eq.s32.totalorder %s50, 0
      %p125 = por %p123, %p124
      %p126 = scmp.ne.s32.totalorder %s114, %s115
      %p127 = scmp.eq.s32.totalorder %s51, 7
      %p128 = por %p126, %p127
      %p130 = scmp.ne.s32.totalorder %s115, %s129
      %p131 = scmp.eq.s32.totalorder %s51, 0
      %p132 = por %p130, %p131
      %s134 = sadd.s32 %s133, 1
      %p137 = scmp.eq.s32.totalorder %s45, 7
      %p138 = scmp.ne.s32.totalorder %s133, %s135
      %p139 = scmp.eq.s32.totalorder %s45, 0
      %p140 = por %p138, %p139
      %p141 = scmp.ne.s32.totalorder %s133, %s135
      %p142 = scmp.eq.s32.totalorder %s50, 7
      %p143 = por %p141, %p142
      %p144 = scmp.ne.s32.totalorder %s135, %s136
      %p145 = scmp.eq.s32.totalorder %s50, 0
      %p146 = por %p144, %p145
      %p147 = scmp.ne.s32.totalorder %s135, %s136
      %p148 = scmp.eq.s32.totalorder %s51, 7
      %p149 = por %p147, %p148
      %p151 = scmp.ne.s32.totalorder %s136, %s150
      %p152 = scmp.eq.s32.totalorder %s51, 0
      %p153 = por %p151, %p152
      %s155 = sadd.s32 %s154, 1
      %p158 = scmp.eq.s32.totalorder %s45, 7
      %p159 = scmp.ne.s32.totalorder %s154, %s156
      %p160 = scmp.eq.s32.totalorder %s45, 0
      %p161 = por %p159, %p160
      %p162 = scmp.ne.s32.totalorder %s154, %s156
      %p163 = scmp.eq.s32.totalorder %s50, 7
      %p164 = por %p162, %p163
      %p165 = scmp.ne.s32.totalorder %s156, %s157
      %p166 = scmp.eq.s32.totalorder %s50, 0
      %p167 = por %p165, %p166
      %p168 = scmp.ne.s32.totalorder %s156, %s157
      %p169 = scmp.eq.s32.totalorder %s51, 7
      %p170 = por %p168, %p169
      %p172 = scmp.ne.s32.totalorder %s157, %s171
      %p173 = scmp.eq.s32.totalorder %s51, 0
      %p174 = por %p172, %p173
      %s176 = sadd.s32 %s175, 1
      %p179 = scmp.eq.s32.totalorder %s45, 7
      %p180 = scmp.ne.s32.totalorder %s175, %s177
      %p181 = scmp.eq.s32.totalorder %s45, 0
      %p182 = por %p180, %p181
      %p183 = scmp.ne.s32.totalorder %s175, %s177
      %p184 = scmp.eq.s32.totalorder %s50, 7
      %p185 = por %p183, %p184
      %p186 = scmp.ne.s32.totalorder %s177, %s178
      %p187 = scmp.eq.s32.totalorder %s50, 0
      %p188 = por %p186, %p187
      %p189 = scmp.ne.s32.totalorder %s177, %s178
      %p190 = scmp.eq.s32.totalorder %s51, 7
      %p191 = por %p189, %p190
      %p193 = scmp.ne.s32.totalorder %s178, %s192
      %p194 = scmp.eq.s32.totalorder %s51, 0
      %p195 = por %p193, %p194
      %s197 = sadd.s32 %s196, 1
      %p200 = scmp.eq.s32.totalorder %s45, 7
      %p201 = scmp.ne.s32.totalorder %s196, %s198
      %p202 = scmp.eq.s32.totalorder %s45, 0
      %p203 = por %p201, %p202
      %p204 = scmp.ne.s32.totalorder %s196, %s198
      %p205 = scmp.eq.s32.totalorder %s50, 7
      %p206 = por %p204, %p205
      %p207 = scmp.ne.s32.totalorder %s198, %s199
      %p208 = scmp.eq.s32.totalorder %s50, 0
      %p209 = por %p207, %p208
      %p210 = scmp.ne.s32.totalorder %s198, %s199
      %p211 = scmp.eq.s32.totalorder %s51, 7
      %p212 = por %p210, %p211
      %p214 = scmp.ne.s32.totalorder %s199, %s213
      %p215 = scmp.eq.s32.totalorder %s51, 0
      %p216 = por %p214, %p215
      %s218 = sadd.s32 %s217, 1
      %p221 = scmp.eq.s32.totalorder %s45, 7
      %p222 = scmp.ne.s32.totalorder %s217, %s219
      %p223 = scmp.eq.s32.totalorder %s45, 0
      %p224 = por %p222, %p223
      %p225 = scmp.ne.s32.totalorder %s217, %s219
      %p226 = scmp.eq.s32.totalorder %s50, 7
      %p227 = por %p225, %p226
      %p228 = scmp.ne.s32.totalorder %s219, %s220
      %p229 = scmp.eq.s32.totalorder %s50, 0
      %p230 = por %p228, %p229
      %p231 = scmp.ne.s32.totalorder %s219, %s220
      %p232 = scmp.eq.s32.totalorder %s51, 7
      %p233 = por %p231, %p232
      %p235 = scmp.ne.s32.totalorder %s220, %s234
      %p236 = scmp.eq.s32.totalorder %s51, 0
      %p237 = por %p235, %p236
      %s238 = ssub.s32 %s52, %s64
      %p239 = scmp.eq.s32.totalorder %s238, 0
      %s241 = sadd.s32 %s240, 1
      %s242 = scalar_select %p239, %s240, %s241
      %p245 = pneg %p239
      %p246 = scmp.eq.s32.totalorder %s45, 7
      %p247 = por %p245, %p246
      %p248 = scmp.ne.s32.totalorder %s240, %s243
      %p249 = scmp.eq.s32.totalorder %s45, 0
      %p250 = por %p248, %p249
      %p251 = scmp.ne.s32.totalorder %s240, %s243
      %p252 = scmp.eq.s32.totalorder %s50, 7
      %p253 = por %p251, %p252
      %p254 = scmp.ne.s32.totalorder %s243, %s244
      %p255 = scmp.eq.s32.totalorder %s50, 0
      %p256 = por %p254, %p255
      %p257 = scmp.ne.s32.totalorder %s243, %s244
      %p258 = scmp.eq.s32.totalorder %s51, 7
      %p259 = por %p257, %p258
      %p261 = scmp.ne.s32.totalorder %s244, %s260
      %p262 = scmp.eq.s32.totalorder %s51, 0
      %p263 = por %p261, %p262
      %s264 = ssub.s32 %s52, %s64
      %p265 = scmp.eq.s32.totalorder %s264, 0
      %s267 = sadd.s32 %s266, 1
      %s268 = scalar_select %p265, %s266, %s267
      %p271 = pneg %p265
      %p272 = scmp.eq.s32.totalorder %s45, 7
      %p273 = por %p271, %p272
      %p274 = scmp.ne.s32.totalorder %s266, %s269
      %p275 = scmp.eq.s32.totalorder %s45, 0
      %p276 = por %p274, %p275
      %p277 = scmp.ne.s32.totalorder %s266, %s269
      %p278 = scmp.eq.s32.totalorder %s50, 7
      %p279 = por %p277, %p278
      %p280 = scmp.ne.s32.totalorder %s269, %s270
      %p281 = scmp.eq.s32.totalorder %s50, 0
      %p282 = por %p280, %p281
      %p283 = scmp.ne.s32.totalorder %s269, %s270
      %p284 = scmp.eq.s32.totalorder %s51, 7
      %p285 = por %p283, %p284
      %p287 = scmp.ne.s32.totalorder %s270, %s286
      %p288 = scmp.eq.s32.totalorder %s51, 0
      %p289 = por %p287, %p288
      %s291 = sadd.s32 %s290, 1
      %p294 = scmp.eq.s32.totalorder %s45, 7
      %p295 = scmp.ne.s32.totalorder %s290, %s292
      %p296 = scmp.eq.s32.totalorder %s45, 0
      %p297 = por %p295, %p296
      %p298 = scmp.ne.s32.totalorder %s290, %s292
      %p299 = scmp.eq.s32.totalorder %s50, 7
      %p300 = por %p298, %p299
      %p301 = scmp.ne.s32.totalorder %s292, %s293
      %p302 = scmp.eq.s32.totalorder %s50, 0
      %p303 = por %p301, %p302
      %p304 = scmp.ne.s32.totalorder %s292, %s293
      %p305 = scmp.eq.s32.totalorder %s51, 7
      %p306 = por %p304, %p305
      %p308 = scmp.ne.s32.totalorder %s293, %s307
      %p309 = scmp.eq.s32.totalorder %s51, 0
      %p310 = por %p308, %p309
      %s312 = sadd.s32 %s311, 1
      %p315 = scmp.eq.s32.totalorder %s45, 7
      %p316 = scmp.ne.s32.totalorder %s311, %s313
      %p317 = scmp.eq.s32.totalorder %s45, 0
      %p318 = por %p316, %p317
      %p319 = scmp.ne.s32.totalorder %s311, %s313
      %p320 = scmp.eq.s32.totalorder %s50, 7
      %p321 = por %p319, %p320
      %p322 = scmp.ne.s32.totalorder %s313, %s314
      %p323 = scmp.eq.s32.totalorder %s50, 0
      %p324 = por %p322, %p323
      %p325 = scmp.ne.s32.totalorder %s313, %s314
      %p326 = scmp.eq.s32.totalorder %s51, 7
      %p327 = por %p325, %p326
      %p329 = scmp.ne.s32.totalorder %s314, %s328
      %p330 = scmp.eq.s32.totalorder %s51, 0
      %p331 = por %p329, %p330
      %s333 = sadd.s32 %s332, 1
      %p336 = scmp.eq.s32.totalorder %s45, 7
      %p337 = scmp.ne.s32.totalorder %s332, %s334
      %p338 = scmp.eq.s32.totalorder %s45, 0
      %p339 = por %p337, %p338
      %p340 = scmp.ne.s32.totalorder %s332, %s334
      %p341 = scmp.eq.s32.totalorder %s50, 7
      %p342 = por %p340, %p341
      %p343 = scmp.ne.s32.totalorder %s334, %s335
      %p344 = scmp.eq.s32.totalorder %s50, 0
      %p345 = por %p343, %p344
      %p346 = scmp.ne.s32.totalorder %s334, %s335
      %p347 = scmp.eq.s32.totalorder %s51, 7
      %p348 = por %p346, %p347
      %p350 = scmp.ne.s32.totalorder %s335, %s349
      %p351 = scmp.eq.s32.totalorder %s51, 0
      %p352 = por %p350, %p351
      %s354 = sadd.s32 %s353, 1
      %p357 = scmp.eq.s32.totalorder %s45, 7
      %p358 = scmp.ne.s32.totalorder %s353, %s355
      %p359 = scmp.eq.s32.totalorder %s45, 0
      %p360 = por %p358, %p359
      %p361 = scmp.ne.s32.totalorder %s353, %s355
      %p362 = scmp.eq.s32.totalorder %s50, 7
      %p363 = por %p361, %p362
      %p364 = scmp.ne.s32.totalorder %s355, %s356
      %p365 = scmp.eq.s32.totalorder %s50, 0
      %p366 = por %p364, %p365
      %p367 = scmp.ne.s32.totalorder %s355, %s356
      %p368 = scmp.eq.s32.totalorder %s51, 7
      %p369 = por %p367, %p368
      %p371 = scmp.ne.s32.totalorder %s356, %s370
      %p372 = scmp.eq.s32.totalorder %s51, 0
      %p373 = por %p371, %p372
      %s375 = sadd.s32 %s374, 1
      %p378 = scmp.eq.s32.totalorder %s45, 7
      %p379 = scmp.ne.s32.totalorder %s374, %s376
      %p380 = scmp.eq.s32.totalorder %s45, 0
      %p381 = por %p379, %p380
      %p382 = scmp.ne.s32.totalorder %s374, %s376
      %p383 = scmp.eq.s32.totalorder %s50, 7
      %p384 = por %p382, %p383
      %p385 = scmp.ne.s32.totalorder %s376, %s377
      %p386 = scmp.eq.s32.totalorder %s50, 0
      %p387 = por %p385, %p386
      %p388 = scmp.ne.s32.totalorder %s376, %s377
      %p389 = scmp.eq.s32.totalorder %s51, 7
      %p390 = por %p388, %p389
      %p392 = scmp.ne.s32.totalorder %s377, %s391
      %p393 = scmp.eq.s32.totalorder %s51, 0
      %p394 = por %p392, %p393
      %s396 = sadd.s32 %s395, 1
      %p399 = scmp.eq.s32.totalorder %s45, 7
      %p400 = scmp.ne.s32.totalorder %s395, %s397
      %p401 = scmp.eq.s32.totalorder %s45, 0
      %p402 = por %p400, %p401
      %p403 = scmp.ne.s32.totalorder %s395, %s397
      %p404 = scmp.eq.s32.totalorder %s50, 7
      %p405 = por %p403, %p404
      %p406 = scmp.ne.s32.totalorder %s397, %s398
      %p407 = scmp.eq.s32.totalorder %s50, 0
      %p408 = por %p406, %p407
      %p409 = scmp.ne.s32.totalorder %s397, %s398
      %p410 = scmp.eq.s32.totalorder %s51, 7
      %p411 = por %p409, %p410
      %p413 = scmp.ne.s32.totalorder %s398, %s412
      %p414 = scmp.eq.s32.totalorder %s51, 0
      %p415 = por %p413, %p414
      %s417 = sadd.s32 %s416, 1
      %p420 = scmp.eq.s32.totalorder %s45, 7
      %p421 = scmp.ne.s32.totalorder %s416, %s418
      %p422 = scmp.eq.s32.totalorder %s45, 0
      %p423 = por %p421, %p422
      %p424 = scmp.ne.s32.totalorder %s416, %s418
      %p425 = scmp.eq.s32.totalorder %s50, 7
      %p426 = por %p424, %p425
      %p427 = scmp.ne.s32.totalorder %s418, %s419
      %p428 = scmp.eq.s32.totalorder %s50, 0
      %p429 = por %p427, %p428
      %p430 = scmp.ne.s32.totalorder %s418, %s419
      %p431 = scmp.eq.s32.totalorder %s51, 7
      %p432 = por %p430, %p431
      %p434 = scmp.ne.s32.totalorder %s419, %s433
      %p435 = scmp.eq.s32.totalorder %s51, 0
      %p436 = por %p434, %p435
      %s437 = ssub.s32 %s53, %s60
      %p438 = scmp.eq.s32.totalorder %s437, 0
      %s440 = sadd.s32 %s439, 1
      %s441 = scalar_select %p438, %s439, %s440
      %p444 = pneg %p438
      %p445 = scmp.eq.s32.totalorder %s45, 7
      %p446 = por %p444, %p445
      %p447 = scmp.ne.s32.totalorder %s439, %s442
      %p448 = scmp.eq.s32.totalorder %s45, 0
      %p449 = por %p447, %p448
      %p450 = scmp.ne.s32.totalorder %s439, %s442
      %p451 = scmp.eq.s32.totalorder %s50, 7
      %p452 = por %p450, %p451
      %p453 = scmp.ne.s32.totalorder %s442, %s443
      %p454 = scmp.eq.s32.totalorder %s50, 0
      %p455 = por %p453, %p454
      %p456 = scmp.ne.s32.totalorder %s442, %s443
      %p457 = scmp.eq.s32.totalorder %s51, 7
      %p458 = por %p456, %p457
      %p460 = scmp.ne.s32.totalorder %s443, %s459
      %p461 = scmp.eq.s32.totalorder %s51, 0
      %p462 = por %p460, %p461
      %s463 = ssub.s32 %s53, %s60
      %p464 = scmp.eq.s32.totalorder %s463, 0
      %s466 = sadd.s32 %s465, 1
      %s467 = scalar_select %p464, %s465, %s466
      %p470 = pneg %p464
      %p471 = scmp.eq.s32.totalorder %s45, 7
      %p472 = por %p470, %p471
      %p473 = scmp.ne.s32.totalorder %s465, %s468
      %p474 = scmp.eq.s32.totalorder %s45, 0
      %p475 = por %p473, %p474
      %p476 = scmp.ne.s32.totalorder %s465, %s468
      %p477 = scmp.eq.s32.totalorder %s50, 7
      %p478 = por %p476, %p477
      %p479 = scmp.ne.s32.totalorder %s468, %s469
      %p480 = scmp.eq.s32.totalorder %s50, 0
      %p481 = por %p479, %p480
      %p482 = scmp.ne.s32.totalorder %s468, %s469
      %p483 = scmp.eq.s32.totalorder %s51, 7
      %p484 = por %p482, %p483
      %p486 = scmp.ne.s32.totalorder %s469, %s485
      %p487 = scmp.eq.s32.totalorder %s51, 0
      %p488 = por %p486, %p487
      %s489 = ssub.s32 %s53, %s60
      %p490 = scmp.eq.s32.totalorder %s489, 0
      %s492 = sadd.s32 %s491, 1
      %s493 = scalar_select %p490, %s491, %s492
      %p496 = pneg %p490
      %p497 = scmp.eq.s32.totalorder %s45, 7
      %p498 = por %p496, %p497
      %p499 = scmp.ne.s32.totalorder %s491, %s494
      %p500 = scmp.eq.s32.totalorder %s45, 0
      %p501 = por %p499, %p500
      %p502 = scmp.ne.s32.totalorder %s491, %s494
      %p503 = scmp.eq.s32.totalorder %s50, 7
      %p504 = por %p502, %p503
      %p505 = scmp.ne.s32.totalorder %s494, %s495
      %p506 = scmp.eq.s32.totalorder %s50, 0
      %p507 = por %p505, %p506
      %p508 = scmp.ne.s32.totalorder %s494, %s495
      %p509 = scmp.eq.s32.totalorder %s51, 7
      %p510 = por %p508, %p509
      %p512 = scmp.ne.s32.totalorder %s495, %s511
      %p513 = scmp.eq.s32.totalorder %s51, 0
      %p514 = por %p512, %p513
      %s516 = sadd.s32 %s515, 1
      %p519 = scmp.eq.s32.totalorder %s45, 7
      %p520 = scmp.ne.s32.totalorder %s515, %s517
      %p521 = scmp.eq.s32.totalorder %s45, 0
      %p522 = por %p520, %p521
      %p523 = scmp.ne.s32.totalorder %s515, %s517
      %p524 = scmp.eq.s32.totalorder %s50, 7
      %p525 = por %p523, %p524
      %p526 = scmp.ne.s32.totalorder %s517, %s518
      %p527 = scmp.eq.s32.totalorder %s50, 0
      %p528 = por %p526, %p527
      %p529 = scmp.ne.s32.totalorder %s517, %s518
      %p530 = scmp.eq.s32.totalorder %s51, 7
      %p531 = por %p529, %p530
      %p533 = scmp.ne.s32.totalorder %s518, %s532
      %p534 = scmp.eq.s32.totalorder %s51, 0
      %p535 = por %p533, %p534
      %s537 = sadd.s32 %s536, 1
      %p540 = scmp.eq.s32.totalorder %s45, 7
      %p541 = scmp.ne.s32.totalorder %s536, %s538
      %p542 = scmp.eq.s32.totalorder %s45, 0
      %p543 = por %p541, %p542
      %p544 = scmp.ne.s32.totalorder %s536, %s538
      %p545 = scmp.eq.s32.totalorder %s50, 7
      %p546 = por %p544, %p545
      %p547 = scmp.ne.s32.totalorder %s538, %s539
      %p548 = scmp.eq.s32.totalorder %s50, 0
      %p549 = por %p547, %p548
      %p550 = scmp.ne.s32.totalorder %s538, %s539
      %p551 = scmp.eq.s32.totalorder %s51, 7
      %p552 = por %p550, %p551
      %p554 = scmp.ne.s32.totalorder %s539, %s553
      %p555 = scmp.eq.s32.totalorder %s51, 0
      %p556 = por %p554, %p555
      %s558 = sadd.s32 %s557, 1
      %p561 = scmp.eq.s32.totalorder %s45, 7
      %p562 = scmp.ne.s32.totalorder %s557, %s559
      %p563 = scmp.eq.s32.totalorder %s45, 0
      %p564 = por %p562, %p563
      %p565 = scmp.ne.s32.totalorder %s557, %s559
      %p566 = scmp.eq.s32.totalorder %s50, 7
      %p567 = por %p565, %p566
      %p568 = scmp.ne.s32.totalorder %s559, %s560
      %p569 = scmp.eq.s32.totalorder %s50, 0
      %p570 = por %p568, %p569
      %p571 = scmp.ne.s32.totalorder %s559, %s560
      %p572 = scmp.eq.s32.totalorder %s51, 7
      %p573 = por %p571, %p572
      %p575 = scmp.ne.s32.totalorder %s560, %s574
      %p576 = scmp.eq.s32.totalorder %s51, 0
      %p577 = por %p575, %p576
      %s578 = ssub.s32 %s52, %s64
      %p579 = scmp.eq.s32.totalorder %s578, 0
      %s581 = sadd.s32 %s580, 1
      %s582 = scalar_select %p579, %s580, %s581
      %p585 = pneg %p579
      %p586 = scmp.eq.s32.totalorder %s45, 7
      %p587 = por %p585, %p586
      %p588 = scmp.ne.s32.totalorder %s580, %s583
      %p589 = scmp.eq.s32.totalorder %s45, 0
      %p590 = por %p588, %p589
      %p591 = scmp.ne.s32.totalorder %s580, %s583
      %p592 = scmp.eq.s32.totalorder %s50, 7
      %p593 = por %p591, %p592
      %p594 = scmp.ne.s32.totalorder %s583, %s584
      %p595 = scmp.eq.s32.totalorder %s50, 0
      %p596 = por %p594, %p595
      %p597 = scmp.ne.s32.totalorder %s583, %s584
      %p598 = scmp.eq.s32.totalorder %s51, 7
      %p599 = por %p597, %p598
      %p601 = scmp.ne.s32.totalorder %s584, %s600
      %p602 = scmp.eq.s32.totalorder %s51, 0
      %p603 = por %p601, %p602
      %p604 = scmp.le.s32.totalorder 1, %s45
      %p605 = scmp.lt.s32.totalorder %s45, 9
      %p606 = pnand %p604, %p605
      %p607 = pneg %p606
      // Predicated region
      $region9: #{tpu_custom_call.1} parent=5 // pred_check
        _
      $region10: #{tpu_custom_call.1} parent=5 // pred_check_branch
        %609 = sbr.rel (%p606) target = $region12
      $region11: #{tpu_custom_call.1} parent=5 // pred_region
        %s610 = ssub.s32 %s45, 1
        // Predicated region
        $region13: #{tpu_custom_call.1} parent=11 // pred_check
          %p611 = pneg %p104
        $region14: #{tpu_custom_call.1} parent=11 // pred_check_branch
          %613 = sbr.rel (%p611) target = $region16
        $region15: #{tpu_custom_call.1} parent=11 // pred_region
          %s615 = ssub.s32 8192, 8192
          %616 = vsyncadd [#allocation9], %s615
          %s617 = sshll.u32 [#allocation8], 4
          %s618 = int_to_ptr.vmem [resolvable:$true] %s617
          %623 = dma.hbm_to_vmem [thread:$0]  %s1, 8192, %s618, [#allocation9], 256, 256, 16
        $region16: #{tpu_custom_call.1} parent=11 // pred_fallthru
          _
        // Predicated region
        $region17: #{tpu_custom_call.1} parent=11 // pred_check
          %p624 = pneg %p125
        $region18: #{tpu_custom_call.1} parent=11 // pred_check_branch
          %626 = sbr.rel (%p624) target = $region20
        $region19: #{tpu_custom_call.1} parent=11 // pred_region
          %s628 = ssub.s32 8192, 8192
          %629 = vsyncadd [#allocation9], %s628
          %s630 = sshll.u32 [#allocation10], 4
          %s631 = int_to_ptr.vmem [resolvable:$true] %s630
          %636 = dma.hbm_to_vmem [thread:$0]  %s2, 8192, %s631, [#allocation9], 256, 256, 16
        $region20: #{tpu_custom_call.1} parent=11 // pred_fallthru
          _
        // Predicated region
        $region21: #{tpu_custom_call.1} parent=11 // pred_check
          %p637 = pneg %p146
        $region22: #{tpu_custom_call.1} parent=11 // pred_check_branch
          %639 = sbr.rel (%p637) target = $region24
        $region23: #{tpu_custom_call.1} parent=11 // pred_region
          %s641 = ssub.s32 8192, 8192
          %642 = vsyncadd [#allocation12], %s641
          %s643 = sshll.u32 [#allocation11], 4
          %s644 = int_to_ptr.vmem [resolvable:$true] %s643
          %649 = dma.hbm_to_vmem [thread:$0]  %s3, 8192, %s644, [#allocation12], 256, 256, 16
        $region24: #{tpu_custom_call.1} parent=11 // pred_fallthru
          _
        // Predicated region
        $region25: #{tpu_custom_call.1} parent=11 // pred_check
          %p650 = pneg %p167
        $region26: #{tpu_custom_call.1} parent=11 // pred_check_branch
          %652 = sbr.rel (%p650) target = $region28
        $region27: #{tpu_custom_call.1} parent=11 // pred_region
          %s654 = ssub.s32 8192, 8192
          %655 = vsyncadd [#allocation12], %s654
          %s656 = sshll.u32 [#allocation13], 4
          %s657 = int_to_ptr.vmem [resolvable:$true] %s656
          %662 = dma.hbm_to_vmem [thread:$0]  %s4, 8192, %s657, [#allocation12], 256, 256, 16
        $region28: #{tpu_custom_call.1} parent=11 // pred_fallthru
          _
        // Predicated region
        $region29: #{tpu_custom_call.1} parent=11 // pred_check
          %p663 = pneg %p188
        $region30: #{tpu_custom_call.1} parent=11 // pred_check_branch
          %665 = sbr.rel (%p663) target = $region32
        $region31: #{tpu_custom_call.1} parent=11 // pred_region
          _
        $region32: #{tpu_custom_call.1} parent=11 // pred_fallthru
          _
        // Predicated region
        $region33: #{tpu_custom_call.1} parent=11 // pred_check
          %p666 = pneg %p209
        $region34: #{tpu_custom_call.1} parent=11 // pred_check_branch
          %668 = sbr.rel (%p666) target = $region36
        $region35: #{tpu_custom_call.1} parent=11 // pred_region
          %s670 = ssub.s32 32, 32
          %671 = vsyncadd [#allocation15], %s670
          %s673 = sshll.u32 [#allocation14], 4
          %s674 = int_to_ptr.vmem [resolvable:$true] %s673
          %676 = dma.hbm_to_vmem [thread:$0]  %s6, 32, %s674, [#allocation15]
        $region36: #{tpu_custom_call.1} parent=11 // pred_fallthru
          _
        // Predicated region
        $region37: #{tpu_custom_call.1} parent=11 // pred_check
          %p677 = pneg %p230
        $region38: #{tpu_custom_call.1} parent=11 // pred_check_branch
          %679 = sbr.rel (%p677) target = $region40
        $region39: #{tpu_custom_call.1} parent=11 // pred_region
          %s681 = ssub.s32 32, 32
          %682 = vsyncadd [#allocation15], %s681
          %s684 = sshll.u32 [#allocation16], 4
          %s685 = int_to_ptr.vmem [resolvable:$true] %s684
          %687 = dma.hbm_to_vmem [thread:$0]  %s7, 32, %s685, [#allocation15]
        $region40: #{tpu_custom_call.1} parent=11 // pred_fallthru
          _
        // Predicated region
        $region41: #{tpu_custom_call.1} parent=11 // pred_check
          %p688 = pneg %p303
        $region42: #{tpu_custom_call.1} parent=11 // pred_check_branch
          %690 = sbr.rel (%p688) target = $region44
        $region43: #{tpu_custom_call.1} parent=11 // pred_region
          %s692 = ssub.s32 4096, 4096
          %693 = vsyncadd [#allocation18], %s692
          %s694 = sshll.u32 [#allocation19], 4
          %s695 = int_to_ptr.vmem [resolvable:$true] %s694
          %700 = dma.hbm_to_vmem [thread:$0]  %s10, 4096, %s695, [#allocation18], 128, 128, 8
        $region44: #{tpu_custom_call.1} parent=11 // pred_fallthru
          _
        // Predicated region
        $region45: #{tpu_custom_call.1} parent=11 // pred_check
          %p701 = pneg %p324
        $region46: #{tpu_custom_call.1} parent=11 // pred_check_branch
          %703 = sbr.rel (%p701) target = $region48
        $region47: #{tpu_custom_call.1} parent=11 // pred_region
          %s705 = ssub.s32 4096, 4096
          %706 = vsyncadd [#allocation21], %s705
          %s707 = sshll.u32 [#allocation20], 4
          %s708 = int_to_ptr.vmem [resolvable:$true] %s707
          %713 = dma.hbm_to_vmem [thread:$0]  %s11, 4096, %s708, [#allocation21], 128, 128, 8
        $region48: #{tpu_custom_call.1} parent=11 // pred_fallthru
          _
        // Predicated region
        $region49: #{tpu_custom_call.1} parent=11 // pred_check
          %p714 = pneg %p345
        $region50: #{tpu_custom_call.1} parent=11 // pred_check_branch
          %716 = sbr.rel (%p714) target = $region52
        $region51: #{tpu_custom_call.1} parent=11 // pred_region
          %s718 = ssub.s32 8192, 8192
          %719 = vsyncadd [#allocation21], %s718
          %s720 = sshll.u32 [#allocation22], 4
          %s721 = int_to_ptr.vmem [resolvable:$true] %s720
          %726 = dma.hbm_to_vmem [thread:$0]  %s12, 8192, %s721, [#allocation21], 256, 256, 16
        $region52: #{tpu_custom_call.1} parent=11 // pred_fallthru
          _
        // Predicated region
        $region53: #{tpu_custom_call.1} parent=11 // pred_check
          %p727 = pneg %p366
        $region54: #{tpu_custom_call.1} parent=11 // pred_check_branch
          %729 = sbr.rel (%p727) target = $region56
        $region55: #{tpu_custom_call.1} parent=11 // pred_region
          _
        $region56: #{tpu_custom_call.1} parent=11 // pred_fallthru
          _
        // Predicated region
        $region57: #{tpu_custom_call.1} parent=11 // pred_check
          %p730 = pneg %p387
        $region58: #{tpu_custom_call.1} parent=11 // pred_check_branch
          %732 = sbr.rel (%p730) target = $region60
        $region59: #{tpu_custom_call.1} parent=11 // pred_region
          _
        $region60: #{tpu_custom_call.1} parent=11 // pred_fallthru
          _
        // Predicated region
        $region61: #{tpu_custom_call.1} parent=11 // pred_check
          %p733 = pneg %p408
        $region62: #{tpu_custom_call.1} parent=11 // pred_check_branch
          %735 = sbr.rel (%p733) target = $region64
        $region63: #{tpu_custom_call.1} parent=11 // pred_region
          _
        $region64: #{tpu_custom_call.1} parent=11 // pred_fallthru
          _
        // Predicated region
        $region65: #{tpu_custom_call.1} parent=11 // pred_check
          %p736 = pneg %p429
        $region66: #{tpu_custom_call.1} parent=11 // pred_check_branch
          %738 = sbr.rel (%p736) target = $region68
        $region67: #{tpu_custom_call.1} parent=11 // pred_region
          _
        $region68: #{tpu_custom_call.1} parent=11 // pred_fallthru
          _
        // Predicated region
        $region69: #{tpu_custom_call.1} parent=11 // pred_check
          %p739 = pneg %p528
        $region70: #{tpu_custom_call.1} parent=11 // pred_check_branch
          %741 = sbr.rel (%p739) target = $region72
        $region71: #{tpu_custom_call.1} parent=11 // pred_region
          _
        $region72: #{tpu_custom_call.1} parent=11 // pred_fallthru
          _
        // Predicated region
        $region73: #{tpu_custom_call.1} parent=11 // pred_check
          %p742 = pneg %p549
        $region74: #{tpu_custom_call.1} parent=11 // pred_check_branch
          %744 = sbr.rel (%p742) target = $region76
        $region75: #{tpu_custom_call.1} parent=11 // pred_region
          _
        $region76: #{tpu_custom_call.1} parent=11 // pred_fallthru
          _
        // Predicated region
        $region77: #{tpu_custom_call.1} parent=11 // pred_check
          %p745 = pneg %p570
        $region78: #{tpu_custom_call.1} parent=11 // pred_check_branch
          %747 = sbr.rel (%p745) target = $region80
        $region79: #{tpu_custom_call.1} parent=11 // pred_region
          _
        $region80: #{tpu_custom_call.1} parent=11 // pred_fallthru
          _
      $region12: #{tpu_custom_call.1} parent=5 // pred_fallthru
        _
      %p748 = scmp.lt.s32.totalorder %s45, 8
      // Predicated region
      $region81: #{tpu_custom_call.1} parent=5 // pred_check
        %p749 = pneg %p748
      $region82: #{tpu_custom_call.1} parent=5 // pred_check_branch
        %751 = sbr.rel (%p749) target = $region84
      $region83: #{tpu_custom_call.1} parent=5 // pred_region
        // Predicated region
        $region85: #{tpu_custom_call.1} parent=83 // pred_check
          %p752 = pneg %p77
        $region86: #{tpu_custom_call.1} parent=83 // pred_check_branch
          %754 = sbr.rel (%p752) target = $region88
        $region87: #{tpu_custom_call.1} parent=83 // pred_region
          %s755 = sand.u32 %s67, 1
          %s756 = scalar_lea.sflag [#allocation6], %s755
          %s757 = sand.u32 %s67, 1
          %s758 = smul.addr %s757, 256
          %s759 = scalar_lea.vmem [#allocation5], %s758
          %s760 = smul.u32 16, %s52
          %s762 = ssub.s32 4096, 4096
          %763 = vsyncadd %s756, %s762
          %s764 = smul.addr %s760, 2
          %s765 = smul.addr %s764, 128
          %s766 = scalar_lea.hbm %s0, %s765
          %s767 = sshll.u32 %s759, 4
          %s768 = int_to_ptr.vmem [resolvable:$true] %s767
          %773 = dma.hbm_to_vmem [thread:$0]  %s766, 4096, %s768, %s756, 256, 256, 16
        $region88: #{tpu_custom_call.1} parent=83 // pred_fallthru
          _
        // Predicated region
        $region89: #{tpu_custom_call.1} parent=83 // pred_check
          %p774 = pneg %p250
        $region90: #{tpu_custom_call.1} parent=83 // pred_check_branch
          %776 = sbr.rel (%p774) target = $region92
        $region91: #{tpu_custom_call.1} parent=83 // pred_region
          %s777 = smul.u32 16, %s52
          %p778 = scmp.lt.s32.totalorder %s777, 31
          %s779 = scalar_select %p778, %s777, 31
          %s780 = smul.addr %s779, 8
          %s781 = scalar_lea.vmem %s8, %s780
          %s782 = smul.u32 16, %s52
        $region92: #{tpu_custom_call.1} parent=83 // pred_fallthru
          _
        // Predicated region
        $region93: #{tpu_custom_call.1} parent=83 // pred_check
          %p783 = pneg %p276
        $region94: #{tpu_custom_call.1} parent=83 // pred_check_branch
          %785 = sbr.rel (%p783) target = $region96
        $region95: #{tpu_custom_call.1} parent=83 // pred_region
          %s786 = sand.u32 %s45, 1
          %s787 = scalar_lea.sflag [#allocation18], %s786
          %s788 = sand.u32 %s266, 1
          %s789 = smul.addr %s788, 128
          %s790 = scalar_lea.vmem [#allocation17], %s789
          %s791 = smul.u32 16, %s52
          %s793 = ssub.s32 2048, 2048
          %794 = vsyncadd %s787, %s793
          %s795 = smul.addr %s791, 128
          %s796 = scalar_lea.hbm %s9, %s795
          %s797 = sshll.u32 %s790, 4
          %s798 = int_to_ptr.vmem [resolvable:$true] %s797
          %803 = dma.hbm_to_vmem [thread:$0]  %s796, 2048, %s798, %s787, 128, 128, 8
        $region96: #{tpu_custom_call.1} parent=83 // pred_fallthru
          _
        // Predicated region
        $region97: #{tpu_custom_call.1} parent=83 // pred_check
          %p804 = pneg %p449
        $region98: #{tpu_custom_call.1} parent=83 // pred_check_branch
          %806 = sbr.rel (%p804) target = $region100
        $region99: #{tpu_custom_call.1} parent=83 // pred_region
          %s807 = sand.u32 %s45, 1
          %s808 = scalar_lea.sflag [#allocation24], %s807
          %s809 = sand.u32 %s439, 1
          %s810 = smul.addr %s809, 512
          %s811 = scalar_lea.vmem [#allocation23], %s810
          %s812 = smul.u32 2, %s53
          %s814 = ssub.s32 8192, 8192
          %815 = vsyncadd %s808, %s814
          %s816 = smul.addr %s812, 128
          %s817 = scalar_lea.hbm %s17, %s816
          %s818 = sshll.u32 %s811, 4
          %s819 = int_to_ptr.vmem [resolvable:$true] %s818
          %824 = dma.hbm_to_vmem [thread:$0]  %s817, 8192, %s819, %s808, 1024, 256, 16
        $region100: #{tpu_custom_call.1} parent=83 // pred_fallthru
          _
        // Predicated region
        $region101: #{tpu_custom_call.1} parent=83 // pred_check
          %p825 = pneg %p475
        $region102: #{tpu_custom_call.1} parent=83 // pred_check_branch
          %827 = sbr.rel (%p825) target = $region104
        $region103: #{tpu_custom_call.1} parent=83 // pred_region
          %s828 = sand.u32 %s45, 1
          %s829 = scalar_lea.sflag [#allocation24], %s828
          %s830 = sand.u32 %s465, 1
          %s831 = smul.addr %s830, 512
          %s832 = scalar_lea.vmem [#allocation25], %s831
          %s833 = smul.u32 32, %s53
          %s835 = ssub.s32 8192, 8192
          %836 = vsyncadd %s829, %s835
          %s837 = smul.addr %s833, 2
          %s838 = smul.addr %s837, 128
          %s839 = scalar_lea.hbm %s18, %s838
          %s840 = sshll.u32 %s832, 4
          %s841 = int_to_ptr.vmem [resolvable:$true] %s840
          %846 = dma.hbm_to_vmem [thread:$0]  %s839, 8192, %s841, %s829, 256, 256, 16
        $region104: #{tpu_custom_call.1} parent=83 // pred_fallthru
          _
        // Predicated region
        $region105: #{tpu_custom_call.1} parent=83 // pred_check
          %p847 = pneg %p501
        $region106: #{tpu_custom_call.1} parent=83 // pred_check_branch
          %849 = sbr.rel (%p847) target = $region108
        $region107: #{tpu_custom_call.1} parent=83 // pred_region
          %s850 = smul.u32 2, %s53
          %p851 = scmp.lt.s32.totalorder %s850, 7
          %s852 = scalar_select %p851, %s850, 7
          %s853 = smul.addr %s852, 4
          %s854 = scalar_lea.vmem %s19, %s853
          %s855 = smul.u32 2, %s53
        $region108: #{tpu_custom_call.1} parent=83 // pred_fallthru
          _
      $region84: #{tpu_custom_call.1} parent=5 // pred_fallthru
        _
      %p856 = scmp.le.s32.totalorder 1, %s45
      %p857 = scmp.lt.s32.totalorder %s45, 9
      %p858 = pnand %p856, %p857
      %p859 = pneg %p858
      // Predicated region
      $region109: #{tpu_custom_call.1} parent=5 // pred_check
        _
      $region110: #{tpu_custom_call.1} parent=5 // pred_check_branch
        %861 = sbr.rel (%p858) target = $region112
      $region111: #{tpu_custom_call.1} parent=5 // pred_region
        %s862 = ssub.s32 %s45, 1
        %s863 = sand.u32 %s70, 1
        %s864 = scalar_lea.sflag [#allocation6], %s863
        %s865 = sand.u32 %s70, 1
        %s866 = smul.addr %s865, 256
        %s867 = scalar_lea.vmem [#allocation5], %s866
        // Predicated region
        $region113: #{tpu_custom_call.1} parent=111 // pred_check
          %p868 = pneg %p83
        $region114: #{tpu_custom_call.1} parent=111 // pred_check_branch
          %870 = sbr.rel (%p868) target = $region116
        $region115: #{tpu_custom_call.1} parent=111 // pred_region
          %871 = dma.done %s864, 4096
        $region116: #{tpu_custom_call.1} parent=111 // pred_fallthru
          _
        // Predicated region
        $region117: #{tpu_custom_call.1} parent=111 // pred_check
          %p872 = pneg %p104
        $region118: #{tpu_custom_call.1} parent=111 // pred_check_branch
          %874 = sbr.rel (%p872) target = $region120
        $region119: #{tpu_custom_call.1} parent=111 // pred_region
          %875 = dma.done [#allocation9], 8192
        $region120: #{tpu_custom_call.1} parent=111 // pred_fallthru
          _
        // Predicated region
        $region121: #{tpu_custom_call.1} parent=111 // pred_check
          %p876 = pneg %p125
        $region122: #{tpu_custom_call.1} parent=111 // pred_check_branch
          %878 = sbr.rel (%p876) target = $region124
        $region123: #{tpu_custom_call.1} parent=111 // pred_region
          %879 = dma.done [#allocation9], 8192
        $region124: #{tpu_custom_call.1} parent=111 // pred_fallthru
          _
        // Predicated region
        $region125: #{tpu_custom_call.1} parent=111 // pred_check
          %p880 = pneg %p146
        $region126: #{tpu_custom_call.1} parent=111 // pred_check_branch
          %882 = sbr.rel (%p880) target = $region128
        $region127: #{tpu_custom_call.1} parent=111 // pred_region
          %883 = dma.done [#allocation12], 8192
        $region128: #{tpu_custom_call.1} parent=111 // pred_fallthru
          _
        // Predicated region
        $region129: #{tpu_custom_call.1} parent=111 // pred_check
          %p884 = pneg %p167
        $region130: #{tpu_custom_call.1} parent=111 // pred_check_branch
          %886 = sbr.rel (%p884) target = $region132
        $region131: #{tpu_custom_call.1} parent=111 // pred_region
          %887 = dma.done [#allocation12], 8192
        $region132: #{tpu_custom_call.1} parent=111 // pred_fallthru
          _
        // Predicated region
        $region133: #{tpu_custom_call.1} parent=111 // pred_check
          %p888 = pneg %p209
        $region134: #{tpu_custom_call.1} parent=111 // pred_check_branch
          %890 = sbr.rel (%p888) target = $region136
        $region135: #{tpu_custom_call.1} parent=111 // pred_region
          %891 = dma.done [#allocation15], 32
        $region136: #{tpu_custom_call.1} parent=111 // pred_fallthru
          _
        // Predicated region
        $region137: #{tpu_custom_call.1} parent=111 // pred_check
          %p892 = pneg %p230
        $region138: #{tpu_custom_call.1} parent=111 // pred_check_branch
          %894 = sbr.rel (%p892) target = $region140
        $region139: #{tpu_custom_call.1} parent=111 // pred_region
          %895 = dma.done [#allocation15], 32
        $region140: #{tpu_custom_call.1} parent=111 // pred_fallthru
          _
        %s896 = sand.u32 %s50, 1
        %s897 = scalar_lea.sflag [#allocation18], %s896
        %s898 = sand.u32 %s269, 1
        %s899 = smul.addr %s898, 128
        %s900 = scalar_lea.vmem [#allocation17], %s899
        // Predicated region
        $region141: #{tpu_custom_call.1} parent=111 // pred_check
          %p901 = pneg %p282
        $region142: #{tpu_custom_call.1} parent=111 // pred_check_branch
          %903 = sbr.rel (%p901) target = $region144
        $region143: #{tpu_custom_call.1} parent=111 // pred_region
          %904 = dma.done %s897, 2048
        $region144: #{tpu_custom_call.1} parent=111 // pred_fallthru
          _
        // Predicated region
        $region145: #{tpu_custom_call.1} parent=111 // pred_check
          %p905 = pneg %p303
        $region146: #{tpu_custom_call.1} parent=111 // pred_check_branch
          %907 = sbr.rel (%p905) target = $region148
        $region147: #{tpu_custom_call.1} parent=111 // pred_region
          %908 = dma.done [#allocation18], 4096
        $region148: #{tpu_custom_call.1} parent=111 // pred_fallthru
          _
        // Predicated region
        $region149: #{tpu_custom_call.1} parent=111 // pred_check
          %p909 = pneg %p324
        $region150: #{tpu_custom_call.1} parent=111 // pred_check_branch
          %911 = sbr.rel (%p909) target = $region152
        $region151: #{tpu_custom_call.1} parent=111 // pred_region
          %912 = dma.done [#allocation21], 4096
        $region152: #{tpu_custom_call.1} parent=111 // pred_fallthru
          _
        // Predicated region
        $region153: #{tpu_custom_call.1} parent=111 // pred_check
          %p913 = pneg %p345
        $region154: #{tpu_custom_call.1} parent=111 // pred_check_branch
          %915 = sbr.rel (%p913) target = $region156
        $region155: #{tpu_custom_call.1} parent=111 // pred_region
          %916 = dma.done [#allocation21], 8192
        $region156: #{tpu_custom_call.1} parent=111 // pred_fallthru
          _
        %s917 = sand.u32 %s50, 1
        %s918 = scalar_lea.sflag [#allocation24], %s917
        %s919 = sand.u32 %s442, 1
        %s920 = smul.addr %s919, 512
        %s921 = scalar_lea.vmem [#allocation23], %s920
        // Predicated region
        $region157: #{tpu_custom_call.1} parent=111 // pred_check
          %p922 = pneg %p455
        $region158: #{tpu_custom_call.1} parent=111 // pred_check_branch
          %924 = sbr.rel (%p922) target = $region160
        $region159: #{tpu_custom_call.1} parent=111 // pred_region
          %925 = dma.done %s918, 8192
        $region160: #{tpu_custom_call.1} parent=111 // pred_fallthru
          _
        %s926 = sand.u32 %s50, 1
        %s927 = scalar_lea.sflag [#allocation24], %s926
        %s928 = sand.u32 %s468, 1
        %s929 = smul.addr %s928, 512
        %s930 = scalar_lea.vmem [#allocation25], %s929
        // Predicated region
        $region161: #{tpu_custom_call.1} parent=111 // pred_check
          %p931 = pneg %p481
        $region162: #{tpu_custom_call.1} parent=111 // pred_check_branch
          %933 = sbr.rel (%p931) target = $region164
        $region163: #{tpu_custom_call.1} parent=111 // pred_region
          %934 = dma.done %s927, 8192
        $region164: #{tpu_custom_call.1} parent=111 // pred_fallthru
          _
        %s935 = sand.u32 %s70, 1
        %s936 = scalar_lea.sflag [#allocation6], %s935
        %s937 = sand.u32 %s70, 1
        %s938 = smul.addr %s937, 256
        %s939 = scalar_lea.vmem [#allocation5], %s938
        %p940 = pneg %p83
        %p941 = pneg %p80
        %p942 = pneg %p104
        %p943 = pneg %p101
        %p944 = pneg %p125
        %p945 = pneg %p122
        %p946 = pneg %p146
        %p947 = pneg %p143
        %p948 = pneg %p167
        %p949 = pneg %p164
        %p950 = pneg %p188
        %p951 = pneg %p185
        %p952 = pneg %p209
        %p953 = pneg %p206
        %p954 = pneg %p230
        %p955 = pneg %p227
        %s956 = smul.u32 16, %s54
        %p957 = scmp.lt.s32.totalorder %s956, 31
        %s958 = scalar_select %p957, %s956, 31
        %s959 = smul.addr %s958, 8
        %s960 = scalar_lea.vmem %s8, %s959
        %p961 = pneg %p256
        %p962 = pneg %p253
        %s963 = sand.u32 %s50, 1
        %s964 = scalar_lea.sflag [#allocation18], %s963
        %s965 = sand.u32 %s269, 1
        %s966 = smul.addr %s965, 128
        %s967 = scalar_lea.vmem [#allocation17], %s966
        %p968 = pneg %p282
        %p969 = pneg %p279
        %p970 = pneg %p303
        %p971 = pneg %p300
        %p972 = pneg %p324
        %p973 = pneg %p321
        %p974 = pneg %p345
        %p975 = pneg %p342
        %p976 = pneg %p366
        %p977 = pneg %p363
        %p978 = pneg %p387
        %p979 = pneg %p384
        %p980 = pneg %p408
        %p981 = pneg %p405
        %p982 = pneg %p429
        %p983 = pneg %p426
        %s984 = sand.u32 %s50, 1
        %s985 = scalar_lea.sflag [#allocation24], %s984
        %s986 = sand.u32 %s442, 1
        %s987 = smul.addr %s986, 512
        %s988 = scalar_lea.vmem [#allocation23], %s987
        %p989 = pneg %p455
        %p990 = pneg %p452
        %s991 = sand.u32 %s50, 1
        %s992 = scalar_lea.sflag [#allocation24], %s991
        %s993 = sand.u32 %s468, 1
        %s994 = smul.addr %s993, 512
        %s995 = scalar_lea.vmem [#allocation25], %s994
        %p996 = pneg %p481
        %p997 = pneg %p478
        %s998 = smul.u32 2, %s55
        %p999 = scmp.lt.s32.totalorder %s998, 7
        %s1000 = scalar_select %p999, %s998, 7
        %s1001 = smul.addr %s1000, 4
        %s1002 = scalar_lea.vmem %s19, %s1001
        %p1003 = pneg %p507
        %p1004 = pneg %p504
        %p1005 = pneg %p528
        %p1006 = pneg %p525
        %p1007 = pneg %p549
        %p1008 = pneg %p546
        %p1009 = pneg %p570
        %p1010 = pneg %p567
        %p1011 = pneg %p596
        %p1012 = pneg %p593
        %s1013 = sand.u32 %s583, 1
        %s1014 = scalar_lea.sflag [#allocation7], %s1013
        %s1015 = sand.u32 %s583, 1
        %s1016 = smul.addr %s1015, 256
        %s1017 = scalar_lea.vmem [#allocation26], %s1016
        %s1018 = smul.u32 16, %s54
        %s1019 = smul.u32 16, %s54
        %p1020 = scmp.lt.s32.totalorder %s1019, 31
        %s1021 = scalar_select %p1020, %s1019, 31
        %s1022 = smul.addr %s1021, 8
        %s1023 = scalar_lea.vmem %s8, %s1022
        %s1024 = smul.u32 16, %s54
        %s1025 = smul.u32 16, %s54
        %s1026 = smul.u32 2, %s55
        %s1027 = smul.u32 32, %s55
        %s1028 = smul.u32 2, %s55
        %p1029 = scmp.lt.s32.totalorder %s1028, 7
        %s1030 = scalar_select %p1029, %s1028, 7
        %s1031 = smul.addr %s1030, 4
        %s1032 = scalar_lea.vmem %s19, %s1031
        %s1033 = smul.u32 2, %s55
        %s1034 = smul.u32 16, %s54
        %p1035 = scmp.eq.s32.totalorder %s55, 0
        // Predicated region
        $region165: #{tpu_custom_call.1} parent=111 // pred_check
          %p1036 = pneg %p1035
        $region166: #{tpu_custom_call.1} parent=111 // pred_check_branch
          %1038 = sbr.rel (%p1036) target = $region168
        $region167: #{tpu_custom_call.1} parent=111 // pred_region
          %v1039 = vld [vmem:[%s867] sm:$0xff]
          %v1040 = vld [vmem:[%s867 + $0x8] sm:$0xff]
          %v1041 = vld [vmem:[%s867 + $0x10] sm:$0xff]
          %v1042 = vld [vmem:[%s867 + $0x18] sm:$0xff]
          %v1043 = vld [vmem:[%s867 + $0x20] sm:$0xff]
          %v1044 = vld [vmem:[%s867 + $0x28] sm:$0xff]
          %v1045 = vld [vmem:[%s867 + $0x30] sm:$0xff]
          %v1046 = vld [vmem:[%s867 + $0x38] sm:$0xff]
          %v1047 = vld [vmem:[%s867 + $0x40] sm:$0xff]
          %v1048 = vld [vmem:[%s867 + $0x48] sm:$0xff]
          %v1049 = vld [vmem:[%s867 + $0x50] sm:$0xff]
          %v1050 = vld [vmem:[%s867 + $0x58] sm:$0xff]
          %v1051 = vld [vmem:[%s867 + $0x60] sm:$0xff]
          %v1052 = vld [vmem:[%s867 + $0x68] sm:$0xff]
          %v1053 = vld [vmem:[%s867 + $0x70] sm:$0xff]
          %v1054 = vld [vmem:[%s867 + $0x78] sm:$0xff]
          %v1055 = vld [vmem:[%s867 + $0x80] sm:$0xff]
          %v1056 = vld [vmem:[%s867 + $0x88] sm:$0xff]
          %v1057 = vld [vmem:[%s867 + $0x90] sm:$0xff]
          %v1058 = vld [vmem:[%s867 + $0x98] sm:$0xff]
          %v1059 = vld [vmem:[%s867 + $0xa0] sm:$0xff]
          %v1060 = vld [vmem:[%s867 + $0xa8] sm:$0xff]
          %v1061 = vld [vmem:[%s867 + $0xb0] sm:$0xff]
          %v1062 = vld [vmem:[%s867 + $0xb8] sm:$0xff]
          %v1063 = vld [vmem:[%s867 + $0xc0] sm:$0xff]
          %v1064 = vld [vmem:[%s867 + $0xc8] sm:$0xff]
          %v1065 = vld [vmem:[%s867 + $0xd0] sm:$0xff]
          %v1066 = vld [vmem:[%s867 + $0xd8] sm:$0xff]
          %v1067 = vld [vmem:[%s867 + $0xe0] sm:$0xff]
          %v1068 = vld [vmem:[%s867 + $0xe8] sm:$0xff]
          %v1069 = vld [vmem:[%s867 + $0xf0] sm:$0xff]
          %v1070 = vld [vmem:[%s867 + $0xf8] sm:$0xff]
          %v1071 = vld [vmem:[#allocation8] sm:$0xff]
          %v1072 = vld [vmem:[#allocation8 + $0x8] sm:$0xff]
          %v1073 = vld [vmem:[#allocation8 + $0x10] sm:$0xff]
          %v1074 = vld [vmem:[#allocation8 + $0x18] sm:$0xff]
          %v1075 = vld [vmem:[#allocation8 + $0x20] sm:$0xff]
          %v1076 = vld [vmem:[#allocation8 + $0x28] sm:$0xff]
          %v1077 = vld [vmem:[#allocation8 + $0x30] sm:$0xff]
          %v1078 = vld [vmem:[#allocation8 + $0x38] sm:$0xff]
          %v1079 = vld [vmem:[#allocation8 + $0x40] sm:$0xff]
          %v1080 = vld [vmem:[#allocation8 + $0x48] sm:$0xff]
          %v1081 = vld [vmem:[#allocation8 + $0x50] sm:$0xff]
          %v1082 = vld [vmem:[#allocation8 + $0x58] sm:$0xff]
          %v1083 = vld [vmem:[#allocation8 + $0x60] sm:$0xff]
          %v1084 = vld [vmem:[#allocation8 + $0x68] sm:$0xff]
          %v1085 = vld [vmem:[#allocation8 + $0x70] sm:$0xff]
          %v1086 = vld [vmem:[#allocation8 + $0x78] sm:$0xff]
          %v1087 = vld [vmem:[#allocation8 + $0x80] sm:$0xff]
          %v1088 = vld [vmem:[#allocation8 + $0x88] sm:$0xff]
          %v1089 = vld [vmem:[#allocation8 + $0x90] sm:$0xff]
          %v1090 = vld [vmem:[#allocation8 + $0x98] sm:$0xff]
          %v1091 = vld [vmem:[#allocation8 + $0xa0] sm:$0xff]
          %v1092 = vld [vmem:[#allocation8 + $0xa8] sm:$0xff]
          %v1093 = vld [vmem:[#allocation8 + $0xb0] sm:$0xff]
          %v1094 = vld [vmem:[#allocation8 + $0xb8] sm:$0xff]
          %v1095 = vld [vmem:[#allocation8 + $0xc0] sm:$0xff]
          %v1096 = vld [vmem:[#allocation8 + $0xc8] sm:$0xff]
          %v1097 = vld [vmem:[#allocation8 + $0xd0] sm:$0xff]
          %v1098 = vld [vmem:[#allocation8 + $0xd8] sm:$0xff]
          %v1099 = vld [vmem:[#allocation8 + $0xe0] sm:$0xff]
          %v1100 = vld [vmem:[#allocation8 + $0xe8] sm:$0xff]
          %v1101 = vld [vmem:[#allocation8 + $0xf0] sm:$0xff]
          %v1102 = vld [vmem:[#allocation8 + $0xf8] sm:$0xff]
          %v1103 = vld [vmem:[#allocation8 + $0x100] sm:$0xff]
          %v1104 = vld [vmem:[#allocation8 + $0x108] sm:$0xff]
          %v1105 = vld [vmem:[#allocation8 + $0x110] sm:$0xff]
          %v1106 = vld [vmem:[#allocation8 + $0x118] sm:$0xff]
          %v1107 = vld [vmem:[#allocation8 + $0x120] sm:$0xff]
          %v1108 = vld [vmem:[#allocation8 + $0x128] sm:$0xff]
          %v1109 = vld [vmem:[#allocation8 + $0x130] sm:$0xff]
          %v1110 = vld [vmem:[#allocation8 + $0x138] sm:$0xff]
          %v1111 = vld [vmem:[#allocation8 + $0x140] sm:$0xff]
          %v1112 = vld [vmem:[#allocation8 + $0x148] sm:$0xff]
          %v1113 = vld [vmem:[#allocation8 + $0x150] sm:$0xff]
          %v1114 = vld [vmem:[#allocation8 + $0x158] sm:$0xff]
          %v1115 = vld [vmem:[#allocation8 + $0x160] sm:$0xff]
          %v1116 = vld [vmem:[#allocation8 + $0x168] sm:$0xff]
          %v1117 = vld [vmem:[#allocation8 + $0x170] sm:$0xff]
          %v1118 = vld [vmem:[#allocation8 + $0x178] sm:$0xff]
          %v1119 = vld [vmem:[#allocation8 + $0x180] sm:$0xff]
          %v1120 = vld [vmem:[#allocation8 + $0x188] sm:$0xff]
          %v1121 = vld [vmem:[#allocation8 + $0x190] sm:$0xff]
          %v1122 = vld [vmem:[#allocation8 + $0x198] sm:$0xff]
          %v1123 = vld [vmem:[#allocation8 + $0x1a0] sm:$0xff]
          %v1124 = vld [vmem:[#allocation8 + $0x1a8] sm:$0xff]
          %v1125 = vld [vmem:[#allocation8 + $0x1b0] sm:$0xff]
          %v1126 = vld [vmem:[#allocation8 + $0x1b8] sm:$0xff]
          %v1127 = vld [vmem:[#allocation8 + $0x1c0] sm:$0xff]
          %v1128 = vld [vmem:[#allocation8 + $0x1c8] sm:$0xff]
          %v1129 = vld [vmem:[#allocation8 + $0x1d0] sm:$0xff]
          %v1130 = vld [vmem:[#allocation8 + $0x1d8] sm:$0xff]
          %v1131 = vld [vmem:[#allocation8 + $0x1e0] sm:$0xff]
          %v1132 = vld [vmem:[#allocation8 + $0x1e8] sm:$0xff]
          %v1133 = vld [vmem:[#allocation8 + $0x1f0] sm:$0xff]
          %v1134 = vld [vmem:[#allocation8 + $0x1f8] sm:$0xff]
          %v1135 = vld [vmem:[#allocation10] sm:$0xff]
          %v1136 = vld [vmem:[#allocation10 + $0x8] sm:$0xff]
          %v1137 = vld [vmem:[#allocation10 + $0x10] sm:$0xff]
          %v1138 = vld [vmem:[#allocation10 + $0x18] sm:$0xff]
          %v1139 = vld [vmem:[#allocation10 + $0x20] sm:$0xff]
          %v1140 = vld [vmem:[#allocation10 + $0x28] sm:$0xff]
          %v1141 = vld [vmem:[#allocation10 + $0x30] sm:$0xff]
          %v1142 = vld [vmem:[#allocation10 + $0x38] sm:$0xff]
          %v1143 = vld [vmem:[#allocation10 + $0x40] sm:$0xff]
          %v1144 = vld [vmem:[#allocation10 + $0x48] sm:$0xff]
          %v1145 = vld [vmem:[#allocation10 + $0x50] sm:$0xff]
          %v1146 = vld [vmem:[#allocation10 + $0x58] sm:$0xff]
          %v1147 = vld [vmem:[#allocation10 + $0x60] sm:$0xff]
          %v1148 = vld [vmem:[#allocation10 + $0x68] sm:$0xff]
          %v1149 = vld [vmem:[#allocation10 + $0x70] sm:$0xff]
          %v1150 = vld [vmem:[#allocation10 + $0x78] sm:$0xff]
          %v1151 = vld [vmem:[#allocation10 + $0x80] sm:$0xff]
          %v1152 = vld [vmem:[#allocation10 + $0x88] sm:$0xff]
          %v1153 = vld [vmem:[#allocation10 + $0x90] sm:$0xff]
          %v1154 = vld [vmem:[#allocation10 + $0x98] sm:$0xff]
          %v1155 = vld [vmem:[#allocation10 + $0xa0] sm:$0xff]
          %v1156 = vld [vmem:[#allocation10 + $0xa8] sm:$0xff]
          %v1157 = vld [vmem:[#allocation10 + $0xb0] sm:$0xff]
          %v1158 = vld [vmem:[#allocation10 + $0xb8] sm:$0xff]
          %v1159 = vld [vmem:[#allocation10 + $0xc0] sm:$0xff]
          %v1160 = vld [vmem:[#allocation10 + $0xc8] sm:$0xff]
          %v1161 = vld [vmem:[#allocation10 + $0xd0] sm:$0xff]
          %v1162 = vld [vmem:[#allocation10 + $0xd8] sm:$0xff]
          %v1163 = vld [vmem:[#allocation10 + $0xe0] sm:$0xff]
          %v1164 = vld [vmem:[#allocation10 + $0xe8] sm:$0xff]
          %v1165 = vld [vmem:[#allocation10 + $0xf0] sm:$0xff]
          %v1166 = vld [vmem:[#allocation10 + $0xf8] sm:$0xff]
          %v1167 = vld [vmem:[#allocation10 + $0x100] sm:$0xff]
          %v1168 = vld [vmem:[#allocation10 + $0x108] sm:$0xff]
          %v1169 = vld [vmem:[#allocation10 + $0x110] sm:$0xff]
          %v1170 = vld [vmem:[#allocation10 + $0x118] sm:$0xff]
          %v1171 = vld [vmem:[#allocation10 + $0x120] sm:$0xff]
          %v1172 = vld [vmem:[#allocation10 + $0x128] sm:$0xff]
          %v1173 = vld [vmem:[#allocation10 + $0x130] sm:$0xff]
          %v1174 = vld [vmem:[#allocation10 + $0x138] sm:$0xff]
          %v1175 = vld [vmem:[#allocation10 + $0x140] sm:$0xff]
          %v1176 = vld [vmem:[#allocation10 + $0x148] sm:$0xff]
          %v1177 = vld [vmem:[#allocation10 + $0x150] sm:$0xff]
          %v1178 = vld [vmem:[#allocation10 + $0x158] sm:$0xff]
          %v1179 = vld [vmem:[#allocation10 + $0x160] sm:$0xff]
          %v1180 = vld [vmem:[#allocation10 + $0x168] sm:$0xff]
          %v1181 = vld [vmem:[#allocation10 + $0x170] sm:$0xff]
          %v1182 = vld [vmem:[#allocation10 + $0x178] sm:$0xff]
          %v1183 = vld [vmem:[#allocation10 + $0x180] sm:$0xff]
          %v1184 = vld [vmem:[#allocation10 + $0x188] sm:$0xff]
          %v1185 = vld [vmem:[#allocation10 + $0x190] sm:$0xff]
          %v1186 = vld [vmem:[#allocation10 + $0x198] sm:$0xff]
          %v1187 = vld [vmem:[#allocation10 + $0x1a0] sm:$0xff]
          %v1188 = vld [vmem:[#allocation10 + $0x1a8] sm:$0xff]
          %v1189 = vld [vmem:[#allocation10 + $0x1b0] sm:$0xff]
          %v1190 = vld [vmem:[#allocation10 + $0x1b8] sm:$0xff]
          %v1191 = vld [vmem:[#allocation10 + $0x1c0] sm:$0xff]
          %v1192 = vld [vmem:[#allocation10 + $0x1c8] sm:$0xff]
          %v1193 = vld [vmem:[#allocation10 + $0x1d0] sm:$0xff]
          %v1194 = vld [vmem:[#allocation10 + $0x1d8] sm:$0xff]
          %v1195 = vld [vmem:[#allocation10 + $0x1e0] sm:$0xff]
          %v1196 = vld [vmem:[#allocation10 + $0x1e8] sm:$0xff]
          %v1197 = vld [vmem:[#allocation10 + $0x1f0] sm:$0xff]
          %v1198 = vld [vmem:[#allocation10 + $0x1f8] sm:$0xff]
          %v1199 = vld [vmem:[%s5] sm:$0x3]
          %v1201 = vlaneseq
          %v1202 = vshrl.u32 %v1201, 7
          %v1203 = vsub.s32 0, %v1202
          %v1204 = vrot.slane %v1199, %v1203
          %v1205 = vlaneseq
          %v1206 = vshrl.u32 %v1205, 7
          %v1207 = vsub.s32 1, %v1206
          %v1208 = vrot.slane %v1199, %v1207
          %1211 = vmatprep.subr.mxu0 %v1136
          %1212 = vmatpush1.msra.mxu0 %v1135
          %1213 = vmatprep.subr.mxu0 %v1138
          %1214 = vmatpush1.msra.mxu0 %v1137
          %1215 = vmatprep.subr.mxu0 %v1140
          %1216 = vmatpush1.msra.mxu0 %v1139
          %1217 = vmatprep.subr.mxu0 %v1142
          %1218 = vmatpush1.msra.mxu0 %v1141
          %1219 = vmatprep.subr.mxu0 %v1144
          %1220 = vmatpush1.msra.mxu0 %v1143
          %1221 = vmatprep.subr.mxu0 %v1146
          %1222 = vmatpush1.msra.mxu0 %v1145
          %1223 = vmatprep.subr.mxu0 %v1148
          %1224 = vmatpush1.msra.mxu0 %v1147
          %1225 = vmatprep.subr.mxu0 %v1150
          %1226 = vmatpush1.msra.mxu0 %v1149
          %1227 = vmatprep.subr.mxu0 %v1152
          %1228 = vmatpush1.msra.mxu0 %v1151
          %1229 = vmatprep.subr.mxu0 %v1154
          %1230 = vmatpush1.msra.mxu0 %v1153
          %1231 = vmatprep.subr.mxu0 %v1156
          %1232 = vmatpush1.msra.mxu0 %v1155
          %1233 = vmatprep.subr.mxu0 %v1158
          %1234 = vmatpush1.msra.mxu0 %v1157
          %1235 = vmatprep.subr.mxu0 %v1160
          %1236 = vmatpush1.msra.mxu0 %v1159
          %1237 = vmatprep.subr.mxu0 %v1162
          %1238 = vmatpush1.msra.mxu0 %v1161
          %1239 = vmatprep.subr.mxu0 %v1164
          %1240 = vmatpush1.msra.mxu0 %v1163
          %1241 = vmatprep.subr.mxu0 %v1166
          %1242 = vmatpush1.msra.mxu0 %v1165
          %1243 = vmatprep.subr.mxu0 %v1168
          %1244 = vmatpush1.msra.mxu0 %v1167
          %1245 = vmatprep.subr.mxu0 %v1170
          %1246 = vmatpush1.msra.mxu0 %v1169
          %1247 = vmatprep.subr.mxu0 %v1172
          %1248 = vmatpush1.msra.mxu0 %v1171
          %1249 = vmatprep.subr.mxu0 %v1174
          %1250 = vmatpush1.msra.mxu0 %v1173
          %1251 = vmatprep.subr.mxu0 %v1176
          %1252 = vmatpush1.msra.mxu0 %v1175
          %1253 = vmatprep.subr.mxu0 %v1178
          %1254 = vmatpush1.msra.mxu0 %v1177
          %1255 = vmatprep.subr.mxu0 %v1180
          %1256 = vmatpush1.msra.mxu0 %v1179
          %1257 = vmatprep.subr.mxu0 %v1182
          %1258 = vmatpush1.msra.mxu0 %v1181
          %1259 = vmatprep.subr.mxu0 %v1184
          %1260 = vmatpush1.msra.mxu0 %v1183
          %1261 = vmatprep.subr.mxu0 %v1186
          %1262 = vmatpush1.msra.mxu0 %v1185
          %1263 = vmatprep.subr.mxu0 %v1188
          %1264 = vmatpush1.msra.mxu0 %v1187
          %1265 = vmatprep.subr.mxu0 %v1190
          %1266 = vmatpush1.msra.mxu0 %v1189
          %1267 = vmatprep.subr.mxu0 %v1192
          %1268 = vmatpush1.msra.mxu0 %v1191
          %1269 = vmatprep.subr.mxu0 %v1194
          %1270 = vmatpush1.msra.mxu0 %v1193
          %1271 = vmatprep.subr.mxu0 %v1196
          %1272 = vmatpush1.msra.mxu0 %v1195
          %1273 = vmatprep.subr.mxu0 %v1198
          %1274 = vmatpush1.msra.mxu0 %v1197
          %1275 = vmatprep.mubr.f32.mxu0 %v1040
          %1276 = vmatmul.mubr.f32.gmra.mrb[0].mxu0 %v1039
          %v1277 = vpop.f32.mrb[0].mxu0
          %v1278 = vadd.f32 %v1204, %v1277
          %v1279 = vpop.f32.mrb[0].mxu0
          %v1280 = vadd.f32 %v1208, %v1279
          %1281 = vmatprep.mubr.f32.mxu0 %v1042
          %1282 = vmatmul.mubr.f32.gmra.mrb[0].mxu0 %v1041
          %v1283 = vpop.f32.mrb[0].mxu0
          %v1284 = vadd.f32 %v1204, %v1283
          %v1285 = vpop.f32.mrb[0].mxu0
          %v1286 = vadd.f32 %v1208, %v1285
          %1287 = vmatprep.mubr.f32.mxu0 %v1044
          %1288 = vmatmul.mubr.f32.gmra.mrb[0].mxu0 %v1043
          %v1289 = vpop.f32.mrb[0].mxu0
          %v1290 = vadd.f32 %v1204, %v1289
          %v1291 = vpop.f32.mrb[0].mxu0
          %v1292 = vadd.f32 %v1208, %v1291
          %1293 = vmatprep.mubr.f32.mxu0 %v1046
          %1294 = vmatmul.mubr.f32.gmra.mrb[0].mxu0 %v1045
          %v1295 = vpop.f32.mrb[0].mxu0
          %v1296 = vadd.f32 %v1204, %v1295
          %v1297 = vpop.f32.mrb[0].mxu0
          %v1298 = vadd.f32 %v1208, %v1297
          %1299 = vmatprep.mubr.f32.mxu0 %v1048
          %1300 = vmatmul.mubr.f32.gmra.mrb[0].mxu0 %v1047
          %v1301 = vpop.f32.mrb[0].mxu0
          %v1302 = vadd.f32 %v1204, %v1301
          %v1303 = vpop.f32.mrb[0].mxu0
          %v1304 = vadd.f32 %v1208, %v1303
          %1305 = vmatprep.mubr.f32.mxu0 %v1050
          %1306 = vmatmul.mubr.f32.gmra.mrb[0].mxu0 %v1049
          %v1307 = vpop.f32.mrb[0].mxu0
          %v1308 = vadd.f32 %v1204, %v1307
          %v1309 = vpop.f32.mrb[0].mxu0
          %v1310 = vadd.f32 %v1208, %v1309
          %1311 = vmatprep.mubr.f32.mxu0 %v1052
          %1312 = vmatmul.mubr.f32.gmra.mrb[0].mxu0 %v1051
          %v1313 = vpop.f32.mrb[0].mxu0
          %v1314 = vadd.f32 %v1204, %v1313
          %v1315 = vpop.f32.mrb[0].mxu0
          %v1316 = vadd.f32 %v1208, %v1315
          %1317 = vmatprep.mubr.f32.mxu0 %v1054
          %1318 = vmatmul.mubr.f32.gmra.mrb[0].mxu0 %v1053
          %v1319 = vpop.f32.mrb[0].mxu0
          %v1320 = vadd.f32 %v1204, %v1319
          %v1321 = vpop.f32.mrb[0].mxu0
          %v1322 = vadd.f32 %v1208, %v1321
          %1323 = vmatprep.mubr.f32.mxu0 %v1056
          %1324 = vmatmul.mubr.f32.gmra.mrb[0].mxu0 %v1055
          %v1325 = vpop.f32.mrb[0].mxu0
          %v1326 = vadd.f32 %v1204, %v1325
          %v1327 = vpop.f32.mrb[0].mxu0
          %v1328 = vadd.f32 %v1208, %v1327
          %1329 = vmatprep.mubr.f32.mxu0 %v1058
          %1330 = vmatmul.mubr.f32.gmra.mrb[0].mxu0 %v1057
          %v1331 = vpop.f32.mrb[0].mxu0
          %v1332 = vadd.f32 %v1204, %v1331
          %v1333 = vpop.f32.mrb[0].mxu0
          %v1334 = vadd.f32 %v1208, %v1333
          %1335 = vmatprep.mubr.f32.mxu0 %v1060
          %1336 = vmatmul.mubr.f32.gmra.mrb[0].mxu0 %v1059
          %v1337 = vpop.f32.mrb[0].mxu0
          %v1338 = vadd.f32 %v1204, %v1337
          %v1339 = vpop.f32.mrb[0].mxu0
          %v1340 = vadd.f32 %v1208, %v1339
          %1341 = vmatprep.mubr.f32.mxu0 %v1062
          %1342 = vmatmul.mubr.f32.gmra.mrb[0].mxu0 %v1061
          %v1343 = vpop.f32.mrb[0].mxu0
          %v1344 = vadd.f32 %v1204, %v1343
          %v1345 = vpop.f32.mrb[0].mxu0
          %v1346 = vadd.f32 %v1208, %v1345
          %1347 = vmatprep.mubr.f32.mxu0 %v1064
          %1348 = vmatmul.mubr.f32.gmra.mrb[0].mxu0 %v1063
          %v1349 = vpop.f32.mrb[0].mxu0
          %v1350 = vadd.f32 %v1204, %v1349
          %v1351 = vpop.f32.mrb[0].mxu0
          %v1352 = vadd.f32 %v1208, %v1351
          %1353 = vmatprep.mubr.f32.mxu0 %v1066
          %1354 = vmatmul.mubr.f32.gmra.mrb[0].mxu0 %v1065
          %v1355 = vpop.f32.mrb[0].mxu0
          %v1356 = vadd.f32 %v1204, %v1355
          %v1357 = vpop.f32.mrb[0].mxu0
          %v1358 = vadd.f32 %v1208, %v1357
          %1359 = vmatprep.mubr.f32.mxu0 %v1068
          %1360 = vmatmul.mubr.f32.gmra.mrb[0].mxu0 %v1067
          %v1361 = vpop.f32.mrb[0].mxu0
          %v1362 = vadd.f32 %v1204, %v1361
          %v1363 = vpop.f32.mrb[0].mxu0
          %v1364 = vadd.f32 %v1208, %v1363
          %1365 = vmatprep.mubr.f32.mxu0 %v1070
          %1366 = vmatmul.mubr.f32.gmra.mrb[0].mxu0 %v1069
          %v1367 = vpop.f32.mrb[0].mxu0
          %v1368 = vadd.f32 %v1204, %v1367
          %v1369 = vpop.f32.mrb[0].mxu0
          %v1370 = vadd.f32 %v1208, %v1369
          %1371 = vdwg.mxu0
          %v1372 = vld [vmem:[#allocation11] sm:$0xff]
          %v1373 = vld [vmem:[#allocation11 + $0x8] sm:$0xff]
          %v1374 = vld [vmem:[#allocation11 + $0x10] sm:$0xff]
          %v1375 = vld [vmem:[#allocation11 + $0x18] sm:$0xff]
          %v1376 = vld [vmem:[#allocation11 + $0x20] sm:$0xff]
          %v1377 = vld [vmem:[#allocation11 + $0x28] sm:$0xff]
          %v1378 = vld [vmem:[#allocation11 + $0x30] sm:$0xff]
          %v1379 = vld [vmem:[#allocation11 + $0x38] sm:$0xff]
          %v1380 = vld [vmem:[#allocation11 + $0x40] sm:$0xff]
          %v1381 = vld [vmem:[#allocation11 + $0x48] sm:$0xff]
          %v1382 = vld [vmem:[#allocation11 + $0x50] sm:$0xff]
          %v1383 = vld [vmem:[#allocation11 + $0x58] sm:$0xff]
          %v1384 = vld [vmem:[#allocation11 + $0x60] sm:$0xff]
          %v1385 = vld [vmem:[#allocation11 + $0x68] sm:$0xff]
          %v1386 = vld [vmem:[#allocation11 + $0x70] sm:$0xff]
          %v1387 = vld [vmem:[#allocation11 + $0x78] sm:$0xff]
          %v1388 = vld [vmem:[#allocation11 + $0x80] sm:$0xff]
          %v1389 = vld [vmem:[#allocation11 + $0x88] sm:$0xff]
          %v1390 = vld [vmem:[#allocation11 + $0x90] sm:$0xff]
          %v1391 = vld [vmem:[#allocation11 + $0x98] sm:$0xff]
          %v1392 = vld [vmem:[#allocation11 + $0xa0] sm:$0xff]
          %v1393 = vld [vmem:[#allocation11 + $0xa8] sm:$0xff]
          %v1394 = vld [vmem:[#allocation11 + $0xb0] sm:$0xff]
          %v1395 = vld [vmem:[#allocation11 + $0xb8] sm:$0xff]
          %v1396 = vld [vmem:[#allocation11 + $0xc0] sm:$0xff]
          %v1397 = vld [vmem:[#allocation11 + $0xc8] sm:$0xff]
          %v1398 = vld [vmem:[#allocation11 + $0xd0] sm:$0xff]
          %v1399 = vld [vmem:[#allocation11 + $0xd8] sm:$0xff]
          %v1400 = vld [vmem:[#allocation11 + $0xe0] sm:$0xff]
          %v1401 = vld [vmem:[#allocation11 + $0xe8] sm:$0xff]
          %v1402 = vld [vmem:[#allocation11 + $0xf0] sm:$0xff]
          %v1403 = vld [vmem:[#allocation11 + $0xf8] sm:$0xff]
          %v1404 = vld [vmem:[#allocation11 + $0x100] sm:$0xff]
          %v1405 = vld [vmem:[#allocation11 + $0x108] sm:$0xff]
          %v1406 = vld [vmem:[#allocation11 + $0x110] sm:$0xff]
          %v1407 = vld [vmem:[#allocation11 + $0x118] sm:$0xff]
          %v1408 = vld [vmem:[#allocation11 + $0x120] sm:$0xff]
          %v1409 = vld [vmem:[#allocation11 + $0x128] sm:$0xff]
          %v1410 = vld [vmem:[#allocation11 + $0x130] sm:$0xff]
          %v1411 = vld [vmem:[#allocation11 + $0x138] sm:$0xff]
          %v1412 = vld [vmem:[#allocation11 + $0x140] sm:$0xff]
          %v1413 = vld [vmem:[#allocation11 + $0x148] sm:$0xff]
          %v1414 = vld [vmem:[#allocation11 + $0x150] sm:$0xff]
          %v1415 = vld [vmem:[#allocation11 + $0x158] sm:$0xff]
          %v1416 = vld [vmem:[#allocation11 + $0x160] sm:$0xff]
          %v1417 = vld [vmem:[#allocation11 + $0x168] sm:$0xff]
          %v1418 = vld [vmem:[#allocation11 + $0x170] sm:$0xff]
          %v1419 = vld [vmem:[#allocation11 + $0x178] sm:$0xff]
          %v1420 = vld [vmem:[#allocation11 + $0x180] sm:$0xff]
          %v1421 = vld [vmem:[#allocation11 + $0x188] sm:$0xff]
          %v1422 = vld [vmem:[#allocation11 + $0x190] sm:$0xff]
          %v1423 = vld [vmem:[#allocation11 + $0x198] sm:$0xff]
          %v1424 = vld [vmem:[#allocation11 + $0x1a0] sm:$0xff]
          %v1425 = vld [vmem:[#allocation11 + $0x1a8] sm:$0xff]
          %v1426 = vld [vmem:[#allocation11 + $0x1b0] sm:$0xff]
          %v1427 = vld [vmem:[#allocation11 + $0x1b8] sm:$0xff]
          %v1428 = vld [vmem:[#allocation11 + $0x1c0] sm:$0xff]
          %v1429 = vld [vmem:[#allocation11 + $0x1c8] sm:$0xff]
          %v1430 = vld [vmem:[#allocation11 + $0x1d0] sm:$0xff]
          %v1431 = vld [vmem:[#allocation11 + $0x1d8] sm:$0xff]
          %v1432 = vld [vmem:[#allocation11 + $0x1e0] sm:$0xff]
          %v1433 = vld [vmem:[#allocation11 + $0x1e8] sm:$0xff]
          %v1434 = vld [vmem:[#allocation11 + $0x1f0] sm:$0xff]
          %v1435 = vld [vmem:[#allocation11 + $0x1f8] sm:$0xff]
          %v1436 = vld [vmem:[#allocation14] sm:$0x3]
          %v1438 = vlaneseq
          %v1439 = vshrl.u32 %v1438, 7
          %v1440 = vsub.s32 0, %v1439
          %v1441 = vrot.slane %v1436, %v1440
          %v1442 = vlaneseq
          %v1443 = vshrl.u32 %v1442, 7
          %v1444 = vsub.s32 1, %v1443
          %v1445 = vrot.slane %v1436, %v1444
          %1448 = vmatprep.subr.mxu0 %v1373
          %1449 = vmatpush1.msra.mxu0 %v1372
          %1450 = vmatprep.subr.mxu0 %v1375
          %1451 = vmatpush1.msra.mxu0 %v1374
          %1452 = vmatprep.subr.mxu0 %v1377
          %1453 = vmatpush1.msra.mxu0 %v1376
          %1454 = vmatprep.subr.mxu0 %v1379
          %1455 = vmatpush1.msra.mxu0 %v1378
          %1456 = vmatprep.subr.mxu0 %v1381
          %1457 = vmatpush1.msra.mxu0 %v1380
          %1458 = vmatprep.subr.mxu0 %v1383
          %1459 = vmatpush1.msra.mxu0 %v1382
          %1460 = vmatprep.subr.mxu0 %v1385
          %1461 = vmatpush1.msra.mxu0 %v1384
          %1462 = vmatprep.subr.mxu0 %v1387
          %1463 = vmatpush1.msra.mxu0 %v1386
          %1464 = vmatprep.subr.mxu0 %v1389
          %1465 = vmatpush1.msra.mxu0 %v1388
          %1466 = vmatprep.subr.mxu0 %v1391
          %1467 = vmatpush1.msra.mxu0 %v1390
          %1468 = vmatprep.subr.mxu0 %v1393
          %1469 = vmatpush1.msra.mxu0 %v1392
          %1470 = vmatprep.subr.mxu0 %v1395
          %1471 = vmatpush1.msra.mxu0 %v1394
          %1472 = vmatprep.subr.mxu0 %v1397
          %1473 = vmatpush1.msra.mxu0 %v1396
          %1474 = vmatprep.subr.mxu0 %v1399
          %1475 = vmatpush1.msra.mxu0 %v1398
          %1476 = vmatprep.subr.mxu0 %v1401
          %1477 = vmatpush1.msra.mxu0 %v1400
          %1478 = vmatprep.subr.mxu0 %v1403
          %1479 = vmatpush1.msra.mxu0 %v1402
          %1480 = vmatprep.subr.mxu0 %v1405
          %1481 = vmatpush1.msra.mxu0 %v1404
          %1482 = vmatprep.subr.mxu0 %v1407
          %1483 = vmatpush1.msra.mxu0 %v1406
          %1484 = vmatprep.subr.mxu0 %v1409
          %1485 = vmatpush1.msra.mxu0 %v1408
          %1486 = vmatprep.subr.mxu0 %v1411
          %1487 = vmatpush1.msra.mxu0 %v1410
          %1488 = vmatprep.subr.mxu0 %v1413
          %1489 = vmatpush1.msra.mxu0 %v1412
          %1490 = vmatprep.subr.mxu0 %v1415
          %1491 = vmatpush1.msra.mxu0 %v1414
          %1492 = vmatprep.subr.mxu0 %v1417
          %1493 = vmatpush1.msra.mxu0 %v1416
          %1494 = vmatprep.subr.mxu0 %v1419
          %1495 = vmatpush1.msra.mxu0 %v1418
          %1496 = vmatprep.subr.mxu0 %v1421
          %1497 = vmatpush1.msra.mxu0 %v1420
          %1498 = vmatprep.subr.mxu0 %v1423
          %1499 = vmatpush1.msra.mxu0 %v1422
          %1500 = vmatprep.subr.mxu0 %v1425
          %1501 = vmatpush1.msra.mxu0 %v1424
          %1502 = vmatprep.subr.mxu0 %v1427
          %1503 = vmatpush1.msra.mxu0 %v1426
          %1504 = vmatprep.subr.mxu0 %v1429
          %1505 = vmatpush1.msra.mxu0 %v1428
          %1506 = vmatprep.subr.mxu0 %v1431
          %1507 = vmatpush1.msra.mxu0 %v1430
          %1508 = vmatprep.subr.mxu0 %v1433
          %1509 = vmatpush1.msra.mxu0 %v1432
          %1510 = vmatprep.subr.mxu0 %v1435
          %1511 = vmatpush1.msra.mxu0 %v1434
          %1512 = vmatprep.mubr.f32.mxu0 %v1072
          %1513 = vmatmul.mubr.f32.gmra.mrb[0].mxu0 %v1071
          %v1514 = vpop.f32.mrb[0].mxu0
          %v1515 = vadd.f32 %v1441, %v1514
          %v1516 = vpop.f32.mrb[0].mxu0
          %v1517 = vadd.f32 %v1445, %v1516
          %1518 = vmatprep.mubr.f32.mxu0 %v1074
          %1519 = vmatmul.mubr.f32.gmra.mrb[0].mxu0 %v1073
          %v1520 = vpop.f32.mrb[0].mxu0
          %v1521 = vadd.f32 %v1441, %v1520
          %v1522 = vpop.f32.mrb[0].mxu0
          %v1523 = vadd.f32 %v1445, %v1522
          %1524 = vmatprep.mubr.f32.mxu0 %v1076
          %1525 = vmatmul.mubr.f32.gmra.mrb[0].mxu0 %v1075
          %v1526 = vpop.f32.mrb[0].mxu0
          %v1527 = vadd.f32 %v1441, %v1526
          %v1528 = vpop.f32.mrb[0].mxu0
          %v1529 = vadd.f32 %v1445, %v1528
          %1530 = vmatprep.mubr.f32.mxu0 %v1078
          %1531 = vmatmul.mubr.f32.gmra.mrb[0].mxu0 %v1077
          %v1532 = vpop.f32.mrb[0].mxu0
          %v1533 = vadd.f32 %v1441, %v1532
          %v1534 = vpop.f32.mrb[0].mxu0
          %v1535 = vadd.f32 %v1445, %v1534
          %1536 = vmatprep.mubr.f32.mxu0 %v1080
          %1537 = vmatmul.mubr.f32.gmra.mrb[0].mxu0 %v1079
          %v1538 = vpop.f32.mrb[0].mxu0
          %v1539 = vadd.f32 %v1441, %v1538
          %v1540 = vpop.f32.mrb[0].mxu0
          %v1541 = vadd.f32 %v1445, %v1540
          %1542 = vmatprep.mubr.f32.mxu0 %v1082
          %1543 = vmatmul.mubr.f32.gmra.mrb[0].mxu0 %v1081
          %v1544 = vpop.f32.mrb[0].mxu0
          %v1545 = vadd.f32 %v1441, %v1544
          %v1546 = vpop.f32.mrb[0].mxu0
          %v1547 = vadd.f32 %v1445, %v1546
          %1548 = vmatprep.mubr.f32.mxu0 %v1084
          %1549 = vmatmul.mubr.f32.gmra.mrb[0].mxu0 %v1083
          %v1550 = vpop.f32.mrb[0].mxu0
          %v1551 = vadd.f32 %v1441, %v1550
          %v1552 = vpop.f32.mrb[0].mxu0
          %v1553 = vadd.f32 %v1445, %v1552
          %1554 = vmatprep.mubr.f32.mxu0 %v1086
          %1555 = vmatmul.mubr.f32.gmra.mrb[0].mxu0 %v1085
          %v1556 = vpop.f32.mrb[0].mxu0
          %v1557 = vadd.f32 %v1441, %v1556
          %v1558 = vpop.f32.mrb[0].mxu0
          %v1559 = vadd.f32 %v1445, %v1558
          %1560 = vmatprep.mubr.f32.mxu0 %v1088
          %1561 = vmatmul.mubr.f32.gmra.mrb[0].mxu0 %v1087
          %v1562 = vpop.f32.mrb[0].mxu0
          %v1563 = vadd.f32 %v1441, %v1562
          %v1564 = vpop.f32.mrb[0].mxu0
          %v1565 = vadd.f32 %v1445, %v1564
          %1566 = vmatprep.mubr.f32.mxu0 %v1090
          %1567 = vmatmul.mubr.f32.gmra.mrb[0].mxu0 %v1089
          %v1568 = vpop.f32.mrb[0].mxu0
          %v1569 = vadd.f32 %v1441, %v1568
          %v1570 = vpop.f32.mrb[0].mxu0
          %v1571 = vadd.f32 %v1445, %v1570
          %1572 = vmatprep.mubr.f32.mxu0 %v1092
          %1573 = vmatmul.mubr.f32.gmra.mrb[0].mxu0 %v1091
          %v1574 = vpop.f32.mrb[0].mxu0
          %v1575 = vadd.f32 %v1441, %v1574
          %v1576 = vpop.f32.mrb[0].mxu0
          %v1577 = vadd.f32 %v1445, %v1576
          %1578 = vmatprep.mubr.f32.mxu0 %v1094
          %1579 = vmatmul.mubr.f32.gmra.mrb[0].mxu0 %v1093
          %v1580 = vpop.f32.mrb[0].mxu0
          %v1581 = vadd.f32 %v1441, %v1580
          %v1582 = vpop.f32.mrb[0].mxu0
          %v1583 = vadd.f32 %v1445, %v1582
          %1584 = vmatprep.mubr.f32.mxu0 %v1096
          %1585 = vmatmul.mubr.f32.gmra.mrb[0].mxu0 %v1095
          %v1586 = vpop.f32.mrb[0].mxu0
          %v1587 = vadd.f32 %v1441, %v1586
          %v1588 = vpop.f32.mrb[0].mxu0
          %v1589 = vadd.f32 %v1445, %v1588
          %1590 = vmatprep.mubr.f32.mxu0 %v1098
          %1591 = vmatmul.mubr.f32.gmra.mrb[0].mxu0 %v1097
          %v1592 = vpop.f32.mrb[0].mxu0
          %v1593 = vadd.f32 %v1441, %v1592
          %v1594 = vpop.f32.mrb[0].mxu0
          %v1595 = vadd.f32 %v1445, %v1594
          %1596 = vmatprep.mubr.f32.mxu0 %v1100
          %1597 = vmatmul.mubr.f32.gmra.mrb[0].mxu0 %v1099
          %v1598 = vpop.f32.mrb[0].mxu0
          %v1599 = vadd.f32 %v1441, %v1598
          %v1600 = vpop.f32.mrb[0].mxu0
          %v1601 = vadd.f32 %v1445, %v1600
          %1602 = vmatprep.mubr.f32.mxu0 %v1102
          %1603 = vmatmul.mubr.f32.gmra.mrb[0].mxu0 %v1101
          %v1604 = vpop.f32.mrb[0].mxu0
          %v1605 = vadd.f32 %v1441, %v1604
          %v1606 = vpop.f32.mrb[0].mxu0
          %v1607 = vadd.f32 %v1445, %v1606
          %1608 = vmatprep.mubr.f32.mxu0 %v1104
          %1609 = vmatmul.mubr.f32.gmra.mrb[0].mxu0 %v1103
          %v1610 = vpop.f32.mrb[0].mxu0
          %v1611 = vadd.f32 %v1441, %v1610
          %v1612 = vpop.f32.mrb[0].mxu0
          %v1613 = vadd.f32 %v1445, %v1612
          %1614 = vmatprep.mubr.f32.mxu0 %v1106
          %1615 = vmatmul.mubr.f32.gmra.mrb[0].mxu0 %v1105
          %v1616 = vpop.f32.mrb[0].mxu0
          %v1617 = vadd.f32 %v1441, %v1616
          %v1618 = vpop.f32.mrb[0].mxu0
          %v1619 = vadd.f32 %v1445, %v1618
          %1620 = vmatprep.mubr.f32.mxu0 %v1108
          %1621 = vmatmul.mubr.f32.gmra.mrb[0].mxu0 %v1107
          %v1622 = vpop.f32.mrb[0].mxu0
          %v1623 = vadd.f32 %v1441, %v1622
          %v1624 = vpop.f32.mrb[0].mxu0
          %v1625 = vadd.f32 %v1445, %v1624
          %1626 = vmatprep.mubr.f32.mxu0 %v1110
          %1627 = vmatmul.mubr.f32.gmra.mrb[0].mxu0 %v1109
          %v1628 = vpop.f32.mrb[0].mxu0
          %v1629 = vadd.f32 %v1441, %v1628
          %v1630 = vpop.f32.mrb[0].mxu0
          %v1631 = vadd.f32 %v1445, %v1630
          %1632 = vmatprep.mubr.f32.mxu0 %v1112
          %1633 = vmatmul.mubr.f32.gmra.mrb[0].mxu0 %v1111
          %v1634 = vpop.f32.mrb[0].mxu0
          %v1635 = vadd.f32 %v1441, %v1634
          %v1636 = vpop.f32.mrb[0].mxu0
          %v1637 = vadd.f32 %v1445, %v1636
          %1638 = vmatprep.mubr.f32.mxu0 %v1114
          %1639 = vmatmul.mubr.f32.gmra.mrb[0].mxu0 %v1113
          %v1640 = vpop.f32.mrb[0].mxu0
          %v1641 = vadd.f32 %v1441, %v1640
          %v1642 = vpop.f32.mrb[0].mxu0
          %v1643 = vadd.f32 %v1445, %v1642
          %1644 = vmatprep.mubr.f32.mxu0 %v1116
          %1645 = vmatmul.mubr.f32.gmra.mrb[0].mxu0 %v1115
          %v1646 = vpop.f32.mrb[0].mxu0
          %v1647 = vadd.f32 %v1441, %v1646
          %v1648 = vpop.f32.mrb[0].mxu0
          %v1649 = vadd.f32 %v1445, %v1648
          %1650 = vmatprep.mubr.f32.mxu0 %v1118
          %1651 = vmatmul.mubr.f32.gmra.mrb[0].mxu0 %v1117
          %v1652 = vpop.f32.mrb[0].mxu0
          %v1653 = vadd.f32 %v1441, %v1652
          %v1654 = vpop.f32.mrb[0].mxu0
          %v1655 = vadd.f32 %v1445, %v1654
          %1656 = vmatprep.mubr.f32.mxu0 %v1120
          %1657 = vmatmul.mubr.f32.gmra.mrb[0].mxu0 %v1119
          %v1658 = vpop.f32.mrb[0].mxu0
          %v1659 = vadd.f32 %v1441, %v1658
          %v1660 = vpop.f32.mrb[0].mxu0
          %v1661 = vadd.f32 %v1445, %v1660
          %1662 = vmatprep.mubr.f32.mxu0 %v1122
          %1663 = vmatmul.mubr.f32.gmra.mrb[0].mxu0 %v1121
          %v1664 = vpop.f32.mrb[0].mxu0
          %v1665 = vadd.f32 %v1441, %v1664
          %v1666 = vpop.f32.mrb[0].mxu0
          %v1667 = vadd.f32 %v1445, %v1666
          %1668 = vmatprep.mubr.f32.mxu0 %v1124
          %1669 = vmatmul.mubr.f32.gmra.mrb[0].mxu0 %v1123
          %v1670 = vpop.f32.mrb[0].mxu0
          %v1671 = vadd.f32 %v1441, %v1670
          %v1672 = vpop.f32.mrb[0].mxu0
          %v1673 = vadd.f32 %v1445, %v1672
          %1674 = vmatprep.mubr.f32.mxu0 %v1126
          %1675 = vmatmul.mubr.f32.gmra.mrb[0].mxu0 %v1125
          %v1676 = vpop.f32.mrb[0].mxu0
          %v1677 = vadd.f32 %v1441, %v1676
          %v1678 = vpop.f32.mrb[0].mxu0
          %v1679 = vadd.f32 %v1445, %v1678
          %1680 = vmatprep.mubr.f32.mxu0 %v1128
          %1681 = vmatmul.mubr.f32.gmra.mrb[0].mxu0 %v1127
          %v1682 = vpop.f32.mrb[0].mxu0
          %v1683 = vadd.f32 %v1441, %v1682
          %v1684 = vpop.f32.mrb[0].mxu0
          %v1685 = vadd.f32 %v1445, %v1684
          %1686 = vmatprep.mubr.f32.mxu0 %v1130
          %1687 = vmatmul.mubr.f32.gmra.mrb[0].mxu0 %v1129
          %v1688 = vpop.f32.mrb[0].mxu0
          %v1689 = vadd.f32 %v1441, %v1688
          %v1690 = vpop.f32.mrb[0].mxu0
          %v1691 = vadd.f32 %v1445, %v1690
          %1692 = vmatprep.mubr.f32.mxu0 %v1132
          %1693 = vmatmul.mubr.f32.gmra.mrb[0].mxu0 %v1131
          %v1694 = vpop.f32.mrb[0].mxu0
          %v1695 = vadd.f32 %v1441, %v1694
          %v1696 = vpop.f32.mrb[0].mxu0
          %v1697 = vadd.f32 %v1445, %v1696
          %1698 = vmatprep.mubr.f32.mxu0 %v1134
          %1699 = vmatmul.mubr.f32.gmra.mrb[0].mxu0 %v1133
          %v1700 = vpop.f32.mrb[0].mxu0
          %v1701 = vadd.f32 %v1441, %v1700
          %v1702 = vpop.f32.mrb[0].mxu0
          %v1703 = vadd.f32 %v1445, %v1702
          %1704 = vdwg.mxu0
          %v1705 = vld [vmem:[#allocation13] sm:$0xff]
          %v1706 = vld [vmem:[#allocation13 + $0x8] sm:$0xff]
          %v1707 = vld [vmem:[#allocation13 + $0x10] sm:$0xff]
          %v1708 = vld [vmem:[#allocation13 + $0x18] sm:$0xff]
          %v1709 = vld [vmem:[#allocation13 + $0x20] sm:$0xff]
          %v1710 = vld [vmem:[#allocation13 + $0x28] sm:$0xff]
          %v1711 = vld [vmem:[#allocation13 + $0x30] sm:$0xff]
          %v1712 = vld [vmem:[#allocation13 + $0x38] sm:$0xff]
          %v1713 = vld [vmem:[#allocation13 + $0x40] sm:$0xff]
          %v1714 = vld [vmem:[#allocation13 + $0x48] sm:$0xff]
          %v1715 = vld [vmem:[#allocation13 + $0x50] sm:$0xff]
          %v1716 = vld [vmem:[#allocation13 + $0x58] sm:$0xff]
          %v1717 = vld [vmem:[#allocation13 + $0x60] sm:$0xff]
          %v1718 = vld [vmem:[#allocation13 + $0x68] sm:$0xff]
          %v1719 = vld [vmem:[#allocation13 + $0x70] sm:$0xff]
          %v1720 = vld [vmem:[#allocation13 + $0x78] sm:$0xff]
          %v1721 = vld [vmem:[#allocation13 + $0x80] sm:$0xff]
          %v1722 = vld [vmem:[#allocation13 + $0x88] sm:$0xff]
          %v1723 = vld [vmem:[#allocation13 + $0x90] sm:$0xff]
          %v1724 = vld [vmem:[#allocation13 + $0x98] sm:$0xff]
          %v1725 = vld [vmem:[#allocation13 + $0xa0] sm:$0xff]
          %v1726 = vld [vmem:[#allocation13 + $0xa8] sm:$0xff]
          %v1727 = vld [vmem:[#allocation13 + $0xb0] sm:$0xff]
          %v1728 = vld [vmem:[#allocation13 + $0xb8] sm:$0xff]
          %v1729 = vld [vmem:[#allocation13 + $0xc0] sm:$0xff]
          %v1730 = vld [vmem:[#allocation13 + $0xc8] sm:$0xff]
          %v1731 = vld [vmem:[#allocation13 + $0xd0] sm:$0xff]
          %v1732 = vld [vmem:[#allocation13 + $0xd8] sm:$0xff]
          %v1733 = vld [vmem:[#allocation13 + $0xe0] sm:$0xff]
          %v1734 = vld [vmem:[#allocation13 + $0xe8] sm:$0xff]
          %v1735 = vld [vmem:[#allocation13 + $0xf0] sm:$0xff]
          %v1736 = vld [vmem:[#allocation13 + $0xf8] sm:$0xff]
          %v1737 = vld [vmem:[#allocation13 + $0x100] sm:$0xff]
          %v1738 = vld [vmem:[#allocation13 + $0x108] sm:$0xff]
          %v1739 = vld [vmem:[#allocation13 + $0x110] sm:$0xff]
          %v1740 = vld [vmem:[#allocation13 + $0x118] sm:$0xff]
          %v1741 = vld [vmem:[#allocation13 + $0x120] sm:$0xff]
          %v1742 = vld [vmem:[#allocation13 + $0x128] sm:$0xff]
          %v1743 = vld [vmem:[#allocation13 + $0x130] sm:$0xff]
          %v1744 = vld [vmem:[#allocation13 + $0x138] sm:$0xff]
          %v1745 = vld [vmem:[#allocation13 + $0x140] sm:$0xff]
          %v1746 = vld [vmem:[#allocation13 + $0x148] sm:$0xff]
          %v1747 = vld [vmem:[#allocation13 + $0x150] sm:$0xff]
          %v1748 = vld [vmem:[#allocation13 + $0x158] sm:$0xff]
          %v1749 = vld [vmem:[#allocation13 + $0x160] sm:$0xff]
          %v1750 = vld [vmem:[#allocation13 + $0x168] sm:$0xff]
          %v1751 = vld [vmem:[#allocation13 + $0x170] sm:$0xff]
          %v1752 = vld [vmem:[#allocation13 + $0x178] sm:$0xff]
          %v1753 = vld [vmem:[#allocation13 + $0x180] sm:$0xff]
          %v1754 = vld [vmem:[#allocation13 + $0x188] sm:$0xff]
          %v1755 = vld [vmem:[#allocation13 + $0x190] sm:$0xff]
          %v1756 = vld [vmem:[#allocation13 + $0x198] sm:$0xff]
          %v1757 = vld [vmem:[#allocation13 + $0x1a0] sm:$0xff]
          %v1758 = vld [vmem:[#allocation13 + $0x1a8] sm:$0xff]
          %v1759 = vld [vmem:[#allocation13 + $0x1b0] sm:$0xff]
          %v1760 = vld [vmem:[#allocation13 + $0x1b8] sm:$0xff]
          %v1761 = vld [vmem:[#allocation13 + $0x1c0] sm:$0xff]
          %v1762 = vld [vmem:[#allocation13 + $0x1c8] sm:$0xff]
          %v1763 = vld [vmem:[#allocation13 + $0x1d0] sm:$0xff]
          %v1764 = vld [vmem:[#allocation13 + $0x1d8] sm:$0xff]
          %v1765 = vld [vmem:[#allocation13 + $0x1e0] sm:$0xff]
          %v1766 = vld [vmem:[#allocation13 + $0x1e8] sm:$0xff]
          %v1767 = vld [vmem:[#allocation13 + $0x1f0] sm:$0xff]
          %v1768 = vld [vmem:[#allocation13 + $0x1f8] sm:$0xff]
          %v1769 = vld [vmem:[#allocation16] sm:$0x3]
          %v1771 = vlaneseq
          %v1772 = vshrl.u32 %v1771, 7
          %v1773 = vsub.s32 0, %v1772
          %v1774 = vrot.slane %v1769, %v1773
          %v1775 = vlaneseq
          %v1776 = vshrl.u32 %v1775, 7
          %v1777 = vsub.s32 1, %v1776
          %v1778 = vrot.slane %v1769, %v1777
          %1781 = vmatprep.subr.mxu0 %v1706
          %1782 = vmatpush1.msra.mxu0 %v1705
          %1783 = vmatprep.subr.mxu0 %v1708
          %1784 = vmatpush1.msra.mxu0 %v1707
          %1785 = vmatprep.subr.mxu0 %v1710
          %1786 = vmatpush1.msra.mxu0 %v1709
          %1787 = vmatprep.subr.mxu0 %v1712
          %1788 = vmatpush1.msra.mxu0 %v1711
          %1789 = vmatprep.subr.mxu0 %v1714
          %1790 = vmatpush1.msra.mxu0 %v1713
          %1791 = vmatprep.subr.mxu0 %v1716
          %1792 = vmatpush1.msra.mxu0 %v1715
          %1793 = vmatprep.subr.mxu0 %v1718
          %1794 = vmatpush1.msra.mxu0 %v1717
          %1795 = vmatprep.subr.mxu0 %v1720
          %1796 = vmatpush1.msra.mxu0 %v1719
          %1797 = vmatprep.subr.mxu0 %v1722
          %1798 = vmatpush1.msra.mxu0 %v1721
          %1799 = vmatprep.subr.mxu0 %v1724
          %1800 = vmatpush1.msra.mxu0 %v1723
          %1801 = vmatprep.subr.mxu0 %v1726
          %1802 = vmatpush1.msra.mxu0 %v1725
          %1803 = vmatprep.subr.mxu0 %v1728
          %1804 = vmatpush1.msra.mxu0 %v1727
          %1805 = vmatprep.subr.mxu0 %v1730
          %1806 = vmatpush1.msra.mxu0 %v1729
          %1807 = vmatprep.subr.mxu0 %v1732
          %1808 = vmatpush1.msra.mxu0 %v1731
          %1809 = vmatprep.subr.mxu0 %v1734
          %1810 = vmatpush1.msra.mxu0 %v1733
          %1811 = vmatprep.subr.mxu0 %v1736
          %1812 = vmatpush1.msra.mxu0 %v1735
          %1813 = vmatprep.subr.mxu0 %v1738
          %1814 = vmatpush1.msra.mxu0 %v1737
          %1815 = vmatprep.subr.mxu0 %v1740
          %1816 = vmatpush1.msra.mxu0 %v1739
          %1817 = vmatprep.subr.mxu0 %v1742
          %1818 = vmatpush1.msra.mxu0 %v1741
          %1819 = vmatprep.subr.mxu0 %v1744
          %1820 = vmatpush1.msra.mxu0 %v1743
          %1821 = vmatprep.subr.mxu0 %v1746
          %1822 = vmatpush1.msra.mxu0 %v1745
          %1823 = vmatprep.subr.mxu0 %v1748
          %1824 = vmatpush1.msra.mxu0 %v1747
          %1825 = vmatprep.subr.mxu0 %v1750
          %1826 = vmatpush1.msra.mxu0 %v1749
          %1827 = vmatprep.subr.mxu0 %v1752
          %1828 = vmatpush1.msra.mxu0 %v1751
          %1829 = vmatprep.subr.mxu0 %v1754
          %1830 = vmatpush1.msra.mxu0 %v1753
          %1831 = vmatprep.subr.mxu0 %v1756
          %1832 = vmatpush1.msra.mxu0 %v1755
          %1833 = vmatprep.subr.mxu0 %v1758
          %1834 = vmatpush1.msra.mxu0 %v1757
          %1835 = vmatprep.subr.mxu0 %v1760
          %1836 = vmatpush1.msra.mxu0 %v1759
          %1837 = vmatprep.subr.mxu0 %v1762
          %1838 = vmatpush1.msra.mxu0 %v1761
          %1839 = vmatprep.subr.mxu0 %v1764
          %1840 = vmatpush1.msra.mxu0 %v1763
          %1841 = vmatprep.subr.mxu0 %v1766
          %1842 = vmatpush1.msra.mxu0 %v1765
          %1843 = vmatprep.subr.mxu0 %v1768
          %1844 = vmatpush1.msra.mxu0 %v1767
          %1845 = vmatprep.mubr.f32.mxu0 %v1072
          %1846 = vmatmul.mubr.f32.gmra.mrb[0].mxu0 %v1071
          %v1847 = vpop.f32.mrb[0].mxu0
          %v1848 = vadd.f32 %v1774, %v1847
          %v1849 = vpop.f32.mrb[0].mxu0
          %v1850 = vadd.f32 %v1778, %v1849
          %1851 = vmatprep.mubr.f32.mxu0 %v1074
          %1852 = vmatmul.mubr.f32.gmra.mrb[0].mxu0 %v1073
          %v1853 = vpop.f32.mrb[0].mxu0
          %v1854 = vadd.f32 %v1774, %v1853
          %v1855 = vpop.f32.mrb[0].mxu0
          %v1856 = vadd.f32 %v1778, %v1855
          %1857 = vmatprep.mubr.f32.mxu0 %v1076
          %1858 = vmatmul.mubr.f32.gmra.mrb[0].mxu0 %v1075
          %v1859 = vpop.f32.mrb[0].mxu0
          %v1860 = vadd.f32 %v1774, %v1859
          %v1861 = vpop.f32.mrb[0].mxu0
          %v1862 = vadd.f32 %v1778, %v1861
          %1863 = vmatprep.mubr.f32.mxu0 %v1078
          %1864 = vmatmul.mubr.f32.gmra.mrb[0].mxu0 %v1077
          %v1865 = vpop.f32.mrb[0].mxu0
          %v1866 = vadd.f32 %v1774, %v1865
          %v1867 = vpop.f32.mrb[0].mxu0
          %v1868 = vadd.f32 %v1778, %v1867
          %1869 = vmatprep.mubr.f32.mxu0 %v1080
          %1870 = vmatmul.mubr.f32.gmra.mrb[0].mxu0 %v1079
          %v1871 = vpop.f32.mrb[0].mxu0
          %v1872 = vadd.f32 %v1774, %v1871
          %v1873 = vpop.f32.mrb[0].mxu0
          %v1874 = vadd.f32 %v1778, %v1873
          %1875 = vmatprep.mubr.f32.mxu0 %v1082
          %1876 = vmatmul.mubr.f32.gmra.mrb[0].mxu0 %v1081
          %v1877 = vpop.f32.mrb[0].mxu0
          %v1878 = vadd.f32 %v1774, %v1877
          %v1879 = vpop.f32.mrb[0].mxu0
          %v1880 = vadd.f32 %v1778, %v1879
          %1881 = vmatprep.mubr.f32.mxu0 %v1084
          %1882 = vmatmul.mubr.f32.gmra.mrb[0].mxu0 %v1083
          %v1883 = vpop.f32.mrb[0].mxu0
          %v1884 = vadd.f32 %v1774, %v1883
          %v1885 = vpop.f32.mrb[0].mxu0
          %v1886 = vadd.f32 %v1778, %v1885
          %1887 = vmatprep.mubr.f32.mxu0 %v1086
          %1888 = vmatmul.mubr.f32.gmra.mrb[0].mxu0 %v1085
          %v1889 = vpop.f32.mrb[0].mxu0
          %v1890 = vadd.f32 %v1774, %v1889
          %v1891 = vpop.f32.mrb[0].mxu0
          %v1892 = vadd.f32 %v1778, %v1891
          %1893 = vmatprep.mubr.f32.mxu0 %v1088
          %1894 = vmatmul.mubr.f32.gmra.mrb[0].mxu0 %v1087
          %v1895 = vpop.f32.mrb[0].mxu0
          %v1896 = vadd.f32 %v1774, %v1895
          %v1897 = vpop.f32.mrb[0].mxu0
          %v1898 = vadd.f32 %v1778, %v1897
          %1899 = vmatprep.mubr.f32.mxu0 %v1090
          %1900 = vmatmul.mubr.f32.gmra.mrb[0].mxu0 %v1089
          %v1901 = vpop.f32.mrb[0].mxu0
          %v1902 = vadd.f32 %v1774, %v1901
          %v1903 = vpop.f32.mrb[0].mxu0
          %v1904 = vadd.f32 %v1778, %v1903
          %1905 = vmatprep.mubr.f32.mxu0 %v1092
          %1906 = vmatmul.mubr.f32.gmra.mrb[0].mxu0 %v1091
          %v1907 = vpop.f32.mrb[0].mxu0
          %v1908 = vadd.f32 %v1774, %v1907
          %v1909 = vpop.f32.mrb[0].mxu0
          %v1910 = vadd.f32 %v1778, %v1909
          %1911 = vmatprep.mubr.f32.mxu0 %v1094
          %1912 = vmatmul.mubr.f32.gmra.mrb[0].mxu0 %v1093
          %v1913 = vpop.f32.mrb[0].mxu0
          %v1914 = vadd.f32 %v1774, %v1913
          %v1915 = vpop.f32.mrb[0].mxu0
          %v1916 = vadd.f32 %v1778, %v1915
          %1917 = vmatprep.mubr.f32.mxu0 %v1096
          %1918 = vmatmul.mubr.f32.gmra.mrb[0].mxu0 %v1095
          %v1919 = vpop.f32.mrb[0].mxu0
          %v1920 = vadd.f32 %v1774, %v1919
          %v1921 = vpop.f32.mrb[0].mxu0
          %v1922 = vadd.f32 %v1778, %v1921
          %1923 = vmatprep.mubr.f32.mxu0 %v1098
          %1924 = vmatmul.mubr.f32.gmra.mrb[0].mxu0 %v1097
          %v1925 = vpop.f32.mrb[0].mxu0
          %v1926 = vadd.f32 %v1774, %v1925
          %v1927 = vpop.f32.mrb[0].mxu0
          %v1928 = vadd.f32 %v1778, %v1927
          %1929 = vmatprep.mubr.f32.mxu0 %v1100
          %1930 = vmatmul.mubr.f32.gmra.mrb[0].mxu0 %v1099
          %v1931 = vpop.f32.mrb[0].mxu0
          %v1932 = vadd.f32 %v1774, %v1931
          %v1933 = vpop.f32.mrb[0].mxu0
          %v1934 = vadd.f32 %v1778, %v1933
          %1935 = vmatprep.mubr.f32.mxu0 %v1102
          %1936 = vmatmul.mubr.f32.gmra.mrb[0].mxu0 %v1101
          %v1937 = vpop.f32.mrb[0].mxu0
          %v1938 = vadd.f32 %v1774, %v1937
          %v1939 = vpop.f32.mrb[0].mxu0
          %v1940 = vadd.f32 %v1778, %v1939
          %1941 = vmatprep.mubr.f32.mxu0 %v1104
          %1942 = vmatmul.mubr.f32.gmra.mrb[0].mxu0 %v1103
          %v1943 = vpop.f32.mrb[0].mxu0
          %v1944 = vadd.f32 %v1774, %v1943
          %v1945 = vpop.f32.mrb[0].mxu0
          %v1946 = vadd.f32 %v1778, %v1945
          %1947 = vmatprep.mubr.f32.mxu0 %v1106
          %1948 = vmatmul.mubr.f32.gmra.mrb[0].mxu0 %v1105
          %v1949 = vpop.f32.mrb[0].mxu0
          %v1950 = vadd.f32 %v1774, %v1949
          %v1951 = vpop.f32.mrb[0].mxu0
          %v1952 = vadd.f32 %v1778, %v1951
          %1953 = vmatprep.mubr.f32.mxu0 %v1108
          %1954 = vmatmul.mubr.f32.gmra.mrb[0].mxu0 %v1107
          %v1955 = vpop.f32.mrb[0].mxu0
          %v1956 = vadd.f32 %v1774, %v1955
          %v1957 = vpop.f32.mrb[0].mxu0
          %v1958 = vadd.f32 %v1778, %v1957
          %1959 = vmatprep.mubr.f32.mxu0 %v1110
          %1960 = vmatmul.mubr.f32.gmra.mrb[0].mxu0 %v1109
          %v1961 = vpop.f32.mrb[0].mxu0
          %v1962 = vadd.f32 %v1774, %v1961
          %v1963 = vpop.f32.mrb[0].mxu0
          %v1964 = vadd.f32 %v1778, %v1963
          %1965 = vmatprep.mubr.f32.mxu0 %v1112
          %1966 = vmatmul.mubr.f32.gmra.mrb[0].mxu0 %v1111
          %v1967 = vpop.f32.mrb[0].mxu0
          %v1968 = vadd.f32 %v1774, %v1967
          %v1969 = vpop.f32.mrb[0].mxu0
          %v1970 = vadd.f32 %v1778, %v1969
          %1971 = vmatprep.mubr.f32.mxu0 %v1114
          %1972 = vmatmul.mubr.f32.gmra.mrb[0].mxu0 %v1113
          %v1973 = vpop.f32.mrb[0].mxu0
          %v1974 = vadd.f32 %v1774, %v1973
          %v1975 = vpop.f32.mrb[0].mxu0
          %v1976 = vadd.f32 %v1778, %v1975
          %1977 = vmatprep.mubr.f32.mxu0 %v1116
          %1978 = vmatmul.mubr.f32.gmra.mrb[0].mxu0 %v1115
          %v1979 = vpop.f32.mrb[0].mxu0
          %v1980 = vadd.f32 %v1774, %v1979
          %v1981 = vpop.f32.mrb[0].mxu0
          %v1982 = vadd.f32 %v1778, %v1981
          %1983 = vmatprep.mubr.f32.mxu0 %v1118
          %1984 = vmatmul.mubr.f32.gmra.mrb[0].mxu0 %v1117
          %v1985 = vpop.f32.mrb[0].mxu0
          %v1986 = vadd.f32 %v1774, %v1985
          %v1987 = vpop.f32.mrb[0].mxu0
          %v1988 = vadd.f32 %v1778, %v1987
          %1989 = vmatprep.mubr.f32.mxu0 %v1120
          %1990 = vmatmul.mubr.f32.gmra.mrb[0].mxu0 %v1119
          %v1991 = vpop.f32.mrb[0].mxu0
          %v1992 = vadd.f32 %v1774, %v1991
          %v1993 = vpop.f32.mrb[0].mxu0
          %v1994 = vadd.f32 %v1778, %v1993
          %1995 = vmatprep.mubr.f32.mxu0 %v1122
          %1996 = vmatmul.mubr.f32.gmra.mrb[0].mxu0 %v1121
          %v1997 = vpop.f32.mrb[0].mxu0
          %v1998 = vadd.f32 %v1774, %v1997
          %v1999 = vpop.f32.mrb[0].mxu0
          %v2000 = vadd.f32 %v1778, %v1999
          %2001 = vmatprep.mubr.f32.mxu0 %v1124
          %2002 = vmatmul.mubr.f32.gmra.mrb[0].mxu0 %v1123
          %v2003 = vpop.f32.mrb[0].mxu0
          %v2004 = vadd.f32 %v1774, %v2003
          %v2005 = vpop.f32.mrb[0].mxu0
          %v2006 = vadd.f32 %v1778, %v2005
          %2007 = vmatprep.mubr.f32.mxu0 %v1126
          %2008 = vmatmul.mubr.f32.gmra.mrb[0].mxu0 %v1125
          %v2009 = vpop.f32.mrb[0].mxu0
          %v2010 = vadd.f32 %v1774, %v2009
          %v2011 = vpop.f32.mrb[0].mxu0
          %v2012 = vadd.f32 %v1778, %v2011
          %2013 = vmatprep.mubr.f32.mxu0 %v1128
          %2014 = vmatmul.mubr.f32.gmra.mrb[0].mxu0 %v1127
          %v2015 = vpop.f32.mrb[0].mxu0
          %v2016 = vadd.f32 %v1774, %v2015
          %v2017 = vpop.f32.mrb[0].mxu0
          %v2018 = vadd.f32 %v1778, %v2017
          %2019 = vmatprep.mubr.f32.mxu0 %v1130
          %2020 = vmatmul.mubr.f32.gmra.mrb[0].mxu0 %v1129
          %v2021 = vpop.f32.mrb[0].mxu0
          %v2022 = vadd.f32 %v1774, %v2021
          %v2023 = vpop.f32.mrb[0].mxu0
          %v2024 = vadd.f32 %v1778, %v2023
          %2025 = vmatprep.mubr.f32.mxu0 %v1132
          %2026 = vmatmul.mubr.f32.gmra.mrb[0].mxu0 %v1131
          %v2027 = vpop.f32.mrb[0].mxu0
          %v2028 = vadd.f32 %v1774, %v2027
          %v2029 = vpop.f32.mrb[0].mxu0
          %v2030 = vadd.f32 %v1778, %v2029
          %2031 = vmatprep.mubr.f32.mxu0 %v1134
          %2032 = vmatmul.mubr.f32.gmra.mrb[0].mxu0 %v1133
          %v2033 = vpop.f32.mrb[0].mxu0
          %v2034 = vadd.f32 %v1774, %v2033
          %v2035 = vpop.f32.mrb[0].mxu0
          %v2036 = vadd.f32 %v1778, %v2035
          %2037 = vdwg.mxu0
          %v2038 = vld [vmem:[%s1023] sm:$0xff]
          %v2039 = vld [vmem:[%s1023 + $0x8] sm:$0xff]
          %v2040 = vld [vmem:[%s1023 + $0x10] sm:$0xff]
          %v2041 = vld [vmem:[%s1023 + $0x18] sm:$0xff]
          %v2042 = vld [vmem:[%s1023 + $0x20] sm:$0xff]
          %v2043 = vld [vmem:[%s1023 + $0x28] sm:$0xff]
          %v2044 = vld [vmem:[%s1023 + $0x30] sm:$0xff]
          %v2045 = vld [vmem:[%s1023 + $0x38] sm:$0xff]
          %v2046 = vld [vmem:[%s1023 + $0x40] sm:$0xff]
          %v2047 = vld [vmem:[%s1023 + $0x48] sm:$0xff]
          %v2048 = vld [vmem:[%s1023 + $0x50] sm:$0xff]
          %v2049 = vld [vmem:[%s1023 + $0x58] sm:$0xff]
          %v2050 = vld [vmem:[%s1023 + $0x60] sm:$0xff]
          %v2051 = vld [vmem:[%s1023 + $0x68] sm:$0xff]
          %v2052 = vld [vmem:[%s1023 + $0x70] sm:$0xff]
          %v2053 = vld [vmem:[%s1023 + $0x78] sm:$0xff]
          %v2054 = vld [vmem:[%s900] sm:$0xff]
          %v2055 = vld [vmem:[%s900 + $0x8] sm:$0xff]
          %v2056 = vld [vmem:[%s900 + $0x10] sm:$0xff]
          %v2057 = vld [vmem:[%s900 + $0x18] sm:$0xff]
          %v2058 = vld [vmem:[%s900 + $0x20] sm:$0xff]
          %v2059 = vld [vmem:[%s900 + $0x28] sm:$0xff]
          %v2060 = vld [vmem:[%s900 + $0x30] sm:$0xff]
          %v2061 = vld [vmem:[%s900 + $0x38] sm:$0xff]
          %v2062 = vld [vmem:[%s900 + $0x40] sm:$0xff]
          %v2063 = vld [vmem:[%s900 + $0x48] sm:$0xff]
          %v2064 = vld [vmem:[%s900 + $0x50] sm:$0xff]
          %v2065 = vld [vmem:[%s900 + $0x58] sm:$0xff]
          %v2066 = vld [vmem:[%s900 + $0x60] sm:$0xff]
          %v2067 = vld [vmem:[%s900 + $0x68] sm:$0xff]
          %v2068 = vld [vmem:[%s900 + $0x70] sm:$0xff]
          %v2069 = vld [vmem:[%s900 + $0x78] sm:$0xff]
          %v2070 = vld [vmem:[#allocation19] sm:$0xff]
          %v2071 = vld [vmem:[#allocation19 + $0x8] sm:$0xff]
          %v2072 = vld [vmem:[#allocation19 + $0x10] sm:$0xff]
          %v2073 = vld [vmem:[#allocation19 + $0x18] sm:$0xff]
          %v2074 = vld [vmem:[#allocation19 + $0x20] sm:$0xff]
          %v2075 = vld [vmem:[#allocation19 + $0x28] sm:$0xff]
          %v2076 = vld [vmem:[#allocation19 + $0x30] sm:$0xff]
          %v2077 = vld [vmem:[#allocation19 + $0x38] sm:$0xff]
          %v2078 = vld [vmem:[#allocation19 + $0x40] sm:$0xff]
          %v2079 = vld [vmem:[#allocation19 + $0x48] sm:$0xff]
          %v2080 = vld [vmem:[#allocation19 + $0x50] sm:$0xff]
          %v2081 = vld [vmem:[#allocation19 + $0x58] sm:$0xff]
          %v2082 = vld [vmem:[#allocation19 + $0x60] sm:$0xff]
          %v2083 = vld [vmem:[#allocation19 + $0x68] sm:$0xff]
          %v2084 = vld [vmem:[#allocation19 + $0x70] sm:$0xff]
          %v2085 = vld [vmem:[#allocation19 + $0x78] sm:$0xff]
          %v2086 = vld [vmem:[#allocation19 + $0x80] sm:$0xff]
          %v2087 = vld [vmem:[#allocation19 + $0x88] sm:$0xff]
          %v2088 = vld [vmem:[#allocation19 + $0x90] sm:$0xff]
          %v2089 = vld [vmem:[#allocation19 + $0x98] sm:$0xff]
          %v2090 = vld [vmem:[#allocation19 + $0xa0] sm:$0xff]
          %v2091 = vld [vmem:[#allocation19 + $0xa8] sm:$0xff]
          %v2092 = vld [vmem:[#allocation19 + $0xb0] sm:$0xff]
          %v2093 = vld [vmem:[#allocation19 + $0xb8] sm:$0xff]
          %v2094 = vld [vmem:[#allocation19 + $0xc0] sm:$0xff]
          %v2095 = vld [vmem:[#allocation19 + $0xc8] sm:$0xff]
          %v2096 = vld [vmem:[#allocation19 + $0xd0] sm:$0xff]
          %v2097 = vld [vmem:[#allocation19 + $0xd8] sm:$0xff]
          %v2098 = vld [vmem:[#allocation19 + $0xe0] sm:$0xff]
          %v2099 = vld [vmem:[#allocation19 + $0xe8] sm:$0xff]
          %v2100 = vld [vmem:[#allocation19 + $0xf0] sm:$0xff]
          %v2101 = vld [vmem:[#allocation19 + $0xf8] sm:$0xff]
          %v2102 = vld [vmem:[#allocation20] sm:$0xff]
          %v2103 = vld [vmem:[#allocation20 + $0x8] sm:$0xff]
          %v2104 = vld [vmem:[#allocation20 + $0x10] sm:$0xff]
          %v2105 = vld [vmem:[#allocation20 + $0x18] sm:$0xff]
          %v2106 = vld [vmem:[#allocation20 + $0x20] sm:$0xff]
          %v2107 = vld [vmem:[#allocation20 + $0x28] sm:$0xff]
          %v2108 = vld [vmem:[#allocation20 + $0x30] sm:$0xff]
          %v2109 = vld [vmem:[#allocation20 + $0x38] sm:$0xff]
          %v2110 = vld [vmem:[#allocation20 + $0x40] sm:$0xff]
          %v2111 = vld [vmem:[#allocation20 + $0x48] sm:$0xff]
          %v2112 = vld [vmem:[#allocation20 + $0x50] sm:$0xff]
          %v2113 = vld [vmem:[#allocation20 + $0x58] sm:$0xff]
          %v2114 = vld [vmem:[#allocation20 + $0x60] sm:$0xff]
          %v2115 = vld [vmem:[#allocation20 + $0x68] sm:$0xff]
          %v2116 = vld [vmem:[#allocation20 + $0x70] sm:$0xff]
          %v2117 = vld [vmem:[#allocation20 + $0x78] sm:$0xff]
          %v2118 = vld [vmem:[#allocation20 + $0x80] sm:$0xff]
          %v2119 = vld [vmem:[#allocation20 + $0x88] sm:$0xff]
          %v2120 = vld [vmem:[#allocation20 + $0x90] sm:$0xff]
          %v2121 = vld [vmem:[#allocation20 + $0x98] sm:$0xff]
          %v2122 = vld [vmem:[#allocation20 + $0xa0] sm:$0xff]
          %v2123 = vld [vmem:[#allocation20 + $0xa8] sm:$0xff]
          %v2124 = vld [vmem:[#allocation20 + $0xb0] sm:$0xff]
          %v2125 = vld [vmem:[#allocation20 + $0xb8] sm:$0xff]
          %v2126 = vld [vmem:[#allocation20 + $0xc0] sm:$0xff]
          %v2127 = vld [vmem:[#allocation20 + $0xc8] sm:$0xff]
          %v2128 = vld [vmem:[#allocation20 + $0xd0] sm:$0xff]
          %v2129 = vld [vmem:[#allocation20 + $0xd8] sm:$0xff]
          %v2130 = vld [vmem:[#allocation20 + $0xe0] sm:$0xff]
          %v2131 = vld [vmem:[#allocation20 + $0xe8] sm:$0xff]
          %v2132 = vld [vmem:[#allocation20 + $0xf0] sm:$0xff]
          %v2133 = vld [vmem:[#allocation20 + $0xf8] sm:$0xff]
          %v2134 = vmul.f32 %v1278, %v2038
          %v2135 = vmul.f32 %v1284, %v2039
          %v2136 = vmul.f32 %v1290, %v2040
          %v2137 = vmul.f32 %v1296, %v2041
          %v2138 = vmul.f32 %v1302, %v2042
          %v2139 = vmul.f32 %v1308, %v2043
          %v2140 = vmul.f32 %v1314, %v2044
          %v2141 = vmul.f32 %v1320, %v2045
          %v2142 = vmul.f32 %v1326, %v2046
          %v2143 = vmul.f32 %v1332, %v2047
          %v2144 = vmul.f32 %v1338, %v2048
          %v2145 = vmul.f32 %v1344, %v2049
          %v2146 = vmul.f32 %v1350, %v2050
          %v2147 = vmul.f32 %v1356, %v2051
          %v2148 = vmul.f32 %v1362, %v2052
          %v2149 = vmul.f32 %v1368, %v2053
          %2150 = vrot.lane.b32.xlu0 %v1278, 64
          %v2151 = vpop.permute.xlu0 %2150
          %2152 = vrot.lane.b32.xlu0 %v1284, 64
          %v2153 = vpop.permute.xlu0 %2152
          %2154 = vrot.lane.b32.xlu0 %v1290, 64
          %v2155 = vpop.permute.xlu0 %2154
          %2156 = vrot.lane.b32.xlu0 %v1296, 64
          %v2157 = vpop.permute.xlu0 %2156
          %2158 = vrot.lane.b32.xlu0 %v1302, 64
          %v2159 = vpop.permute.xlu0 %2158
          %2160 = vrot.lane.b32.xlu0 %v1308, 64
          %v2161 = vpop.permute.xlu0 %2160
          %2162 = vrot.lane.b32.xlu0 %v1314, 64
          %v2163 = vpop.permute.xlu0 %2162
          %2164 = vrot.lane.b32.xlu0 %v1320, 64
          %v2165 = vpop.permute.xlu0 %2164
          %2166 = vrot.lane.b32.xlu0 %v1326, 64
          %v2167 = vpop.permute.xlu0 %2166
          %2168 = vrot.lane.b32.xlu0 %v1332, 64
          %v2169 = vpop.permute.xlu0 %2168
          %2170 = vrot.lane.b32.xlu0 %v1338, 64
          %v2171 = vpop.permute.xlu0 %2170
          %2172 = vrot.lane.b32.xlu0 %v1344, 64
          %v2173 = vpop.permute.xlu0 %2172
          %2174 = vrot.lane.b32.xlu0 %v1350, 64
          %v2175 = vpop.permute.xlu0 %2174
          %2176 = vrot.lane.b32.xlu0 %v1356, 64
          %v2177 = vpop.permute.xlu0 %2176
          %2178 = vrot.lane.b32.xlu0 %v1362, 64
          %v2179 = vpop.permute.xlu0 %2178
          %2180 = vrot.lane.b32.xlu0 %v1368, 64
          %v2181 = vpop.permute.xlu0 %2180
          %v2182 = vmul.f32 %v2151, %v2054
          %v2183 = vmul.f32 %v2153, %v2055
          %v2184 = vmul.f32 %v2155, %v2056
          %v2185 = vmul.f32 %v2157, %v2057
          %v2186 = vmul.f32 %v2159, %v2058
          %v2187 = vmul.f32 %v2161, %v2059
          %v2188 = vmul.f32 %v2163, %v2060
          %v2189 = vmul.f32 %v2165, %v2061
          %v2190 = vmul.f32 %v2167, %v2062
          %v2191 = vmul.f32 %v2169, %v2063
          %v2192 = vmul.f32 %v2171, %v2064
          %v2193 = vmul.f32 %v2173, %v2065
          %v2194 = vmul.f32 %v2175, %v2066
          %v2195 = vmul.f32 %v2177, %v2067
          %v2196 = vmul.f32 %v2179, %v2068
          %v2197 = vmul.f32 %v2181, %v2069
          %v2198 = vadd.f32 %v2134, %v2182
          %v2199 = vadd.f32 %v2135, %v2183
          %v2200 = vadd.f32 %v2136, %v2184
          %v2201 = vadd.f32 %v2137, %v2185
          %v2202 = vadd.f32 %v2138, %v2186
          %v2203 = vadd.f32 %v2139, %v2187
          %v2204 = vadd.f32 %v2140, %v2188
          %v2205 = vadd.f32 %v2141, %v2189
          %v2206 = vadd.f32 %v2142, %v2190
          %v2207 = vadd.f32 %v2143, %v2191
          %v2208 = vadd.f32 %v2144, %v2192
          %v2209 = vadd.f32 %v2145, %v2193
          %v2210 = vadd.f32 %v2146, %v2194
          %v2211 = vadd.f32 %v2147, %v2195
          %v2212 = vadd.f32 %v2148, %v2196
          %v2213 = vadd.f32 %v2149, %v2197
          %v2214 = vmul.f32 %v1515, %v2070
          %v2215 = vmul.f32 %v1521, %v2071
          %v2216 = vmul.f32 %v1527, %v2072
          %v2217 = vmul.f32 %v1533, %v2073
          %v2218 = vmul.f32 %v1539, %v2074
          %v2219 = vmul.f32 %v1545, %v2075
          %v2220 = vmul.f32 %v1551, %v2076
          %v2221 = vmul.f32 %v1557, %v2077
          %v2222 = vmul.f32 %v1563, %v2078
          %v2223 = vmul.f32 %v1569, %v2079
          %v2224 = vmul.f32 %v1575, %v2080
          %v2225 = vmul.f32 %v1581, %v2081
          %v2226 = vmul.f32 %v1587, %v2082
          %v2227 = vmul.f32 %v1593, %v2083
          %v2228 = vmul.f32 %v1599, %v2084
          %v2229 = vmul.f32 %v1605, %v2085
          %v2230 = vmul.f32 %v1611, %v2086
          %v2231 = vmul.f32 %v1617, %v2087
          %v2232 = vmul.f32 %v1623, %v2088
          %v2233 = vmul.f32 %v1629, %v2089
          %v2234 = vmul.f32 %v1635, %v2090
          %v2235 = vmul.f32 %v1641, %v2091
          %v2236 = vmul.f32 %v1647, %v2092
          %v2237 = vmul.f32 %v1653, %v2093
          %v2238 = vmul.f32 %v1659, %v2094
          %v2239 = vmul.f32 %v1665, %v2095
          %v2240 = vmul.f32 %v1671, %v2096
          %v2241 = vmul.f32 %v1677, %v2097
          %v2242 = vmul.f32 %v1683, %v2098
          %v2243 = vmul.f32 %v1689, %v2099
          %v2244 = vmul.f32 %v1695, %v2100
          %v2245 = vmul.f32 %v1701, %v2101
          %2246 = vrot.lane.b32.xlu0 %v1515, 64
          %v2247 = vpop.permute.xlu0 %2246
          %2248 = vrot.lane.b32.xlu0 %v1521, 64
          %v2249 = vpop.permute.xlu0 %2248
          %2250 = vrot.lane.b32.xlu0 %v1527, 64
          %v2251 = vpop.permute.xlu0 %2250
          %2252 = vrot.lane.b32.xlu0 %v1533, 64
          %v2253 = vpop.permute.xlu0 %2252
          %2254 = vrot.lane.b32.xlu0 %v1539, 64
          %v2255 = vpop.permute.xlu0 %2254
          %2256 = vrot.lane.b32.xlu0 %v1545, 64
          %v2257 = vpop.permute.xlu0 %2256
          %2258 = vrot.lane.b32.xlu0 %v1551, 64
          %v2259 = vpop.permute.xlu0 %2258
          %2260 = vrot.lane.b32.xlu0 %v1557, 64
          %v2261 = vpop.permute.xlu0 %2260
          %2262 = vrot.lane.b32.xlu0 %v1563, 64
          %v2263 = vpop.permute.xlu0 %2262
          %2264 = vrot.lane.b32.xlu0 %v1569, 64
          %v2265 = vpop.permute.xlu0 %2264
          %2266 = vrot.lane.b32.xlu0 %v1575, 64
          %v2267 = vpop.permute.xlu0 %2266
          %2268 = vrot.lane.b32.xlu0 %v1581, 64
          %v2269 = vpop.permute.xlu0 %2268
          %2270 = vrot.lane.b32.xlu0 %v1587, 64
          %v2271 = vpop.permute.xlu0 %2270
          %2272 = vrot.lane.b32.xlu0 %v1593, 64
          %v2273 = vpop.permute.xlu0 %2272
          %2274 = vrot.lane.b32.xlu0 %v1599, 64
          %v2275 = vpop.permute.xlu0 %2274
          %2276 = vrot.lane.b32.xlu0 %v1605, 64
          %v2277 = vpop.permute.xlu0 %2276
          %2278 = vrot.lane.b32.xlu0 %v1611, 64
          %v2279 = vpop.permute.xlu0 %2278
          %2280 = vrot.lane.b32.xlu0 %v1617, 64
          %v2281 = vpop.permute.xlu0 %2280
          %2282 = vrot.lane.b32.xlu0 %v1623, 64
          %v2283 = vpop.permute.xlu0 %2282
          %2284 = vrot.lane.b32.xlu0 %v1629, 64
          %v2285 = vpop.permute.xlu0 %2284
          %2286 = vrot.lane.b32.xlu0 %v1635, 64
          %v2287 = vpop.permute.xlu0 %2286
          %2288 = vrot.lane.b32.xlu0 %v1641, 64
          %v2289 = vpop.permute.xlu0 %2288
          %2290 = vrot.lane.b32.xlu0 %v1647, 64
          %v2291 = vpop.permute.xlu0 %2290
          %2292 = vrot.lane.b32.xlu0 %v1653, 64
          %v2293 = vpop.permute.xlu0 %2292
          %2294 = vrot.lane.b32.xlu0 %v1659, 64
          %v2295 = vpop.permute.xlu0 %2294
          %2296 = vrot.lane.b32.xlu0 %v1665, 64
          %v2297 = vpop.permute.xlu0 %2296
          %2298 = vrot.lane.b32.xlu0 %v1671, 64
          %v2299 = vpop.permute.xlu0 %2298
          %2300 = vrot.lane.b32.xlu0 %v1677, 64
          %v2301 = vpop.permute.xlu0 %2300
          %2302 = vrot.lane.b32.xlu0 %v1683, 64
          %v2303 = vpop.permute.xlu0 %2302
          %2304 = vrot.lane.b32.xlu0 %v1689, 64
          %v2305 = vpop.permute.xlu0 %2304
          %2306 = vrot.lane.b32.xlu0 %v1695, 64
          %v2307 = vpop.permute.xlu0 %2306
          %2308 = vrot.lane.b32.xlu0 %v1701, 64
          %v2309 = vpop.permute.xlu0 %2308
          %v2310 = vmul.f32 %v2247, %v2102
          %v2311 = vmul.f32 %v2249, %v2103
          %v2312 = vmul.f32 %v2251, %v2104
          %v2313 = vmul.f32 %v2253, %v2105
          %v2314 = vmul.f32 %v2255, %v2106
          %v2315 = vmul.f32 %v2257, %v2107
          %v2316 = vmul.f32 %v2259, %v2108
          %v2317 = vmul.f32 %v2261, %v2109
          %v2318 = vmul.f32 %v2263, %v2110
          %v2319 = vmul.f32 %v2265, %v2111
          %v2320 = vmul.f32 %v2267, %v2112
          %v2321 = vmul.f32 %v2269, %v2113
          %v2322 = vmul.f32 %v2271, %v2114
          %v2323 = vmul.f32 %v2273, %v2115
          %v2324 = vmul.f32 %v2275, %v2116
          %v2325 = vmul.f32 %v2277, %v2117
          %v2326 = vmul.f32 %v2279, %v2118
          %v2327 = vmul.f32 %v2281, %v2119
          %v2328 = vmul.f32 %v2283, %v2120
          %v2329 = vmul.f32 %v2285, %v2121
          %v2330 = vmul.f32 %v2287, %v2122
          %v2331 = vmul.f32 %v2289, %v2123
          %v2332 = vmul.f32 %v2291, %v2124
          %v2333 = vmul.f32 %v2293, %v2125
          %v2334 = vmul.f32 %v2295, %v2126
          %v2335 = vmul.f32 %v2297, %v2127
          %v2336 = vmul.f32 %v2299, %v2128
          %v2337 = vmul.f32 %v2301, %v2129
          %v2338 = vmul.f32 %v2303, %v2130
          %v2339 = vmul.f32 %v2305, %v2131
          %v2340 = vmul.f32 %v2307, %v2132
          %v2341 = vmul.f32 %v2309, %v2133
          %v2342 = vadd.f32 %v2214, %v2310
          %v2343 = vadd.f32 %v2215, %v2311
          %v2344 = vadd.f32 %v2216, %v2312
          %v2345 = vadd.f32 %v2217, %v2313
          %v2346 = vadd.f32 %v2218, %v2314
          %v2347 = vadd.f32 %v2219, %v2315
          %v2348 = vadd.f32 %v2220, %v2316
          %v2349 = vadd.f32 %v2221, %v2317
          %v2350 = vadd.f32 %v2222, %v2318
          %v2351 = vadd.f32 %v2223, %v2319
          %v2352 = vadd.f32 %v2224, %v2320
          %v2353 = vadd.f32 %v2225, %v2321
          %v2354 = vadd.f32 %v2226, %v2322
          %v2355 = vadd.f32 %v2227, %v2323
          %v2356 = vadd.f32 %v2228, %v2324
          %v2357 = vadd.f32 %v2229, %v2325
          %v2358 = vadd.f32 %v2230, %v2326
          %v2359 = vadd.f32 %v2231, %v2327
          %v2360 = vadd.f32 %v2232, %v2328
          %v2361 = vadd.f32 %v2233, %v2329
          %v2362 = vadd.f32 %v2234, %v2330
          %v2363 = vadd.f32 %v2235, %v2331
          %v2364 = vadd.f32 %v2236, %v2332
          %v2365 = vadd.f32 %v2237, %v2333
          %v2366 = vadd.f32 %v2238, %v2334
          %v2367 = vadd.f32 %v2239, %v2335
          %v2368 = vadd.f32 %v2240, %v2336
          %v2369 = vadd.f32 %v2241, %v2337
          %v2370 = vadd.f32 %v2242, %v2338
          %v2371 = vadd.f32 %v2243, %v2339
          %v2372 = vadd.f32 %v2244, %v2340
          %v2373 = vadd.f32 %v2245, %v2341
          %2374 = vmatprep.subr.mxu0 0.0
          %2375 = vmatpush1.xpose.msra.mxu0 %v2342
          %2376 = vmatprep.subr.mxu0 0.0
          %2377 = vmatpush1.xpose.msra.mxu0 %v2343
          %2378 = vmatprep.subr.mxu0 0.0
          %2379 = vmatpush1.xpose.msra.mxu0 %v2344
          %2380 = vmatprep.subr.mxu0 0.0
          %2381 = vmatpush1.xpose.msra.mxu0 %v2345
          %2382 = vmatprep.subr.mxu0 0.0
          %2383 = vmatpush1.xpose.msra.mxu0 %v2346
          %2384 = vmatprep.subr.mxu0 0.0
          %2385 = vmatpush1.xpose.msra.mxu0 %v2347
          %2386 = vmatprep.subr.mxu0 0.0
          %2387 = vmatpush1.xpose.msra.mxu0 %v2348
          %2388 = vmatprep.subr.mxu0 0.0
          %2389 = vmatpush1.xpose.msra.mxu0 %v2349
          %2390 = vmatprep.subr.mxu0 0.0
          %2391 = vmatpush1.xpose.msra.mxu0 %v2350
          %2392 = vmatprep.subr.mxu0 0.0
          %2393 = vmatpush1.xpose.msra.mxu0 %v2351
          %2394 = vmatprep.subr.mxu0 0.0
          %2395 = vmatpush1.xpose.msra.mxu0 %v2352
          %2396 = vmatprep.subr.mxu0 0.0
          %2397 = vmatpush1.xpose.msra.mxu0 %v2353
          %2398 = vmatprep.subr.mxu0 0.0
          %2399 = vmatpush1.xpose.msra.mxu0 %v2354
          %2400 = vmatprep.subr.mxu0 0.0
          %2401 = vmatpush1.xpose.msra.mxu0 %v2355
          %2402 = vmatprep.subr.mxu0 0.0
          %2403 = vmatpush1.xpose.msra.mxu0 %v2356
          %2404 = vmatprep.subr.mxu0 0.0
          %2405 = vmatpush1.xpose.msra.mxu0 %v2357
          %2406 = vmatprep.subr.mxu0 0.0
          %2407 = vmatpush1.xpose.msra.mxu0 %v2358
          %2408 = vmatprep.subr.mxu0 0.0
          %2409 = vmatpush1.xpose.msra.mxu0 %v2359
          %2410 = vmatprep.subr.mxu0 0.0
          %2411 = vmatpush1.xpose.msra.mxu0 %v2360
          %2412 = vmatprep.subr.mxu0 0.0
          %2413 = vmatpush1.xpose.msra.mxu0 %v2361
          %2414 = vmatprep.subr.mxu0 0.0
          %2415 = vmatpush1.xpose.msra.mxu0 %v2362
          %2416 = vmatprep.subr.mxu0 0.0
          %2417 = vmatpush1.xpose.msra.mxu0 %v2363
          %2418 = vmatprep.subr.mxu0 0.0
          %2419 = vmatpush1.xpose.msra.mxu0 %v2364
          %2420 = vmatprep.subr.mxu0 0.0
          %2421 = vmatpush1.xpose.msra.mxu0 %v2365
          %2422 = vmatprep.subr.mxu0 0.0
          %2423 = vmatpush1.xpose.msra.mxu0 %v2366
          %2424 = vmatprep.subr.mxu0 0.0
          %2425 = vmatpush1.xpose.msra.mxu0 %v2367
          %2426 = vmatprep.subr.mxu0 0.0
          %2427 = vmatpush1.xpose.msra.mxu0 %v2368
          %2428 = vmatprep.subr.mxu0 0.0
          %2429 = vmatpush1.xpose.msra.mxu0 %v2369
          %2430 = vmatprep.subr.mxu0 0.0
          %2431 = vmatpush1.xpose.msra.mxu0 %v2370
          %2432 = vmatprep.subr.mxu0 0.0
          %2433 = vmatpush1.xpose.msra.mxu0 %v2371
          %2434 = vmatprep.subr.mxu0 0.0
          %2435 = vmatpush1.xpose.msra.mxu0 %v2372
          %2436 = vmatprep.subr.mxu0 0.0
          %2437 = vmatpush1.xpose.msra.mxu0 %v2373
          %2438 = vmatprep.mubr.f32.mxu0 0.0
          %2439 = vmatmul.mubr.f32.gmra.mrb[0].mxu0 %v2198
          %v2440 = vpop.f32.mrb[0].mxu0
          %v2441 = vadd.f32 0.0, %v2440
          %v2442 = vpop.f32.mrb[0].mxu0
          %v2443 = vadd.f32 0.0, %v2442
          %2444 = vmatprep.mubr.f32.mxu0 0.0
          %2445 = vmatmul.mubr.f32.gmra.mrb[0].mxu0 %v2199
          %v2446 = vpop.f32.mrb[0].mxu0
          %v2447 = vadd.f32 0.0, %v2446
          %v2448 = vpop.f32.mrb[0].mxu0
          %v2449 = vadd.f32 0.0, %v2448
          %2450 = vmatprep.mubr.f32.mxu0 0.0
          %2451 = vmatmul.mubr.f32.gmra.mrb[0].mxu0 %v2200
          %v2452 = vpop.f32.mrb[0].mxu0
          %v2453 = vadd.f32 0.0, %v2452
          %v2454 = vpop.f32.mrb[0].mxu0
          %v2455 = vadd.f32 0.0, %v2454
          %2456 = vmatprep.mubr.f32.mxu0 0.0
          %2457 = vmatmul.mubr.f32.gmra.mrb[0].mxu0 %v2201
          %v2458 = vpop.f32.mrb[0].mxu0
          %v2459 = vadd.f32 0.0, %v2458
          %v2460 = vpop.f32.mrb[0].mxu0
          %v2461 = vadd.f32 0.0, %v2460
          %2462 = vmatprep.mubr.f32.mxu0 0.0
          %2463 = vmatmul.mubr.f32.gmra.mrb[0].mxu0 %v2202
          %v2464 = vpop.f32.mrb[0].mxu0
          %v2465 = vadd.f32 0.0, %v2464
          %v2466 = vpop.f32.mrb[0].mxu0
          %v2467 = vadd.f32 0.0, %v2466
          %2468 = vmatprep.mubr.f32.mxu0 0.0
          %2469 = vmatmul.mubr.f32.gmra.mrb[0].mxu0 %v2203
          %v2470 = vpop.f32.mrb[0].mxu0
          %v2471 = vadd.f32 0.0, %v2470
          %v2472 = vpop.f32.mrb[0].mxu0
          %v2473 = vadd.f32 0.0, %v2472
          %2474 = vmatprep.mubr.f32.mxu0 0.0
          %2475 = vmatmul.mubr.f32.gmra.mrb[0].mxu0 %v2204
          %v2476 = vpop.f32.mrb[0].mxu0
          %v2477 = vadd.f32 0.0, %v2476
          %v2478 = vpop.f32.mrb[0].mxu0
          %v2479 = vadd.f32 0.0, %v2478
          %2480 = vmatprep.mubr.f32.mxu0 0.0
          %2481 = vmatmul.mubr.f32.gmra.mrb[0].mxu0 %v2205
          %v2482 = vpop.f32.mrb[0].mxu0
          %v2483 = vadd.f32 0.0, %v2482
          %v2484 = vpop.f32.mrb[0].mxu0
          %v2485 = vadd.f32 0.0, %v2484
          %2486 = vmatprep.mubr.f32.mxu0 0.0
          %2487 = vmatmul.mubr.f32.gmra.mrb[0].mxu0 %v2206
          %v2488 = vpop.f32.mrb[0].mxu0
          %v2489 = vadd.f32 0.0, %v2488
          %v2490 = vpop.f32.mrb[0].mxu0
          %v2491 = vadd.f32 0.0, %v2490
          %2492 = vmatprep.mubr.f32.mxu0 0.0
          %2493 = vmatmul.mubr.f32.gmra.mrb[0].mxu0 %v2207
          %v2494 = vpop.f32.mrb[0].mxu0
          %v2495 = vadd.f32 0.0, %v2494
          %v2496 = vpop.f32.mrb[0].mxu0
          %v2497 = vadd.f32 0.0, %v2496
          %2498 = vmatprep.mubr.f32.mxu0 0.0
          %2499 = vmatmul.mubr.f32.gmra.mrb[0].mxu0 %v2208
          %v2500 = vpop.f32.mrb[0].mxu0
          %v2501 = vadd.f32 0.0, %v2500
          %v2502 = vpop.f32.mrb[0].mxu0
          %v2503 = vadd.f32 0.0, %v2502
          %2504 = vmatprep.mubr.f32.mxu0 0.0
          %2505 = vmatmul.mubr.f32.gmra.mrb[0].mxu0 %v2209
          %v2506 = vpop.f32.mrb[0].mxu0
          %v2507 = vadd.f32 0.0, %v2506
          %v2508 = vpop.f32.mrb[0].mxu0
          %v2509 = vadd.f32 0.0, %v2508
          %2510 = vmatprep.mubr.f32.mxu0 0.0
          %2511 = vmatmul.mubr.f32.gmra.mrb[0].mxu0 %v2210
          %v2512 = vpop.f32.mrb[0].mxu0
          %v2513 = vadd.f32 0.0, %v2512
          %v2514 = vpop.f32.mrb[0].mxu0
          %v2515 = vadd.f32 0.0, %v2514
          %2516 = vmatprep.mubr.f32.mxu0 0.0
          %2517 = vmatmul.mubr.f32.gmra.mrb[0].mxu0 %v2211
          %v2518 = vpop.f32.mrb[0].mxu0
          %v2519 = vadd.f32 0.0, %v2518
          %v2520 = vpop.f32.mrb[0].mxu0
          %v2521 = vadd.f32 0.0, %v2520
          %2522 = vmatprep.mubr.f32.mxu0 0.0
          %2523 = vmatmul.mubr.f32.gmra.mrb[0].mxu0 %v2212
          %v2524 = vpop.f32.mrb[0].mxu0
          %v2525 = vadd.f32 0.0, %v2524
          %v2526 = vpop.f32.mrb[0].mxu0
          %v2527 = vadd.f32 0.0, %v2526
          %2528 = vmatprep.mubr.f32.mxu0 0.0
          %2529 = vmatmul.mubr.f32.gmra.mrb[0].mxu0 %v2213
          %v2530 = vpop.f32.mrb[0].mxu0
          %v2531 = vadd.f32 0.0, %v2530
          %v2532 = vpop.f32.mrb[0].mxu0
          %v2533 = vadd.f32 0.0, %v2532
          %2534 = vdwg.mxu0
          %v2535 = vmul.f32 %v2441, 0.088388346
          %v2536 = vmul.f32 %v2443, 0.088388346
          %v2537 = vmul.f32 %v2447, 0.088388346
          %v2538 = vmul.f32 %v2449, 0.088388346
          %v2539 = vmul.f32 %v2453, 0.088388346
          %v2540 = vmul.f32 %v2455, 0.088388346
          %v2541 = vmul.f32 %v2459, 0.088388346
          %v2542 = vmul.f32 %v2461, 0.088388346
          %v2543 = vmul.f32 %v2465, 0.088388346
          %v2544 = vmul.f32 %v2467, 0.088388346
          %v2545 = vmul.f32 %v2471, 0.088388346
          %v2546 = vmul.f32 %v2473, 0.088388346
          %v2547 = vmul.f32 %v2477, 0.088388346
          %v2548 = vmul.f32 %v2479, 0.088388346
          %v2549 = vmul.f32 %v2483, 0.088388346
          %v2550 = vmul.f32 %v2485, 0.088388346
          %v2551 = vmul.f32 %v2489, 0.088388346
          %v2552 = vmul.f32 %v2491, 0.088388346
          %v2553 = vmul.f32 %v2495, 0.088388346
          %v2554 = vmul.f32 %v2497, 0.088388346
          %v2555 = vmul.f32 %v2501, 0.088388346
          %v2556 = vmul.f32 %v2503, 0.088388346
          %v2557 = vmul.f32 %v2507, 0.088388346
          %v2558 = vmul.f32 %v2509, 0.088388346
          %v2559 = vmul.f32 %v2513, 0.088388346
          %v2560 = vmul.f32 %v2515, 0.088388346
          %v2561 = vmul.f32 %v2519, 0.088388346
          %v2562 = vmul.f32 %v2521, 0.088388346
          %v2563 = vmul.f32 %v2525, 0.088388346
          %v2564 = vmul.f32 %v2527, 0.088388346
          %v2565 = vmul.f32 %v2531, 0.088388346
          %v2566 = vmul.f32 %v2533, 0.088388346
          %v2567 = vmax.f32 %v2535, %v2536
          %2568 = vmax.xlane.f32.xlu0 %v2567
          %v2569 = vpop.xlane.xlu0 %2568
          %v2570 = vmax.f32 %v2537, %v2538
          %2571 = vmax.xlane.f32.xlu0 %v2570
          %v2572 = vpop.xlane.xlu0 %2571
          %v2573 = vmax.f32 %v2539, %v2540
          %2574 = vmax.xlane.f32.xlu0 %v2573
          %v2575 = vpop.xlane.xlu0 %2574
          %v2576 = vmax.f32 %v2541, %v2542
          %2577 = vmax.xlane.f32.xlu0 %v2576
          %v2578 = vpop.xlane.xlu0 %2577
          %v2579 = vmax.f32 %v2543, %v2544
          %2580 = vmax.xlane.f32.xlu0 %v2579
          %v2581 = vpop.xlane.xlu0 %2580
          %v2582 = vmax.f32 %v2545, %v2546
          %2583 = vmax.xlane.f32.xlu0 %v2582
          %v2584 = vpop.xlane.xlu0 %2583
          %v2585 = vmax.f32 %v2547, %v2548
          %2586 = vmax.xlane.f32.xlu0 %v2585
          %v2587 = vpop.xlane.xlu0 %2586
          %v2588 = vmax.f32 %v2549, %v2550
          %2589 = vmax.xlane.f32.xlu0 %v2588
          %v2590 = vpop.xlane.xlu0 %2589
          %v2591 = vmax.f32 %v2551, %v2552
          %2592 = vmax.xlane.f32.xlu0 %v2591
          %v2593 = vpop.xlane.xlu0 %2592
          %v2594 = vmax.f32 %v2553, %v2554
          %2595 = vmax.xlane.f32.xlu0 %v2594
          %v2596 = vpop.xlane.xlu0 %2595
          %v2597 = vmax.f32 %v2555, %v2556
          %2598 = vmax.xlane.f32.xlu0 %v2597
          %v2599 = vpop.xlane.xlu0 %2598
          %v2600 = vmax.f32 %v2557, %v2558
          %2601 = vmax.xlane.f32.xlu0 %v2600
          %v2602 = vpop.xlane.xlu0 %2601
          %v2603 = vmax.f32 %v2559, %v2560
          %2604 = vmax.xlane.f32.xlu0 %v2603
          %v2605 = vpop.xlane.xlu0 %2604
          %v2606 = vmax.f32 %v2561, %v2562
          %2607 = vmax.xlane.f32.xlu0 %v2606
          %v2608 = vpop.xlane.xlu0 %2607
          %v2609 = vmax.f32 %v2563, %v2564
          %2610 = vmax.xlane.f32.xlu0 %v2609
          %v2611 = vpop.xlane.xlu0 %2610
          %v2612 = vmax.f32 %v2565, %v2566
          %2613 = vmax.xlane.f32.xlu0 %v2612
          %v2614 = vpop.xlane.xlu0 %2613
          %v2615 = vsub.f32 %v2535, %v2569
          %v2616 = vsub.f32 %v2536, %v2569
          %v2617 = vsub.f32 %v2537, %v2572
          %v2618 = vsub.f32 %v2538, %v2572
          %v2619 = vsub.f32 %v2539, %v2575
          %v2620 = vsub.f32 %v2540, %v2575
          %v2621 = vsub.f32 %v2541, %v2578
          %v2622 = vsub.f32 %v2542, %v2578
          %v2623 = vsub.f32 %v2543, %v2581
          %v2624 = vsub.f32 %v2544, %v2581
          %v2625 = vsub.f32 %v2545, %v2584
          %v2626 = vsub.f32 %v2546, %v2584
          %v2627 = vsub.f32 %v2547, %v2587
          %v2628 = vsub.f32 %v2548, %v2587
          %v2629 = vsub.f32 %v2549, %v2590
          %v2630 = vsub.f32 %v2550, %v2590
          %v2631 = vsub.f32 %v2551, %v2593
          %v2632 = vsub.f32 %v2552, %v2593
          %v2633 = vsub.f32 %v2553, %v2596
          %v2634 = vsub.f32 %v2554, %v2596
          %v2635 = vsub.f32 %v2555, %v2599
          %v2636 = vsub.f32 %v2556, %v2599
          %v2637 = vsub.f32 %v2557, %v2602
          %v2638 = vsub.f32 %v2558, %v2602
          %v2639 = vsub.f32 %v2559, %v2605
          %v2640 = vsub.f32 %v2560, %v2605
          %v2641 = vsub.f32 %v2561, %v2608
          %v2642 = vsub.f32 %v2562, %v2608
          %v2643 = vsub.f32 %v2563, %v2611
          %v2644 = vsub.f32 %v2564, %v2611
          %v2645 = vsub.f32 %v2565, %v2614
          %v2646 = vsub.f32 %v2566, %v2614
          %v2647 = vmul.f32 %v2615, 1.442695
          %v2648 = vpow.pop %v2647
          %v2649 = vmul.f32 %v2616, 1.442695
          %v2650 = vpow.pop %v2649
          %v2651 = vmul.f32 %v2617, 1.442695
          %v2652 = vpow.pop %v2651
          %v2653 = vmul.f32 %v2618, 1.442695
          %v2654 = vpow.pop %v2653
          %v2655 = vmul.f32 %v2619, 1.442695
          %v2656 = vpow.pop %v2655
          %v2657 = vmul.f32 %v2620, 1.442695
          %v2658 = vpow.pop %v2657
          %v2659 = vmul.f32 %v2621, 1.442695
          %v2660 = vpow.pop %v2659
          %v2661 = vmul.f32 %v2622, 1.442695
          %v2662 = vpow.pop %v2661
          %v2663 = vmul.f32 %v2623, 1.442695
          %v2664 = vpow.pop %v2663
          %v2665 = vmul.f32 %v2624, 1.442695
          %v2666 = vpow.pop %v2665
          %v2667 = vmul.f32 %v2625, 1.442695
          %v2668 = vpow.pop %v2667
          %v2669 = vmul.f32 %v2626, 1.442695
          %v2670 = vpow.pop %v2669
          %v2671 = vmul.f32 %v2627, 1.442695
          %v2672 = vpow.pop %v2671
          %v2673 = vmul.f32 %v2628, 1.442695
          %v2674 = vpow.pop %v2673
          %v2675 = vmul.f32 %v2629, 1.442695
          %v2676 = vpow.pop %v2675
          %v2677 = vmul.f32 %v2630, 1.442695
          %v2678 = vpow.pop %v2677
          %v2679 = vmul.f32 %v2631, 1.442695
          %v2680 = vpow.pop %v2679
          %v2681 = vmul.f32 %v2632, 1.442695
          %v2682 = vpow.pop %v2681
          %v2683 = vmul.f32 %v2633, 1.442695
          %v2684 = vpow.pop %v2683
          %v2685 = vmul.f32 %v2634, 1.442695
          %v2686 = vpow.pop %v2685
          %v2687 = vmul.f32 %v2635, 1.442695
          %v2688 = vpow.pop %v2687
          %v2689 = vmul.f32 %v2636, 1.442695
          %v2690 = vpow.pop %v2689
          %v2691 = vmul.f32 %v2637, 1.442695
          %v2692 = vpow.pop %v2691
          %v2693 = vmul.f32 %v2638, 1.442695
          %v2694 = vpow.pop %v2693
          %v2695 = vmul.f32 %v2639, 1.442695
          %v2696 = vpow.pop %v2695
          %v2697 = vmul.f32 %v2640, 1.442695
          %v2698 = vpow.pop %v2697
          %v2699 = vmul.f32 %v2641, 1.442695
          %v2700 = vpow.pop %v2699
          %v2701 = vmul.f32 %v2642, 1.442695
          %v2702 = vpow.pop %v2701
          %v2703 = vmul.f32 %v2643, 1.442695
          %v2704 = vpow.pop %v2703
          %v2705 = vmul.f32 %v2644, 1.442695
          %v2706 = vpow.pop %v2705
          %v2707 = vmul.f32 %v2645, 1.442695
          %v2708 = vpow.pop %v2707
          %v2709 = vmul.f32 %v2646, 1.442695
          %v2710 = vpow.pop %v2709
          %v2711 = vadd.f32 %v2648, %v2650
          %2712 = vadd.xlane.f32.xlu0 %v2711
          %v2713 = vpop.xlane.xlu0 %2712
          %v2714 = vadd.f32 %v2652, %v2654
          %2715 = vadd.xlane.f32.xlu0 %v2714
          %v2716 = vpop.xlane.xlu0 %2715
          %v2717 = vadd.f32 %v2656, %v2658
          %2718 = vadd.xlane.f32.xlu0 %v2717
          %v2719 = vpop.xlane.xlu0 %2718
          %v2720 = vadd.f32 %v2660, %v2662
          %2721 = vadd.xlane.f32.xlu0 %v2720
          %v2722 = vpop.xlane.xlu0 %2721
          %v2723 = vadd.f32 %v2664, %v2666
          %2724 = vadd.xlane.f32.xlu0 %v2723
          %v2725 = vpop.xlane.xlu0 %2724
          %v2726 = vadd.f32 %v2668, %v2670
          %2727 = vadd.xlane.f32.xlu0 %v2726
          %v2728 = vpop.xlane.xlu0 %2727
          %v2729 = vadd.f32 %v2672, %v2674
          %2730 = vadd.xlane.f32.xlu0 %v2729
          %v2731 = vpop.xlane.xlu0 %2730
          %v2732 = vadd.f32 %v2676, %v2678
          %2733 = vadd.xlane.f32.xlu0 %v2732
          %v2734 = vpop.xlane.xlu0 %2733
          %v2735 = vadd.f32 %v2680, %v2682
          %2736 = vadd.xlane.f32.xlu0 %v2735
          %v2737 = vpop.xlane.xlu0 %2736
          %v2738 = vadd.f32 %v2684, %v2686
          %2739 = vadd.xlane.f32.xlu0 %v2738
          %v2740 = vpop.xlane.xlu0 %2739
          %v2741 = vadd.f32 %v2688, %v2690
          %2742 = vadd.xlane.f32.xlu0 %v2741
          %v2743 = vpop.xlane.xlu0 %2742
          %v2744 = vadd.f32 %v2692, %v2694
          %2745 = vadd.xlane.f32.xlu0 %v2744
          %v2746 = vpop.xlane.xlu0 %2745
          %v2747 = vadd.f32 %v2696, %v2698
          %2748 = vadd.xlane.f32.xlu0 %v2747
          %v2749 = vpop.xlane.xlu0 %2748
          %v2750 = vadd.f32 %v2700, %v2702
          %2751 = vadd.xlane.f32.xlu0 %v2750
          %v2752 = vpop.xlane.xlu0 %2751
          %v2753 = vadd.f32 %v2704, %v2706
          %2754 = vadd.xlane.f32.xlu0 %v2753
          %v2755 = vpop.xlane.xlu0 %2754
          %v2756 = vadd.f32 %v2708, %v2710
          %2757 = vadd.xlane.f32.xlu0 %v2756
          %v2758 = vpop.xlane.xlu0 %2757
          %v2759 = vrcp.pop %v2713
          %v2760 = vrcp.pop %v2716
          %v2761 = vrcp.pop %v2719
          %v2762 = vrcp.pop %v2722
          %v2763 = vrcp.pop %v2725
          %v2764 = vrcp.pop %v2728
          %v2765 = vrcp.pop %v2731
          %v2766 = vrcp.pop %v2734
          %v2767 = vrcp.pop %v2737
          %v2768 = vrcp.pop %v2740
          %v2769 = vrcp.pop %v2743
          %v2770 = vrcp.pop %v2746
          %v2771 = vrcp.pop %v2749
          %v2772 = vrcp.pop %v2752
          %v2773 = vrcp.pop %v2755
          %v2774 = vrcp.pop %v2758
          %v2775 = vmul.f32 %v2713, %v2759
          %v2776 = vmul.f32 %v2716, %v2760
          %v2777 = vmul.f32 %v2719, %v2761
          %v2778 = vmul.f32 %v2722, %v2762
          %v2779 = vmul.f32 %v2725, %v2763
          %v2780 = vmul.f32 %v2728, %v2764
          %v2781 = vmul.f32 %v2731, %v2765
          %v2782 = vmul.f32 %v2734, %v2766
          %v2783 = vmul.f32 %v2737, %v2767
          %v2784 = vmul.f32 %v2740, %v2768
          %v2785 = vmul.f32 %v2743, %v2769
          %v2786 = vmul.f32 %v2746, %v2770
          %v2787 = vmul.f32 %v2749, %v2771
          %v2788 = vmul.f32 %v2752, %v2772
          %v2789 = vmul.f32 %v2755, %v2773
          %v2790 = vmul.f32 %v2758, %v2774
          %v2791 = vsub.f32 2.0, %v2775
          %v2792 = vsub.f32 2.0, %v2776
          %v2793 = vsub.f32 2.0, %v2777
          %v2794 = vsub.f32 2.0, %v2778
          %v2795 = vsub.f32 2.0, %v2779
          %v2796 = vsub.f32 2.0, %v2780
          %v2797 = vsub.f32 2.0, %v2781
          %v2798 = vsub.f32 2.0, %v2782
          %v2799 = vsub.f32 2.0, %v2783
          %v2800 = vsub.f32 2.0, %v2784
          %v2801 = vsub.f32 2.0, %v2785
          %v2802 = vsub.f32 2.0, %v2786
          %v2803 = vsub.f32 2.0, %v2787
          %v2804 = vsub.f32 2.0, %v2788
          %v2805 = vsub.f32 2.0, %v2789
          %v2806 = vsub.f32 2.0, %v2790
          %v2807 = vmul.f32 %v2759, %v2791
          %v2808 = vmul.f32 %v2760, %v2792
          %v2809 = vmul.f32 %v2761, %v2793
          %v2810 = vmul.f32 %v2762, %v2794
          %v2811 = vmul.f32 %v2763, %v2795
          %v2812 = vmul.f32 %v2764, %v2796
          %v2813 = vmul.f32 %v2765, %v2797
          %v2814 = vmul.f32 %v2766, %v2798
          %v2815 = vmul.f32 %v2767, %v2799
          %v2816 = vmul.f32 %v2768, %v2800
          %v2817 = vmul.f32 %v2769, %v2801
          %v2818 = vmul.f32 %v2770, %v2802
          %v2819 = vmul.f32 %v2771, %v2803
          %v2820 = vmul.f32 %v2772, %v2804
          %v2821 = vmul.f32 %v2773, %v2805
          %v2822 = vmul.f32 %v2774, %v2806
          %v2823 = vmul.f32 %v2648, %v2807
          %v2824 = vmul.f32 %v2650, %v2807
          %v2825 = vmul.f32 %v2652, %v2808
          %v2826 = vmul.f32 %v2654, %v2808
          %v2827 = vmul.f32 %v2656, %v2809
          %v2828 = vmul.f32 %v2658, %v2809
          %v2829 = vmul.f32 %v2660, %v2810
          %v2830 = vmul.f32 %v2662, %v2810
          %v2831 = vmul.f32 %v2664, %v2811
          %v2832 = vmul.f32 %v2666, %v2811
          %v2833 = vmul.f32 %v2668, %v2812
          %v2834 = vmul.f32 %v2670, %v2812
          %v2835 = vmul.f32 %v2672, %v2813
          %v2836 = vmul.f32 %v2674, %v2813
          %v2837 = vmul.f32 %v2676, %v2814
          %v2838 = vmul.f32 %v2678, %v2814
          %v2839 = vmul.f32 %v2680, %v2815
          %v2840 = vmul.f32 %v2682, %v2815
          %v2841 = vmul.f32 %v2684, %v2816
          %v2842 = vmul.f32 %v2686, %v2816
          %v2843 = vmul.f32 %v2688, %v2817
          %v2844 = vmul.f32 %v2690, %v2817
          %v2845 = vmul.f32 %v2692, %v2818
          %v2846 = vmul.f32 %v2694, %v2818
          %v2847 = vmul.f32 %v2696, %v2819
          %v2848 = vmul.f32 %v2698, %v2819
          %v2849 = vmul.f32 %v2700, %v2820
          %v2850 = vmul.f32 %v2702, %v2820
          %v2851 = vmul.f32 %v2704, %v2821
          %v2852 = vmul.f32 %v2706, %v2821
          %v2853 = vmul.f32 %v2708, %v2822
          %v2854 = vmul.f32 %v2710, %v2822
          %2855 = vmatprep.subr.mxu0 0.0
          %2856 = vmatpush1.msra.mxu0 %v1848
          %2857 = vmatprep.subr.mxu0 0.0
          %2858 = vmatpush1.msra.mxu0 %v1854
          %2859 = vmatprep.subr.mxu0 0.0
          %2860 = vmatpush1.msra.mxu0 %v1860
          %2861 = vmatprep.subr.mxu0 0.0
          %2862 = vmatpush1.msra.mxu0 %v1866
          %2863 = vmatprep.subr.mxu0 0.0
          %2864 = vmatpush1.msra.mxu0 %v1872
          %2865 = vmatprep.subr.mxu0 0.0
          %2866 = vmatpush1.msra.mxu0 %v1878
          %2867 = vmatprep.subr.mxu0 0.0
          %2868 = vmatpush1.msra.mxu0 %v1884
          %2869 = vmatprep.subr.mxu0 0.0
          %2870 = vmatpush1.msra.mxu0 %v1890
          %2871 = vmatprep.subr.mxu0 0.0
          %2872 = vmatpush1.msra.mxu0 %v1896
          %2873 = vmatprep.subr.mxu0 0.0
          %2874 = vmatpush1.msra.mxu0 %v1902
          %2875 = vmatprep.subr.mxu0 0.0
          %2876 = vmatpush1.msra.mxu0 %v1908
          %2877 = vmatprep.subr.mxu0 0.0
          %2878 = vmatpush1.msra.mxu0 %v1914
          %2879 = vmatprep.subr.mxu0 0.0
          %2880 = vmatpush1.msra.mxu0 %v1920
          %2881 = vmatprep.subr.mxu0 0.0
          %2882 = vmatpush1.msra.mxu0 %v1926
          %2883 = vmatprep.subr.mxu0 0.0
          %2884 = vmatpush1.msra.mxu0 %v1932
          %2885 = vmatprep.subr.mxu0 0.0
          %2886 = vmatpush1.msra.mxu0 %v1938
          %2887 = vmatprep.subr.mxu0 0.0
          %2888 = vmatpush1.msra.mxu0 %v1944
          %2889 = vmatprep.subr.mxu0 0.0
          %2890 = vmatpush1.msra.mxu0 %v1950
          %2891 = vmatprep.subr.mxu0 0.0
          %2892 = vmatpush1.msra.mxu0 %v1956
          %2893 = vmatprep.subr.mxu0 0.0
          %2894 = vmatpush1.msra.mxu0 %v1962
          %2895 = vmatprep.subr.mxu0 0.0
          %2896 = vmatpush1.msra.mxu0 %v1968
          %2897 = vmatprep.subr.mxu0 0.0
          %2898 = vmatpush1.msra.mxu0 %v1974
          %2899 = vmatprep.subr.mxu0 0.0
          %2900 = vmatpush1.msra.mxu0 %v1980
          %2901 = vmatprep.subr.mxu0 0.0
          %2902 = vmatpush1.msra.mxu0 %v1986
          %2903 = vmatprep.subr.mxu0 0.0
          %2904 = vmatpush1.msra.mxu0 %v1992
          %2905 = vmatprep.subr.mxu0 0.0
          %2906 = vmatpush1.msra.mxu0 %v1998
          %2907 = vmatprep.subr.mxu0 0.0
          %2908 = vmatpush1.msra.mxu0 %v2004
          %2909 = vmatprep.subr.mxu0 0.0
          %2910 = vmatpush1.msra.mxu0 %v2010
          %2911 = vmatprep.subr.mxu0 0.0
          %2912 = vmatpush1.msra.mxu0 %v2016
          %2913 = vmatprep.subr.mxu0 0.0
          %2914 = vmatpush1.msra.mxu0 %v2022
          %2915 = vmatprep.subr.mxu0 0.0
          %2916 = vmatpush1.msra.mxu0 %v2028
          %2917 = vmatprep.subr.mxu0 0.0
          %2918 = vmatpush1.msra.mxu0 %v2034
          %2919 = vmatprep.mubr.f32.mxu0 %v2824
          %2920 = vmatmul.mubr.f32.gmra.mrb[0].mxu0 %v2823
          %v2921 = vpop.f32.mrb[0].mxu0
          %v2922 = vadd.f32 0.0, %v2921
          %v2923 = vpop.f32.mrb[0].mxu0
          %2924 = vmatprep.mubr.f32.mxu0 %v2826
          %2925 = vmatmul.mubr.f32.gmra.mrb[0].mxu0 %v2825
          %v2926 = vpop.f32.mrb[0].mxu0
          %v2927 = vadd.f32 0.0, %v2926
          %v2928 = vpop.f32.mrb[0].mxu0
          %2929 = vmatprep.mubr.f32.mxu0 %v2828
          %2930 = vmatmul.mubr.f32.gmra.mrb[0].mxu0 %v2827
          %v2931 = vpop.f32.mrb[0].mxu0
          %v2932 = vadd.f32 0.0, %v2931
          %v2933 = vpop.f32.mrb[0].mxu0
          %2934 = vmatprep.mubr.f32.mxu0 %v2830
          %2935 = vmatmul.mubr.f32.gmra.mrb[0].mxu0 %v2829
          %v2936 = vpop.f32.mrb[0].mxu0
          %v2937 = vadd.f32 0.0, %v2936
          %v2938 = vpop.f32.mrb[0].mxu0
          %2939 = vmatprep.mubr.f32.mxu0 %v2832
          %2940 = vmatmul.mubr.f32.gmra.mrb[0].mxu0 %v2831
          %v2941 = vpop.f32.mrb[0].mxu0
          %v2942 = vadd.f32 0.0, %v2941
          %v2943 = vpop.f32.mrb[0].mxu0
          %2944 = vmatprep.mubr.f32.mxu0 %v2834
          %2945 = vmatmul.mubr.f32.gmra.mrb[0].mxu0 %v2833
          %v2946 = vpop.f32.mrb[0].mxu0
          %v2947 = vadd.f32 0.0, %v2946
          %v2948 = vpop.f32.mrb[0].mxu0
          %2949 = vmatprep.mubr.f32.mxu0 %v2836
          %2950 = vmatmul.mubr.f32.gmra.mrb[0].mxu0 %v2835
          %v2951 = vpop.f32.mrb[0].mxu0
          %v2952 = vadd.f32 0.0, %v2951
          %v2953 = vpop.f32.mrb[0].mxu0
          %2954 = vmatprep.mubr.f32.mxu0 %v2838
          %2955 = vmatmul.mubr.f32.gmra.mrb[0].mxu0 %v2837
          %v2956 = vpop.f32.mrb[0].mxu0
          %v2957 = vadd.f32 0.0, %v2956
          %v2958 = vpop.f32.mrb[0].mxu0
          %2959 = vmatprep.mubr.f32.mxu0 %v2840
          %2960 = vmatmul.mubr.f32.gmra.mrb[0].mxu0 %v2839
          %v2961 = vpop.f32.mrb[0].mxu0
          %v2962 = vadd.f32 0.0, %v2961
          %v2963 = vpop.f32.mrb[0].mxu0
          %2964 = vmatprep.mubr.f32.mxu0 %v2842
          %2965 = vmatmul.mubr.f32.gmra.mrb[0].mxu0 %v2841
          %v2966 = vpop.f32.mrb[0].mxu0
          %v2967 = vadd.f32 0.0, %v2966
          %v2968 = vpop.f32.mrb[0].mxu0
          %2969 = vmatprep.mubr.f32.mxu0 %v2844
          %2970 = vmatmul.mubr.f32.gmra.mrb[0].mxu0 %v2843
          %v2971 = vpop.f32.mrb[0].mxu0
          %v2972 = vadd.f32 0.0, %v2971
          %v2973 = vpop.f32.mrb[0].mxu0
          %2974 = vmatprep.mubr.f32.mxu0 %v2846
          %2975 = vmatmul.mubr.f32.gmra.mrb[0].mxu0 %v2845
          %v2976 = vpop.f32.mrb[0].mxu0
          %v2977 = vadd.f32 0.0, %v2976
          %v2978 = vpop.f32.mrb[0].mxu0
          %2979 = vmatprep.mubr.f32.mxu0 %v2848
          %2980 = vmatmul.mubr.f32.gmra.mrb[0].mxu0 %v2847
          %v2981 = vpop.f32.mrb[0].mxu0
          %v2982 = vadd.f32 0.0, %v2981
          %v2983 = vpop.f32.mrb[0].mxu0
          %2984 = vmatprep.mubr.f32.mxu0 %v2850
          %2985 = vmatmul.mubr.f32.gmra.mrb[0].mxu0 %v2849
          %v2986 = vpop.f32.mrb[0].mxu0
          %v2987 = vadd.f32 0.0, %v2986
          %v2988 = vpop.f32.mrb[0].mxu0
          %2989 = vmatprep.mubr.f32.mxu0 %v2852
          %2990 = vmatmul.mubr.f32.gmra.mrb[0].mxu0 %v2851
          %v2991 = vpop.f32.mrb[0].mxu0
          %v2992 = vadd.f32 0.0, %v2991
          %v2993 = vpop.f32.mrb[0].mxu0
          %2994 = vmatprep.mubr.f32.mxu0 %v2854
          %2995 = vmatmul.mubr.f32.gmra.mrb[0].mxu0 %v2853
          %v2996 = vpop.f32.mrb[0].mxu0
          %v2997 = vadd.f32 0.0, %v2996
          %v2998 = vpop.f32.mrb[0].mxu0
          %2999 = vdwg.mxu0
          %v3000 = vld [vmem:[#allocation22] sm:$0xff]
          %v3001 = vld [vmem:[#allocation22 + $0x8] sm:$0xff]
          %v3002 = vld [vmem:[#allocation22 + $0x10] sm:$0xff]
          %v3003 = vld [vmem:[#allocation22 + $0x18] sm:$0xff]
          %v3004 = vld [vmem:[#allocation22 + $0x20] sm:$0xff]
          %v3005 = vld [vmem:[#allocation22 + $0x28] sm:$0xff]
          %v3006 = vld [vmem:[#allocation22 + $0x30] sm:$0xff]
          %v3007 = vld [vmem:[#allocation22 + $0x38] sm:$0xff]
          %v3008 = vld [vmem:[#allocation22 + $0x40] sm:$0xff]
          %v3009 = vld [vmem:[#allocation22 + $0x48] sm:$0xff]
          %v3010 = vld [vmem:[#allocation22 + $0x50] sm:$0xff]
          %v3011 = vld [vmem:[#allocation22 + $0x58] sm:$0xff]
          %v3012 = vld [vmem:[#allocation22 + $0x60] sm:$0xff]
          %v3013 = vld [vmem:[#allocation22 + $0x68] sm:$0xff]
          %v3014 = vld [vmem:[#allocation22 + $0x70] sm:$0xff]
          %v3015 = vld [vmem:[#allocation22 + $0x78] sm:$0xff]
          %v3016 = vld [vmem:[#allocation22 + $0x80] sm:$0xff]
          %v3017 = vld [vmem:[#allocation22 + $0x88] sm:$0xff]
          %v3018 = vld [vmem:[#allocation22 + $0x90] sm:$0xff]
          %v3019 = vld [vmem:[#allocation22 + $0x98] sm:$0xff]
          %v3020 = vld [vmem:[#allocation22 + $0xa0] sm:$0xff]
          %v3021 = vld [vmem:[#allocation22 + $0xa8] sm:$0xff]
          %v3022 = vld [vmem:[#allocation22 + $0xb0] sm:$0xff]
          %v3023 = vld [vmem:[#allocation22 + $0xb8] sm:$0xff]
          %v3024 = vld [vmem:[#allocation22 + $0xc0] sm:$0xff]
          %v3025 = vld [vmem:[#allocation22 + $0xc8] sm:$0xff]
          %v3026 = vld [vmem:[#allocation22 + $0xd0] sm:$0xff]
          %v3027 = vld [vmem:[#allocation22 + $0xd8] sm:$0xff]
          %v3028 = vld [vmem:[#allocation22 + $0xe0] sm:$0xff]
          %v3029 = vld [vmem:[#allocation22 + $0xe8] sm:$0xff]
          %v3030 = vld [vmem:[#allocation22 + $0xf0] sm:$0xff]
          %v3031 = vld [vmem:[#allocation22 + $0xf8] sm:$0xff]
          %v3032 = vmul.f32 %v1280, %v2038
          %v3033 = vmul.f32 %v1286, %v2039
          %v3034 = vmul.f32 %v1292, %v2040
          %v3035 = vmul.f32 %v1298, %v2041
          %v3036 = vmul.f32 %v1304, %v2042
          %v3037 = vmul.f32 %v1310, %v2043
          %v3038 = vmul.f32 %v1316, %v2044
          %v3039 = vmul.f32 %v1322, %v2045
          %v3040 = vmul.f32 %v1328, %v2046
          %v3041 = vmul.f32 %v1334, %v2047
          %v3042 = vmul.f32 %v1340, %v2048
          %v3043 = vmul.f32 %v1346, %v2049
          %v3044 = vmul.f32 %v1352, %v2050
          %v3045 = vmul.f32 %v1358, %v2051
          %v3046 = vmul.f32 %v1364, %v2052
          %v3047 = vmul.f32 %v1370, %v2053
          %3048 = vrot.lane.b32.xlu0 %v1280, 64
          %v3049 = vpop.permute.xlu0 %3048
          %3050 = vrot.lane.b32.xlu0 %v1286, 64
          %v3051 = vpop.permute.xlu0 %3050
          %3052 = vrot.lane.b32.xlu0 %v1292, 64
          %v3053 = vpop.permute.xlu0 %3052
          %3054 = vrot.lane.b32.xlu0 %v1298, 64
          %v3055 = vpop.permute.xlu0 %3054
          %3056 = vrot.lane.b32.xlu0 %v1304, 64
          %v3057 = vpop.permute.xlu0 %3056
          %3058 = vrot.lane.b32.xlu0 %v1310, 64
          %v3059 = vpop.permute.xlu0 %3058
          %3060 = vrot.lane.b32.xlu0 %v1316, 64
          %v3061 = vpop.permute.xlu0 %3060
          %3062 = vrot.lane.b32.xlu0 %v1322, 64
          %v3063 = vpop.permute.xlu0 %3062
          %3064 = vrot.lane.b32.xlu0 %v1328, 64
          %v3065 = vpop.permute.xlu0 %3064
          %3066 = vrot.lane.b32.xlu0 %v1334, 64
          %v3067 = vpop.permute.xlu0 %3066
          %3068 = vrot.lane.b32.xlu0 %v1340, 64
          %v3069 = vpop.permute.xlu0 %3068
          %3070 = vrot.lane.b32.xlu0 %v1346, 64
          %v3071 = vpop.permute.xlu0 %3070
          %3072 = vrot.lane.b32.xlu0 %v1352, 64
          %v3073 = vpop.permute.xlu0 %3072
          %3074 = vrot.lane.b32.xlu0 %v1358, 64
          %v3075 = vpop.permute.xlu0 %3074
          %3076 = vrot.lane.b32.xlu0 %v1364, 64
          %v3077 = vpop.permute.xlu0 %3076
          %3078 = vrot.lane.b32.xlu0 %v1370, 64
          %v3079 = vpop.permute.xlu0 %3078
          %v3080 = vmul.f32 %v3049, %v2054
          %v3081 = vmul.f32 %v3051, %v2055
          %v3082 = vmul.f32 %v3053, %v2056
          %v3083 = vmul.f32 %v3055, %v2057
          %v3084 = vmul.f32 %v3057, %v2058
          %v3085 = vmul.f32 %v3059, %v2059
          %v3086 = vmul.f32 %v3061, %v2060
          %v3087 = vmul.f32 %v3063, %v2061
          %v3088 = vmul.f32 %v3065, %v2062
          %v3089 = vmul.f32 %v3067, %v2063
          %v3090 = vmul.f32 %v3069, %v2064
          %v3091 = vmul.f32 %v3071, %v2065
          %v3092 = vmul.f32 %v3073, %v2066
          %v3093 = vmul.f32 %v3075, %v2067
          %v3094 = vmul.f32 %v3077, %v2068
          %v3095 = vmul.f32 %v3079, %v2069
          %v3096 = vadd.f32 %v3032, %v3080
          %v3097 = vadd.f32 %v3033, %v3081
          %v3098 = vadd.f32 %v3034, %v3082
          %v3099 = vadd.f32 %v3035, %v3083
          %v3100 = vadd.f32 %v3036, %v3084
          %v3101 = vadd.f32 %v3037, %v3085
          %v3102 = vadd.f32 %v3038, %v3086
          %v3103 = vadd.f32 %v3039, %v3087
          %v3104 = vadd.f32 %v3040, %v3088
          %v3105 = vadd.f32 %v3041, %v3089
          %v3106 = vadd.f32 %v3042, %v3090
          %v3107 = vadd.f32 %v3043, %v3091
          %v3108 = vadd.f32 %v3044, %v3092
          %v3109 = vadd.f32 %v3045, %v3093
          %v3110 = vadd.f32 %v3046, %v3094
          %v3111 = vadd.f32 %v3047, %v3095
          %v3112 = vmul.f32 %v1517, %v2070
          %v3113 = vmul.f32 %v1523, %v2071
          %v3114 = vmul.f32 %v1529, %v2072
          %v3115 = vmul.f32 %v1535, %v2073
          %v3116 = vmul.f32 %v1541, %v2074
          %v3117 = vmul.f32 %v1547, %v2075
          %v3118 = vmul.f32 %v1553, %v2076
          %v3119 = vmul.f32 %v1559, %v2077
          %v3120 = vmul.f32 %v1565, %v2078
          %v3121 = vmul.f32 %v1571, %v2079
          %v3122 = vmul.f32 %v1577, %v2080
          %v3123 = vmul.f32 %v1583, %v2081
          %v3124 = vmul.f32 %v1589, %v2082
          %v3125 = vmul.f32 %v1595, %v2083
          %v3126 = vmul.f32 %v1601, %v2084
          %v3127 = vmul.f32 %v1607, %v2085
          %v3128 = vmul.f32 %v1613, %v2086
          %v3129 = vmul.f32 %v1619, %v2087
          %v3130 = vmul.f32 %v1625, %v2088
          %v3131 = vmul.f32 %v1631, %v2089
          %v3132 = vmul.f32 %v1637, %v2090
          %v3133 = vmul.f32 %v1643, %v2091
          %v3134 = vmul.f32 %v1649, %v2092
          %v3135 = vmul.f32 %v1655, %v2093
          %v3136 = vmul.f32 %v1661, %v2094
          %v3137 = vmul.f32 %v1667, %v2095
          %v3138 = vmul.f32 %v1673, %v2096
          %v3139 = vmul.f32 %v1679, %v2097
          %v3140 = vmul.f32 %v1685, %v2098
          %v3141 = vmul.f32 %v1691, %v2099
          %v3142 = vmul.f32 %v1697, %v2100
          %v3143 = vmul.f32 %v1703, %v2101
          %3144 = vrot.lane.b32.xlu0 %v1517, 64
          %v3145 = vpop.permute.xlu0 %3144
          %3146 = vrot.lane.b32.xlu0 %v1523, 64
          %v3147 = vpop.permute.xlu0 %3146
          %3148 = vrot.lane.b32.xlu0 %v1529, 64
          %v3149 = vpop.permute.xlu0 %3148
          %3150 = vrot.lane.b32.xlu0 %v1535, 64
          %v3151 = vpop.permute.xlu0 %3150
          %3152 = vrot.lane.b32.xlu0 %v1541, 64
          %v3153 = vpop.permute.xlu0 %3152
          %3154 = vrot.lane.b32.xlu0 %v1547, 64
          %v3155 = vpop.permute.xlu0 %3154
          %3156 = vrot.lane.b32.xlu0 %v1553, 64
          %v3157 = vpop.permute.xlu0 %3156
          %3158 = vrot.lane.b32.xlu0 %v1559, 64
          %v3159 = vpop.permute.xlu0 %3158
          %3160 = vrot.lane.b32.xlu0 %v1565, 64
          %v3161 = vpop.permute.xlu0 %3160
          %3162 = vrot.lane.b32.xlu0 %v1571, 64
          %v3163 = vpop.permute.xlu0 %3162
          %3164 = vrot.lane.b32.xlu0 %v1577, 64
          %v3165 = vpop.permute.xlu0 %3164
          %3166 = vrot.lane.b32.xlu0 %v1583, 64
          %v3167 = vpop.permute.xlu0 %3166
          %3168 = vrot.lane.b32.xlu0 %v1589, 64
          %v3169 = vpop.permute.xlu0 %3168
          %3170 = vrot.lane.b32.xlu0 %v1595, 64
          %v3171 = vpop.permute.xlu0 %3170
          %3172 = vrot.lane.b32.xlu0 %v1601, 64
          %v3173 = vpop.permute.xlu0 %3172
          %3174 = vrot.lane.b32.xlu0 %v1607, 64
          %v3175 = vpop.permute.xlu0 %3174
          %3176 = vrot.lane.b32.xlu0 %v1613, 64
          %v3177 = vpop.permute.xlu0 %3176
          %3178 = vrot.lane.b32.xlu0 %v1619, 64
          %v3179 = vpop.permute.xlu0 %3178
          %3180 = vrot.lane.b32.xlu0 %v1625, 64
          %v3181 = vpop.permute.xlu0 %3180
          %3182 = vrot.lane.b32.xlu0 %v1631, 64
          %v3183 = vpop.permute.xlu0 %3182
          %3184 = vrot.lane.b32.xlu0 %v1637, 64
          %v3185 = vpop.permute.xlu0 %3184
          %3186 = vrot.lane.b32.xlu0 %v1643, 64
          %v3187 = vpop.permute.xlu0 %3186
          %3188 = vrot.lane.b32.xlu0 %v1649, 64
          %v3189 = vpop.permute.xlu0 %3188
          %3190 = vrot.lane.b32.xlu0 %v1655, 64
          %v3191 = vpop.permute.xlu0 %3190
          %3192 = vrot.lane.b32.xlu0 %v1661, 64
          %v3193 = vpop.permute.xlu0 %3192
          %3194 = vrot.lane.b32.xlu0 %v1667, 64
          %v3195 = vpop.permute.xlu0 %3194
          %3196 = vrot.lane.b32.xlu0 %v1673, 64
          %v3197 = vpop.permute.xlu0 %3196
          %3198 = vrot.lane.b32.xlu0 %v1679, 64
          %v3199 = vpop.permute.xlu0 %3198
          %3200 = vrot.lane.b32.xlu0 %v1685, 64
          %v3201 = vpop.permute.xlu0 %3200
          %3202 = vrot.lane.b32.xlu0 %v1691, 64
          %v3203 = vpop.permute.xlu0 %3202
          %3204 = vrot.lane.b32.xlu0 %v1697, 64
          %v3205 = vpop.permute.xlu0 %3204
          %3206 = vrot.lane.b32.xlu0 %v1703, 64
          %v3207 = vpop.permute.xlu0 %3206
          %v3208 = vmul.f32 %v3145, %v2102
          %v3209 = vmul.f32 %v3147, %v2103
          %v3210 = vmul.f32 %v3149, %v2104
          %v3211 = vmul.f32 %v3151, %v2105
          %v3212 = vmul.f32 %v3153, %v2106
          %v3213 = vmul.f32 %v3155, %v2107
          %v3214 = vmul.f32 %v3157, %v2108
          %v3215 = vmul.f32 %v3159, %v2109
          %v3216 = vmul.f32 %v3161, %v2110
          %v3217 = vmul.f32 %v3163, %v2111
          %v3218 = vmul.f32 %v3165, %v2112
          %v3219 = vmul.f32 %v3167, %v2113
          %v3220 = vmul.f32 %v3169, %v2114
          %v3221 = vmul.f32 %v3171, %v2115
          %v3222 = vmul.f32 %v3173, %v2116
          %v3223 = vmul.f32 %v3175, %v2117
          %v3224 = vmul.f32 %v3177, %v2118
          %v3225 = vmul.f32 %v3179, %v2119
          %v3226 = vmul.f32 %v3181, %v2120
          %v3227 = vmul.f32 %v3183, %v2121
          %v3228 = vmul.f32 %v3185, %v2122
          %v3229 = vmul.f32 %v3187, %v2123
          %v3230 = vmul.f32 %v3189, %v2124
          %v3231 = vmul.f32 %v3191, %v2125
          %v3232 = vmul.f32 %v3193, %v2126
          %v3233 = vmul.f32 %v3195, %v2127
          %v3234 = vmul.f32 %v3197, %v2128
          %v3235 = vmul.f32 %v3199, %v2129
          %v3236 = vmul.f32 %v3201, %v2130
          %v3237 = vmul.f32 %v3203, %v2131
          %v3238 = vmul.f32 %v3205, %v2132
          %v3239 = vmul.f32 %v3207, %v2133
          %v3240 = vadd.f32 %v3112, %v3208
          %v3241 = vadd.f32 %v3113, %v3209
          %v3242 = vadd.f32 %v3114, %v3210
          %v3243 = vadd.f32 %v3115, %v3211
          %v3244 = vadd.f32 %v3116, %v3212
          %v3245 = vadd.f32 %v3117, %v3213
          %v3246 = vadd.f32 %v3118, %v3214
          %v3247 = vadd.f32 %v3119, %v3215
          %v3248 = vadd.f32 %v3120, %v3216
          %v3249 = vadd.f32 %v3121, %v3217
          %v3250 = vadd.f32 %v3122, %v3218
          %v3251 = vadd.f32 %v3123, %v3219
          %v3252 = vadd.f32 %v3124, %v3220
          %v3253 = vadd.f32 %v3125, %v3221
          %v3254 = vadd.f32 %v3126, %v3222
          %v3255 = vadd.f32 %v3127, %v3223
          %v3256 = vadd.f32 %v3128, %v3224
          %v3257 = vadd.f32 %v3129, %v3225
          %v3258 = vadd.f32 %v3130, %v3226
          %v3259 = vadd.f32 %v3131, %v3227
          %v3260 = vadd.f32 %v3132, %v3228
          %v3261 = vadd.f32 %v3133, %v3229
          %v3262 = vadd.f32 %v3134, %v3230
          %v3263 = vadd.f32 %v3135, %v3231
          %v3264 = vadd.f32 %v3136, %v3232
          %v3265 = vadd.f32 %v3137, %v3233
          %v3266 = vadd.f32 %v3138, %v3234
          %v3267 = vadd.f32 %v3139, %v3235
          %v3268 = vadd.f32 %v3140, %v3236
          %v3269 = vadd.f32 %v3141, %v3237
          %v3270 = vadd.f32 %v3142, %v3238
          %v3271 = vadd.f32 %v3143, %v3239
          %3272 = vmatprep.subr.mxu0 0.0
          %3273 = vmatpush1.xpose.msra.mxu0 %v3240
          %3274 = vmatprep.subr.mxu0 0.0
          %3275 = vmatpush1.xpose.msra.mxu0 %v3241
          %3276 = vmatprep.subr.mxu0 0.0
          %3277 = vmatpush1.xpose.msra.mxu0 %v3242
          %3278 = vmatprep.subr.mxu0 0.0
          %3279 = vmatpush1.xpose.msra.mxu0 %v3243
          %3280 = vmatprep.subr.mxu0 0.0
          %3281 = vmatpush1.xpose.msra.mxu0 %v3244
          %3282 = vmatprep.subr.mxu0 0.0
          %3283 = vmatpush1.xpose.msra.mxu0 %v3245
          %3284 = vmatprep.subr.mxu0 0.0
          %3285 = vmatpush1.xpose.msra.mxu0 %v3246
          %3286 = vmatprep.subr.mxu0 0.0
          %3287 = vmatpush1.xpose.msra.mxu0 %v3247
          %3288 = vmatprep.subr.mxu0 0.0
          %3289 = vmatpush1.xpose.msra.mxu0 %v3248
          %3290 = vmatprep.subr.mxu0 0.0
          %3291 = vmatpush1.xpose.msra.mxu0 %v3249
          %3292 = vmatprep.subr.mxu0 0.0
          %3293 = vmatpush1.xpose.msra.mxu0 %v3250
          %3294 = vmatprep.subr.mxu0 0.0
          %3295 = vmatpush1.xpose.msra.mxu0 %v3251
          %3296 = vmatprep.subr.mxu0 0.0
          %3297 = vmatpush1.xpose.msra.mxu0 %v3252
          %3298 = vmatprep.subr.mxu0 0.0
          %3299 = vmatpush1.xpose.msra.mxu0 %v3253
          %3300 = vmatprep.subr.mxu0 0.0
          %3301 = vmatpush1.xpose.msra.mxu0 %v3254
          %3302 = vmatprep.subr.mxu0 0.0
          %3303 = vmatpush1.xpose.msra.mxu0 %v3255
          %3304 = vmatprep.subr.mxu0 0.0
          %3305 = vmatpush1.xpose.msra.mxu0 %v3256
          %3306 = vmatprep.subr.mxu0 0.0
          %3307 = vmatpush1.xpose.msra.mxu0 %v3257
          %3308 = vmatprep.subr.mxu0 0.0
          %3309 = vmatpush1.xpose.msra.mxu0 %v3258
          %3310 = vmatprep.subr.mxu0 0.0
          %3311 = vmatpush1.xpose.msra.mxu0 %v3259
          %3312 = vmatprep.subr.mxu0 0.0
          %3313 = vmatpush1.xpose.msra.mxu0 %v3260
          %3314 = vmatprep.subr.mxu0 0.0
          %3315 = vmatpush1.xpose.msra.mxu0 %v3261
          %3316 = vmatprep.subr.mxu0 0.0
          %3317 = vmatpush1.xpose.msra.mxu0 %v3262
          %3318 = vmatprep.subr.mxu0 0.0
          %3319 = vmatpush1.xpose.msra.mxu0 %v3263
          %3320 = vmatprep.subr.mxu0 0.0
          %3321 = vmatpush1.xpose.msra.mxu0 %v3264
          %3322 = vmatprep.subr.mxu0 0.0
          %3323 = vmatpush1.xpose.msra.mxu0 %v3265
          %3324 = vmatprep.subr.mxu0 0.0
          %3325 = vmatpush1.xpose.msra.mxu0 %v3266
          %3326 = vmatprep.subr.mxu0 0.0
          %3327 = vmatpush1.xpose.msra.mxu0 %v3267
          %3328 = vmatprep.subr.mxu0 0.0
          %3329 = vmatpush1.xpose.msra.mxu0 %v3268
          %3330 = vmatprep.subr.mxu0 0.0
          %3331 = vmatpush1.xpose.msra.mxu0 %v3269
          %3332 = vmatprep.subr.mxu0 0.0
          %3333 = vmatpush1.xpose.msra.mxu0 %v3270
          %3334 = vmatprep.subr.mxu0 0.0
          %3335 = vmatpush1.xpose.msra.mxu0 %v3271
          %3336 = vmatprep.mubr.f32.mxu0 0.0
          %3337 = vmatmul.mubr.f32.gmra.mrb[0].mxu0 %v3096
          %v3338 = vpop.f32.mrb[0].mxu0
          %v3339 = vadd.f32 0.0, %v3338
          %v3340 = vpop.f32.mrb[0].mxu0
          %v3341 = vadd.f32 0.0, %v3340
          %3342 = vmatprep.mubr.f32.mxu0 0.0
          %3343 = vmatmul.mubr.f32.gmra.mrb[0].mxu0 %v3097
          %v3344 = vpop.f32.mrb[0].mxu0
          %v3345 = vadd.f32 0.0, %v3344
          %v3346 = vpop.f32.mrb[0].mxu0
          %v3347 = vadd.f32 0.0, %v3346
          %3348 = vmatprep.mubr.f32.mxu0 0.0
          %3349 = vmatmul.mubr.f32.gmra.mrb[0].mxu0 %v3098
          %v3350 = vpop.f32.mrb[0].mxu0
          %v3351 = vadd.f32 0.0, %v3350
          %v3352 = vpop.f32.mrb[0].mxu0
          %v3353 = vadd.f32 0.0, %v3352
          %3354 = vmatprep.mubr.f32.mxu0 0.0
          %3355 = vmatmul.mubr.f32.gmra.mrb[0].mxu0 %v3099
          %v3356 = vpop.f32.mrb[0].mxu0
          %v3357 = vadd.f32 0.0, %v3356
          %v3358 = vpop.f32.mrb[0].mxu0
          %v3359 = vadd.f32 0.0, %v3358
          %3360 = vmatprep.mubr.f32.mxu0 0.0
          %3361 = vmatmul.mubr.f32.gmra.mrb[0].mxu0 %v3100
          %v3362 = vpop.f32.mrb[0].mxu0
          %v3363 = vadd.f32 0.0, %v3362
          %v3364 = vpop.f32.mrb[0].mxu0
          %v3365 = vadd.f32 0.0, %v3364
          %3366 = vmatprep.mubr.f32.mxu0 0.0
          %3367 = vmatmul.mubr.f32.gmra.mrb[0].mxu0 %v3101
          %v3368 = vpop.f32.mrb[0].mxu0
          %v3369 = vadd.f32 0.0, %v3368
          %v3370 = vpop.f32.mrb[0].mxu0
          %v3371 = vadd.f32 0.0, %v3370
          %3372 = vmatprep.mubr.f32.mxu0 0.0
          %3373 = vmatmul.mubr.f32.gmra.mrb[0].mxu0 %v3102
          %v3374 = vpop.f32.mrb[0].mxu0
          %v3375 = vadd.f32 0.0, %v3374
          %v3376 = vpop.f32.mrb[0].mxu0
          %v3377 = vadd.f32 0.0, %v3376
          %3378 = vmatprep.mubr.f32.mxu0 0.0
          %3379 = vmatmul.mubr.f32.gmra.mrb[0].mxu0 %v3103
          %v3380 = vpop.f32.mrb[0].mxu0
          %v3381 = vadd.f32 0.0, %v3380
          %v3382 = vpop.f32.mrb[0].mxu0
          %v3383 = vadd.f32 0.0, %v3382
          %3384 = vmatprep.mubr.f32.mxu0 0.0
          %3385 = vmatmul.mubr.f32.gmra.mrb[0].mxu0 %v3104
          %v3386 = vpop.f32.mrb[0].mxu0
          %v3387 = vadd.f32 0.0, %v3386
          %v3388 = vpop.f32.mrb[0].mxu0
          %v3389 = vadd.f32 0.0, %v3388
          %3390 = vmatprep.mubr.f32.mxu0 0.0
          %3391 = vmatmul.mubr.f32.gmra.mrb[0].mxu0 %v3105
          %v3392 = vpop.f32.mrb[0].mxu0
          %v3393 = vadd.f32 0.0, %v3392
          %v3394 = vpop.f32.mrb[0].mxu0
          %v3395 = vadd.f32 0.0, %v3394
          %3396 = vmatprep.mubr.f32.mxu0 0.0
          %3397 = vmatmul.mubr.f32.gmra.mrb[0].mxu0 %v3106
          %v3398 = vpop.f32.mrb[0].mxu0
          %v3399 = vadd.f32 0.0, %v3398
          %v3400 = vpop.f32.mrb[0].mxu0
          %v3401 = vadd.f32 0.0, %v3400
          %3402 = vmatprep.mubr.f32.mxu0 0.0
          %3403 = vmatmul.mubr.f32.gmra.mrb[0].mxu0 %v3107
          %v3404 = vpop.f32.mrb[0].mxu0
          %v3405 = vadd.f32 0.0, %v3404
          %v3406 = vpop.f32.mrb[0].mxu0
          %v3407 = vadd.f32 0.0, %v3406
          %3408 = vmatprep.mubr.f32.mxu0 0.0
          %3409 = vmatmul.mubr.f32.gmra.mrb[0].mxu0 %v3108
          %v3410 = vpop.f32.mrb[0].mxu0
          %v3411 = vadd.f32 0.0, %v3410
          %v3412 = vpop.f32.mrb[0].mxu0
          %v3413 = vadd.f32 0.0, %v3412
          %3414 = vmatprep.mubr.f32.mxu0 0.0
          %3415 = vmatmul.mubr.f32.gmra.mrb[0].mxu0 %v3109
          %v3416 = vpop.f32.mrb[0].mxu0
          %v3417 = vadd.f32 0.0, %v3416
          %v3418 = vpop.f32.mrb[0].mxu0
          %v3419 = vadd.f32 0.0, %v3418
          %3420 = vmatprep.mubr.f32.mxu0 0.0
          %3421 = vmatmul.mubr.f32.gmra.mrb[0].mxu0 %v3110
          %v3422 = vpop.f32.mrb[0].mxu0
          %v3423 = vadd.f32 0.0, %v3422
          %v3424 = vpop.f32.mrb[0].mxu0
          %v3425 = vadd.f32 0.0, %v3424
          %3426 = vmatprep.mubr.f32.mxu0 0.0
          %3427 = vmatmul.mubr.f32.gmra.mrb[0].mxu0 %v3111
          %v3428 = vpop.f32.mrb[0].mxu0
          %v3429 = vadd.f32 0.0, %v3428
          %v3430 = vpop.f32.mrb[0].mxu0
          %v3431 = vadd.f32 0.0, %v3430
          %3432 = vdwg.mxu0
          %v3433 = vmul.f32 %v3339, 0.088388346
          %v3434 = vmul.f32 %v3341, 0.088388346
          %v3435 = vmul.f32 %v3345, 0.088388346
          %v3436 = vmul.f32 %v3347, 0.088388346
          %v3437 = vmul.f32 %v3351, 0.088388346
          %v3438 = vmul.f32 %v3353, 0.088388346
          %v3439 = vmul.f32 %v3357, 0.088388346
          %v3440 = vmul.f32 %v3359, 0.088388346
          %v3441 = vmul.f32 %v3363, 0.088388346
          %v3442 = vmul.f32 %v3365, 0.088388346
          %v3443 = vmul.f32 %v3369, 0.088388346
          %v3444 = vmul.f32 %v3371, 0.088388346
          %v3445 = vmul.f32 %v3375, 0.088388346
          %v3446 = vmul.f32 %v3377, 0.088388346
          %v3447 = vmul.f32 %v3381, 0.088388346
          %v3448 = vmul.f32 %v3383, 0.088388346
          %v3449 = vmul.f32 %v3387, 0.088388346
          %v3450 = vmul.f32 %v3389, 0.088388346
          %v3451 = vmul.f32 %v3393, 0.088388346
          %v3452 = vmul.f32 %v3395, 0.088388346
          %v3453 = vmul.f32 %v3399, 0.088388346
          %v3454 = vmul.f32 %v3401, 0.088388346
          %v3455 = vmul.f32 %v3405, 0.088388346
          %v3456 = vmul.f32 %v3407, 0.088388346
          %v3457 = vmul.f32 %v3411, 0.088388346
          %v3458 = vmul.f32 %v3413, 0.088388346
          %v3459 = vmul.f32 %v3417, 0.088388346
          %v3460 = vmul.f32 %v3419, 0.088388346
          %v3461 = vmul.f32 %v3423, 0.088388346
          %v3462 = vmul.f32 %v3425, 0.088388346
          %v3463 = vmul.f32 %v3429, 0.088388346
          %v3464 = vmul.f32 %v3431, 0.088388346
          %v3465 = vmax.f32 %v3433, %v3434
          %3466 = vmax.xlane.f32.xlu0 %v3465
          %v3467 = vpop.xlane.xlu0 %3466
          %v3468 = vmax.f32 %v3435, %v3436
          %3469 = vmax.xlane.f32.xlu0 %v3468
          %v3470 = vpop.xlane.xlu0 %3469
          %v3471 = vmax.f32 %v3437, %v3438
          %3472 = vmax.xlane.f32.xlu0 %v3471
          %v3473 = vpop.xlane.xlu0 %3472
          %v3474 = vmax.f32 %v3439, %v3440
          %3475 = vmax.xlane.f32.xlu0 %v3474
          %v3476 = vpop.xlane.xlu0 %3475
          %v3477 = vmax.f32 %v3441, %v3442
          %3478 = vmax.xlane.f32.xlu0 %v3477
          %v3479 = vpop.xlane.xlu0 %3478
          %v3480 = vmax.f32 %v3443, %v3444
          %3481 = vmax.xlane.f32.xlu0 %v3480
          %v3482 = vpop.xlane.xlu0 %3481
          %v3483 = vmax.f32 %v3445, %v3446
          %3484 = vmax.xlane.f32.xlu0 %v3483
          %v3485 = vpop.xlane.xlu0 %3484
          %v3486 = vmax.f32 %v3447, %v3448
          %3487 = vmax.xlane.f32.xlu0 %v3486
          %v3488 = vpop.xlane.xlu0 %3487
          %v3489 = vmax.f32 %v3449, %v3450
          %3490 = vmax.xlane.f32.xlu0 %v3489
          %v3491 = vpop.xlane.xlu0 %3490
          %v3492 = vmax.f32 %v3451, %v3452
          %3493 = vmax.xlane.f32.xlu0 %v3492
          %v3494 = vpop.xlane.xlu0 %3493
          %v3495 = vmax.f32 %v3453, %v3454
          %3496 = vmax.xlane.f32.xlu0 %v3495
          %v3497 = vpop.xlane.xlu0 %3496
          %v3498 = vmax.f32 %v3455, %v3456
          %3499 = vmax.xlane.f32.xlu0 %v3498
          %v3500 = vpop.xlane.xlu0 %3499
          %v3501 = vmax.f32 %v3457, %v3458
          %3502 = vmax.xlane.f32.xlu0 %v3501
          %v3503 = vpop.xlane.xlu0 %3502
          %v3504 = vmax.f32 %v3459, %v3460
          %3505 = vmax.xlane.f32.xlu0 %v3504
          %v3506 = vpop.xlane.xlu0 %3505
          %v3507 = vmax.f32 %v3461, %v3462
          %3508 = vmax.xlane.f32.xlu0 %v3507
          %v3509 = vpop.xlane.xlu0 %3508
          %v3510 = vmax.f32 %v3463, %v3464
          %3511 = vmax.xlane.f32.xlu0 %v3510
          %v3512 = vpop.xlane.xlu0 %3511
          %v3513 = vsub.f32 %v3433, %v3467
          %v3514 = vsub.f32 %v3434, %v3467
          %v3515 = vsub.f32 %v3435, %v3470
          %v3516 = vsub.f32 %v3436, %v3470
          %v3517 = vsub.f32 %v3437, %v3473
          %v3518 = vsub.f32 %v3438, %v3473
          %v3519 = vsub.f32 %v3439, %v3476
          %v3520 = vsub.f32 %v3440, %v3476
          %v3521 = vsub.f32 %v3441, %v3479
          %v3522 = vsub.f32 %v3442, %v3479
          %v3523 = vsub.f32 %v3443, %v3482
          %v3524 = vsub.f32 %v3444, %v3482
          %v3525 = vsub.f32 %v3445, %v3485
          %v3526 = vsub.f32 %v3446, %v3485
          %v3527 = vsub.f32 %v3447, %v3488
          %v3528 = vsub.f32 %v3448, %v3488
          %v3529 = vsub.f32 %v3449, %v3491
          %v3530 = vsub.f32 %v3450, %v3491
          %v3531 = vsub.f32 %v3451, %v3494
          %v3532 = vsub.f32 %v3452, %v3494
          %v3533 = vsub.f32 %v3453, %v3497
          %v3534 = vsub.f32 %v3454, %v3497
          %v3535 = vsub.f32 %v3455, %v3500
          %v3536 = vsub.f32 %v3456, %v3500
          %v3537 = vsub.f32 %v3457, %v3503
          %v3538 = vsub.f32 %v3458, %v3503
          %v3539 = vsub.f32 %v3459, %v3506
          %v3540 = vsub.f32 %v3460, %v3506
          %v3541 = vsub.f32 %v3461, %v3509
          %v3542 = vsub.f32 %v3462, %v3509
          %v3543 = vsub.f32 %v3463, %v3512
          %v3544 = vsub.f32 %v3464, %v3512
          %v3545 = vmul.f32 %v3513, 1.442695
          %v3546 = vpow.pop %v3545
          %v3547 = vmul.f32 %v3514, 1.442695
          %v3548 = vpow.pop %v3547
          %v3549 = vmul.f32 %v3515, 1.442695
          %v3550 = vpow.pop %v3549
          %v3551 = vmul.f32 %v3516, 1.442695
          %v3552 = vpow.pop %v3551
          %v3553 = vmul.f32 %v3517, 1.442695
          %v3554 = vpow.pop %v3553
          %v3555 = vmul.f32 %v3518, 1.442695
          %v3556 = vpow.pop %v3555
          %v3557 = vmul.f32 %v3519, 1.442695
          %v3558 = vpow.pop %v3557
          %v3559 = vmul.f32 %v3520, 1.442695
          %v3560 = vpow.pop %v3559
          %v3561 = vmul.f32 %v3521, 1.442695
          %v3562 = vpow.pop %v3561
          %v3563 = vmul.f32 %v3522, 1.442695
          %v3564 = vpow.pop %v3563
          %v3565 = vmul.f32 %v3523, 1.442695
          %v3566 = vpow.pop %v3565
          %v3567 = vmul.f32 %v3524, 1.442695
          %v3568 = vpow.pop %v3567
          %v3569 = vmul.f32 %v3525, 1.442695
          %v3570 = vpow.pop %v3569
          %v3571 = vmul.f32 %v3526, 1.442695
          %v3572 = vpow.pop %v3571
          %v3573 = vmul.f32 %v3527, 1.442695
          %v3574 = vpow.pop %v3573
          %v3575 = vmul.f32 %v3528, 1.442695
          %v3576 = vpow.pop %v3575
          %v3577 = vmul.f32 %v3529, 1.442695
          %v3578 = vpow.pop %v3577
          %v3579 = vmul.f32 %v3530, 1.442695
          %v3580 = vpow.pop %v3579
          %v3581 = vmul.f32 %v3531, 1.442695
          %v3582 = vpow.pop %v3581
          %v3583 = vmul.f32 %v3532, 1.442695
          %v3584 = vpow.pop %v3583
          %v3585 = vmul.f32 %v3533, 1.442695
          %v3586 = vpow.pop %v3585
          %v3587 = vmul.f32 %v3534, 1.442695
          %v3588 = vpow.pop %v3587
          %v3589 = vmul.f32 %v3535, 1.442695
          %v3590 = vpow.pop %v3589
          %v3591 = vmul.f32 %v3536, 1.442695
          %v3592 = vpow.pop %v3591
          %v3593 = vmul.f32 %v3537, 1.442695
          %v3594 = vpow.pop %v3593
          %v3595 = vmul.f32 %v3538, 1.442695
          %v3596 = vpow.pop %v3595
          %v3597 = vmul.f32 %v3539, 1.442695
          %v3598 = vpow.pop %v3597
          %v3599 = vmul.f32 %v3540, 1.442695
          %v3600 = vpow.pop %v3599
          %v3601 = vmul.f32 %v3541, 1.442695
          %v3602 = vpow.pop %v3601
          %v3603 = vmul.f32 %v3542, 1.442695
          %v3604 = vpow.pop %v3603
          %v3605 = vmul.f32 %v3543, 1.442695
          %v3606 = vpow.pop %v3605
          %v3607 = vmul.f32 %v3544, 1.442695
          %v3608 = vpow.pop %v3607
          %v3609 = vadd.f32 %v3546, %v3548
          %3610 = vadd.xlane.f32.xlu0 %v3609
          %v3611 = vpop.xlane.xlu0 %3610
          %v3612 = vadd.f32 %v3550, %v3552
          %3613 = vadd.xlane.f32.xlu0 %v3612
          %v3614 = vpop.xlane.xlu0 %3613
          %v3615 = vadd.f32 %v3554, %v3556
          %3616 = vadd.xlane.f32.xlu0 %v3615
          %v3617 = vpop.xlane.xlu0 %3616
          %v3618 = vadd.f32 %v3558, %v3560
          %3619 = vadd.xlane.f32.xlu0 %v3618
          %v3620 = vpop.xlane.xlu0 %3619
          %v3621 = vadd.f32 %v3562, %v3564
          %3622 = vadd.xlane.f32.xlu0 %v3621
          %v3623 = vpop.xlane.xlu0 %3622
          %v3624 = vadd.f32 %v3566, %v3568
          %3625 = vadd.xlane.f32.xlu0 %v3624
          %v3626 = vpop.xlane.xlu0 %3625
          %v3627 = vadd.f32 %v3570, %v3572
          %3628 = vadd.xlane.f32.xlu0 %v3627
          %v3629 = vpop.xlane.xlu0 %3628
          %v3630 = vadd.f32 %v3574, %v3576
          %3631 = vadd.xlane.f32.xlu0 %v3630
          %v3632 = vpop.xlane.xlu0 %3631
          %v3633 = vadd.f32 %v3578, %v3580
          %3634 = vadd.xlane.f32.xlu0 %v3633
          %v3635 = vpop.xlane.xlu0 %3634
          %v3636 = vadd.f32 %v3582, %v3584
          %3637 = vadd.xlane.f32.xlu0 %v3636
          %v3638 = vpop.xlane.xlu0 %3637
          %v3639 = vadd.f32 %v3586, %v3588
          %3640 = vadd.xlane.f32.xlu0 %v3639
          %v3641 = vpop.xlane.xlu0 %3640
          %v3642 = vadd.f32 %v3590, %v3592
          %3643 = vadd.xlane.f32.xlu0 %v3642
          %v3644 = vpop.xlane.xlu0 %3643
          %v3645 = vadd.f32 %v3594, %v3596
          %3646 = vadd.xlane.f32.xlu0 %v3645
          %v3647 = vpop.xlane.xlu0 %3646
          %v3648 = vadd.f32 %v3598, %v3600
          %3649 = vadd.xlane.f32.xlu0 %v3648
          %v3650 = vpop.xlane.xlu0 %3649
          %v3651 = vadd.f32 %v3602, %v3604
          %3652 = vadd.xlane.f32.xlu0 %v3651
          %v3653 = vpop.xlane.xlu0 %3652
          %v3654 = vadd.f32 %v3606, %v3608
          %3655 = vadd.xlane.f32.xlu0 %v3654
          %v3656 = vpop.xlane.xlu0 %3655
          %v3657 = vrcp.pop %v3611
          %v3658 = vrcp.pop %v3614
          %v3659 = vrcp.pop %v3617
          %v3660 = vrcp.pop %v3620
          %v3661 = vrcp.pop %v3623
          %v3662 = vrcp.pop %v3626
          %v3663 = vrcp.pop %v3629
          %v3664 = vrcp.pop %v3632
          %v3665 = vrcp.pop %v3635
          %v3666 = vrcp.pop %v3638
          %v3667 = vrcp.pop %v3641
          %v3668 = vrcp.pop %v3644
          %v3669 = vrcp.pop %v3647
          %v3670 = vrcp.pop %v3650
          %v3671 = vrcp.pop %v3653
          %v3672 = vrcp.pop %v3656
          %v3673 = vmul.f32 %v3611, %v3657
          %v3674 = vmul.f32 %v3614, %v3658
          %v3675 = vmul.f32 %v3617, %v3659
          %v3676 = vmul.f32 %v3620, %v3660
          %v3677 = vmul.f32 %v3623, %v3661
          %v3678 = vmul.f32 %v3626, %v3662
          %v3679 = vmul.f32 %v3629, %v3663
          %v3680 = vmul.f32 %v3632, %v3664
          %v3681 = vmul.f32 %v3635, %v3665
          %v3682 = vmul.f32 %v3638, %v3666
          %v3683 = vmul.f32 %v3641, %v3667
          %v3684 = vmul.f32 %v3644, %v3668
          %v3685 = vmul.f32 %v3647, %v3669
          %v3686 = vmul.f32 %v3650, %v3670
          %v3687 = vmul.f32 %v3653, %v3671
          %v3688 = vmul.f32 %v3656, %v3672
          %v3689 = vsub.f32 2.0, %v3673
          %v3690 = vsub.f32 2.0, %v3674
          %v3691 = vsub.f32 2.0, %v3675
          %v3692 = vsub.f32 2.0, %v3676
          %v3693 = vsub.f32 2.0, %v3677
          %v3694 = vsub.f32 2.0, %v3678
          %v3695 = vsub.f32 2.0, %v3679
          %v3696 = vsub.f32 2.0, %v3680
          %v3697 = vsub.f32 2.0, %v3681
          %v3698 = vsub.f32 2.0, %v3682
          %v3699 = vsub.f32 2.0, %v3683
          %v3700 = vsub.f32 2.0, %v3684
          %v3701 = vsub.f32 2.0, %v3685
          %v3702 = vsub.f32 2.0, %v3686
          %v3703 = vsub.f32 2.0, %v3687
          %v3704 = vsub.f32 2.0, %v3688
          %v3705 = vmul.f32 %v3657, %v3689
          %v3706 = vmul.f32 %v3658, %v3690
          %v3707 = vmul.f32 %v3659, %v3691
          %v3708 = vmul.f32 %v3660, %v3692
          %v3709 = vmul.f32 %v3661, %v3693
          %v3710 = vmul.f32 %v3662, %v3694
          %v3711 = vmul.f32 %v3663, %v3695
          %v3712 = vmul.f32 %v3664, %v3696
          %v3713 = vmul.f32 %v3665, %v3697
          %v3714 = vmul.f32 %v3666, %v3698
          %v3715 = vmul.f32 %v3667, %v3699
          %v3716 = vmul.f32 %v3668, %v3700
          %v3717 = vmul.f32 %v3669, %v3701
          %v3718 = vmul.f32 %v3670, %v3702
          %v3719 = vmul.f32 %v3671, %v3703
          %v3720 = vmul.f32 %v3672, %v3704
          %v3721 = vmul.f32 %v3546, %v3705
          %v3722 = vmul.f32 %v3548, %v3705
          %v3723 = vmul.f32 %v3550, %v3706
          %v3724 = vmul.f32 %v3552, %v3706
          %v3725 = vmul.f32 %v3554, %v3707
          %v3726 = vmul.f32 %v3556, %v3707
          %v3727 = vmul.f32 %v3558, %v3708
          %v3728 = vmul.f32 %v3560, %v3708
          %v3729 = vmul.f32 %v3562, %v3709
          %v3730 = vmul.f32 %v3564, %v3709
          %v3731 = vmul.f32 %v3566, %v3710
          %v3732 = vmul.f32 %v3568, %v3710
          %v3733 = vmul.f32 %v3570, %v3711
          %v3734 = vmul.f32 %v3572, %v3711
          %v3735 = vmul.f32 %v3574, %v3712
          %v3736 = vmul.f32 %v3576, %v3712
          %v3737 = vmul.f32 %v3578, %v3713
          %v3738 = vmul.f32 %v3580, %v3713
          %v3739 = vmul.f32 %v3582, %v3714
          %v3740 = vmul.f32 %v3584, %v3714
          %v3741 = vmul.f32 %v3586, %v3715
          %v3742 = vmul.f32 %v3588, %v3715
          %v3743 = vmul.f32 %v3590, %v3716
          %v3744 = vmul.f32 %v3592, %v3716
          %v3745 = vmul.f32 %v3594, %v3717
          %v3746 = vmul.f32 %v3596, %v3717
          %v3747 = vmul.f32 %v3598, %v3718
          %v3748 = vmul.f32 %v3600, %v3718
          %v3749 = vmul.f32 %v3602, %v3719
          %v3750 = vmul.f32 %v3604, %v3719
          %v3751 = vmul.f32 %v3606, %v3720
          %v3752 = vmul.f32 %v3608, %v3720
          %3753 = vmatprep.subr.mxu0 0.0
          %3754 = vmatpush1.msra.mxu0 %v1850
          %3755 = vmatprep.subr.mxu0 0.0
          %3756 = vmatpush1.msra.mxu0 %v1856
          %3757 = vmatprep.subr.mxu0 0.0
          %3758 = vmatpush1.msra.mxu0 %v1862
          %3759 = vmatprep.subr.mxu0 0.0
          %3760 = vmatpush1.msra.mxu0 %v1868
          %3761 = vmatprep.subr.mxu0 0.0
          %3762 = vmatpush1.msra.mxu0 %v1874
          %3763 = vmatprep.subr.mxu0 0.0
          %3764 = vmatpush1.msra.mxu0 %v1880
          %3765 = vmatprep.subr.mxu0 0.0
          %3766 = vmatpush1.msra.mxu0 %v1886
          %3767 = vmatprep.subr.mxu0 0.0
          %3768 = vmatpush1.msra.mxu0 %v1892
          %3769 = vmatprep.subr.mxu0 0.0
          %3770 = vmatpush1.msra.mxu0 %v1898
          %3771 = vmatprep.subr.mxu0 0.0
          %3772 = vmatpush1.msra.mxu0 %v1904
          %3773 = vmatprep.subr.mxu0 0.0
          %3774 = vmatpush1.msra.mxu0 %v1910
          %3775 = vmatprep.subr.mxu0 0.0
          %3776 = vmatpush1.msra.mxu0 %v1916
          %3777 = vmatprep.subr.mxu0 0.0
          %3778 = vmatpush1.msra.mxu0 %v1922
          %3779 = vmatprep.subr.mxu0 0.0
          %3780 = vmatpush1.msra.mxu0 %v1928
          %3781 = vmatprep.subr.mxu0 0.0
          %3782 = vmatpush1.msra.mxu0 %v1934
          %3783 = vmatprep.subr.mxu0 0.0
          %3784 = vmatpush1.msra.mxu0 %v1940
          %3785 = vmatprep.subr.mxu0 0.0
          %3786 = vmatpush1.msra.mxu0 %v1946
          %3787 = vmatprep.subr.mxu0 0.0
          %3788 = vmatpush1.msra.mxu0 %v1952
          %3789 = vmatprep.subr.mxu0 0.0
          %3790 = vmatpush1.msra.mxu0 %v1958
          %3791 = vmatprep.subr.mxu0 0.0
          %3792 = vmatpush1.msra.mxu0 %v1964
          %3793 = vmatprep.subr.mxu0 0.0
          %3794 = vmatpush1.msra.mxu0 %v1970
          %3795 = vmatprep.subr.mxu0 0.0
          %3796 = vmatpush1.msra.mxu0 %v1976
          %3797 = vmatprep.subr.mxu0 0.0
          %3798 = vmatpush1.msra.mxu0 %v1982
          %3799 = vmatprep.subr.mxu0 0.0
          %3800 = vmatpush1.msra.mxu0 %v1988
          %3801 = vmatprep.subr.mxu0 0.0
          %3802 = vmatpush1.msra.mxu0 %v1994
          %3803 = vmatprep.subr.mxu0 0.0
          %3804 = vmatpush1.msra.mxu0 %v2000
          %3805 = vmatprep.subr.mxu0 0.0
          %3806 = vmatpush1.msra.mxu0 %v2006
          %3807 = vmatprep.subr.mxu0 0.0
          %3808 = vmatpush1.msra.mxu0 %v2012
          %3809 = vmatprep.subr.mxu0 0.0
          %3810 = vmatpush1.msra.mxu0 %v2018
          %3811 = vmatprep.subr.mxu0 0.0
          %3812 = vmatpush1.msra.mxu0 %v2024
          %3813 = vmatprep.subr.mxu0 0.0
          %3814 = vmatpush1.msra.mxu0 %v2030
          %3815 = vmatprep.subr.mxu0 0.0
          %3816 = vmatpush1.msra.mxu0 %v2036
          %3817 = vmatprep.mubr.f32.mxu0 %v3722
          %3818 = vmatmul.mubr.f32.gmra.mrb[0].mxu0 %v3721
          %v3819 = vpop.f32.mrb[0].mxu0
          %v3820 = vadd.f32 0.0, %v3819
          %v3821 = vpop.f32.mrb[0].mxu0
          %3822 = vmatprep.mubr.f32.mxu0 %v3724
          %3823 = vmatmul.mubr.f32.gmra.mrb[0].mxu0 %v3723
          %v3824 = vpop.f32.mrb[0].mxu0
          %v3825 = vadd.f32 0.0, %v3824
          %v3826 = vpop.f32.mrb[0].mxu0
          %3827 = vmatprep.mubr.f32.mxu0 %v3726
          %3828 = vmatmul.mubr.f32.gmra.mrb[0].mxu0 %v3725
          %v3829 = vpop.f32.mrb[0].mxu0
          %v3830 = vadd.f32 0.0, %v3829
          %v3831 = vpop.f32.mrb[0].mxu0
          %3832 = vmatprep.mubr.f32.mxu0 %v3728
          %3833 = vmatmul.mubr.f32.gmra.mrb[0].mxu0 %v3727
          %v3834 = vpop.f32.mrb[0].mxu0
          %v3835 = vadd.f32 0.0, %v3834
          %v3836 = vpop.f32.mrb[0].mxu0
          %3837 = vmatprep.mubr.f32.mxu0 %v3730
          %3838 = vmatmul.mubr.f32.gmra.mrb[0].mxu0 %v3729
          %v3839 = vpop.f32.mrb[0].mxu0
          %v3840 = vadd.f32 0.0, %v3839
          %v3841 = vpop.f32.mrb[0].mxu0
          %3842 = vmatprep.mubr.f32.mxu0 %v3732
          %3843 = vmatmul.mubr.f32.gmra.mrb[0].mxu0 %v3731
          %v3844 = vpop.f32.mrb[0].mxu0
          %v3845 = vadd.f32 0.0, %v3844
          %v3846 = vpop.f32.mrb[0].mxu0
          %3847 = vmatprep.mubr.f32.mxu0 %v3734
          %3848 = vmatmul.mubr.f32.gmra.mrb[0].mxu0 %v3733
          %v3849 = vpop.f32.mrb[0].mxu0
          %v3850 = vadd.f32 0.0, %v3849
          %v3851 = vpop.f32.mrb[0].mxu0
          %3852 = vmatprep.mubr.f32.mxu0 %v3736
          %3853 = vmatmul.mubr.f32.gmra.mrb[0].mxu0 %v3735
          %v3854 = vpop.f32.mrb[0].mxu0
          %v3855 = vadd.f32 0.0, %v3854
          %v3856 = vpop.f32.mrb[0].mxu0
          %3857 = vmatprep.mubr.f32.mxu0 %v3738
          %3858 = vmatmul.mubr.f32.gmra.mrb[0].mxu0 %v3737
          %v3859 = vpop.f32.mrb[0].mxu0
          %v3860 = vadd.f32 0.0, %v3859
          %v3861 = vpop.f32.mrb[0].mxu0
          %3862 = vmatprep.mubr.f32.mxu0 %v3740
          %3863 = vmatmul.mubr.f32.gmra.mrb[0].mxu0 %v3739
          %v3864 = vpop.f32.mrb[0].mxu0
          %v3865 = vadd.f32 0.0, %v3864
          %v3866 = vpop.f32.mrb[0].mxu0
          %3867 = vmatprep.mubr.f32.mxu0 %v3742
          %3868 = vmatmul.mubr.f32.gmra.mrb[0].mxu0 %v3741
          %v3869 = vpop.f32.mrb[0].mxu0
          %v3870 = vadd.f32 0.0, %v3869
          %v3871 = vpop.f32.mrb[0].mxu0
          %3872 = vmatprep.mubr.f32.mxu0 %v3744
          %3873 = vmatmul.mubr.f32.gmra.mrb[0].mxu0 %v3743
          %v3874 = vpop.f32.mrb[0].mxu0
          %v3875 = vadd.f32 0.0, %v3874
          %v3876 = vpop.f32.mrb[0].mxu0
          %3877 = vmatprep.mubr.f32.mxu0 %v3746
          %3878 = vmatmul.mubr.f32.gmra.mrb[0].mxu0 %v3745
          %v3879 = vpop.f32.mrb[0].mxu0
          %v3880 = vadd.f32 0.0, %v3879
          %v3881 = vpop.f32.mrb[0].mxu0
          %3882 = vmatprep.mubr.f32.mxu0 %v3748
          %3883 = vmatmul.mubr.f32.gmra.mrb[0].mxu0 %v3747
          %v3884 = vpop.f32.mrb[0].mxu0
          %v3885 = vadd.f32 0.0, %v3884
          %v3886 = vpop.f32.mrb[0].mxu0
          %3887 = vmatprep.mubr.f32.mxu0 %v3750
          %3888 = vmatmul.mubr.f32.gmra.mrb[0].mxu0 %v3749
          %v3889 = vpop.f32.mrb[0].mxu0
          %v3890 = vadd.f32 0.0, %v3889
          %v3891 = vpop.f32.mrb[0].mxu0
          %3892 = vmatprep.mubr.f32.mxu0 %v3752
          %3893 = vmatmul.mubr.f32.gmra.mrb[0].mxu0 %v3751
          %v3894 = vpop.f32.mrb[0].mxu0
          %v3895 = vadd.f32 0.0, %v3894
          %v3896 = vpop.f32.mrb[0].mxu0
          %3897 = vdwg.mxu0
          %v3898 = vld [vmem:[#allocation22 + $0x100] sm:$0xff]
          %v3899 = vld [vmem:[#allocation22 + $0x108] sm:$0xff]
          %v3900 = vld [vmem:[#allocation22 + $0x110] sm:$0xff]
          %v3901 = vld [vmem:[#allocation22 + $0x118] sm:$0xff]
          %v3902 = vld [vmem:[#allocation22 + $0x120] sm:$0xff]
          %v3903 = vld [vmem:[#allocation22 + $0x128] sm:$0xff]
          %v3904 = vld [vmem:[#allocation22 + $0x130] sm:$0xff]
          %v3905 = vld [vmem:[#allocation22 + $0x138] sm:$0xff]
          %v3906 = vld [vmem:[#allocation22 + $0x140] sm:$0xff]
          %v3907 = vld [vmem:[#allocation22 + $0x148] sm:$0xff]
          %v3908 = vld [vmem:[#allocation22 + $0x150] sm:$0xff]
          %v3909 = vld [vmem:[#allocation22 + $0x158] sm:$0xff]
          %v3910 = vld [vmem:[#allocation22 + $0x160] sm:$0xff]
          %v3911 = vld [vmem:[#allocation22 + $0x168] sm:$0xff]
          %v3912 = vld [vmem:[#allocation22 + $0x170] sm:$0xff]
          %v3913 = vld [vmem:[#allocation22 + $0x178] sm:$0xff]
          %v3914 = vld [vmem:[#allocation22 + $0x180] sm:$0xff]
          %v3915 = vld [vmem:[#allocation22 + $0x188] sm:$0xff]
          %v3916 = vld [vmem:[#allocation22 + $0x190] sm:$0xff]
          %v3917 = vld [vmem:[#allocation22 + $0x198] sm:$0xff]
          %v3918 = vld [vmem:[#allocation22 + $0x1a0] sm:$0xff]
          %v3919 = vld [vmem:[#allocation22 + $0x1a8] sm:$0xff]
          %v3920 = vld [vmem:[#allocation22 + $0x1b0] sm:$0xff]
          %v3921 = vld [vmem:[#allocation22 + $0x1b8] sm:$0xff]
          %v3922 = vld [vmem:[#allocation22 + $0x1c0] sm:$0xff]
          %v3923 = vld [vmem:[#allocation22 + $0x1c8] sm:$0xff]
          %v3924 = vld [vmem:[#allocation22 + $0x1d0] sm:$0xff]
          %v3925 = vld [vmem:[#allocation22 + $0x1d8] sm:$0xff]
          %v3926 = vld [vmem:[#allocation22 + $0x1e0] sm:$0xff]
          %v3927 = vld [vmem:[#allocation22 + $0x1e8] sm:$0xff]
          %v3928 = vld [vmem:[#allocation22 + $0x1f0] sm:$0xff]
          %v3929 = vld [vmem:[#allocation22 + $0x1f8] sm:$0xff]
          %3930 = vmatprep.subr.mxu0 %v3899
          %3931 = vmatpush1.msra.mxu0 %v3898
          %3932 = vmatprep.subr.mxu0 %v3901
          %3933 = vmatpush1.msra.mxu0 %v3900
          %3934 = vmatprep.subr.mxu0 %v3903
          %3935 = vmatpush1.msra.mxu0 %v3902
          %3936 = vmatprep.subr.mxu0 %v3905
          %3937 = vmatpush1.msra.mxu0 %v3904
          %3938 = vmatprep.subr.mxu0 %v3907
          %3939 = vmatpush1.msra.mxu0 %v3906
          %3940 = vmatprep.subr.mxu0 %v3909
          %3941 = vmatpush1.msra.mxu0 %v3908
          %3942 = vmatprep.subr.mxu0 %v3911
          %3943 = vmatpush1.msra.mxu0 %v3910
          %3944 = vmatprep.subr.mxu0 %v3913
          %3945 = vmatpush1.msra.mxu0 %v3912
          %3946 = vmatprep.subr.mxu0 %v3915
          %3947 = vmatpush1.msra.mxu0 %v3914
          %3948 = vmatprep.subr.mxu0 %v3917
          %3949 = vmatpush1.msra.mxu0 %v3916
          %3950 = vmatprep.subr.mxu0 %v3919
          %3951 = vmatpush1.msra.mxu0 %v3918
          %3952 = vmatprep.subr.mxu0 %v3921
          %3953 = vmatpush1.msra.mxu0 %v3920
          %3954 = vmatprep.subr.mxu0 %v3923
          %3955 = vmatpush1.msra.mxu0 %v3922
          %3956 = vmatprep.subr.mxu0 %v3925
          %3957 = vmatpush1.msra.mxu0 %v3924
          %3958 = vmatprep.subr.mxu0 %v3927
          %3959 = vmatpush1.msra.mxu0 %v3926
          %3960 = vmatprep.subr.mxu0 %v3929
          %3961 = vmatpush1.msra.mxu0 %v3928
          %3962 = vmatprep.subr.mxu0 0.0
          %3963 = vmatpush1.msra.mxu0 0.0
          %3964 = vmatprep.subr.mxu0 0.0
          %3965 = vmatpush1.msra.mxu0 0.0
          %3966 = vmatprep.subr.mxu0 0.0
          %3967 = vmatpush1.msra.mxu0 0.0
          %3968 = vmatprep.subr.mxu0 0.0
          %3969 = vmatpush1.msra.mxu0 0.0
          %3970 = vmatprep.subr.mxu0 0.0
          %3971 = vmatpush1.msra.mxu0 0.0
          %3972 = vmatprep.subr.mxu0 0.0
          %3973 = vmatpush1.msra.mxu0 0.0
          %3974 = vmatprep.subr.mxu0 0.0
          %3975 = vmatpush1.msra.mxu0 0.0
          %3976 = vmatprep.subr.mxu0 0.0
          %3977 = vmatpush1.msra.mxu0 0.0
          %3978 = vmatprep.subr.mxu0 0.0
          %3979 = vmatpush1.msra.mxu0 0.0
          %3980 = vmatprep.subr.mxu0 0.0
          %3981 = vmatpush1.msra.mxu0 0.0
          %3982 = vmatprep.subr.mxu0 0.0
          %3983 = vmatpush1.msra.mxu0 0.0
          %3984 = vmatprep.subr.mxu0 0.0
          %3985 = vmatpush1.msra.mxu0 0.0
          %3986 = vmatprep.subr.mxu0 0.0
          %3987 = vmatpush1.msra.mxu0 0.0
          %3988 = vmatprep.subr.mxu0 0.0
          %3989 = vmatpush1.msra.mxu0 0.0
          %3990 = vmatprep.subr.mxu0 0.0
          %3991 = vmatpush1.msra.mxu0 0.0
          %3992 = vmatprep.subr.mxu0 0.0
          %3993 = vmatpush1.msra.mxu0 0.0
          %3994 = vmatprep.mubr.f32.mxu0 0.0
          %3995 = vmatmul.mubr.f32.gmra.mrb[0].mxu0 %v3820
          %v3996 = vpop.f32.mrb[0].mxu0
          %v3997 = vadd.f32 0.0, %v3996
          %v3998 = vpop.f32.mrb[0].mxu0
          %v3999 = vadd.f32 0.0, %v3998
          %4000 = vmatprep.mubr.f32.mxu0 0.0
          %4001 = vmatmul.mubr.f32.gmra.mrb[0].mxu0 %v3825
          %v4002 = vpop.f32.mrb[0].mxu0
          %v4003 = vadd.f32 0.0, %v4002
          %v4004 = vpop.f32.mrb[0].mxu0
          %v4005 = vadd.f32 0.0, %v4004
          %4006 = vmatprep.mubr.f32.mxu0 0.0
          %4007 = vmatmul.mubr.f32.gmra.mrb[0].mxu0 %v3830
          %v4008 = vpop.f32.mrb[0].mxu0
          %v4009 = vadd.f32 0.0, %v4008
          %v4010 = vpop.f32.mrb[0].mxu0
          %v4011 = vadd.f32 0.0, %v4010
          %4012 = vmatprep.mubr.f32.mxu0 0.0
          %4013 = vmatmul.mubr.f32.gmra.mrb[0].mxu0 %v3835
          %v4014 = vpop.f32.mrb[0].mxu0
          %v4015 = vadd.f32 0.0, %v4014
          %v4016 = vpop.f32.mrb[0].mxu0
          %v4017 = vadd.f32 0.0, %v4016
          %4018 = vmatprep.mubr.f32.mxu0 0.0
          %4019 = vmatmul.mubr.f32.gmra.mrb[0].mxu0 %v3840
          %v4020 = vpop.f32.mrb[0].mxu0
          %v4021 = vadd.f32 0.0, %v4020
          %v4022 = vpop.f32.mrb[0].mxu0
          %v4023 = vadd.f32 0.0, %v4022
          %4024 = vmatprep.mubr.f32.mxu0 0.0
          %4025 = vmatmul.mubr.f32.gmra.mrb[0].mxu0 %v3845
          %v4026 = vpop.f32.mrb[0].mxu0
          %v4027 = vadd.f32 0.0, %v4026
          %v4028 = vpop.f32.mrb[0].mxu0
          %v4029 = vadd.f32 0.0, %v4028
          %4030 = vmatprep.mubr.f32.mxu0 0.0
          %4031 = vmatmul.mubr.f32.gmra.mrb[0].mxu0 %v3850
          %v4032 = vpop.f32.mrb[0].mxu0
          %v4033 = vadd.f32 0.0, %v4032
          %v4034 = vpop.f32.mrb[0].mxu0
          %v4035 = vadd.f32 0.0, %v4034
          %4036 = vmatprep.mubr.f32.mxu0 0.0
          %4037 = vmatmul.mubr.f32.gmra.mrb[0].mxu0 %v3855
          %v4038 = vpop.f32.mrb[0].mxu0
          %v4039 = vadd.f32 0.0, %v4038
          %v4040 = vpop.f32.mrb[0].mxu0
          %v4041 = vadd.f32 0.0, %v4040
          %4042 = vmatprep.mubr.f32.mxu0 0.0
          %4043 = vmatmul.mubr.f32.gmra.mrb[0].mxu0 %v3860
          %v4044 = vpop.f32.mrb[0].mxu0
          %v4045 = vadd.f32 0.0, %v4044
          %v4046 = vpop.f32.mrb[0].mxu0
          %v4047 = vadd.f32 0.0, %v4046
          %4048 = vmatprep.mubr.f32.mxu0 0.0
          %4049 = vmatmul.mubr.f32.gmra.mrb[0].mxu0 %v3865
          %v4050 = vpop.f32.mrb[0].mxu0
          %v4051 = vadd.f32 0.0, %v4050
          %v4052 = vpop.f32.mrb[0].mxu0
          %v4053 = vadd.f32 0.0, %v4052
          %4054 = vmatprep.mubr.f32.mxu0 0.0
          %4055 = vmatmul.mubr.f32.gmra.mrb[0].mxu0 %v3870
          %v4056 = vpop.f32.mrb[0].mxu0
          %v4057 = vadd.f32 0.0, %v4056
          %v4058 = vpop.f32.mrb[0].mxu0
          %v4059 = vadd.f32 0.0, %v4058
          %4060 = vmatprep.mubr.f32.mxu0 0.0
          %4061 = vmatmul.mubr.f32.gmra.mrb[0].mxu0 %v3875
          %v4062 = vpop.f32.mrb[0].mxu0
          %v4063 = vadd.f32 0.0, %v4062
          %v4064 = vpop.f32.mrb[0].mxu0
          %v4065 = vadd.f32 0.0, %v4064
          %4066 = vmatprep.mubr.f32.mxu0 0.0
          %4067 = vmatmul.mubr.f32.gmra.mrb[0].mxu0 %v3880
          %v4068 = vpop.f32.mrb[0].mxu0
          %v4069 = vadd.f32 0.0, %v4068
          %v4070 = vpop.f32.mrb[0].mxu0
          %v4071 = vadd.f32 0.0, %v4070
          %4072 = vmatprep.mubr.f32.mxu0 0.0
          %4073 = vmatmul.mubr.f32.gmra.mrb[0].mxu0 %v3885
          %v4074 = vpop.f32.mrb[0].mxu0
          %v4075 = vadd.f32 0.0, %v4074
          %v4076 = vpop.f32.mrb[0].mxu0
          %v4077 = vadd.f32 0.0, %v4076
          %4078 = vmatprep.mubr.f32.mxu0 0.0
          %4079 = vmatmul.mubr.f32.gmra.mrb[0].mxu0 %v3890
          %v4080 = vpop.f32.mrb[0].mxu0
          %v4081 = vadd.f32 0.0, %v4080
          %v4082 = vpop.f32.mrb[0].mxu0
          %v4083 = vadd.f32 0.0, %v4082
          %4084 = vmatprep.mubr.f32.mxu0 0.0
          %4085 = vmatmul.mubr.f32.gmra.mrb[0].mxu0 %v3895
          %v4086 = vpop.f32.mrb[0].mxu0
          %v4087 = vadd.f32 0.0, %v4086
          %v4088 = vpop.f32.mrb[0].mxu0
          %v4089 = vadd.f32 0.0, %v4088
          %4090 = vdwg.mxu0
          %4091 = vmatprep.subr.mxu0 %v3001
          %4092 = vmatpush1.msra.mxu0 %v3000
          %4093 = vmatprep.subr.mxu0 %v3003
          %4094 = vmatpush1.msra.mxu0 %v3002
          %4095 = vmatprep.subr.mxu0 %v3005
          %4096 = vmatpush1.msra.mxu0 %v3004
          %4097 = vmatprep.subr.mxu0 %v3007
          %4098 = vmatpush1.msra.mxu0 %v3006
          %4099 = vmatprep.subr.mxu0 %v3009
          %4100 = vmatpush1.msra.mxu0 %v3008
          %4101 = vmatprep.subr.mxu0 %v3011
          %4102 = vmatpush1.msra.mxu0 %v3010
          %4103 = vmatprep.subr.mxu0 %v3013
          %4104 = vmatpush1.msra.mxu0 %v3012
          %4105 = vmatprep.subr.mxu0 %v3015
          %4106 = vmatpush1.msra.mxu0 %v3014
          %4107 = vmatprep.subr.mxu0 %v3017
          %4108 = vmatpush1.msra.mxu0 %v3016
          %4109 = vmatprep.subr.mxu0 %v3019
          %4110 = vmatpush1.msra.mxu0 %v3018
          %4111 = vmatprep.subr.mxu0 %v3021
          %4112 = vmatpush1.msra.mxu0 %v3020
          %4113 = vmatprep.subr.mxu0 %v3023
          %4114 = vmatpush1.msra.mxu0 %v3022
          %4115 = vmatprep.subr.mxu0 %v3025
          %4116 = vmatpush1.msra.mxu0 %v3024
          %4117 = vmatprep.subr.mxu0 %v3027
          %4118 = vmatpush1.msra.mxu0 %v3026
          %4119 = vmatprep.subr.mxu0 %v3029
          %4120 = vmatpush1.msra.mxu0 %v3028
          %4121 = vmatprep.subr.mxu0 %v3031
          %4122 = vmatpush1.msra.mxu0 %v3030
          %4123 = vmatprep.subr.mxu0 0.0
          %4124 = vmatpush1.msra.mxu0 0.0
          %4125 = vmatprep.subr.mxu0 0.0
          %4126 = vmatpush1.msra.mxu0 0.0
          %4127 = vmatprep.subr.mxu0 0.0
          %4128 = vmatpush1.msra.mxu0 0.0
          %4129 = vmatprep.subr.mxu0 0.0
          %4130 = vmatpush1.msra.mxu0 0.0
          %4131 = vmatprep.subr.mxu0 0.0
          %4132 = vmatpush1.msra.mxu0 0.0
          %4133 = vmatprep.subr.mxu0 0.0
          %4134 = vmatpush1.msra.mxu0 0.0
          %4135 = vmatprep.subr.mxu0 0.0
          %4136 = vmatpush1.msra.mxu0 0.0
          %4137 = vmatprep.subr.mxu0 0.0
          %4138 = vmatpush1.msra.mxu0 0.0
          %4139 = vmatprep.subr.mxu0 0.0
          %4140 = vmatpush1.msra.mxu0 0.0
          %4141 = vmatprep.subr.mxu0 0.0
          %4142 = vmatpush1.msra.mxu0 0.0
          %4143 = vmatprep.subr.mxu0 0.0
          %4144 = vmatpush1.msra.mxu0 0.0
          %4145 = vmatprep.subr.mxu0 0.0
          %4146 = vmatpush1.msra.mxu0 0.0
          %4147 = vmatprep.subr.mxu0 0.0
          %4148 = vmatpush1.msra.mxu0 0.0
          %4149 = vmatprep.subr.mxu0 0.0
          %4150 = vmatpush1.msra.mxu0 0.0
          %4151 = vmatprep.subr.mxu0 0.0
          %4152 = vmatpush1.msra.mxu0 0.0
          %4153 = vmatprep.subr.mxu0 0.0
          %4154 = vmatpush1.msra.mxu0 0.0
          %4155 = vmatprep.mubr.f32.mxu0 0.0
          %4156 = vmatmul.mubr.f32.gmra.mrb[0].mxu0 %v2922
          %v4157 = vpop.f32.mrb[0].mxu0
          %v4158 = vadd.f32 %v3997, %v4157
          %v4159 = vpop.f32.mrb[0].mxu0
          %v4160 = vadd.f32 %v3999, %v4159
          %4161 = vmatprep.mubr.f32.mxu0 0.0
          %4162 = vmatmul.mubr.f32.gmra.mrb[0].mxu0 %v2927
          %v4163 = vpop.f32.mrb[0].mxu0
          %v4164 = vadd.f32 %v4003, %v4163
          %v4165 = vpop.f32.mrb[0].mxu0
          %v4166 = vadd.f32 %v4005, %v4165
          %4167 = vmatprep.mubr.f32.mxu0 0.0
          %4168 = vmatmul.mubr.f32.gmra.mrb[0].mxu0 %v2932
          %v4169 = vpop.f32.mrb[0].mxu0
          %v4170 = vadd.f32 %v4009, %v4169
          %v4171 = vpop.f32.mrb[0].mxu0
          %v4172 = vadd.f32 %v4011, %v4171
          %4173 = vmatprep.mubr.f32.mxu0 0.0
          %4174 = vmatmul.mubr.f32.gmra.mrb[0].mxu0 %v2937
          %v4175 = vpop.f32.mrb[0].mxu0
          %v4176 = vadd.f32 %v4015, %v4175
          %v4177 = vpop.f32.mrb[0].mxu0
          %v4178 = vadd.f32 %v4017, %v4177
          %4179 = vmatprep.mubr.f32.mxu0 0.0
          %4180 = vmatmul.mubr.f32.gmra.mrb[0].mxu0 %v2942
          %v4181 = vpop.f32.mrb[0].mxu0
          %v4182 = vadd.f32 %v4021, %v4181
          %v4183 = vpop.f32.mrb[0].mxu0
          %v4184 = vadd.f32 %v4023, %v4183
          %4185 = vmatprep.mubr.f32.mxu0 0.0
          %4186 = vmatmul.mubr.f32.gmra.mrb[0].mxu0 %v2947
          %v4187 = vpop.f32.mrb[0].mxu0
          %v4188 = vadd.f32 %v4027, %v4187
          %v4189 = vpop.f32.mrb[0].mxu0
          %v4190 = vadd.f32 %v4029, %v4189
          %4191 = vmatprep.mubr.f32.mxu0 0.0
          %4192 = vmatmul.mubr.f32.gmra.mrb[0].mxu0 %v2952
          %v4193 = vpop.f32.mrb[0].mxu0
          %v4194 = vadd.f32 %v4033, %v4193
          %v4195 = vpop.f32.mrb[0].mxu0
          %v4196 = vadd.f32 %v4035, %v4195
          %4197 = vmatprep.mubr.f32.mxu0 0.0
          %4198 = vmatmul.mubr.f32.gmra.mrb[0].mxu0 %v2957
          %v4199 = vpop.f32.mrb[0].mxu0
          %v4200 = vadd.f32 %v4039, %v4199
          %v4201 = vpop.f32.mrb[0].mxu0
          %v4202 = vadd.f32 %v4041, %v4201
          %4203 = vmatprep.mubr.f32.mxu0 0.0
          %4204 = vmatmul.mubr.f32.gmra.mrb[0].mxu0 %v2962
          %v4205 = vpop.f32.mrb[0].mxu0
          %v4206 = vadd.f32 %v4045, %v4205
          %v4207 = vpop.f32.mrb[0].mxu0
          %v4208 = vadd.f32 %v4047, %v4207
          %4209 = vmatprep.mubr.f32.mxu0 0.0
          %4210 = vmatmul.mubr.f32.gmra.mrb[0].mxu0 %v2967
          %v4211 = vpop.f32.mrb[0].mxu0
          %v4212 = vadd.f32 %v4051, %v4211
          %v4213 = vpop.f32.mrb[0].mxu0
          %v4214 = vadd.f32 %v4053, %v4213
          %4215 = vmatprep.mubr.f32.mxu0 0.0
          %4216 = vmatmul.mubr.f32.gmra.mrb[0].mxu0 %v2972
          %v4217 = vpop.f32.mrb[0].mxu0
          %v4218 = vadd.f32 %v4057, %v4217
          %v4219 = vpop.f32.mrb[0].mxu0
          %v4220 = vadd.f32 %v4059, %v4219
          %4221 = vmatprep.mubr.f32.mxu0 0.0
          %4222 = vmatmul.mubr.f32.gmra.mrb[0].mxu0 %v2977
          %v4223 = vpop.f32.mrb[0].mxu0
          %v4224 = vadd.f32 %v4063, %v4223
          %v4225 = vpop.f32.mrb[0].mxu0
          %v4226 = vadd.f32 %v4065, %v4225
          %4227 = vmatprep.mubr.f32.mxu0 0.0
          %4228 = vmatmul.mubr.f32.gmra.mrb[0].mxu0 %v2982
          %v4229 = vpop.f32.mrb[0].mxu0
          %v4230 = vadd.f32 %v4069, %v4229
          %v4231 = vpop.f32.mrb[0].mxu0
          %v4232 = vadd.f32 %v4071, %v4231
          %4233 = vmatprep.mubr.f32.mxu0 0.0
          %4234 = vmatmul.mubr.f32.gmra.mrb[0].mxu0 %v2987
          %v4235 = vpop.f32.mrb[0].mxu0
          %v4236 = vadd.f32 %v4075, %v4235
          %v4237 = vpop.f32.mrb[0].mxu0
          %v4238 = vadd.f32 %v4077, %v4237
          %4239 = vmatprep.mubr.f32.mxu0 0.0
          %4240 = vmatmul.mubr.f32.gmra.mrb[0].mxu0 %v2992
          %v4241 = vpop.f32.mrb[0].mxu0
          %v4242 = vadd.f32 %v4081, %v4241
          %v4243 = vpop.f32.mrb[0].mxu0
          %v4244 = vadd.f32 %v4083, %v4243
          %4245 = vmatprep.mubr.f32.mxu0 0.0
          %4246 = vmatmul.mubr.f32.gmra.mrb[0].mxu0 %v2997
          %v4247 = vpop.f32.mrb[0].mxu0
          %v4248 = vadd.f32 %v4087, %v4247
          %v4249 = vpop.f32.mrb[0].mxu0
          %v4250 = vadd.f32 %v4089, %v4249
          %4251 = vdwg.mxu0
          %v4252 = vld [vmem:[%s13] sm:$0x3]
          %v4254 = vlaneseq
          %v4255 = vshrl.u32 %v4254, 7
          %v4256 = vsub.s32 0, %v4255
          %v4257 = vrot.slane %v4252, %v4256
          %v4258 = vlaneseq
          %v4259 = vshrl.u32 %v4258, 7
          %v4260 = vsub.s32 1, %v4259
          %v4261 = vrot.slane %v4252, %v4260
          %v4264 = vadd.f32 %v4158, %v4257
          %v4265 = vadd.f32 %v4160, %v4261
          %v4266 = vadd.f32 %v4164, %v4257
          %v4267 = vadd.f32 %v4166, %v4261
          %v4268 = vadd.f32 %v4170, %v4257
          %v4269 = vadd.f32 %v4172, %v4261
          %v4270 = vadd.f32 %v4176, %v4257
          %v4271 = vadd.f32 %v4178, %v4261
          %v4272 = vadd.f32 %v4182, %v4257
          %v4273 = vadd.f32 %v4184, %v4261
          %v4274 = vadd.f32 %v4188, %v4257
          %v4275 = vadd.f32 %v4190, %v4261
          %v4276 = vadd.f32 %v4194, %v4257
          %v4277 = vadd.f32 %v4196, %v4261
          %v4278 = vadd.f32 %v4200, %v4257
          %v4279 = vadd.f32 %v4202, %v4261
          %v4280 = vadd.f32 %v4206, %v4257
          %v4281 = vadd.f32 %v4208, %v4261
          %v4282 = vadd.f32 %v4212, %v4257
          %v4283 = vadd.f32 %v4214, %v4261
          %v4284 = vadd.f32 %v4218, %v4257
          %v4285 = vadd.f32 %v4220, %v4261
          %v4286 = vadd.f32 %v4224, %v4257
          %v4287 = vadd.f32 %v4226, %v4261
          %v4288 = vadd.f32 %v4230, %v4257
          %v4289 = vadd.f32 %v4232, %v4261
          %v4290 = vadd.f32 %v4236, %v4257
          %v4291 = vadd.f32 %v4238, %v4261
          %v4292 = vadd.f32 %v4242, %v4257
          %v4293 = vadd.f32 %v4244, %v4261
          %v4294 = vadd.f32 %v4248, %v4257
          %v4295 = vadd.f32 %v4250, %v4261
          %v4296 = vadd.f32 %v1039, %v4264
          %v4297 = vadd.f32 %v1040, %v4265
          %v4298 = vadd.f32 %v1041, %v4266
          %v4299 = vadd.f32 %v1042, %v4267
          %v4300 = vadd.f32 %v1043, %v4268
          %v4301 = vadd.f32 %v1044, %v4269
          %v4302 = vadd.f32 %v1045, %v4270
          %v4303 = vadd.f32 %v1046, %v4271
          %v4304 = vadd.f32 %v1047, %v4272
          %v4305 = vadd.f32 %v1048, %v4273
          %v4306 = vadd.f32 %v1049, %v4274
          %v4307 = vadd.f32 %v1050, %v4275
          %v4308 = vadd.f32 %v1051, %v4276
          %v4309 = vadd.f32 %v1052, %v4277
          %v4310 = vadd.f32 %v1053, %v4278
          %v4311 = vadd.f32 %v1054, %v4279
          %v4312 = vadd.f32 %v1055, %v4280
          %v4313 = vadd.f32 %v1056, %v4281
          %v4314 = vadd.f32 %v1057, %v4282
          %v4315 = vadd.f32 %v1058, %v4283
          %v4316 = vadd.f32 %v1059, %v4284
          %v4317 = vadd.f32 %v1060, %v4285
          %v4318 = vadd.f32 %v1061, %v4286
          %v4319 = vadd.f32 %v1062, %v4287
          %v4320 = vadd.f32 %v1063, %v4288
          %v4321 = vadd.f32 %v1064, %v4289
          %v4322 = vadd.f32 %v1065, %v4290
          %v4323 = vadd.f32 %v1066, %v4291
          %v4324 = vadd.f32 %v1067, %v4292
          %v4325 = vadd.f32 %v1068, %v4293
          %v4326 = vadd.f32 %v1069, %v4294
          %v4327 = vadd.f32 %v1070, %v4295
          %v4328 = vld [vmem:[%s14] sm:$0x3]
          %v4329 = vld [vmem:[%s15] sm:$0x3]
          %v4330 = vadd.f32 %v4296, %v4297
          %4331 = vadd.xlane.f32.xlu0 %v4330
          %v4332 = vpop.xlane.xlu0 %4331
          %v4333 = vadd.f32 %v4298, %v4299
          %4334 = vadd.xlane.f32.xlu0 %v4333
          %v4335 = vpop.xlane.xlu0 %4334
          %v4336 = vadd.f32 %v4300, %v4301
          %4337 = vadd.xlane.f32.xlu0 %v4336
          %v4338 = vpop.xlane.xlu0 %4337
          %v4339 = vadd.f32 %v4302, %v4303
          %4340 = vadd.xlane.f32.xlu0 %v4339
          %v4341 = vpop.xlane.xlu0 %4340
          %v4342 = vadd.f32 %v4304, %v4305
          %4343 = vadd.xlane.f32.xlu0 %v4342
          %v4344 = vpop.xlane.xlu0 %4343
          %v4345 = vadd.f32 %v4306, %v4307
          %4346 = vadd.xlane.f32.xlu0 %v4345
          %v4347 = vpop.xlane.xlu0 %4346
          %v4348 = vadd.f32 %v4308, %v4309
          %4349 = vadd.xlane.f32.xlu0 %v4348
          %v4350 = vpop.xlane.xlu0 %4349
          %v4351 = vadd.f32 %v4310, %v4311
          %4352 = vadd.xlane.f32.xlu0 %v4351
          %v4353 = vpop.xlane.xlu0 %4352
          %v4354 = vadd.f32 %v4312, %v4313
          %4355 = vadd.xlane.f32.xlu0 %v4354
          %v4356 = vpop.xlane.xlu0 %4355
          %v4357 = vadd.f32 %v4314, %v4315
          %4358 = vadd.xlane.f32.xlu0 %v4357
          %v4359 = vpop.xlane.xlu0 %4358
          %v4360 = vadd.f32 %v4316, %v4317
          %4361 = vadd.xlane.f32.xlu0 %v4360
          %v4362 = vpop.xlane.xlu0 %4361
          %v4363 = vadd.f32 %v4318, %v4319
          %4364 = vadd.xlane.f32.xlu0 %v4363
          %v4365 = vpop.xlane.xlu0 %4364
          %v4366 = vadd.f32 %v4320, %v4321
          %4367 = vadd.xlane.f32.xlu0 %v4366
          %v4368 = vpop.xlane.xlu0 %4367
          %v4369 = vadd.f32 %v4322, %v4323
          %4370 = vadd.xlane.f32.xlu0 %v4369
          %v4371 = vpop.xlane.xlu0 %4370
          %v4372 = vadd.f32 %v4324, %v4325
          %4373 = vadd.xlane.f32.xlu0 %v4372
          %v4374 = vpop.xlane.xlu0 %4373
          %v4375 = vadd.f32 %v4326, %v4327
          %4376 = vadd.xlane.f32.xlu0 %v4375
          %v4377 = vpop.xlane.xlu0 %4376
          %v4378 = vrcp.pop 256.0
          %v4379 = vmul.f32 %v4332, %v4378
          %v4380 = vmul.f32 %v4335, %v4378
          %v4381 = vmul.f32 %v4338, %v4378
          %v4382 = vmul.f32 %v4341, %v4378
          %v4383 = vmul.f32 %v4344, %v4378
          %v4384 = vmul.f32 %v4347, %v4378
          %v4385 = vmul.f32 %v4350, %v4378
          %v4386 = vmul.f32 %v4353, %v4378
          %v4387 = vmul.f32 %v4356, %v4378
          %v4388 = vmul.f32 %v4359, %v4378
          %v4389 = vmul.f32 %v4362, %v4378
          %v4390 = vmul.f32 %v4365, %v4378
          %v4391 = vmul.f32 %v4368, %v4378
          %v4392 = vmul.f32 %v4371, %v4378
          %v4393 = vmul.f32 %v4374, %v4378
          %v4394 = vmul.f32 %v4377, %v4378
          %v4395 = vsub.f32 %v4296, %v4379
          %v4396 = vsub.f32 %v4297, %v4379
          %v4397 = vsub.f32 %v4298, %v4380
          %v4398 = vsub.f32 %v4299, %v4380
          %v4399 = vsub.f32 %v4300, %v4381
          %v4400 = vsub.f32 %v4301, %v4381
          %v4401 = vsub.f32 %v4302, %v4382
          %v4402 = vsub.f32 %v4303, %v4382
          %v4403 = vsub.f32 %v4304, %v4383
          %v4404 = vsub.f32 %v4305, %v4383
          %v4405 = vsub.f32 %v4306, %v4384
          %v4406 = vsub.f32 %v4307, %v4384
          %v4407 = vsub.f32 %v4308, %v4385
          %v4408 = vsub.f32 %v4309, %v4385
          %v4409 = vsub.f32 %v4310, %v4386
          %v4410 = vsub.f32 %v4311, %v4386
          %v4411 = vsub.f32 %v4312, %v4387
          %v4412 = vsub.f32 %v4313, %v4387
          %v4413 = vsub.f32 %v4314, %v4388
          %v4414 = vsub.f32 %v4315, %v4388
          %v4415 = vsub.f32 %v4316, %v4389
          %v4416 = vsub.f32 %v4317, %v4389
          %v4417 = vsub.f32 %v4318, %v4390
          %v4418 = vsub.f32 %v4319, %v4390
          %v4419 = vsub.f32 %v4320, %v4391
          %v4420 = vsub.f32 %v4321, %v4391
          %v4421 = vsub.f32 %v4322, %v4392
          %v4422 = vsub.f32 %v4323, %v4392
          %v4423 = vsub.f32 %v4324, %v4393
          %v4424 = vsub.f32 %v4325, %v4393
          %v4425 = vsub.f32 %v4326, %v4394
          %v4426 = vsub.f32 %v4327, %v4394
          %v4427 = vmul.f32 %v4395, %v4395
          %v4428 = vmul.f32 %v4396, %v4396
          %v4429 = vmul.f32 %v4397, %v4397
          %v4430 = vmul.f32 %v4398, %v4398
          %v4431 = vmul.f32 %v4399, %v4399
          %v4432 = vmul.f32 %v4400, %v4400
          %v4433 = vmul.f32 %v4401, %v4401
          %v4434 = vmul.f32 %v4402, %v4402
          %v4435 = vmul.f32 %v4403, %v4403
          %v4436 = vmul.f32 %v4404, %v4404
          %v4437 = vmul.f32 %v4405, %v4405
          %v4438 = vmul.f32 %v4406, %v4406
          %v4439 = vmul.f32 %v4407, %v4407
          %v4440 = vmul.f32 %v4408, %v4408
          %v4441 = vmul.f32 %v4409, %v4409
          %v4442 = vmul.f32 %v4410, %v4410
          %v4443 = vmul.f32 %v4411, %v4411
          %v4444 = vmul.f32 %v4412, %v4412
          %v4445 = vmul.f32 %v4413, %v4413
          %v4446 = vmul.f32 %v4414, %v4414
          %v4447 = vmul.f32 %v4415, %v4415
          %v4448 = vmul.f32 %v4416, %v4416
          %v4449 = vmul.f32 %v4417, %v4417
          %v4450 = vmul.f32 %v4418, %v4418
          %v4451 = vmul.f32 %v4419, %v4419
          %v4452 = vmul.f32 %v4420, %v4420
          %v4453 = vmul.f32 %v4421, %v4421
          %v4454 = vmul.f32 %v4422, %v4422
          %v4455 = vmul.f32 %v4423, %v4423
          %v4456 = vmul.f32 %v4424, %v4424
          %v4457 = vmul.f32 %v4425, %v4425
          %v4458 = vmul.f32 %v4426, %v4426
          %v4459 = vadd.f32 %v4427, %v4428
          %4460 = vadd.xlane.f32.xlu0 %v4459
          %v4461 = vpop.xlane.xlu0 %4460
          %v4462 = vadd.f32 %v4429, %v4430
          %4463 = vadd.xlane.f32.xlu0 %v4462
          %v4464 = vpop.xlane.xlu0 %4463
          %v4465 = vadd.f32 %v4431, %v4432
          %4466 = vadd.xlane.f32.xlu0 %v4465
          %v4467 = vpop.xlane.xlu0 %4466
          %v4468 = vadd.f32 %v4433, %v4434
          %4469 = vadd.xlane.f32.xlu0 %v4468
          %v4470 = vpop.xlane.xlu0 %4469
          %v4471 = vadd.f32 %v4435, %v4436
          %4472 = vadd.xlane.f32.xlu0 %v4471
          %v4473 = vpop.xlane.xlu0 %4472
          %v4474 = vadd.f32 %v4437, %v4438
          %4475 = vadd.xlane.f32.xlu0 %v4474
          %v4476 = vpop.xlane.xlu0 %4475
          %v4477 = vadd.f32 %v4439, %v4440
          %4478 = vadd.xlane.f32.xlu0 %v4477
          %v4479 = vpop.xlane.xlu0 %4478
          %v4480 = vadd.f32 %v4441, %v4442
          %4481 = vadd.xlane.f32.xlu0 %v4480
          %v4482 = vpop.xlane.xlu0 %4481
          %v4483 = vadd.f32 %v4443, %v4444
          %4484 = vadd.xlane.f32.xlu0 %v4483
          %v4485 = vpop.xlane.xlu0 %4484
          %v4486 = vadd.f32 %v4445, %v4446
          %4487 = vadd.xlane.f32.xlu0 %v4486
          %v4488 = vpop.xlane.xlu0 %4487
          %v4489 = vadd.f32 %v4447, %v4448
          %4490 = vadd.xlane.f32.xlu0 %v4489
          %v4491 = vpop.xlane.xlu0 %4490
          %v4492 = vadd.f32 %v4449, %v4450
          %4493 = vadd.xlane.f32.xlu0 %v4492
          %v4494 = vpop.xlane.xlu0 %4493
          %v4495 = vadd.f32 %v4451, %v4452
          %4496 = vadd.xlane.f32.xlu0 %v4495
          %v4497 = vpop.xlane.xlu0 %4496
          %v4498 = vadd.f32 %v4453, %v4454
          %4499 = vadd.xlane.f32.xlu0 %v4498
          %v4500 = vpop.xlane.xlu0 %4499
          %v4501 = vadd.f32 %v4455, %v4456
          %4502 = vadd.xlane.f32.xlu0 %v4501
          %v4503 = vpop.xlane.xlu0 %4502
          %v4504 = vadd.f32 %v4457, %v4458
          %4505 = vadd.xlane.f32.xlu0 %v4504
          %v4506 = vpop.xlane.xlu0 %4505
          %v4507 = vmul.f32 %v4461, %v4378
          %v4508 = vmul.f32 %v4464, %v4378
          %v4509 = vmul.f32 %v4467, %v4378
          %v4510 = vmul.f32 %v4470, %v4378
          %v4511 = vmul.f32 %v4473, %v4378
          %v4512 = vmul.f32 %v4476, %v4378
          %v4513 = vmul.f32 %v4479, %v4378
          %v4514 = vmul.f32 %v4482, %v4378
          %v4515 = vmul.f32 %v4485, %v4378
          %v4516 = vmul.f32 %v4488, %v4378
          %v4517 = vmul.f32 %v4491, %v4378
          %v4518 = vmul.f32 %v4494, %v4378
          %v4519 = vmul.f32 %v4497, %v4378
          %v4520 = vmul.f32 %v4500, %v4378
          %v4521 = vmul.f32 %v4503, %v4378
          %v4522 = vmul.f32 %v4506, %v4378
          %v4523 = vadd.f32 %v4507, 1e-12
          %v4524 = vadd.f32 %v4508, 1e-12
          %v4525 = vadd.f32 %v4509, 1e-12
          %v4526 = vadd.f32 %v4510, 1e-12
          %v4527 = vadd.f32 %v4511, 1e-12
          %v4528 = vadd.f32 %v4512, 1e-12
          %v4529 = vadd.f32 %v4513, 1e-12
          %v4530 = vadd.f32 %v4514, 1e-12
          %v4531 = vadd.f32 %v4515, 1e-12
          %v4532 = vadd.f32 %v4516, 1e-12
          %v4533 = vadd.f32 %v4517, 1e-12
          %v4534 = vadd.f32 %v4518, 1e-12
          %v4535 = vadd.f32 %v4519, 1e-12
          %v4536 = vadd.f32 %v4520, 1e-12
          %v4537 = vadd.f32 %v4521, 1e-12
          %v4538 = vadd.f32 %v4522, 1e-12
          %v4539 = vrsqrt.pop %v4523
          %v4540 = vrsqrt.pop %v4524
          %v4541 = vrsqrt.pop %v4525
          %v4542 = vrsqrt.pop %v4526
          %v4543 = vrsqrt.pop %v4527
          %v4544 = vrsqrt.pop %v4528
          %v4545 = vrsqrt.pop %v4529
          %v4546 = vrsqrt.pop %v4530
          %v4547 = vrsqrt.pop %v4531
          %v4548 = vrsqrt.pop %v4532
          %v4549 = vrsqrt.pop %v4533
          %v4550 = vrsqrt.pop %v4534
          %v4551 = vrsqrt.pop %v4535
          %v4552 = vrsqrt.pop %v4536
          %v4553 = vrsqrt.pop %v4537
          %v4554 = vrsqrt.pop %v4538
          %v4555 = vmul.f32 %v4395, %v4539
          %v4556 = vmul.f32 %v4396, %v4539
          %v4557 = vmul.f32 %v4397, %v4540
          %v4558 = vmul.f32 %v4398, %v4540
          %v4559 = vmul.f32 %v4399, %v4541
          %v4560 = vmul.f32 %v4400, %v4541
          %v4561 = vmul.f32 %v4401, %v4542
          %v4562 = vmul.f32 %v4402, %v4542
          %v4563 = vmul.f32 %v4403, %v4543
          %v4564 = vmul.f32 %v4404, %v4543
          %v4565 = vmul.f32 %v4405, %v4544
          %v4566 = vmul.f32 %v4406, %v4544
          %v4567 = vmul.f32 %v4407, %v4545
          %v4568 = vmul.f32 %v4408, %v4545
          %v4569 = vmul.f32 %v4409, %v4546
          %v4570 = vmul.f32 %v4410, %v4546
          %v4571 = vmul.f32 %v4411, %v4547
          %v4572 = vmul.f32 %v4412, %v4547
          %v4573 = vmul.f32 %v4413, %v4548
          %v4574 = vmul.f32 %v4414, %v4548
          %v4575 = vmul.f32 %v4415, %v4549
          %v4576 = vmul.f32 %v4416, %v4549
          %v4577 = vmul.f32 %v4417, %v4550
          %v4578 = vmul.f32 %v4418, %v4550
          %v4579 = vmul.f32 %v4419, %v4551
          %v4580 = vmul.f32 %v4420, %v4551
          %v4581 = vmul.f32 %v4421, %v4552
          %v4582 = vmul.f32 %v4422, %v4552
          %v4583 = vmul.f32 %v4423, %v4553
          %v4584 = vmul.f32 %v4424, %v4553
          %v4585 = vmul.f32 %v4425, %v4554
          %v4586 = vmul.f32 %v4426, %v4554
          %v4588 = vlaneseq
          %v4589 = vshrl.u32 %v4588, 7
          %v4590 = vsub.s32 0, %v4589
          %v4591 = vrot.slane %v4328, %v4590
          %v4592 = vlaneseq
          %v4593 = vshrl.u32 %v4592, 7
          %v4594 = vsub.s32 1, %v4593
          %v4595 = vrot.slane %v4328, %v4594
          %v4598 = vmul.f32 %v4555, %v4591
          %v4599 = vmul.f32 %v4556, %v4595
          %v4600 = vmul.f32 %v4557, %v4591
          %v4601 = vmul.f32 %v4558, %v4595
          %v4602 = vmul.f32 %v4559, %v4591
          %v4603 = vmul.f32 %v4560, %v4595
          %v4604 = vmul.f32 %v4561, %v4591
          %v4605 = vmul.f32 %v4562, %v4595
          %v4606 = vmul.f32 %v4563, %v4591
          %v4607 = vmul.f32 %v4564, %v4595
          %v4608 = vmul.f32 %v4565, %v4591
          %v4609 = vmul.f32 %v4566, %v4595
          %v4610 = vmul.f32 %v4567, %v4591
          %v4611 = vmul.f32 %v4568, %v4595
          %v4612 = vmul.f32 %v4569, %v4591
          %v4613 = vmul.f32 %v4570, %v4595
          %v4614 = vmul.f32 %v4571, %v4591
          %v4615 = vmul.f32 %v4572, %v4595
          %v4616 = vmul.f32 %v4573, %v4591
          %v4617 = vmul.f32 %v4574, %v4595
          %v4618 = vmul.f32 %v4575, %v4591
          %v4619 = vmul.f32 %v4576, %v4595
          %v4620 = vmul.f32 %v4577, %v4591
          %v4621 = vmul.f32 %v4578, %v4595
          %v4622 = vmul.f32 %v4579, %v4591
          %v4623 = vmul.f32 %v4580, %v4595
          %v4624 = vmul.f32 %v4581, %v4591
          %v4625 = vmul.f32 %v4582, %v4595
          %v4626 = vmul.f32 %v4583, %v4591
          %v4627 = vmul.f32 %v4584, %v4595
          %v4628 = vmul.f32 %v4585, %v4591
          %v4629 = vmul.f32 %v4586, %v4595
          %v4631 = vlaneseq
          %v4632 = vshrl.u32 %v4631, 7
          %v4633 = vsub.s32 0, %v4632
          %v4634 = vrot.slane %v4329, %v4633
          %v4635 = vlaneseq
          %v4636 = vshrl.u32 %v4635, 7
          %v4637 = vsub.s32 1, %v4636
          %v4638 = vrot.slane %v4329, %v4637
          %v4641 = vadd.f32 %v4598, %v4634
          %v4642 = vadd.f32 %v4599, %v4638
          %v4643 = vadd.f32 %v4600, %v4634
          %v4644 = vadd.f32 %v4601, %v4638
          %v4645 = vadd.f32 %v4602, %v4634
          %v4646 = vadd.f32 %v4603, %v4638
          %v4647 = vadd.f32 %v4604, %v4634
          %v4648 = vadd.f32 %v4605, %v4638
          %v4649 = vadd.f32 %v4606, %v4634
          %v4650 = vadd.f32 %v4607, %v4638
          %v4651 = vadd.f32 %v4608, %v4634
          %v4652 = vadd.f32 %v4609, %v4638
          %v4653 = vadd.f32 %v4610, %v4634
          %v4654 = vadd.f32 %v4611, %v4638
          %v4655 = vadd.f32 %v4612, %v4634
          %v4656 = vadd.f32 %v4613, %v4638
          %v4657 = vadd.f32 %v4614, %v4634
          %v4658 = vadd.f32 %v4615, %v4638
          %v4659 = vadd.f32 %v4616, %v4634
          %v4660 = vadd.f32 %v4617, %v4638
          %v4661 = vadd.f32 %v4618, %v4634
          %v4662 = vadd.f32 %v4619, %v4638
          %v4663 = vadd.f32 %v4620, %v4634
          %v4664 = vadd.f32 %v4621, %v4638
          %v4665 = vadd.f32 %v4622, %v4634
          %v4666 = vadd.f32 %v4623, %v4638
          %v4667 = vadd.f32 %v4624, %v4634
          %v4668 = vadd.f32 %v4625, %v4638
          %v4669 = vadd.f32 %v4626, %v4634
          %v4670 = vadd.f32 %v4627, %v4638
          %v4671 = vadd.f32 %v4628, %v4634
          %v4672 = vadd.f32 %v4629, %v4638
          %4673 = vst [vmem:[#allocation2] sm:$0xff] %v4641
          %4674 = vst [vmem:[#allocation2 + $0x8] sm:$0xff] %v4642
          %4675 = vst [vmem:[#allocation2 + $0x10] sm:$0xff] %v4643
          %4676 = vst [vmem:[#allocation2 + $0x18] sm:$0xff] %v4644
          %4677 = vst [vmem:[#allocation2 + $0x20] sm:$0xff] %v4645
          %4678 = vst [vmem:[#allocation2 + $0x28] sm:$0xff] %v4646
          %4679 = vst [vmem:[#allocation2 + $0x30] sm:$0xff] %v4647
          %4680 = vst [vmem:[#allocation2 + $0x38] sm:$0xff] %v4648
          %4681 = vst [vmem:[#allocation2 + $0x40] sm:$0xff] %v4649
          %4682 = vst [vmem:[#allocation2 + $0x48] sm:$0xff] %v4650
          %4683 = vst [vmem:[#allocation2 + $0x50] sm:$0xff] %v4651
          %4684 = vst [vmem:[#allocation2 + $0x58] sm:$0xff] %v4652
          %4685 = vst [vmem:[#allocation2 + $0x60] sm:$0xff] %v4653
          %4686 = vst [vmem:[#allocation2 + $0x68] sm:$0xff] %v4654
          %4687 = vst [vmem:[#allocation2 + $0x70] sm:$0xff] %v4655
          %4688 = vst [vmem:[#allocation2 + $0x78] sm:$0xff] %v4656
          %4689 = vst [vmem:[#allocation2 + $0x80] sm:$0xff] %v4657
          %4690 = vst [vmem:[#allocation2 + $0x88] sm:$0xff] %v4658
          %4691 = vst [vmem:[#allocation2 + $0x90] sm:$0xff] %v4659
          %4692 = vst [vmem:[#allocation2 + $0x98] sm:$0xff] %v4660
          %4693 = vst [vmem:[#allocation2 + $0xa0] sm:$0xff] %v4661
          %4694 = vst [vmem:[#allocation2 + $0xa8] sm:$0xff] %v4662
          %4695 = vst [vmem:[#allocation2 + $0xb0] sm:$0xff] %v4663
          %4696 = vst [vmem:[#allocation2 + $0xb8] sm:$0xff] %v4664
          %4697 = vst [vmem:[#allocation2 + $0xc0] sm:$0xff] %v4665
          %4698 = vst [vmem:[#allocation2 + $0xc8] sm:$0xff] %v4666
          %4699 = vst [vmem:[#allocation2 + $0xd0] sm:$0xff] %v4667
          %4700 = vst [vmem:[#allocation2 + $0xd8] sm:$0xff] %v4668
          %4701 = vst [vmem:[#allocation2 + $0xe0] sm:$0xff] %v4669
          %4702 = vst [vmem:[#allocation2 + $0xe8] sm:$0xff] %v4670
          %4703 = vst [vmem:[#allocation2 + $0xf0] sm:$0xff] %v4671
          %4704 = vst [vmem:[#allocation2 + $0xf8] sm:$0xff] %v4672
          %v4705 = vld [vmem:[%s16] sm:$0xff]
          %v4706 = vld [vmem:[%s16 + $0x8] sm:$0xff]
          %v4707 = vld [vmem:[%s16 + $0x10] sm:$0xff]
          %v4708 = vld [vmem:[%s16 + $0x18] sm:$0xff]
          %v4709 = vld [vmem:[%s16 + $0x20] sm:$0xff]
          %v4710 = vld [vmem:[%s16 + $0x28] sm:$0xff]
          %v4711 = vld [vmem:[%s16 + $0x30] sm:$0xff]
          %v4712 = vld [vmem:[%s16 + $0x38] sm:$0xff]
          %v4713 = vld [vmem:[%s16 + $0x40] sm:$0xff]
          %v4714 = vld [vmem:[%s16 + $0x48] sm:$0xff]
          %v4715 = vld [vmem:[%s16 + $0x50] sm:$0xff]
          %v4716 = vld [vmem:[%s16 + $0x58] sm:$0xff]
          %v4717 = vld [vmem:[%s16 + $0x60] sm:$0xff]
          %v4718 = vld [vmem:[%s16 + $0x68] sm:$0xff]
          %v4719 = vld [vmem:[%s16 + $0x70] sm:$0xff]
          %v4720 = vld [vmem:[%s16 + $0x78] sm:$0xff]
          %v4721 = vld [vmem:[%s16 + $0x80] sm:$0xff]
          %v4722 = vld [vmem:[%s16 + $0x88] sm:$0xff]
          %v4723 = vld [vmem:[%s16 + $0x90] sm:$0xff]
          %v4724 = vld [vmem:[%s16 + $0x98] sm:$0xff]
          %v4725 = vld [vmem:[%s16 + $0xa0] sm:$0xff]
          %v4726 = vld [vmem:[%s16 + $0xa8] sm:$0xff]
          %v4727 = vld [vmem:[%s16 + $0xb0] sm:$0xff]
          %v4728 = vld [vmem:[%s16 + $0xb8] sm:$0xff]
          %v4729 = vld [vmem:[%s16 + $0xc0] sm:$0xff]
          %v4730 = vld [vmem:[%s16 + $0xc8] sm:$0xff]
          %v4731 = vld [vmem:[%s16 + $0xd0] sm:$0xff]
          %v4732 = vld [vmem:[%s16 + $0xd8] sm:$0xff]
          %v4733 = vld [vmem:[%s16 + $0xe0] sm:$0xff]
          %v4734 = vld [vmem:[%s16 + $0xe8] sm:$0xff]
          %v4735 = vld [vmem:[%s16 + $0xf0] sm:$0xff]
          %v4736 = vld [vmem:[%s16 + $0xf8] sm:$0xff]
          %4737 = vmatprep.subr.mxu0 0.0
          %4738 = vmatpush1.msra.mxu0 %v4705
          %4739 = vmatprep.subr.mxu0 0.0
          %4740 = vmatpush1.msra.mxu0 %v4706
          %4741 = vmatprep.subr.mxu0 0.0
          %4742 = vmatpush1.msra.mxu0 %v4707
          %4743 = vmatprep.subr.mxu0 0.0
          %4744 = vmatpush1.msra.mxu0 %v4708
          %4745 = vmatprep.subr.mxu0 0.0
          %4746 = vmatpush1.msra.mxu0 %v4709
          %4747 = vmatprep.subr.mxu0 0.0
          %4748 = vmatpush1.msra.mxu0 %v4710
          %4749 = vmatprep.subr.mxu0 0.0
          %4750 = vmatpush1.msra.mxu0 %v4711
          %4751 = vmatprep.subr.mxu0 0.0
          %4752 = vmatpush1.msra.mxu0 %v4712
          %4753 = vmatprep.subr.mxu0 0.0
          %4754 = vmatpush1.msra.mxu0 %v4713
          %4755 = vmatprep.subr.mxu0 0.0
          %4756 = vmatpush1.msra.mxu0 %v4714
          %4757 = vmatprep.subr.mxu0 0.0
          %4758 = vmatpush1.msra.mxu0 %v4715
          %4759 = vmatprep.subr.mxu0 0.0
          %4760 = vmatpush1.msra.mxu0 %v4716
          %4761 = vmatprep.subr.mxu0 0.0
          %4762 = vmatpush1.msra.mxu0 %v4717
          %4763 = vmatprep.subr.mxu0 0.0
          %4764 = vmatpush1.msra.mxu0 %v4718
          %4765 = vmatprep.subr.mxu0 0.0
          %4766 = vmatpush1.msra.mxu0 %v4719
          %4767 = vmatprep.subr.mxu0 0.0
          %4768 = vmatpush1.msra.mxu0 %v4720
          %4769 = vmatprep.subr.mxu0 0.0
          %4770 = vmatpush1.msra.mxu0 %v4721
          %4771 = vmatprep.subr.mxu0 0.0
          %4772 = vmatpush1.msra.mxu0 %v4722
          %4773 = vmatprep.subr.mxu0 0.0
          %4774 = vmatpush1.msra.mxu0 %v4723
          %4775 = vmatprep.subr.mxu0 0.0
          %4776 = vmatpush1.msra.mxu0 %v4724
          %4777 = vmatprep.subr.mxu0 0.0
          %4778 = vmatpush1.msra.mxu0 %v4725
          %4779 = vmatprep.subr.mxu0 0.0
          %4780 = vmatpush1.msra.mxu0 %v4726
          %4781 = vmatprep.subr.mxu0 0.0
          %4782 = vmatpush1.msra.mxu0 %v4727
          %4783 = vmatprep.subr.mxu0 0.0
          %4784 = vmatpush1.msra.mxu0 %v4728
          %4785 = vmatprep.subr.mxu0 0.0
          %4786 = vmatpush1.msra.mxu0 %v4729
          %4787 = vmatprep.subr.mxu0 0.0
          %4788 = vmatpush1.msra.mxu0 %v4730
          %4789 = vmatprep.subr.mxu0 0.0
          %4790 = vmatpush1.msra.mxu0 %v4731
          %4791 = vmatprep.subr.mxu0 0.0
          %4792 = vmatpush1.msra.mxu0 %v4732
          %4793 = vmatprep.subr.mxu0 0.0
          %4794 = vmatpush1.msra.mxu0 %v4733
          %4795 = vmatprep.subr.mxu0 0.0
          %4796 = vmatpush1.msra.mxu0 %v4734
          %4797 = vmatprep.subr.mxu0 0.0
          %4798 = vmatpush1.msra.mxu0 %v4735
          %4799 = vmatprep.subr.mxu0 0.0
          %4800 = vmatpush1.msra.mxu0 %v4736
          %4801 = vmatprep.mubr.f32.mxu0 %v4642
          %4802 = vmatmul.mubr.f32.gmra.mrb[0].mxu0 %v4641
          %v4803 = vpop.f32.mrb[0].mxu0
          %v4804 = vadd.f32 0.0, %v4803
          %v4805 = vpop.f32.mrb[0].mxu0
          %4806 = vmatprep.mubr.f32.mxu0 %v4644
          %4807 = vmatmul.mubr.f32.gmra.mrb[0].mxu0 %v4643
          %v4808 = vpop.f32.mrb[0].mxu0
          %v4809 = vadd.f32 0.0, %v4808
          %v4810 = vpop.f32.mrb[0].mxu0
          %4811 = vmatprep.mubr.f32.mxu0 %v4646
          %4812 = vmatmul.mubr.f32.gmra.mrb[0].mxu0 %v4645
          %v4813 = vpop.f32.mrb[0].mxu0
          %v4814 = vadd.f32 0.0, %v4813
          %v4815 = vpop.f32.mrb[0].mxu0
          %4816 = vmatprep.mubr.f32.mxu0 %v4648
          %4817 = vmatmul.mubr.f32.gmra.mrb[0].mxu0 %v4647
          %v4818 = vpop.f32.mrb[0].mxu0
          %v4819 = vadd.f32 0.0, %v4818
          %v4820 = vpop.f32.mrb[0].mxu0
          %4821 = vmatprep.mubr.f32.mxu0 %v4650
          %4822 = vmatmul.mubr.f32.gmra.mrb[0].mxu0 %v4649
          %v4823 = vpop.f32.mrb[0].mxu0
          %v4824 = vadd.f32 0.0, %v4823
          %v4825 = vpop.f32.mrb[0].mxu0
          %4826 = vmatprep.mubr.f32.mxu0 %v4652
          %4827 = vmatmul.mubr.f32.gmra.mrb[0].mxu0 %v4651
          %v4828 = vpop.f32.mrb[0].mxu0
          %v4829 = vadd.f32 0.0, %v4828
          %v4830 = vpop.f32.mrb[0].mxu0
          %4831 = vmatprep.mubr.f32.mxu0 %v4654
          %4832 = vmatmul.mubr.f32.gmra.mrb[0].mxu0 %v4653
          %v4833 = vpop.f32.mrb[0].mxu0
          %v4834 = vadd.f32 0.0, %v4833
          %v4835 = vpop.f32.mrb[0].mxu0
          %4836 = vmatprep.mubr.f32.mxu0 %v4656
          %4837 = vmatmul.mubr.f32.gmra.mrb[0].mxu0 %v4655
          %v4838 = vpop.f32.mrb[0].mxu0
          %v4839 = vadd.f32 0.0, %v4838
          %v4840 = vpop.f32.mrb[0].mxu0
          %4841 = vmatprep.mubr.f32.mxu0 %v4658
          %4842 = vmatmul.mubr.f32.gmra.mrb[0].mxu0 %v4657
          %v4843 = vpop.f32.mrb[0].mxu0
          %v4844 = vadd.f32 0.0, %v4843
          %v4845 = vpop.f32.mrb[0].mxu0
          %4846 = vmatprep.mubr.f32.mxu0 %v4660
          %4847 = vmatmul.mubr.f32.gmra.mrb[0].mxu0 %v4659
          %v4848 = vpop.f32.mrb[0].mxu0
          %v4849 = vadd.f32 0.0, %v4848
          %v4850 = vpop.f32.mrb[0].mxu0
          %4851 = vmatprep.mubr.f32.mxu0 %v4662
          %4852 = vmatmul.mubr.f32.gmra.mrb[0].mxu0 %v4661
          %v4853 = vpop.f32.mrb[0].mxu0
          %v4854 = vadd.f32 0.0, %v4853
          %v4855 = vpop.f32.mrb[0].mxu0
          %4856 = vmatprep.mubr.f32.mxu0 %v4664
          %4857 = vmatmul.mubr.f32.gmra.mrb[0].mxu0 %v4663
          %v4858 = vpop.f32.mrb[0].mxu0
          %v4859 = vadd.f32 0.0, %v4858
          %v4860 = vpop.f32.mrb[0].mxu0
          %4861 = vmatprep.mubr.f32.mxu0 %v4666
          %4862 = vmatmul.mubr.f32.gmra.mrb[0].mxu0 %v4665
          %v4863 = vpop.f32.mrb[0].mxu0
          %v4864 = vadd.f32 0.0, %v4863
          %v4865 = vpop.f32.mrb[0].mxu0
          %4866 = vmatprep.mubr.f32.mxu0 %v4668
          %4867 = vmatmul.mubr.f32.gmra.mrb[0].mxu0 %v4667
          %v4868 = vpop.f32.mrb[0].mxu0
          %v4869 = vadd.f32 0.0, %v4868
          %v4870 = vpop.f32.mrb[0].mxu0
          %4871 = vmatprep.mubr.f32.mxu0 %v4670
          %4872 = vmatmul.mubr.f32.gmra.mrb[0].mxu0 %v4669
          %v4873 = vpop.f32.mrb[0].mxu0
          %v4874 = vadd.f32 0.0, %v4873
          %v4875 = vpop.f32.mrb[0].mxu0
          %4876 = vmatprep.mubr.f32.mxu0 %v4672
          %4877 = vmatmul.mubr.f32.gmra.mrb[0].mxu0 %v4671
          %v4878 = vpop.f32.mrb[0].mxu0
          %v4879 = vadd.f32 0.0, %v4878
          %v4880 = vpop.f32.mrb[0].mxu0
          %4881 = vdwg.mxu0
          %vm4882 = vcmask 31744
          %v4883 = vsel %vm4882, %v4804, -inf
          %4884 = vmax.xlane.f32.xlu0 %v4883
          %v4885 = vpop.xlane.xlu0 %4884
          %v4886 = vsel %vm4882, %v4809, -inf
          %4887 = vmax.xlane.f32.xlu0 %v4886
          %v4888 = vpop.xlane.xlu0 %4887
          %v4889 = vsel %vm4882, %v4814, -inf
          %4890 = vmax.xlane.f32.xlu0 %v4889
          %v4891 = vpop.xlane.xlu0 %4890
          %v4892 = vsel %vm4882, %v4819, -inf
          %4893 = vmax.xlane.f32.xlu0 %v4892
          %v4894 = vpop.xlane.xlu0 %4893
          %v4895 = vsel %vm4882, %v4824, -inf
          %4896 = vmax.xlane.f32.xlu0 %v4895
          %v4897 = vpop.xlane.xlu0 %4896
          %v4898 = vsel %vm4882, %v4829, -inf
          %4899 = vmax.xlane.f32.xlu0 %v4898
          %v4900 = vpop.xlane.xlu0 %4899
          %v4901 = vsel %vm4882, %v4834, -inf
          %4902 = vmax.xlane.f32.xlu0 %v4901
          %v4903 = vpop.xlane.xlu0 %4902
          %v4904 = vsel %vm4882, %v4839, -inf
          %4905 = vmax.xlane.f32.xlu0 %v4904
          %v4906 = vpop.xlane.xlu0 %4905
          %v4907 = vsel %vm4882, %v4844, -inf
          %4908 = vmax.xlane.f32.xlu0 %v4907
          %v4909 = vpop.xlane.xlu0 %4908
          %v4910 = vsel %vm4882, %v4849, -inf
          %4911 = vmax.xlane.f32.xlu0 %v4910
          %v4912 = vpop.xlane.xlu0 %4911
          %v4913 = vsel %vm4882, %v4854, -inf
          %4914 = vmax.xlane.f32.xlu0 %v4913
          %v4915 = vpop.xlane.xlu0 %4914
          %v4916 = vsel %vm4882, %v4859, -inf
          %4917 = vmax.xlane.f32.xlu0 %v4916
          %v4918 = vpop.xlane.xlu0 %4917
          %v4919 = vsel %vm4882, %v4864, -inf
          %4920 = vmax.xlane.f32.xlu0 %v4919
          %v4921 = vpop.xlane.xlu0 %4920
          %v4922 = vsel %vm4882, %v4869, -inf
          %4923 = vmax.xlane.f32.xlu0 %v4922
          %v4924 = vpop.xlane.xlu0 %4923
          %v4925 = vsel %vm4882, %v4874, -inf
          %4926 = vmax.xlane.f32.xlu0 %v4925
          %v4927 = vpop.xlane.xlu0 %4926
          %v4928 = vsel %vm4882, %v4879, -inf
          %4929 = vmax.xlane.f32.xlu0 %v4928
          %v4930 = vpop.xlane.xlu0 %4929
          %v4931 = vsub.f32 %v4804, %v4885
          %v4932 = vsub.f32 %v4809, %v4888
          %v4933 = vsub.f32 %v4814, %v4891
          %v4934 = vsub.f32 %v4819, %v4894
          %v4935 = vsub.f32 %v4824, %v4897
          %v4936 = vsub.f32 %v4829, %v4900
          %v4937 = vsub.f32 %v4834, %v4903
          %v4938 = vsub.f32 %v4839, %v4906
          %v4939 = vsub.f32 %v4844, %v4909
          %v4940 = vsub.f32 %v4849, %v4912
          %v4941 = vsub.f32 %v4854, %v4915
          %v4942 = vsub.f32 %v4859, %v4918
          %v4943 = vsub.f32 %v4864, %v4921
          %v4944 = vsub.f32 %v4869, %v4924
          %v4945 = vsub.f32 %v4874, %v4927
          %v4946 = vsub.f32 %v4879, %v4930
          %v4947 = vmul.f32 %v4931, 1.442695
          %v4948 = vpow.pop %v4947
          %v4949 = vmul.f32 %v4932, 1.442695
          %v4950 = vpow.pop %v4949
          %v4951 = vmul.f32 %v4933, 1.442695
          %v4952 = vpow.pop %v4951
          %v4953 = vmul.f32 %v4934, 1.442695
          %v4954 = vpow.pop %v4953
          %v4955 = vmul.f32 %v4935, 1.442695
          %v4956 = vpow.pop %v4955
          %v4957 = vmul.f32 %v4936, 1.442695
          %v4958 = vpow.pop %v4957
          %v4959 = vmul.f32 %v4937, 1.442695
          %v4960 = vpow.pop %v4959
          %v4961 = vmul.f32 %v4938, 1.442695
          %v4962 = vpow.pop %v4961
          %v4963 = vmul.f32 %v4939, 1.442695
          %v4964 = vpow.pop %v4963
          %v4965 = vmul.f32 %v4940, 1.442695
          %v4966 = vpow.pop %v4965
          %v4967 = vmul.f32 %v4941, 1.442695
          %v4968 = vpow.pop %v4967
          %v4969 = vmul.f32 %v4942, 1.442695
          %v4970 = vpow.pop %v4969
          %v4971 = vmul.f32 %v4943, 1.442695
          %v4972 = vpow.pop %v4971
          %v4973 = vmul.f32 %v4944, 1.442695
          %v4974 = vpow.pop %v4973
          %v4975 = vmul.f32 %v4945, 1.442695
          %v4976 = vpow.pop %v4975
          %v4977 = vmul.f32 %v4946, 1.442695
          %v4978 = vpow.pop %v4977
          %v4979 = vsel %vm4882, %v4948, 0.0
          %4980 = vadd.xlane.f32.xlu0 %v4979
          %v4981 = vpop.xlane.xlu0 %4980
          %v4982 = vsel %vm4882, %v4950, 0.0
          %4983 = vadd.xlane.f32.xlu0 %v4982
          %v4984 = vpop.xlane.xlu0 %4983
          %v4985 = vsel %vm4882, %v4952, 0.0
          %4986 = vadd.xlane.f32.xlu0 %v4985
          %v4987 = vpop.xlane.xlu0 %4986
          %v4988 = vsel %vm4882, %v4954, 0.0
          %4989 = vadd.xlane.f32.xlu0 %v4988
          %v4990 = vpop.xlane.xlu0 %4989
          %v4991 = vsel %vm4882, %v4956, 0.0
          %4992 = vadd.xlane.f32.xlu0 %v4991
          %v4993 = vpop.xlane.xlu0 %4992
          %v4994 = vsel %vm4882, %v4958, 0.0
          %4995 = vadd.xlane.f32.xlu0 %v4994
          %v4996 = vpop.xlane.xlu0 %4995
          %v4997 = vsel %vm4882, %v4960, 0.0
          %4998 = vadd.xlane.f32.xlu0 %v4997
          %v4999 = vpop.xlane.xlu0 %4998
          %v5000 = vsel %vm4882, %v4962, 0.0
          %5001 = vadd.xlane.f32.xlu0 %v5000
          %v5002 = vpop.xlane.xlu0 %5001
          %v5003 = vsel %vm4882, %v4964, 0.0
          %5004 = vadd.xlane.f32.xlu0 %v5003
          %v5005 = vpop.xlane.xlu0 %5004
          %v5006 = vsel %vm4882, %v4966, 0.0
          %5007 = vadd.xlane.f32.xlu0 %v5006
          %v5008 = vpop.xlane.xlu0 %5007
          %v5009 = vsel %vm4882, %v4968, 0.0
          %5010 = vadd.xlane.f32.xlu0 %v5009
          %v5011 = vpop.xlane.xlu0 %5010
          %v5012 = vsel %vm4882, %v4970, 0.0
          %5013 = vadd.xlane.f32.xlu0 %v5012
          %v5014 = vpop.xlane.xlu0 %5013
          %v5015 = vsel %vm4882, %v4972, 0.0
          %5016 = vadd.xlane.f32.xlu0 %v5015
          %v5017 = vpop.xlane.xlu0 %5016
          %v5018 = vsel %vm4882, %v4974, 0.0
          %5019 = vadd.xlane.f32.xlu0 %v5018
          %v5020 = vpop.xlane.xlu0 %5019
          %v5021 = vsel %vm4882, %v4976, 0.0
          %5022 = vadd.xlane.f32.xlu0 %v5021
          %v5023 = vpop.xlane.xlu0 %5022
          %v5024 = vsel %vm4882, %v4978, 0.0
          %5025 = vadd.xlane.f32.xlu0 %v5024
          %v5026 = vpop.xlane.xlu0 %5025
          %v5027 = vrcp.pop %v4981
          %v5028 = vrcp.pop %v4984
          %v5029 = vrcp.pop %v4987
          %v5030 = vrcp.pop %v4990
          %v5031 = vrcp.pop %v4993
          %v5032 = vrcp.pop %v4996
          %v5033 = vrcp.pop %v4999
          %v5034 = vrcp.pop %v5002
          %v5035 = vrcp.pop %v5005
          %v5036 = vrcp.pop %v5008
          %v5037 = vrcp.pop %v5011
          %v5038 = vrcp.pop %v5014
          %v5039 = vrcp.pop %v5017
          %v5040 = vrcp.pop %v5020
          %v5041 = vrcp.pop %v5023
          %v5042 = vrcp.pop %v5026
          %v5043 = vmul.f32 %v4981, %v5027
          %v5044 = vmul.f32 %v4984, %v5028
          %v5045 = vmul.f32 %v4987, %v5029
          %v5046 = vmul.f32 %v4990, %v5030
          %v5047 = vmul.f32 %v4993, %v5031
          %v5048 = vmul.f32 %v4996, %v5032
          %v5049 = vmul.f32 %v4999, %v5033
          %v5050 = vmul.f32 %v5002, %v5034
          %v5051 = vmul.f32 %v5005, %v5035
          %v5052 = vmul.f32 %v5008, %v5036
          %v5053 = vmul.f32 %v5011, %v5037
          %v5054 = vmul.f32 %v5014, %v5038
          %v5055 = vmul.f32 %v5017, %v5039
          %v5056 = vmul.f32 %v5020, %v5040
          %v5057 = vmul.f32 %v5023, %v5041
          %v5058 = vmul.f32 %v5026, %v5042
          %v5059 = vsub.f32 2.0, %v5043
          %v5060 = vsub.f32 2.0, %v5044
          %v5061 = vsub.f32 2.0, %v5045
          %v5062 = vsub.f32 2.0, %v5046
          %v5063 = vsub.f32 2.0, %v5047
          %v5064 = vsub.f32 2.0, %v5048
          %v5065 = vsub.f32 2.0, %v5049
          %v5066 = vsub.f32 2.0, %v5050
          %v5067 = vsub.f32 2.0, %v5051
          %v5068 = vsub.f32 2.0, %v5052
          %v5069 = vsub.f32 2.0, %v5053
          %v5070 = vsub.f32 2.0, %v5054
          %v5071 = vsub.f32 2.0, %v5055
          %v5072 = vsub.f32 2.0, %v5056
          %v5073 = vsub.f32 2.0, %v5057
          %v5074 = vsub.f32 2.0, %v5058
          %v5075 = vmul.f32 %v5027, %v5059
          %v5076 = vmul.f32 %v5028, %v5060
          %v5077 = vmul.f32 %v5029, %v5061
          %v5078 = vmul.f32 %v5030, %v5062
          %v5079 = vmul.f32 %v5031, %v5063
          %v5080 = vmul.f32 %v5032, %v5064
          %v5081 = vmul.f32 %v5033, %v5065
          %v5082 = vmul.f32 %v5034, %v5066
          %v5083 = vmul.f32 %v5035, %v5067
          %v5084 = vmul.f32 %v5036, %v5068
          %v5085 = vmul.f32 %v5037, %v5069
          %v5086 = vmul.f32 %v5038, %v5070
          %v5087 = vmul.f32 %v5039, %v5071
          %v5088 = vmul.f32 %v5040, %v5072
          %v5089 = vmul.f32 %v5041, %v5073
          %v5090 = vmul.f32 %v5042, %v5074
          %v5091 = vmul.f32 %v4948, %v5075
          %v5092 = vmul.f32 %v4950, %v5076
          %v5093 = vmul.f32 %v4952, %v5077
          %v5094 = vmul.f32 %v4954, %v5078
          %v5095 = vmul.f32 %v4956, %v5079
          %v5096 = vmul.f32 %v4958, %v5080
          %v5097 = vmul.f32 %v4960, %v5081
          %v5098 = vmul.f32 %v4962, %v5082
          %v5099 = vmul.f32 %v4964, %v5083
          %v5100 = vmul.f32 %v4966, %v5084
          %v5101 = vmul.f32 %v4968, %v5085
          %v5102 = vmul.f32 %v4970, %v5086
          %v5103 = vmul.f32 %v4972, %v5087
          %v5104 = vmul.f32 %v4974, %v5088
          %v5105 = vmul.f32 %v4976, %v5089
          %v5106 = vmul.f32 %v4978, %v5090
          %v5107 = vsel %vm4882, %v5091, -inf
          %5108 = vmax.xlane.f32.xlu0 %v5107
          %v5109 = vpop.xlane.xlu0 %5108
          %v5110 = vsel %vm4882, %v5092, -inf
          %5111 = vmax.xlane.f32.xlu0 %v5110
          %v5112 = vpop.xlane.xlu0 %5111
          %v5113 = vsel %vm4882, %v5093, -inf
          %5114 = vmax.xlane.f32.xlu0 %v5113
          %v5115 = vpop.xlane.xlu0 %5114
          %v5116 = vsel %vm4882, %v5094, -inf
          %5117 = vmax.xlane.f32.xlu0 %v5116
          %v5118 = vpop.xlane.xlu0 %5117
          %v5119 = vsel %vm4882, %v5095, -inf
          %5120 = vmax.xlane.f32.xlu0 %v5119
          %v5121 = vpop.xlane.xlu0 %5120
          %v5122 = vsel %vm4882, %v5096, -inf
          %5123 = vmax.xlane.f32.xlu0 %v5122
          %v5124 = vpop.xlane.xlu0 %5123
          %v5125 = vsel %vm4882, %v5097, -inf
          %5126 = vmax.xlane.f32.xlu0 %v5125
          %v5127 = vpop.xlane.xlu0 %5126
          %v5128 = vsel %vm4882, %v5098, -inf
          %5129 = vmax.xlane.f32.xlu0 %v5128
          %v5130 = vpop.xlane.xlu0 %5129
          %v5131 = vsel %vm4882, %v5099, -inf
          %5132 = vmax.xlane.f32.xlu0 %v5131
          %v5133 = vpop.xlane.xlu0 %5132
          %v5134 = vsel %vm4882, %v5100, -inf
          %5135 = vmax.xlane.f32.xlu0 %v5134
          %v5136 = vpop.xlane.xlu0 %5135
          %v5137 = vsel %vm4882, %v5101, -inf
          %5138 = vmax.xlane.f32.xlu0 %v5137
          %v5139 = vpop.xlane.xlu0 %5138
          %v5140 = vsel %vm4882, %v5102, -inf
          %5141 = vmax.xlane.f32.xlu0 %v5140
          %v5142 = vpop.xlane.xlu0 %5141
          %v5143 = vsel %vm4882, %v5103, -inf
          %5144 = vmax.xlane.f32.xlu0 %v5143
          %v5145 = vpop.xlane.xlu0 %5144
          %v5146 = vsel %vm4882, %v5104, -inf
          %5147 = vmax.xlane.f32.xlu0 %v5146
          %v5148 = vpop.xlane.xlu0 %5147
          %v5149 = vsel %vm4882, %v5105, -inf
          %5150 = vmax.xlane.f32.xlu0 %v5149
          %v5151 = vpop.xlane.xlu0 %5150
          %v5152 = vsel %vm4882, %v5106, -inf
          %5153 = vmax.xlane.f32.xlu0 %v5152
          %v5154 = vpop.xlane.xlu0 %5153
          %vm5155 = vcmp.ge.f32.partialorder %v5091, %v5109
          %vm5156 = vcmp.ge.f32.partialorder %v5092, %v5112
          %vm5157 = vcmp.ge.f32.partialorder %v5093, %v5115
          %vm5158 = vcmp.ge.f32.partialorder %v5094, %v5118
          %vm5159 = vcmp.ge.f32.partialorder %v5095, %v5121
          %vm5160 = vcmp.ge.f32.partialorder %v5096, %v5124
          %vm5161 = vcmp.ge.f32.partialorder %v5097, %v5127
          %vm5162 = vcmp.ge.f32.partialorder %v5098, %v5130
          %vm5163 = vcmp.ge.f32.partialorder %v5099, %v5133
          %vm5164 = vcmp.ge.f32.partialorder %v5100, %v5136
          %vm5165 = vcmp.ge.f32.partialorder %v5101, %v5139
          %vm5166 = vcmp.ge.f32.partialorder %v5102, %v5142
          %vm5167 = vcmp.ge.f32.partialorder %v5103, %v5145
          %vm5168 = vcmp.ge.f32.partialorder %v5104, %v5148
          %vm5169 = vcmp.ge.f32.partialorder %v5105, %v5151
          %vm5170 = vcmp.ge.f32.partialorder %v5106, %v5154
          %v5171 = vsel %vm5155, -inf, %v5091
          %v5172 = vsel %vm5156, -inf, %v5092
          %v5173 = vsel %vm5157, -inf, %v5093
          %v5174 = vsel %vm5158, -inf, %v5094
          %v5175 = vsel %vm5159, -inf, %v5095
          %v5176 = vsel %vm5160, -inf, %v5096
          %v5177 = vsel %vm5161, -inf, %v5097
          %v5178 = vsel %vm5162, -inf, %v5098
          %v5179 = vsel %vm5163, -inf, %v5099
          %v5180 = vsel %vm5164, -inf, %v5100
          %v5181 = vsel %vm5165, -inf, %v5101
          %v5182 = vsel %vm5166, -inf, %v5102
          %v5183 = vsel %vm5167, -inf, %v5103
          %v5184 = vsel %vm5168, -inf, %v5104
          %v5185 = vsel %vm5169, -inf, %v5105
          %v5186 = vsel %vm5170, -inf, %v5106
          %v5187 = vsel %vm4882, %v5171, -inf
          %5188 = vmax.xlane.f32.xlu0 %v5187
          %v5189 = vpop.xlane.xlu0 %5188
          %v5190 = vsel %vm4882, %v5172, -inf
          %5191 = vmax.xlane.f32.xlu0 %v5190
          %v5192 = vpop.xlane.xlu0 %5191
          %v5193 = vsel %vm4882, %v5173, -inf
          %5194 = vmax.xlane.f32.xlu0 %v5193
          %v5195 = vpop.xlane.xlu0 %5194
          %v5196 = vsel %vm4882, %v5174, -inf
          %5197 = vmax.xlane.f32.xlu0 %v5196
          %v5198 = vpop.xlane.xlu0 %5197
          %v5199 = vsel %vm4882, %v5175, -inf
          %5200 = vmax.xlane.f32.xlu0 %v5199
          %v5201 = vpop.xlane.xlu0 %5200
          %v5202 = vsel %vm4882, %v5176, -inf
          %5203 = vmax.xlane.f32.xlu0 %v5202
          %v5204 = vpop.xlane.xlu0 %5203
          %v5205 = vsel %vm4882, %v5177, -inf
          %5206 = vmax.xlane.f32.xlu0 %v5205
          %v5207 = vpop.xlane.xlu0 %5206
          %v5208 = vsel %vm4882, %v5178, -inf
          %5209 = vmax.xlane.f32.xlu0 %v5208
          %v5210 = vpop.xlane.xlu0 %5209
          %v5211 = vsel %vm4882, %v5179, -inf
          %5212 = vmax.xlane.f32.xlu0 %v5211
          %v5213 = vpop.xlane.xlu0 %5212
          %v5214 = vsel %vm4882, %v5180, -inf
          %5215 = vmax.xlane.f32.xlu0 %v5214
          %v5216 = vpop.xlane.xlu0 %5215
          %v5217 = vsel %vm4882, %v5181, -inf
          %5218 = vmax.xlane.f32.xlu0 %v5217
          %v5219 = vpop.xlane.xlu0 %5218
          %v5220 = vsel %vm4882, %v5182, -inf
          %5221 = vmax.xlane.f32.xlu0 %v5220
          %v5222 = vpop.xlane.xlu0 %5221
          %v5223 = vsel %vm4882, %v5183, -inf
          %5224 = vmax.xlane.f32.xlu0 %v5223
          %v5225 = vpop.xlane.xlu0 %5224
          %v5226 = vsel %vm4882, %v5184, -inf
          %5227 = vmax.xlane.f32.xlu0 %v5226
          %v5228 = vpop.xlane.xlu0 %5227
          %v5229 = vsel %vm4882, %v5185, -inf
          %5230 = vmax.xlane.f32.xlu0 %v5229
          %v5231 = vpop.xlane.xlu0 %5230
          %v5232 = vsel %vm4882, %v5186, -inf
          %5233 = vmax.xlane.f32.xlu0 %v5232
          %v5234 = vpop.xlane.xlu0 %5233
          %vm5235 = vcmp.ge.f32.partialorder %v5091, %v5189
          %vm5236 = vcmp.ge.f32.partialorder %v5092, %v5192
          %vm5237 = vcmp.ge.f32.partialorder %v5093, %v5195
          %vm5238 = vcmp.ge.f32.partialorder %v5094, %v5198
          %vm5239 = vcmp.ge.f32.partialorder %v5095, %v5201
          %vm5240 = vcmp.ge.f32.partialorder %v5096, %v5204
          %vm5241 = vcmp.ge.f32.partialorder %v5097, %v5207
          %vm5242 = vcmp.ge.f32.partialorder %v5098, %v5210
          %vm5243 = vcmp.ge.f32.partialorder %v5099, %v5213
          %vm5244 = vcmp.ge.f32.partialorder %v5100, %v5216
          %vm5245 = vcmp.ge.f32.partialorder %v5101, %v5219
          %vm5246 = vcmp.ge.f32.partialorder %v5102, %v5222
          %vm5247 = vcmp.ge.f32.partialorder %v5103, %v5225
          %vm5248 = vcmp.ge.f32.partialorder %v5104, %v5228
          %vm5249 = vcmp.ge.f32.partialorder %v5105, %v5231
          %vm5250 = vcmp.ge.f32.partialorder %v5106, %v5234
          %v5251 = vsel %vm5235, %v5091, 0.0
          %v5252 = vsel %vm5236, %v5092, 0.0
          %v5253 = vsel %vm5237, %v5093, 0.0
          %v5254 = vsel %vm5238, %v5094, 0.0
          %v5255 = vsel %vm5239, %v5095, 0.0
          %v5256 = vsel %vm5240, %v5096, 0.0
          %v5257 = vsel %vm5241, %v5097, 0.0
          %v5258 = vsel %vm5242, %v5098, 0.0
          %v5259 = vsel %vm5243, %v5099, 0.0
          %v5260 = vsel %vm5244, %v5100, 0.0
          %v5261 = vsel %vm5245, %v5101, 0.0
          %v5262 = vsel %vm5246, %v5102, 0.0
          %v5263 = vsel %vm5247, %v5103, 0.0
          %v5264 = vsel %vm5248, %v5104, 0.0
          %v5265 = vsel %vm5249, %v5105, 0.0
          %v5266 = vsel %vm5250, %v5106, 0.0
          %5267 = vst.msk [vmem:[#allocation3] sm:$0xff] %vm4882, %v5251
          %5268 = vst.msk [vmem:[#allocation3 + $0x8] sm:$0xff] %vm4882, %v5252
          %5269 = vst.msk [vmem:[#allocation3 + $0x10] sm:$0xff] %vm4882, %v5253
          %5270 = vst.msk [vmem:[#allocation3 + $0x18] sm:$0xff] %vm4882, %v5254
          %5271 = vst.msk [vmem:[#allocation3 + $0x20] sm:$0xff] %vm4882, %v5255
          %5272 = vst.msk [vmem:[#allocation3 + $0x28] sm:$0xff] %vm4882, %v5256
          %5273 = vst.msk [vmem:[#allocation3 + $0x30] sm:$0xff] %vm4882, %v5257
          %5274 = vst.msk [vmem:[#allocation3 + $0x38] sm:$0xff] %vm4882, %v5258
          %5275 = vst.msk [vmem:[#allocation3 + $0x40] sm:$0xff] %vm4882, %v5259
          %5276 = vst.msk [vmem:[#allocation3 + $0x48] sm:$0xff] %vm4882, %v5260
          %5277 = vst.msk [vmem:[#allocation3 + $0x50] sm:$0xff] %vm4882, %v5261
          %5278 = vst.msk [vmem:[#allocation3 + $0x58] sm:$0xff] %vm4882, %v5262
          %5279 = vst.msk [vmem:[#allocation3 + $0x60] sm:$0xff] %vm4882, %v5263
          %5280 = vst.msk [vmem:[#allocation3 + $0x68] sm:$0xff] %vm4882, %v5264
          %5281 = vst.msk [vmem:[#allocation3 + $0x70] sm:$0xff] %vm4882, %v5265
          %5282 = vst.msk [vmem:[#allocation3 + $0x78] sm:$0xff] %vm4882, %v5266
          %5283 = vst [vmem:[#allocation4] sm:$0xff] 0.0
          %5284 = vst [vmem:[#allocation4 + $0x8] sm:$0xff] 0.0
          %5285 = vst [vmem:[#allocation4 + $0x10] sm:$0xff] 0.0
          %5286 = vst [vmem:[#allocation4 + $0x18] sm:$0xff] 0.0
          %5287 = vst [vmem:[#allocation4 + $0x20] sm:$0xff] 0.0
          %5288 = vst [vmem:[#allocation4 + $0x28] sm:$0xff] 0.0
          %5289 = vst [vmem:[#allocation4 + $0x30] sm:$0xff] 0.0
          %5290 = vst [vmem:[#allocation4 + $0x38] sm:$0xff] 0.0
          %5291 = vst [vmem:[#allocation4 + $0x40] sm:$0xff] 0.0
          %5292 = vst [vmem:[#allocation4 + $0x48] sm:$0xff] 0.0
          %5293 = vst [vmem:[#allocation4 + $0x50] sm:$0xff] 0.0
          %5294 = vst [vmem:[#allocation4 + $0x58] sm:$0xff] 0.0
          %5295 = vst [vmem:[#allocation4 + $0x60] sm:$0xff] 0.0
          %5296 = vst [vmem:[#allocation4 + $0x68] sm:$0xff] 0.0
          %5297 = vst [vmem:[#allocation4 + $0x70] sm:$0xff] 0.0
          %5298 = vst [vmem:[#allocation4 + $0x78] sm:$0xff] 0.0
          %5299 = vst [vmem:[#allocation4 + $0x80] sm:$0xff] 0.0
          %5300 = vst [vmem:[#allocation4 + $0x88] sm:$0xff] 0.0
          %5301 = vst [vmem:[#allocation4 + $0x90] sm:$0xff] 0.0
          %5302 = vst [vmem:[#allocation4 + $0x98] sm:$0xff] 0.0
          %5303 = vst [vmem:[#allocation4 + $0xa0] sm:$0xff] 0.0
          %5304 = vst [vmem:[#allocation4 + $0xa8] sm:$0xff] 0.0
          %5305 = vst [vmem:[#allocation4 + $0xb0] sm:$0xff] 0.0
          %5306 = vst [vmem:[#allocation4 + $0xb8] sm:$0xff] 0.0
          %5307 = vst [vmem:[#allocation4 + $0xc0] sm:$0xff] 0.0
          %5308 = vst [vmem:[#allocation4 + $0xc8] sm:$0xff] 0.0
          %5309 = vst [vmem:[#allocation4 + $0xd0] sm:$0xff] 0.0
          %5310 = vst [vmem:[#allocation4 + $0xd8] sm:$0xff] 0.0
          %5311 = vst [vmem:[#allocation4 + $0xe0] sm:$0xff] 0.0
          %5312 = vst [vmem:[#allocation4 + $0xe8] sm:$0xff] 0.0
          %5313 = vst [vmem:[#allocation4 + $0xf0] sm:$0xff] 0.0
          %5314 = vst [vmem:[#allocation4 + $0xf8] sm:$0xff] 0.0
        $region168: #{tpu_custom_call.1} parent=111 // pred_fallthru
          _
        %v5315 = vld [vmem:[#allocation2] sm:$0xff]
        %v5316 = vld [vmem:[#allocation2 + $0x8] sm:$0xff]
        %v5317 = vld [vmem:[#allocation2 + $0x10] sm:$0xff]
        %v5318 = vld [vmem:[#allocation2 + $0x18] sm:$0xff]
        %v5319 = vld [vmem:[#allocation2 + $0x20] sm:$0xff]
        %v5320 = vld [vmem:[#allocation2 + $0x28] sm:$0xff]
        %v5321 = vld [vmem:[#allocation2 + $0x30] sm:$0xff]
        %v5322 = vld [vmem:[#allocation2 + $0x38] sm:$0xff]
        %v5323 = vld [vmem:[#allocation2 + $0x40] sm:$0xff]
        %v5324 = vld [vmem:[#allocation2 + $0x48] sm:$0xff]
        %v5325 = vld [vmem:[#allocation2 + $0x50] sm:$0xff]
        %v5326 = vld [vmem:[#allocation2 + $0x58] sm:$0xff]
        %v5327 = vld [vmem:[#allocation2 + $0x60] sm:$0xff]
        %v5328 = vld [vmem:[#allocation2 + $0x68] sm:$0xff]
        %v5329 = vld [vmem:[#allocation2 + $0x70] sm:$0xff]
        %v5330 = vld [vmem:[#allocation2 + $0x78] sm:$0xff]
        %v5331 = vld [vmem:[#allocation2 + $0x80] sm:$0xff]
        %v5332 = vld [vmem:[#allocation2 + $0x88] sm:$0xff]
        %v5333 = vld [vmem:[#allocation2 + $0x90] sm:$0xff]
        %v5334 = vld [vmem:[#allocation2 + $0x98] sm:$0xff]
        %v5335 = vld [vmem:[#allocation2 + $0xa0] sm:$0xff]
        %v5336 = vld [vmem:[#allocation2 + $0xa8] sm:$0xff]
        %v5337 = vld [vmem:[#allocation2 + $0xb0] sm:$0xff]
        %v5338 = vld [vmem:[#allocation2 + $0xb8] sm:$0xff]
        %v5339 = vld [vmem:[#allocation2 + $0xc0] sm:$0xff]
        %v5340 = vld [vmem:[#allocation2 + $0xc8] sm:$0xff]
        %v5341 = vld [vmem:[#allocation2 + $0xd0] sm:$0xff]
        %v5342 = vld [vmem:[#allocation2 + $0xd8] sm:$0xff]
        %v5343 = vld [vmem:[#allocation2 + $0xe0] sm:$0xff]
        %v5344 = vld [vmem:[#allocation2 + $0xe8] sm:$0xff]
        %v5345 = vld [vmem:[#allocation2 + $0xf0] sm:$0xff]
        %v5346 = vld [vmem:[#allocation2 + $0xf8] sm:$0xff]
        %v5347 = vld [vmem:[%s921] sm:$0xff]
        %v5348 = vld [vmem:[%s921 + $0x8] sm:$0xff]
        %v5349 = vld [vmem:[%s921 + $0x10] sm:$0xff]
        %v5350 = vld [vmem:[%s921 + $0x18] sm:$0xff]
        %v5351 = vld [vmem:[%s921 + $0x20] sm:$0xff]
        %v5352 = vld [vmem:[%s921 + $0x28] sm:$0xff]
        %v5353 = vld [vmem:[%s921 + $0x30] sm:$0xff]
        %v5354 = vld [vmem:[%s921 + $0x38] sm:$0xff]
        %v5355 = vld [vmem:[%s921 + $0x40] sm:$0xff]
        %v5356 = vld [vmem:[%s921 + $0x48] sm:$0xff]
        %v5357 = vld [vmem:[%s921 + $0x50] sm:$0xff]
        %v5358 = vld [vmem:[%s921 + $0x58] sm:$0xff]
        %v5359 = vld [vmem:[%s921 + $0x60] sm:$0xff]
        %v5360 = vld [vmem:[%s921 + $0x68] sm:$0xff]
        %v5361 = vld [vmem:[%s921 + $0x70] sm:$0xff]
        %v5362 = vld [vmem:[%s921 + $0x78] sm:$0xff]
        %v5363 = vld [vmem:[%s921 + $0x80] sm:$0xff]
        %v5364 = vld [vmem:[%s921 + $0x88] sm:$0xff]
        %v5365 = vld [vmem:[%s921 + $0x90] sm:$0xff]
        %v5366 = vld [vmem:[%s921 + $0x98] sm:$0xff]
        %v5367 = vld [vmem:[%s921 + $0xa0] sm:$0xff]
        %v5368 = vld [vmem:[%s921 + $0xa8] sm:$0xff]
        %v5369 = vld [vmem:[%s921 + $0xb0] sm:$0xff]
        %v5370 = vld [vmem:[%s921 + $0xb8] sm:$0xff]
        %v5371 = vld [vmem:[%s921 + $0xc0] sm:$0xff]
        %v5372 = vld [vmem:[%s921 + $0xc8] sm:$0xff]
        %v5373 = vld [vmem:[%s921 + $0xd0] sm:$0xff]
        %v5374 = vld [vmem:[%s921 + $0xd8] sm:$0xff]
        %v5375 = vld [vmem:[%s921 + $0xe0] sm:$0xff]
        %v5376 = vld [vmem:[%s921 + $0xe8] sm:$0xff]
        %v5377 = vld [vmem:[%s921 + $0xf0] sm:$0xff]
        %v5378 = vld [vmem:[%s921 + $0xf8] sm:$0xff]
        %v5379 = vld [vmem:[%s921 + $0x100] sm:$0xff]
        %v5380 = vld [vmem:[%s921 + $0x108] sm:$0xff]
        %v5381 = vld [vmem:[%s921 + $0x110] sm:$0xff]
        %v5382 = vld [vmem:[%s921 + $0x118] sm:$0xff]
        %v5383 = vld [vmem:[%s921 + $0x120] sm:$0xff]
        %v5384 = vld [vmem:[%s921 + $0x128] sm:$0xff]
        %v5385 = vld [vmem:[%s921 + $0x130] sm:$0xff]
        %v5386 = vld [vmem:[%s921 + $0x138] sm:$0xff]
        %v5387 = vld [vmem:[%s921 + $0x140] sm:$0xff]
        %v5388 = vld [vmem:[%s921 + $0x148] sm:$0xff]
        %v5389 = vld [vmem:[%s921 + $0x150] sm:$0xff]
        %v5390 = vld [vmem:[%s921 + $0x158] sm:$0xff]
        %v5391 = vld [vmem:[%s921 + $0x160] sm:$0xff]
        %v5392 = vld [vmem:[%s921 + $0x168] sm:$0xff]
        %v5393 = vld [vmem:[%s921 + $0x170] sm:$0xff]
        %v5394 = vld [vmem:[%s921 + $0x178] sm:$0xff]
        %v5395 = vld [vmem:[%s921 + $0x180] sm:$0xff]
        %v5396 = vld [vmem:[%s921 + $0x188] sm:$0xff]
        %v5397 = vld [vmem:[%s921 + $0x190] sm:$0xff]
        %v5398 = vld [vmem:[%s921 + $0x198] sm:$0xff]
        %v5399 = vld [vmem:[%s921 + $0x1a0] sm:$0xff]
        %v5400 = vld [vmem:[%s921 + $0x1a8] sm:$0xff]
        %v5401 = vld [vmem:[%s921 + $0x1b0] sm:$0xff]
        %v5402 = vld [vmem:[%s921 + $0x1b8] sm:$0xff]
        %v5403 = vld [vmem:[%s921 + $0x1c0] sm:$0xff]
        %v5404 = vld [vmem:[%s921 + $0x1c8] sm:$0xff]
        %v5405 = vld [vmem:[%s921 + $0x1d0] sm:$0xff]
        %v5406 = vld [vmem:[%s921 + $0x1d8] sm:$0xff]
        %v5407 = vld [vmem:[%s921 + $0x1e0] sm:$0xff]
        %v5408 = vld [vmem:[%s921 + $0x1e8] sm:$0xff]
        %v5409 = vld [vmem:[%s921 + $0x1f0] sm:$0xff]
        %v5410 = vld [vmem:[%s921 + $0x1f8] sm:$0xff]
        %5411 = vmatprep.subr.mxu0 %v5348
        %5412 = vmatpush1.msra.mxu0 %v5347
        %5413 = vmatprep.subr.mxu0 %v5350
        %5414 = vmatpush1.msra.mxu0 %v5349
        %5415 = vmatprep.subr.mxu0 %v5352
        %5416 = vmatpush1.msra.mxu0 %v5351
        %5417 = vmatprep.subr.mxu0 %v5354
        %5418 = vmatpush1.msra.mxu0 %v5353
        %5419 = vmatprep.subr.mxu0 %v5356
        %5420 = vmatpush1.msra.mxu0 %v5355
        %5421 = vmatprep.subr.mxu0 %v5358
        %5422 = vmatpush1.msra.mxu0 %v5357
        %5423 = vmatprep.subr.mxu0 %v5360
        %5424 = vmatpush1.msra.mxu0 %v5359
        %5425 = vmatprep.subr.mxu0 %v5362
        %5426 = vmatpush1.msra.mxu0 %v5361
        %5427 = vmatprep.subr.mxu0 %v5364
        %5428 = vmatpush1.msra.mxu0 %v5363
        %5429 = vmatprep.subr.mxu0 %v5366
        %5430 = vmatpush1.msra.mxu0 %v5365
        %5431 = vmatprep.subr.mxu0 %v5368
        %5432 = vmatpush1.msra.mxu0 %v5367
        %5433 = vmatprep.subr.mxu0 %v5370
        %5434 = vmatpush1.msra.mxu0 %v5369
        %5435 = vmatprep.subr.mxu0 %v5372
        %5436 = vmatpush1.msra.mxu0 %v5371
        %5437 = vmatprep.subr.mxu0 %v5374
        %5438 = vmatpush1.msra.mxu0 %v5373
        %5439 = vmatprep.subr.mxu0 %v5376
        %5440 = vmatpush1.msra.mxu0 %v5375
        %5441 = vmatprep.subr.mxu0 %v5378
        %5442 = vmatpush1.msra.mxu0 %v5377
        %5443 = vmatprep.subr.mxu0 %v5380
        %5444 = vmatpush1.msra.mxu0 %v5379
        %5445 = vmatprep.subr.mxu0 %v5382
        %5446 = vmatpush1.msra.mxu0 %v5381
        %5447 = vmatprep.subr.mxu0 %v5384
        %5448 = vmatpush1.msra.mxu0 %v5383
        %5449 = vmatprep.subr.mxu0 %v5386
        %5450 = vmatpush1.msra.mxu0 %v5385
        %5451 = vmatprep.subr.mxu0 %v5388
        %5452 = vmatpush1.msra.mxu0 %v5387
        %5453 = vmatprep.subr.mxu0 %v5390
        %5454 = vmatpush1.msra.mxu0 %v5389
        %5455 = vmatprep.subr.mxu0 %v5392
        %5456 = vmatpush1.msra.mxu0 %v5391
        %5457 = vmatprep.subr.mxu0 %v5394
        %5458 = vmatpush1.msra.mxu0 %v5393
        %5459 = vmatprep.subr.mxu0 %v5396
        %5460 = vmatpush1.msra.mxu0 %v5395
        %5461 = vmatprep.subr.mxu0 %v5398
        %5462 = vmatpush1.msra.mxu0 %v5397
        %5463 = vmatprep.subr.mxu0 %v5400
        %5464 = vmatpush1.msra.mxu0 %v5399
        %5465 = vmatprep.subr.mxu0 %v5402
        %5466 = vmatpush1.msra.mxu0 %v5401
        %5467 = vmatprep.subr.mxu0 %v5404
        %5468 = vmatpush1.msra.mxu0 %v5403
        %5469 = vmatprep.subr.mxu0 %v5406
        %5470 = vmatpush1.msra.mxu0 %v5405
        %5471 = vmatprep.subr.mxu0 %v5408
        %5472 = vmatpush1.msra.mxu0 %v5407
        %5473 = vmatprep.subr.mxu0 %v5410
        %5474 = vmatpush1.msra.mxu0 %v5409
        %5475 = vmatprep.mubr.f32.mxu0 %v5316
        %5476 = vmatmul.mubr.f32.gmra.mrb[0].mxu0 %v5315
        %v5477 = vpop.f32.mrb[0].mxu0
        %v5478 = vadd.f32 0.0, %v5477
        %v5479 = vpop.f32.mrb[0].mxu0
        %v5480 = vadd.f32 0.0, %v5479
        %5481 = vmatprep.mubr.f32.mxu0 %v5318
        %5482 = vmatmul.mubr.f32.gmra.mrb[0].mxu0 %v5317
        %v5483 = vpop.f32.mrb[0].mxu0
        %v5484 = vadd.f32 0.0, %v5483
        %v5485 = vpop.f32.mrb[0].mxu0
        %v5486 = vadd.f32 0.0, %v5485
        %5487 = vmatprep.mubr.f32.mxu0 %v5320
        %5488 = vmatmul.mubr.f32.gmra.mrb[0].mxu0 %v5319
        %v5489 = vpop.f32.mrb[0].mxu0
        %v5490 = vadd.f32 0.0, %v5489
        %v5491 = vpop.f32.mrb[0].mxu0
        %v5492 = vadd.f32 0.0, %v5491
        %5493 = vmatprep.mubr.f32.mxu0 %v5322
        %5494 = vmatmul.mubr.f32.gmra.mrb[0].mxu0 %v5321
        %v5495 = vpop.f32.mrb[0].mxu0
        %v5496 = vadd.f32 0.0, %v5495
        %v5497 = vpop.f32.mrb[0].mxu0
        %v5498 = vadd.f32 0.0, %v5497
        %5499 = vmatprep.mubr.f32.mxu0 %v5324
        %5500 = vmatmul.mubr.f32.gmra.mrb[0].mxu0 %v5323
        %v5501 = vpop.f32.mrb[0].mxu0
        %v5502 = vadd.f32 0.0, %v5501
        %v5503 = vpop.f32.mrb[0].mxu0
        %v5504 = vadd.f32 0.0, %v5503
        %5505 = vmatprep.mubr.f32.mxu0 %v5326
        %5506 = vmatmul.mubr.f32.gmra.mrb[0].mxu0 %v5325
        %v5507 = vpop.f32.mrb[0].mxu0
        %v5508 = vadd.f32 0.0, %v5507
        %v5509 = vpop.f32.mrb[0].mxu0
        %v5510 = vadd.f32 0.0, %v5509
        %5511 = vmatprep.mubr.f32.mxu0 %v5328
        %5512 = vmatmul.mubr.f32.gmra.mrb[0].mxu0 %v5327
        %v5513 = vpop.f32.mrb[0].mxu0
        %v5514 = vadd.f32 0.0, %v5513
        %v5515 = vpop.f32.mrb[0].mxu0
        %v5516 = vadd.f32 0.0, %v5515
        %5517 = vmatprep.mubr.f32.mxu0 %v5330
        %5518 = vmatmul.mubr.f32.gmra.mrb[0].mxu0 %v5329
        %v5519 = vpop.f32.mrb[0].mxu0
        %v5520 = vadd.f32 0.0, %v5519
        %v5521 = vpop.f32.mrb[0].mxu0
        %v5522 = vadd.f32 0.0, %v5521
        %5523 = vmatprep.mubr.f32.mxu0 %v5332
        %5524 = vmatmul.mubr.f32.gmra.mrb[0].mxu0 %v5331
        %v5525 = vpop.f32.mrb[0].mxu0
        %v5526 = vadd.f32 0.0, %v5525
        %v5527 = vpop.f32.mrb[0].mxu0
        %v5528 = vadd.f32 0.0, %v5527
        %5529 = vmatprep.mubr.f32.mxu0 %v5334
        %5530 = vmatmul.mubr.f32.gmra.mrb[0].mxu0 %v5333
        %v5531 = vpop.f32.mrb[0].mxu0
        %v5532 = vadd.f32 0.0, %v5531
        %v5533 = vpop.f32.mrb[0].mxu0
        %v5534 = vadd.f32 0.0, %v5533
        %5535 = vmatprep.mubr.f32.mxu0 %v5336
        %5536 = vmatmul.mubr.f32.gmra.mrb[0].mxu0 %v5335
        %v5537 = vpop.f32.mrb[0].mxu0
        %v5538 = vadd.f32 0.0, %v5537
        %v5539 = vpop.f32.mrb[0].mxu0
        %v5540 = vadd.f32 0.0, %v5539
        %5541 = vmatprep.mubr.f32.mxu0 %v5338
        %5542 = vmatmul.mubr.f32.gmra.mrb[0].mxu0 %v5337
        %v5543 = vpop.f32.mrb[0].mxu0
        %v5544 = vadd.f32 0.0, %v5543
        %v5545 = vpop.f32.mrb[0].mxu0
        %v5546 = vadd.f32 0.0, %v5545
        %5547 = vmatprep.mubr.f32.mxu0 %v5340
        %5548 = vmatmul.mubr.f32.gmra.mrb[0].mxu0 %v5339
        %v5549 = vpop.f32.mrb[0].mxu0
        %v5550 = vadd.f32 0.0, %v5549
        %v5551 = vpop.f32.mrb[0].mxu0
        %v5552 = vadd.f32 0.0, %v5551
        %5553 = vmatprep.mubr.f32.mxu0 %v5342
        %5554 = vmatmul.mubr.f32.gmra.mrb[0].mxu0 %v5341
        %v5555 = vpop.f32.mrb[0].mxu0
        %v5556 = vadd.f32 0.0, %v5555
        %v5557 = vpop.f32.mrb[0].mxu0
        %v5558 = vadd.f32 0.0, %v5557
        %5559 = vmatprep.mubr.f32.mxu0 %v5344
        %5560 = vmatmul.mubr.f32.gmra.mrb[0].mxu0 %v5343
        %v5561 = vpop.f32.mrb[0].mxu0
        %v5562 = vadd.f32 0.0, %v5561
        %v5563 = vpop.f32.mrb[0].mxu0
        %v5564 = vadd.f32 0.0, %v5563
        %5565 = vmatprep.mubr.f32.mxu0 %v5346
        %5566 = vmatmul.mubr.f32.gmra.mrb[0].mxu0 %v5345
        %v5567 = vpop.f32.mrb[0].mxu0
        %v5568 = vadd.f32 0.0, %v5567
        %v5569 = vpop.f32.mrb[0].mxu0
        %v5570 = vadd.f32 0.0, %v5569
        %5571 = vdwg.mxu0
        %v5572 = vmul.f32 %v5478, %v5478
        %v5573 = vmul.f32 %v5480, %v5480
        %v5574 = vmul.f32 %v5484, %v5484
        %v5575 = vmul.f32 %v5486, %v5486
        %v5576 = vmul.f32 %v5490, %v5490
        %v5577 = vmul.f32 %v5492, %v5492
        %v5578 = vmul.f32 %v5496, %v5496
        %v5579 = vmul.f32 %v5498, %v5498
        %v5580 = vmul.f32 %v5502, %v5502
        %v5581 = vmul.f32 %v5504, %v5504
        %v5582 = vmul.f32 %v5508, %v5508
        %v5583 = vmul.f32 %v5510, %v5510
        %v5584 = vmul.f32 %v5514, %v5514
        %v5585 = vmul.f32 %v5516, %v5516
        %v5586 = vmul.f32 %v5520, %v5520
        %v5587 = vmul.f32 %v5522, %v5522
        %v5588 = vmul.f32 %v5526, %v5526
        %v5589 = vmul.f32 %v5528, %v5528
        %v5590 = vmul.f32 %v5532, %v5532
        %v5591 = vmul.f32 %v5534, %v5534
        %v5592 = vmul.f32 %v5538, %v5538
        %v5593 = vmul.f32 %v5540, %v5540
        %v5594 = vmul.f32 %v5544, %v5544
        %v5595 = vmul.f32 %v5546, %v5546
        %v5596 = vmul.f32 %v5550, %v5550
        %v5597 = vmul.f32 %v5552, %v5552
        %v5598 = vmul.f32 %v5556, %v5556
        %v5599 = vmul.f32 %v5558, %v5558
        %v5600 = vmul.f32 %v5562, %v5562
        %v5601 = vmul.f32 %v5564, %v5564
        %v5602 = vmul.f32 %v5568, %v5568
        %v5603 = vmul.f32 %v5570, %v5570
        %v5604 = vmul.f32 %v5478, %v5572
        %v5605 = vmul.f32 %v5480, %v5573
        %v5606 = vmul.f32 %v5484, %v5574
        %v5607 = vmul.f32 %v5486, %v5575
        %v5608 = vmul.f32 %v5490, %v5576
        %v5609 = vmul.f32 %v5492, %v5577
        %v5610 = vmul.f32 %v5496, %v5578
        %v5611 = vmul.f32 %v5498, %v5579
        %v5612 = vmul.f32 %v5502, %v5580
        %v5613 = vmul.f32 %v5504, %v5581
        %v5614 = vmul.f32 %v5508, %v5582
        %v5615 = vmul.f32 %v5510, %v5583
        %v5616 = vmul.f32 %v5514, %v5584
        %v5617 = vmul.f32 %v5516, %v5585
        %v5618 = vmul.f32 %v5520, %v5586
        %v5619 = vmul.f32 %v5522, %v5587
        %v5620 = vmul.f32 %v5526, %v5588
        %v5621 = vmul.f32 %v5528, %v5589
        %v5622 = vmul.f32 %v5532, %v5590
        %v5623 = vmul.f32 %v5534, %v5591
        %v5624 = vmul.f32 %v5538, %v5592
        %v5625 = vmul.f32 %v5540, %v5593
        %v5626 = vmul.f32 %v5544, %v5594
        %v5627 = vmul.f32 %v5546, %v5595
        %v5628 = vmul.f32 %v5550, %v5596
        %v5629 = vmul.f32 %v5552, %v5597
        %v5630 = vmul.f32 %v5556, %v5598
        %v5631 = vmul.f32 %v5558, %v5599
        %v5632 = vmul.f32 %v5562, %v5600
        %v5633 = vmul.f32 %v5564, %v5601
        %v5634 = vmul.f32 %v5568, %v5602
        %v5635 = vmul.f32 %v5570, %v5603
        %v5636 = vmul.f32 %v5604, 0.044715
        %v5637 = vmul.f32 %v5605, 0.044715
        %v5638 = vmul.f32 %v5606, 0.044715
        %v5639 = vmul.f32 %v5607, 0.044715
        %v5640 = vmul.f32 %v5608, 0.044715
        %v5641 = vmul.f32 %v5609, 0.044715
        %v5642 = vmul.f32 %v5610, 0.044715
        %v5643 = vmul.f32 %v5611, 0.044715
        %v5644 = vmul.f32 %v5612, 0.044715
        %v5645 = vmul.f32 %v5613, 0.044715
        %v5646 = vmul.f32 %v5614, 0.044715
        %v5647 = vmul.f32 %v5615, 0.044715
        %v5648 = vmul.f32 %v5616, 0.044715
        %v5649 = vmul.f32 %v5617, 0.044715
        %v5650 = vmul.f32 %v5618, 0.044715
        %v5651 = vmul.f32 %v5619, 0.044715
        %v5652 = vmul.f32 %v5620, 0.044715
        %v5653 = vmul.f32 %v5621, 0.044715
        %v5654 = vmul.f32 %v5622, 0.044715
        %v5655 = vmul.f32 %v5623, 0.044715
        %v5656 = vmul.f32 %v5624, 0.044715
        %v5657 = vmul.f32 %v5625, 0.044715
        %v5658 = vmul.f32 %v5626, 0.044715
        %v5659 = vmul.f32 %v5627, 0.044715
        %v5660 = vmul.f32 %v5628, 0.044715
        %v5661 = vmul.f32 %v5629, 0.044715
        %v5662 = vmul.f32 %v5630, 0.044715
        %v5663 = vmul.f32 %v5631, 0.044715
        %v5664 = vmul.f32 %v5632, 0.044715
        %v5665 = vmul.f32 %v5633, 0.044715
        %v5666 = vmul.f32 %v5634, 0.044715
        %v5667 = vmul.f32 %v5635, 0.044715
        %v5668 = vadd.f32 %v5478, %v5636
        %v5669 = vadd.f32 %v5480, %v5637
        %v5670 = vadd.f32 %v5484, %v5638
        %v5671 = vadd.f32 %v5486, %v5639
        %v5672 = vadd.f32 %v5490, %v5640
        %v5673 = vadd.f32 %v5492, %v5641
        %v5674 = vadd.f32 %v5496, %v5642
        %v5675 = vadd.f32 %v5498, %v5643
        %v5676 = vadd.f32 %v5502, %v5644
        %v5677 = vadd.f32 %v5504, %v5645
        %v5678 = vadd.f32 %v5508, %v5646
        %v5679 = vadd.f32 %v5510, %v5647
        %v5680 = vadd.f32 %v5514, %v5648
        %v5681 = vadd.f32 %v5516, %v5649
        %v5682 = vadd.f32 %v5520, %v5650
        %v5683 = vadd.f32 %v5522, %v5651
        %v5684 = vadd.f32 %v5526, %v5652
        %v5685 = vadd.f32 %v5528, %v5653
        %v5686 = vadd.f32 %v5532, %v5654
        %v5687 = vadd.f32 %v5534, %v5655
        %v5688 = vadd.f32 %v5538, %v5656
        %v5689 = vadd.f32 %v5540, %v5657
        %v5690 = vadd.f32 %v5544, %v5658
        %v5691 = vadd.f32 %v5546, %v5659
        %v5692 = vadd.f32 %v5550, %v5660
        %v5693 = vadd.f32 %v5552, %v5661
        %v5694 = vadd.f32 %v5556, %v5662
        %v5695 = vadd.f32 %v5558, %v5663
        %v5696 = vadd.f32 %v5562, %v5664
        %v5697 = vadd.f32 %v5564, %v5665
        %v5698 = vadd.f32 %v5568, %v5666
        %v5699 = vadd.f32 %v5570, %v5667
        %v5700 = vmul.f32 %v5668, 0.7978846
        %v5701 = vmul.f32 %v5669, 0.7978846
        %v5702 = vmul.f32 %v5670, 0.7978846
        %v5703 = vmul.f32 %v5671, 0.7978846
        %v5704 = vmul.f32 %v5672, 0.7978846
        %v5705 = vmul.f32 %v5673, 0.7978846
        %v5706 = vmul.f32 %v5674, 0.7978846
        %v5707 = vmul.f32 %v5675, 0.7978846
        %v5708 = vmul.f32 %v5676, 0.7978846
        %v5709 = vmul.f32 %v5677, 0.7978846
        %v5710 = vmul.f32 %v5678, 0.7978846
        %v5711 = vmul.f32 %v5679, 0.7978846
        %v5712 = vmul.f32 %v5680, 0.7978846
        %v5713 = vmul.f32 %v5681, 0.7978846
        %v5714 = vmul.f32 %v5682, 0.7978846
        %v5715 = vmul.f32 %v5683, 0.7978846
        %v5716 = vmul.f32 %v5684, 0.7978846
        %v5717 = vmul.f32 %v5685, 0.7978846
        %v5718 = vmul.f32 %v5686, 0.7978846
        %v5719 = vmul.f32 %v5687, 0.7978846
        %v5720 = vmul.f32 %v5688, 0.7978846
        %v5721 = vmul.f32 %v5689, 0.7978846
        %v5722 = vmul.f32 %v5690, 0.7978846
        %v5723 = vmul.f32 %v5691, 0.7978846
        %v5724 = vmul.f32 %v5692, 0.7978846
        %v5725 = vmul.f32 %v5693, 0.7978846
        %v5726 = vmul.f32 %v5694, 0.7978846
        %v5727 = vmul.f32 %v5695, 0.7978846
        %v5728 = vmul.f32 %v5696, 0.7978846
        %v5729 = vmul.f32 %v5697, 0.7978846
        %v5730 = vmul.f32 %v5698, 0.7978846
        %v5731 = vmul.f32 %v5699, 0.7978846
        %v5732 = vtanh.pop %v5700
        %v5733 = vtanh.pop %v5701
        %v5734 = vtanh.pop %v5702
        %v5735 = vtanh.pop %v5703
        %v5736 = vtanh.pop %v5704
        %v5737 = vtanh.pop %v5705
        %v5738 = vtanh.pop %v5706
        %v5739 = vtanh.pop %v5707
        %v5740 = vtanh.pop %v5708
        %v5741 = vtanh.pop %v5709
        %v5742 = vtanh.pop %v5710
        %v5743 = vtanh.pop %v5711
        %v5744 = vtanh.pop %v5712
        %v5745 = vtanh.pop %v5713
        %v5746 = vtanh.pop %v5714
        %v5747 = vtanh.pop %v5715
        %v5748 = vtanh.pop %v5716
        %v5749 = vtanh.pop %v5717
        %v5750 = vtanh.pop %v5718
        %v5751 = vtanh.pop %v5719
        %v5752 = vtanh.pop %v5720
        %v5753 = vtanh.pop %v5721
        %v5754 = vtanh.pop %v5722
        %v5755 = vtanh.pop %v5723
        %v5756 = vtanh.pop %v5724
        %v5757 = vtanh.pop %v5725
        %v5758 = vtanh.pop %v5726
        %v5759 = vtanh.pop %v5727
        %v5760 = vtanh.pop %v5728
        %v5761 = vtanh.pop %v5729
        %v5762 = vtanh.pop %v5730
        %v5763 = vtanh.pop %v5731
        %v5764 = vadd.f32 %v5732, 1.0
        %v5765 = vadd.f32 %v5733, 1.0
        %v5766 = vadd.f32 %v5734, 1.0
        %v5767 = vadd.f32 %v5735, 1.0
        %v5768 = vadd.f32 %v5736, 1.0
        %v5769 = vadd.f32 %v5737, 1.0
        %v5770 = vadd.f32 %v5738, 1.0
        %v5771 = vadd.f32 %v5739, 1.0
        %v5772 = vadd.f32 %v5740, 1.0
        %v5773 = vadd.f32 %v5741, 1.0
        %v5774 = vadd.f32 %v5742, 1.0
        %v5775 = vadd.f32 %v5743, 1.0
        %v5776 = vadd.f32 %v5744, 1.0
        %v5777 = vadd.f32 %v5745, 1.0
        %v5778 = vadd.f32 %v5746, 1.0
        %v5779 = vadd.f32 %v5747, 1.0
        %v5780 = vadd.f32 %v5748, 1.0
        %v5781 = vadd.f32 %v5749, 1.0
        %v5782 = vadd.f32 %v5750, 1.0
        %v5783 = vadd.f32 %v5751, 1.0
        %v5784 = vadd.f32 %v5752, 1.0
        %v5785 = vadd.f32 %v5753, 1.0
        %v5786 = vadd.f32 %v5754, 1.0
        %v5787 = vadd.f32 %v5755, 1.0
        %v5788 = vadd.f32 %v5756, 1.0
        %v5789 = vadd.f32 %v5757, 1.0
        %v5790 = vadd.f32 %v5758, 1.0
        %v5791 = vadd.f32 %v5759, 1.0
        %v5792 = vadd.f32 %v5760, 1.0
        %v5793 = vadd.f32 %v5761, 1.0
        %v5794 = vadd.f32 %v5762, 1.0
        %v5795 = vadd.f32 %v5763, 1.0
        %v5796 = vmul.f32 %v5764, 0.5
        %v5797 = vmul.f32 %v5765, 0.5
        %v5798 = vmul.f32 %v5766, 0.5
        %v5799 = vmul.f32 %v5767, 0.5
        %v5800 = vmul.f32 %v5768, 0.5
        %v5801 = vmul.f32 %v5769, 0.5
        %v5802 = vmul.f32 %v5770, 0.5
        %v5803 = vmul.f32 %v5771, 0.5
        %v5804 = vmul.f32 %v5772, 0.5
        %v5805 = vmul.f32 %v5773, 0.5
        %v5806 = vmul.f32 %v5774, 0.5
        %v5807 = vmul.f32 %v5775, 0.5
        %v5808 = vmul.f32 %v5776, 0.5
        %v5809 = vmul.f32 %v5777, 0.5
        %v5810 = vmul.f32 %v5778, 0.5
        %v5811 = vmul.f32 %v5779, 0.5
        %v5812 = vmul.f32 %v5780, 0.5
        %v5813 = vmul.f32 %v5781, 0.5
        %v5814 = vmul.f32 %v5782, 0.5
        %v5815 = vmul.f32 %v5783, 0.5
        %v5816 = vmul.f32 %v5784, 0.5
        %v5817 = vmul.f32 %v5785, 0.5
        %v5818 = vmul.f32 %v5786, 0.5
        %v5819 = vmul.f32 %v5787, 0.5
        %v5820 = vmul.f32 %v5788, 0.5
        %v5821 = vmul.f32 %v5789, 0.5
        %v5822 = vmul.f32 %v5790, 0.5
        %v5823 = vmul.f32 %v5791, 0.5
        %v5824 = vmul.f32 %v5792, 0.5
        %v5825 = vmul.f32 %v5793, 0.5
        %v5826 = vmul.f32 %v5794, 0.5
        %v5827 = vmul.f32 %v5795, 0.5
        %v5828 = vmul.f32 %v5478, %v5796
        %v5829 = vmul.f32 %v5480, %v5797
        %v5830 = vmul.f32 %v5484, %v5798
        %v5831 = vmul.f32 %v5486, %v5799
        %v5832 = vmul.f32 %v5490, %v5800
        %v5833 = vmul.f32 %v5492, %v5801
        %v5834 = vmul.f32 %v5496, %v5802
        %v5835 = vmul.f32 %v5498, %v5803
        %v5836 = vmul.f32 %v5502, %v5804
        %v5837 = vmul.f32 %v5504, %v5805
        %v5838 = vmul.f32 %v5508, %v5806
        %v5839 = vmul.f32 %v5510, %v5807
        %v5840 = vmul.f32 %v5514, %v5808
        %v5841 = vmul.f32 %v5516, %v5809
        %v5842 = vmul.f32 %v5520, %v5810
        %v5843 = vmul.f32 %v5522, %v5811
        %v5844 = vmul.f32 %v5526, %v5812
        %v5845 = vmul.f32 %v5528, %v5813
        %v5846 = vmul.f32 %v5532, %v5814
        %v5847 = vmul.f32 %v5534, %v5815
        %v5848 = vmul.f32 %v5538, %v5816
        %v5849 = vmul.f32 %v5540, %v5817
        %v5850 = vmul.f32 %v5544, %v5818
        %v5851 = vmul.f32 %v5546, %v5819
        %v5852 = vmul.f32 %v5550, %v5820
        %v5853 = vmul.f32 %v5552, %v5821
        %v5854 = vmul.f32 %v5556, %v5822
        %v5855 = vmul.f32 %v5558, %v5823
        %v5856 = vmul.f32 %v5562, %v5824
        %v5857 = vmul.f32 %v5564, %v5825
        %v5858 = vmul.f32 %v5568, %v5826
        %v5859 = vmul.f32 %v5570, %v5827
        %v5860 = vld [vmem:[#allocation3] sm:$0xff]
        %v5861 = vld [vmem:[#allocation3 + $0x8] sm:$0xff]
        %v5862 = vld [vmem:[#allocation3 + $0x10] sm:$0xff]
        %v5863 = vld [vmem:[#allocation3 + $0x18] sm:$0xff]
        %v5864 = vld [vmem:[#allocation3 + $0x20] sm:$0xff]
        %v5865 = vld [vmem:[#allocation3 + $0x28] sm:$0xff]
        %v5866 = vld [vmem:[#allocation3 + $0x30] sm:$0xff]
        %v5867 = vld [vmem:[#allocation3 + $0x38] sm:$0xff]
        %v5868 = vld [vmem:[#allocation3 + $0x40] sm:$0xff]
        %v5869 = vld [vmem:[#allocation3 + $0x48] sm:$0xff]
        %v5870 = vld [vmem:[#allocation3 + $0x50] sm:$0xff]
        %v5871 = vld [vmem:[#allocation3 + $0x58] sm:$0xff]
        %v5872 = vld [vmem:[#allocation3 + $0x60] sm:$0xff]
        %v5873 = vld [vmem:[#allocation3 + $0x68] sm:$0xff]
        %v5874 = vld [vmem:[#allocation3 + $0x70] sm:$0xff]
        %v5875 = vld [vmem:[#allocation3 + $0x78] sm:$0xff]
        %v5876 = vld [vmem:[%s1032] sm:$0xff]
        %v5878 = vcombine.high %v5876, %v5876
        %vm5879 = vcmask 31744
        %v5881 = vsel %vm5879, %v5860, 0
        %v5884 = vsel %vm5879, %v5861, 0
        %v5887 = vsel %vm5879, %v5862, 0
        %v5890 = vsel %vm5879, %v5863, 0
        %v5893 = vsel %vm5879, %v5864, 0
        %v5896 = vsel %vm5879, %v5865, 0
        %v5899 = vsel %vm5879, %v5866, 0
        %v5902 = vsel %vm5879, %v5867, 0
        %v5905 = vsel %vm5879, %v5868, 0
        %v5908 = vsel %vm5879, %v5869, 0
        %v5911 = vsel %vm5879, %v5870, 0
        %v5914 = vsel %vm5879, %v5871, 0
        %v5917 = vsel %vm5879, %v5872, 0
        %v5920 = vsel %vm5879, %v5873, 0
        %v5923 = vsel %vm5879, %v5874, 0
        %v5926 = vsel %vm5879, %v5875, 0
        %vm5928 = vcmask 1043456
        %v5929 = vsel %vm5928, %v5876, 0
        %v5931 = vsel %vm5928, %v5878, 0
        %5933 = vmatprep.subr.mxu0 %v5931
        %5934 = vmatpush1.msra.mxu0 %v5929
        %5935 = vmatprep.subr.mxu0 0.0
        %5936 = vmatpush1.msra.mxu0 0.0
        %5937 = vmatprep.subr.mxu0 0.0
        %5938 = vmatpush1.msra.mxu0 0.0
        %5939 = vmatprep.subr.mxu0 0.0
        %5940 = vmatpush1.msra.mxu0 0.0
        %5941 = vmatprep.subr.mxu0 0.0
        %5942 = vmatpush1.msra.mxu0 0.0
        %5943 = vmatprep.subr.mxu0 0.0
        %5944 = vmatpush1.msra.mxu0 0.0
        %5945 = vmatprep.subr.mxu0 0.0
        %5946 = vmatpush1.msra.mxu0 0.0
        %5947 = vmatprep.subr.mxu0 0.0
        %5948 = vmatpush1.msra.mxu0 0.0
        %5949 = vmatprep.subr.mxu0 0.0
        %5950 = vmatpush1.msra.mxu0 0.0
        %5951 = vmatprep.subr.mxu0 0.0
        %5952 = vmatpush1.msra.mxu0 0.0
        %5953 = vmatprep.subr.mxu0 0.0
        %5954 = vmatpush1.msra.mxu0 0.0
        %5955 = vmatprep.subr.mxu0 0.0
        %5956 = vmatpush1.msra.mxu0 0.0
        %5957 = vmatprep.subr.mxu0 0.0
        %5958 = vmatpush1.msra.mxu0 0.0
        %5959 = vmatprep.subr.mxu0 0.0
        %5960 = vmatpush1.msra.mxu0 0.0
        %5961 = vmatprep.subr.mxu0 0.0
        %5962 = vmatpush1.msra.mxu0 0.0
        %5963 = vmatprep.subr.mxu0 0.0
        %5964 = vmatpush1.msra.mxu0 0.0
        %5965 = vmatprep.subr.mxu0 0.0
        %5966 = vmatpush1.msra.mxu0 0.0
        %5967 = vmatprep.subr.mxu0 0.0
        %5968 = vmatpush1.msra.mxu0 0.0
        %5969 = vmatprep.subr.mxu0 0.0
        %5970 = vmatpush1.msra.mxu0 0.0
        %5971 = vmatprep.subr.mxu0 0.0
        %5972 = vmatpush1.msra.mxu0 0.0
        %5973 = vmatprep.subr.mxu0 0.0
        %5974 = vmatpush1.msra.mxu0 0.0
        %5975 = vmatprep.subr.mxu0 0.0
        %5976 = vmatpush1.msra.mxu0 0.0
        %5977 = vmatprep.subr.mxu0 0.0
        %5978 = vmatpush1.msra.mxu0 0.0
        %5979 = vmatprep.subr.mxu0 0.0
        %5980 = vmatpush1.msra.mxu0 0.0
        %5981 = vmatprep.subr.mxu0 0.0
        %5982 = vmatpush1.msra.mxu0 0.0
        %5983 = vmatprep.subr.mxu0 0.0
        %5984 = vmatpush1.msra.mxu0 0.0
        %5985 = vmatprep.subr.mxu0 0.0
        %5986 = vmatpush1.msra.mxu0 0.0
        %5987 = vmatprep.subr.mxu0 0.0
        %5988 = vmatpush1.msra.mxu0 0.0
        %5989 = vmatprep.subr.mxu0 0.0
        %5990 = vmatpush1.msra.mxu0 0.0
        %5991 = vmatprep.subr.mxu0 0.0
        %5992 = vmatpush1.msra.mxu0 0.0
        %5993 = vmatprep.subr.mxu0 0.0
        %5994 = vmatpush1.msra.mxu0 0.0
        %5995 = vmatprep.subr.mxu0 0.0
        %5996 = vmatpush1.msra.mxu0 0.0
        %5997 = vmatprep.mubr.f32.mxu0 0.0
        %5998 = vmatmul.mubr.f32.gmra.mrb[0].mxu0 %v5881
        %v5999 = vpop.f32.mrb[0].mxu0
        %v6000 = vadd.f32 0.0, %v5999
        %v6001 = vpop.f32.mrb[0].mxu0
        %v6002 = vadd.f32 0.0, %v6001
        %6003 = vmatprep.mubr.f32.mxu0 0.0
        %6004 = vmatmul.mubr.f32.gmra.mrb[0].mxu0 %v5884
        %v6005 = vpop.f32.mrb[0].mxu0
        %v6006 = vadd.f32 0.0, %v6005
        %v6007 = vpop.f32.mrb[0].mxu0
        %v6008 = vadd.f32 0.0, %v6007
        %6009 = vmatprep.mubr.f32.mxu0 0.0
        %6010 = vmatmul.mubr.f32.gmra.mrb[0].mxu0 %v5887
        %v6011 = vpop.f32.mrb[0].mxu0
        %v6012 = vadd.f32 0.0, %v6011
        %v6013 = vpop.f32.mrb[0].mxu0
        %v6014 = vadd.f32 0.0, %v6013
        %6015 = vmatprep.mubr.f32.mxu0 0.0
        %6016 = vmatmul.mubr.f32.gmra.mrb[0].mxu0 %v5890
        %v6017 = vpop.f32.mrb[0].mxu0
        %v6018 = vadd.f32 0.0, %v6017
        %v6019 = vpop.f32.mrb[0].mxu0
        %v6020 = vadd.f32 0.0, %v6019
        %6021 = vmatprep.mubr.f32.mxu0 0.0
        %6022 = vmatmul.mubr.f32.gmra.mrb[0].mxu0 %v5893
        %v6023 = vpop.f32.mrb[0].mxu0
        %v6024 = vadd.f32 0.0, %v6023
        %v6025 = vpop.f32.mrb[0].mxu0
        %v6026 = vadd.f32 0.0, %v6025
        %6027 = vmatprep.mubr.f32.mxu0 0.0
        %6028 = vmatmul.mubr.f32.gmra.mrb[0].mxu0 %v5896
        %v6029 = vpop.f32.mrb[0].mxu0
        %v6030 = vadd.f32 0.0, %v6029
        %v6031 = vpop.f32.mrb[0].mxu0
        %v6032 = vadd.f32 0.0, %v6031
        %6033 = vmatprep.mubr.f32.mxu0 0.0
        %6034 = vmatmul.mubr.f32.gmra.mrb[0].mxu0 %v5899
        %v6035 = vpop.f32.mrb[0].mxu0
        %v6036 = vadd.f32 0.0, %v6035
        %v6037 = vpop.f32.mrb[0].mxu0
        %v6038 = vadd.f32 0.0, %v6037
        %6039 = vmatprep.mubr.f32.mxu0 0.0
        %6040 = vmatmul.mubr.f32.gmra.mrb[0].mxu0 %v5902
        %v6041 = vpop.f32.mrb[0].mxu0
        %v6042 = vadd.f32 0.0, %v6041
        %v6043 = vpop.f32.mrb[0].mxu0
        %v6044 = vadd.f32 0.0, %v6043
        %6045 = vmatprep.mubr.f32.mxu0 0.0
        %6046 = vmatmul.mubr.f32.gmra.mrb[0].mxu0 %v5905
        %v6047 = vpop.f32.mrb[0].mxu0
        %v6048 = vadd.f32 0.0, %v6047
        %v6049 = vpop.f32.mrb[0].mxu0
        %v6050 = vadd.f32 0.0, %v6049
        %6051 = vmatprep.mubr.f32.mxu0 0.0
        %6052 = vmatmul.mubr.f32.gmra.mrb[0].mxu0 %v5908
        %v6053 = vpop.f32.mrb[0].mxu0
        %v6054 = vadd.f32 0.0, %v6053
        %v6055 = vpop.f32.mrb[0].mxu0
        %v6056 = vadd.f32 0.0, %v6055
        %6057 = vmatprep.mubr.f32.mxu0 0.0
        %6058 = vmatmul.mubr.f32.gmra.mrb[0].mxu0 %v5911
        %v6059 = vpop.f32.mrb[0].mxu0
        %v6060 = vadd.f32 0.0, %v6059
        %v6061 = vpop.f32.mrb[0].mxu0
        %v6062 = vadd.f32 0.0, %v6061
        %6063 = vmatprep.mubr.f32.mxu0 0.0
        %6064 = vmatmul.mubr.f32.gmra.mrb[0].mxu0 %v5914
        %v6065 = vpop.f32.mrb[0].mxu0
        %v6066 = vadd.f32 0.0, %v6065
        %v6067 = vpop.f32.mrb[0].mxu0
        %v6068 = vadd.f32 0.0, %v6067
        %6069 = vmatprep.mubr.f32.mxu0 0.0
        %6070 = vmatmul.mubr.f32.gmra.mrb[0].mxu0 %v5917
        %v6071 = vpop.f32.mrb[0].mxu0
        %v6072 = vadd.f32 0.0, %v6071
        %v6073 = vpop.f32.mrb[0].mxu0
        %v6074 = vadd.f32 0.0, %v6073
        %6075 = vmatprep.mubr.f32.mxu0 0.0
        %6076 = vmatmul.mubr.f32.gmra.mrb[0].mxu0 %v5920
        %v6077 = vpop.f32.mrb[0].mxu0
        %v6078 = vadd.f32 0.0, %v6077
        %v6079 = vpop.f32.mrb[0].mxu0
        %v6080 = vadd.f32 0.0, %v6079
        %6081 = vmatprep.mubr.f32.mxu0 0.0
        %6082 = vmatmul.mubr.f32.gmra.mrb[0].mxu0 %v5923
        %v6083 = vpop.f32.mrb[0].mxu0
        %v6084 = vadd.f32 0.0, %v6083
        %v6085 = vpop.f32.mrb[0].mxu0
        %v6086 = vadd.f32 0.0, %v6085
        %6087 = vmatprep.mubr.f32.mxu0 0.0
        %6088 = vmatmul.mubr.f32.gmra.mrb[0].mxu0 %v5926
        %v6089 = vpop.f32.mrb[0].mxu0
        %v6090 = vadd.f32 0.0, %v6089
        %v6091 = vpop.f32.mrb[0].mxu0
        %v6092 = vadd.f32 0.0, %v6091
        %6093 = vdwg.mxu0
        %v6094 = vld [vmem:[#allocation4] sm:$0xff]
        %v6095 = vld [vmem:[#allocation4 + $0x8] sm:$0xff]
        %v6096 = vld [vmem:[#allocation4 + $0x10] sm:$0xff]
        %v6097 = vld [vmem:[#allocation4 + $0x18] sm:$0xff]
        %v6098 = vld [vmem:[#allocation4 + $0x20] sm:$0xff]
        %v6099 = vld [vmem:[#allocation4 + $0x28] sm:$0xff]
        %v6100 = vld [vmem:[#allocation4 + $0x30] sm:$0xff]
        %v6101 = vld [vmem:[#allocation4 + $0x38] sm:$0xff]
        %v6102 = vld [vmem:[#allocation4 + $0x40] sm:$0xff]
        %v6103 = vld [vmem:[#allocation4 + $0x48] sm:$0xff]
        %v6104 = vld [vmem:[#allocation4 + $0x50] sm:$0xff]
        %v6105 = vld [vmem:[#allocation4 + $0x58] sm:$0xff]
        %v6106 = vld [vmem:[#allocation4 + $0x60] sm:$0xff]
        %v6107 = vld [vmem:[#allocation4 + $0x68] sm:$0xff]
        %v6108 = vld [vmem:[#allocation4 + $0x70] sm:$0xff]
        %v6109 = vld [vmem:[#allocation4 + $0x78] sm:$0xff]
        %v6110 = vld [vmem:[#allocation4 + $0x80] sm:$0xff]
        %v6111 = vld [vmem:[#allocation4 + $0x88] sm:$0xff]
        %v6112 = vld [vmem:[#allocation4 + $0x90] sm:$0xff]
        %v6113 = vld [vmem:[#allocation4 + $0x98] sm:$0xff]
        %v6114 = vld [vmem:[#allocation4 + $0xa0] sm:$0xff]
        %v6115 = vld [vmem:[#allocation4 + $0xa8] sm:$0xff]
        %v6116 = vld [vmem:[#allocation4 + $0xb0] sm:$0xff]
        %v6117 = vld [vmem:[#allocation4 + $0xb8] sm:$0xff]
        %v6118 = vld [vmem:[#allocation4 + $0xc0] sm:$0xff]
        %v6119 = vld [vmem:[#allocation4 + $0xc8] sm:$0xff]
        %v6120 = vld [vmem:[#allocation4 + $0xd0] sm:$0xff]
        %v6121 = vld [vmem:[#allocation4 + $0xd8] sm:$0xff]
        %v6122 = vld [vmem:[#allocation4 + $0xe0] sm:$0xff]
        %v6123 = vld [vmem:[#allocation4 + $0xe8] sm:$0xff]
        %v6124 = vld [vmem:[#allocation4 + $0xf0] sm:$0xff]
        %v6125 = vld [vmem:[#allocation4 + $0xf8] sm:$0xff]
        %v6126 = vmul.f32 %v5828, %v6000
        %v6127 = vmul.f32 %v5829, %v6002
        %v6128 = vmul.f32 %v5830, %v6006
        %v6129 = vmul.f32 %v5831, %v6008
        %v6130 = vmul.f32 %v5832, %v6012
        %v6131 = vmul.f32 %v5833, %v6014
        %v6132 = vmul.f32 %v5834, %v6018
        %v6133 = vmul.f32 %v5835, %v6020
        %v6134 = vmul.f32 %v5836, %v6024
        %v6135 = vmul.f32 %v5837, %v6026
        %v6136 = vmul.f32 %v5838, %v6030
        %v6137 = vmul.f32 %v5839, %v6032
        %v6138 = vmul.f32 %v5840, %v6036
        %v6139 = vmul.f32 %v5841, %v6038
        %v6140 = vmul.f32 %v5842, %v6042
        %v6141 = vmul.f32 %v5843, %v6044
        %v6142 = vmul.f32 %v5844, %v6048
        %v6143 = vmul.f32 %v5845, %v6050
        %v6144 = vmul.f32 %v5846, %v6054
        %v6145 = vmul.f32 %v5847, %v6056
        %v6146 = vmul.f32 %v5848, %v6060
        %v6147 = vmul.f32 %v5849, %v6062
        %v6148 = vmul.f32 %v5850, %v6066
        %v6149 = vmul.f32 %v5851, %v6068
        %v6150 = vmul.f32 %v5852, %v6072
        %v6151 = vmul.f32 %v5853, %v6074
        %v6152 = vmul.f32 %v5854, %v6078
        %v6153 = vmul.f32 %v5855, %v6080
        %v6154 = vmul.f32 %v5856, %v6084
        %v6155 = vmul.f32 %v5857, %v6086
        %v6156 = vmul.f32 %v5858, %v6090
        %v6157 = vmul.f32 %v5859, %v6092
        %v6158 = vld [vmem:[%s930] sm:$0xff]
        %v6159 = vld [vmem:[%s930 + $0x8] sm:$0xff]
        %v6160 = vld [vmem:[%s930 + $0x10] sm:$0xff]
        %v6161 = vld [vmem:[%s930 + $0x18] sm:$0xff]
        %v6162 = vld [vmem:[%s930 + $0x20] sm:$0xff]
        %v6163 = vld [vmem:[%s930 + $0x28] sm:$0xff]
        %v6164 = vld [vmem:[%s930 + $0x30] sm:$0xff]
        %v6165 = vld [vmem:[%s930 + $0x38] sm:$0xff]
        %v6166 = vld [vmem:[%s930 + $0x40] sm:$0xff]
        %v6167 = vld [vmem:[%s930 + $0x48] sm:$0xff]
        %v6168 = vld [vmem:[%s930 + $0x50] sm:$0xff]
        %v6169 = vld [vmem:[%s930 + $0x58] sm:$0xff]
        %v6170 = vld [vmem:[%s930 + $0x60] sm:$0xff]
        %v6171 = vld [vmem:[%s930 + $0x68] sm:$0xff]
        %v6172 = vld [vmem:[%s930 + $0x70] sm:$0xff]
        %v6173 = vld [vmem:[%s930 + $0x78] sm:$0xff]
        %v6174 = vld [vmem:[%s930 + $0x80] sm:$0xff]
        %v6175 = vld [vmem:[%s930 + $0x88] sm:$0xff]
        %v6176 = vld [vmem:[%s930 + $0x90] sm:$0xff]
        %v6177 = vld [vmem:[%s930 + $0x98] sm:$0xff]
        %v6178 = vld [vmem:[%s930 + $0xa0] sm:$0xff]
        %v6179 = vld [vmem:[%s930 + $0xa8] sm:$0xff]
        %v6180 = vld [vmem:[%s930 + $0xb0] sm:$0xff]
        %v6181 = vld [vmem:[%s930 + $0xb8] sm:$0xff]
        %v6182 = vld [vmem:[%s930 + $0xc0] sm:$0xff]
        %v6183 = vld [vmem:[%s930 + $0xc8] sm:$0xff]
        %v6184 = vld [vmem:[%s930 + $0xd0] sm:$0xff]
        %v6185 = vld [vmem:[%s930 + $0xd8] sm:$0xff]
        %v6186 = vld [vmem:[%s930 + $0xe0] sm:$0xff]
        %v6187 = vld [vmem:[%s930 + $0xe8] sm:$0xff]
        %v6188 = vld [vmem:[%s930 + $0xf0] sm:$0xff]
        %v6189 = vld [vmem:[%s930 + $0xf8] sm:$0xff]
        %v6190 = vld [vmem:[%s930 + $0x100] sm:$0xff]
        %v6191 = vld [vmem:[%s930 + $0x108] sm:$0xff]
        %v6192 = vld [vmem:[%s930 + $0x110] sm:$0xff]
        %v6193 = vld [vmem:[%s930 + $0x118] sm:$0xff]
        %v6194 = vld [vmem:[%s930 + $0x120] sm:$0xff]
        %v6195 = vld [vmem:[%s930 + $0x128] sm:$0xff]
        %v6196 = vld [vmem:[%s930 + $0x130] sm:$0xff]
        %v6197 = vld [vmem:[%s930 + $0x138] sm:$0xff]
        %v6198 = vld [vmem:[%s930 + $0x140] sm:$0xff]
        %v6199 = vld [vmem:[%s930 + $0x148] sm:$0xff]
        %v6200 = vld [vmem:[%s930 + $0x150] sm:$0xff]
        %v6201 = vld [vmem:[%s930 + $0x158] sm:$0xff]
        %v6202 = vld [vmem:[%s930 + $0x160] sm:$0xff]
        %v6203 = vld [vmem:[%s930 + $0x168] sm:$0xff]
        %v6204 = vld [vmem:[%s930 + $0x170] sm:$0xff]
        %v6205 = vld [vmem:[%s930 + $0x178] sm:$0xff]
        %v6206 = vld [vmem:[%s930 + $0x180] sm:$0xff]
        %v6207 = vld [vmem:[%s930 + $0x188] sm:$0xff]
        %v6208 = vld [vmem:[%s930 + $0x190] sm:$0xff]
        %v6209 = vld [vmem:[%s930 + $0x198] sm:$0xff]
        %v6210 = vld [vmem:[%s930 + $0x1a0] sm:$0xff]
        %v6211 = vld [vmem:[%s930 + $0x1a8] sm:$0xff]
        %v6212 = vld [vmem:[%s930 + $0x1b0] sm:$0xff]
        %v6213 = vld [vmem:[%s930 + $0x1b8] sm:$0xff]
        %v6214 = vld [vmem:[%s930 + $0x1c0] sm:$0xff]
        %v6215 = vld [vmem:[%s930 + $0x1c8] sm:$0xff]
        %v6216 = vld [vmem:[%s930 + $0x1d0] sm:$0xff]
        %v6217 = vld [vmem:[%s930 + $0x1d8] sm:$0xff]
        %v6218 = vld [vmem:[%s930 + $0x1e0] sm:$0xff]
        %v6219 = vld [vmem:[%s930 + $0x1e8] sm:$0xff]
        %v6220 = vld [vmem:[%s930 + $0x1f0] sm:$0xff]
        %v6221 = vld [vmem:[%s930 + $0x1f8] sm:$0xff]
        %6222 = vmatprep.subr.mxu0 %v6159
        %6223 = vmatpush1.msra.mxu0 %v6158
        %6224 = vmatprep.subr.mxu0 %v6161
        %6225 = vmatpush1.msra.mxu0 %v6160
        %6226 = vmatprep.subr.mxu0 %v6163
        %6227 = vmatpush1.msra.mxu0 %v6162
        %6228 = vmatprep.subr.mxu0 %v6165
        %6229 = vmatpush1.msra.mxu0 %v6164
        %6230 = vmatprep.subr.mxu0 %v6167
        %6231 = vmatpush1.msra.mxu0 %v6166
        %6232 = vmatprep.subr.mxu0 %v6169
        %6233 = vmatpush1.msra.mxu0 %v6168
        %6234 = vmatprep.subr.mxu0 %v6171
        %6235 = vmatpush1.msra.mxu0 %v6170
        %6236 = vmatprep.subr.mxu0 %v6173
        %6237 = vmatpush1.msra.mxu0 %v6172
        %6238 = vmatprep.subr.mxu0 %v6175
        %6239 = vmatpush1.msra.mxu0 %v6174
        %6240 = vmatprep.subr.mxu0 %v6177
        %6241 = vmatpush1.msra.mxu0 %v6176
        %6242 = vmatprep.subr.mxu0 %v6179
        %6243 = vmatpush1.msra.mxu0 %v6178
        %6244 = vmatprep.subr.mxu0 %v6181
        %6245 = vmatpush1.msra.mxu0 %v6180
        %6246 = vmatprep.subr.mxu0 %v6183
        %6247 = vmatpush1.msra.mxu0 %v6182
        %6248 = vmatprep.subr.mxu0 %v6185
        %6249 = vmatpush1.msra.mxu0 %v6184
        %6250 = vmatprep.subr.mxu0 %v6187
        %6251 = vmatpush1.msra.mxu0 %v6186
        %6252 = vmatprep.subr.mxu0 %v6189
        %6253 = vmatpush1.msra.mxu0 %v6188
        %6254 = vmatprep.subr.mxu0 %v6191
        %6255 = vmatpush1.msra.mxu0 %v6190
        %6256 = vmatprep.subr.mxu0 %v6193
        %6257 = vmatpush1.msra.mxu0 %v6192
        %6258 = vmatprep.subr.mxu0 %v6195
        %6259 = vmatpush1.msra.mxu0 %v6194
        %6260 = vmatprep.subr.mxu0 %v6197
        %6261 = vmatpush1.msra.mxu0 %v6196
        %6262 = vmatprep.subr.mxu0 %v6199
        %6263 = vmatpush1.msra.mxu0 %v6198
        %6264 = vmatprep.subr.mxu0 %v6201
        %6265 = vmatpush1.msra.mxu0 %v6200
        %6266 = vmatprep.subr.mxu0 %v6203
        %6267 = vmatpush1.msra.mxu0 %v6202
        %6268 = vmatprep.subr.mxu0 %v6205
        %6269 = vmatpush1.msra.mxu0 %v6204
        %6270 = vmatprep.subr.mxu0 %v6207
        %6271 = vmatpush1.msra.mxu0 %v6206
        %6272 = vmatprep.subr.mxu0 %v6209
        %6273 = vmatpush1.msra.mxu0 %v6208
        %6274 = vmatprep.subr.mxu0 %v6211
        %6275 = vmatpush1.msra.mxu0 %v6210
        %6276 = vmatprep.subr.mxu0 %v6213
        %6277 = vmatpush1.msra.mxu0 %v6212
        %6278 = vmatprep.subr.mxu0 %v6215
        %6279 = vmatpush1.msra.mxu0 %v6214
        %6280 = vmatprep.subr.mxu0 %v6217
        %6281 = vmatpush1.msra.mxu0 %v6216
        %6282 = vmatprep.subr.mxu0 %v6219
        %6283 = vmatpush1.msra.mxu0 %v6218
        %6284 = vmatprep.subr.mxu0 %v6221
        %6285 = vmatpush1.msra.mxu0 %v6220
        %6286 = vmatprep.mubr.f32.mxu0 %v6127
        %6287 = vmatmul.mubr.f32.gmra.mrb[0].mxu0 %v6126
        %v6288 = vpop.f32.mrb[0].mxu0
        %v6289 = vadd.f32 0.0, %v6288
        %v6290 = vpop.f32.mrb[0].mxu0
        %v6291 = vadd.f32 0.0, %v6290
        %6292 = vmatprep.mubr.f32.mxu0 %v6129
        %6293 = vmatmul.mubr.f32.gmra.mrb[0].mxu0 %v6128
        %v6294 = vpop.f32.mrb[0].mxu0
        %v6295 = vadd.f32 0.0, %v6294
        %v6296 = vpop.f32.mrb[0].mxu0
        %v6297 = vadd.f32 0.0, %v6296
        %6298 = vmatprep.mubr.f32.mxu0 %v6131
        %6299 = vmatmul.mubr.f32.gmra.mrb[0].mxu0 %v6130
        %v6300 = vpop.f32.mrb[0].mxu0
        %v6301 = vadd.f32 0.0, %v6300
        %v6302 = vpop.f32.mrb[0].mxu0
        %v6303 = vadd.f32 0.0, %v6302
        %6304 = vmatprep.mubr.f32.mxu0 %v6133
        %6305 = vmatmul.mubr.f32.gmra.mrb[0].mxu0 %v6132
        %v6306 = vpop.f32.mrb[0].mxu0
        %v6307 = vadd.f32 0.0, %v6306
        %v6308 = vpop.f32.mrb[0].mxu0
        %v6309 = vadd.f32 0.0, %v6308
        %6310 = vmatprep.mubr.f32.mxu0 %v6135
        %6311 = vmatmul.mubr.f32.gmra.mrb[0].mxu0 %v6134
        %v6312 = vpop.f32.mrb[0].mxu0
        %v6313 = vadd.f32 0.0, %v6312
        %v6314 = vpop.f32.mrb[0].mxu0
        %v6315 = vadd.f32 0.0, %v6314
        %6316 = vmatprep.mubr.f32.mxu0 %v6137
        %6317 = vmatmul.mubr.f32.gmra.mrb[0].mxu0 %v6136
        %v6318 = vpop.f32.mrb[0].mxu0
        %v6319 = vadd.f32 0.0, %v6318
        %v6320 = vpop.f32.mrb[0].mxu0
        %v6321 = vadd.f32 0.0, %v6320
        %6322 = vmatprep.mubr.f32.mxu0 %v6139
        %6323 = vmatmul.mubr.f32.gmra.mrb[0].mxu0 %v6138
        %v6324 = vpop.f32.mrb[0].mxu0
        %v6325 = vadd.f32 0.0, %v6324
        %v6326 = vpop.f32.mrb[0].mxu0
        %v6327 = vadd.f32 0.0, %v6326
        %6328 = vmatprep.mubr.f32.mxu0 %v6141
        %6329 = vmatmul.mubr.f32.gmra.mrb[0].mxu0 %v6140
        %v6330 = vpop.f32.mrb[0].mxu0
        %v6331 = vadd.f32 0.0, %v6330
        %v6332 = vpop.f32.mrb[0].mxu0
        %v6333 = vadd.f32 0.0, %v6332
        %6334 = vmatprep.mubr.f32.mxu0 %v6143
        %6335 = vmatmul.mubr.f32.gmra.mrb[0].mxu0 %v6142
        %v6336 = vpop.f32.mrb[0].mxu0
        %v6337 = vadd.f32 0.0, %v6336
        %v6338 = vpop.f32.mrb[0].mxu0
        %v6339 = vadd.f32 0.0, %v6338
        %6340 = vmatprep.mubr.f32.mxu0 %v6145
        %6341 = vmatmul.mubr.f32.gmra.mrb[0].mxu0 %v6144
        %v6342 = vpop.f32.mrb[0].mxu0
        %v6343 = vadd.f32 0.0, %v6342
        %v6344 = vpop.f32.mrb[0].mxu0
        %v6345 = vadd.f32 0.0, %v6344
        %6346 = vmatprep.mubr.f32.mxu0 %v6147
        %6347 = vmatmul.mubr.f32.gmra.mrb[0].mxu0 %v6146
        %v6348 = vpop.f32.mrb[0].mxu0
        %v6349 = vadd.f32 0.0, %v6348
        %v6350 = vpop.f32.mrb[0].mxu0
        %v6351 = vadd.f32 0.0, %v6350
        %6352 = vmatprep.mubr.f32.mxu0 %v6149
        %6353 = vmatmul.mubr.f32.gmra.mrb[0].mxu0 %v6148
        %v6354 = vpop.f32.mrb[0].mxu0
        %v6355 = vadd.f32 0.0, %v6354
        %v6356 = vpop.f32.mrb[0].mxu0
        %v6357 = vadd.f32 0.0, %v6356
        %6358 = vmatprep.mubr.f32.mxu0 %v6151
        %6359 = vmatmul.mubr.f32.gmra.mrb[0].mxu0 %v6150
        %v6360 = vpop.f32.mrb[0].mxu0
        %v6361 = vadd.f32 0.0, %v6360
        %v6362 = vpop.f32.mrb[0].mxu0
        %v6363 = vadd.f32 0.0, %v6362
        %6364 = vmatprep.mubr.f32.mxu0 %v6153
        %6365 = vmatmul.mubr.f32.gmra.mrb[0].mxu0 %v6152
        %v6366 = vpop.f32.mrb[0].mxu0
        %v6367 = vadd.f32 0.0, %v6366
        %v6368 = vpop.f32.mrb[0].mxu0
        %v6369 = vadd.f32 0.0, %v6368
        %6370 = vmatprep.mubr.f32.mxu0 %v6155
        %6371 = vmatmul.mubr.f32.gmra.mrb[0].mxu0 %v6154
        %v6372 = vpop.f32.mrb[0].mxu0
        %v6373 = vadd.f32 0.0, %v6372
        %v6374 = vpop.f32.mrb[0].mxu0
        %v6375 = vadd.f32 0.0, %v6374
        %6376 = vmatprep.mubr.f32.mxu0 %v6157
        %6377 = vmatmul.mubr.f32.gmra.mrb[0].mxu0 %v6156
        %v6378 = vpop.f32.mrb[0].mxu0
        %v6379 = vadd.f32 0.0, %v6378
        %v6380 = vpop.f32.mrb[0].mxu0
        %v6381 = vadd.f32 0.0, %v6380
        %6382 = vdwg.mxu0
        %v6383 = vadd.f32 %v6094, %v6289
        %v6384 = vadd.f32 %v6095, %v6291
        %v6385 = vadd.f32 %v6096, %v6295
        %v6386 = vadd.f32 %v6097, %v6297
        %v6387 = vadd.f32 %v6098, %v6301
        %v6388 = vadd.f32 %v6099, %v6303
        %v6389 = vadd.f32 %v6100, %v6307
        %v6390 = vadd.f32 %v6101, %v6309
        %v6391 = vadd.f32 %v6102, %v6313
        %v6392 = vadd.f32 %v6103, %v6315
        %v6393 = vadd.f32 %v6104, %v6319
        %v6394 = vadd.f32 %v6105, %v6321
        %v6395 = vadd.f32 %v6106, %v6325
        %v6396 = vadd.f32 %v6107, %v6327
        %v6397 = vadd.f32 %v6108, %v6331
        %v6398 = vadd.f32 %v6109, %v6333
        %v6399 = vadd.f32 %v6110, %v6337
        %v6400 = vadd.f32 %v6111, %v6339
        %v6401 = vadd.f32 %v6112, %v6343
        %v6402 = vadd.f32 %v6113, %v6345
        %v6403 = vadd.f32 %v6114, %v6349
        %v6404 = vadd.f32 %v6115, %v6351
        %v6405 = vadd.f32 %v6116, %v6355
        %v6406 = vadd.f32 %v6117, %v6357
        %v6407 = vadd.f32 %v6118, %v6361
        %v6408 = vadd.f32 %v6119, %v6363
        %v6409 = vadd.f32 %v6120, %v6367
        %v6410 = vadd.f32 %v6121, %v6369
        %v6411 = vadd.f32 %v6122, %v6373
        %v6412 = vadd.f32 %v6123, %v6375
        %v6413 = vadd.f32 %v6124, %v6379
        %v6414 = vadd.f32 %v6125, %v6381
        %6415 = vst [vmem:[#allocation4] sm:$0xff] %v6383
        %6416 = vst [vmem:[#allocation4 + $0x8] sm:$0xff] %v6384
        %6417 = vst [vmem:[#allocation4 + $0x10] sm:$0xff] %v6385
        %6418 = vst [vmem:[#allocation4 + $0x18] sm:$0xff] %v6386
        %6419 = vst [vmem:[#allocation4 + $0x20] sm:$0xff] %v6387
        %6420 = vst [vmem:[#allocation4 + $0x28] sm:$0xff] %v6388
        %6421 = vst [vmem:[#allocation4 + $0x30] sm:$0xff] %v6389
        %6422 = vst [vmem:[#allocation4 + $0x38] sm:$0xff] %v6390
        %6423 = vst [vmem:[#allocation4 + $0x40] sm:$0xff] %v6391
        %6424 = vst [vmem:[#allocation4 + $0x48] sm:$0xff] %v6392
        %6425 = vst [vmem:[#allocation4 + $0x50] sm:$0xff] %v6393
        %6426 = vst [vmem:[#allocation4 + $0x58] sm:$0xff] %v6394
        %6427 = vst [vmem:[#allocation4 + $0x60] sm:$0xff] %v6395
        %6428 = vst [vmem:[#allocation4 + $0x68] sm:$0xff] %v6396
        %6429 = vst [vmem:[#allocation4 + $0x70] sm:$0xff] %v6397
        %6430 = vst [vmem:[#allocation4 + $0x78] sm:$0xff] %v6398
        %6431 = vst [vmem:[#allocation4 + $0x80] sm:$0xff] %v6399
        %6432 = vst [vmem:[#allocation4 + $0x88] sm:$0xff] %v6400
        %6433 = vst [vmem:[#allocation4 + $0x90] sm:$0xff] %v6401
        %6434 = vst [vmem:[#allocation4 + $0x98] sm:$0xff] %v6402
        %6435 = vst [vmem:[#allocation4 + $0xa0] sm:$0xff] %v6403
        %6436 = vst [vmem:[#allocation4 + $0xa8] sm:$0xff] %v6404
        %6437 = vst [vmem:[#allocation4 + $0xb0] sm:$0xff] %v6405
        %6438 = vst [vmem:[#allocation4 + $0xb8] sm:$0xff] %v6406
        %6439 = vst [vmem:[#allocation4 + $0xc0] sm:$0xff] %v6407
        %6440 = vst [vmem:[#allocation4 + $0xc8] sm:$0xff] %v6408
        %6441 = vst [vmem:[#allocation4 + $0xd0] sm:$0xff] %v6409
        %6442 = vst [vmem:[#allocation4 + $0xd8] sm:$0xff] %v6410
        %6443 = vst [vmem:[#allocation4 + $0xe0] sm:$0xff] %v6411
        %6444 = vst [vmem:[#allocation4 + $0xe8] sm:$0xff] %v6412
        %6445 = vst [vmem:[#allocation4 + $0xf0] sm:$0xff] %v6413
        %6446 = vst [vmem:[#allocation4 + $0xf8] sm:$0xff] %v6414
        %p6447 = scmp.eq.s32.totalorder %s55, 3
        // Predicated region
        $region169: #{tpu_custom_call.1} parent=111 // pred_check
          %p6448 = pneg %p6447
        $region170: #{tpu_custom_call.1} parent=111 // pred_check_branch
          %6450 = sbr.rel (%p6448) target = $region172
        $region171: #{tpu_custom_call.1} parent=111 // pred_region
          %v6451 = vld [vmem:[#allocation4] sm:$0xff]
          %v6452 = vld [vmem:[#allocation4 + $0x8] sm:$0xff]
          %v6453 = vld [vmem:[#allocation4 + $0x10] sm:$0xff]
          %v6454 = vld [vmem:[#allocation4 + $0x18] sm:$0xff]
          %v6455 = vld [vmem:[#allocation4 + $0x20] sm:$0xff]
          %v6456 = vld [vmem:[#allocation4 + $0x28] sm:$0xff]
          %v6457 = vld [vmem:[#allocation4 + $0x30] sm:$0xff]
          %v6458 = vld [vmem:[#allocation4 + $0x38] sm:$0xff]
          %v6459 = vld [vmem:[#allocation4 + $0x40] sm:$0xff]
          %v6460 = vld [vmem:[#allocation4 + $0x48] sm:$0xff]
          %v6461 = vld [vmem:[#allocation4 + $0x50] sm:$0xff]
          %v6462 = vld [vmem:[#allocation4 + $0x58] sm:$0xff]
          %v6463 = vld [vmem:[#allocation4 + $0x60] sm:$0xff]
          %v6464 = vld [vmem:[#allocation4 + $0x68] sm:$0xff]
          %v6465 = vld [vmem:[#allocation4 + $0x70] sm:$0xff]
          %v6466 = vld [vmem:[#allocation4 + $0x78] sm:$0xff]
          %v6467 = vld [vmem:[#allocation4 + $0x80] sm:$0xff]
          %v6468 = vld [vmem:[#allocation4 + $0x88] sm:$0xff]
          %v6469 = vld [vmem:[#allocation4 + $0x90] sm:$0xff]
          %v6470 = vld [vmem:[#allocation4 + $0x98] sm:$0xff]
          %v6471 = vld [vmem:[#allocation4 + $0xa0] sm:$0xff]
          %v6472 = vld [vmem:[#allocation4 + $0xa8] sm:$0xff]
          %v6473 = vld [vmem:[#allocation4 + $0xb0] sm:$0xff]
          %v6474 = vld [vmem:[#allocation4 + $0xb8] sm:$0xff]
          %v6475 = vld [vmem:[#allocation4 + $0xc0] sm:$0xff]
          %v6476 = vld [vmem:[#allocation4 + $0xc8] sm:$0xff]
          %v6477 = vld [vmem:[#allocation4 + $0xd0] sm:$0xff]
          %v6478 = vld [vmem:[#allocation4 + $0xd8] sm:$0xff]
          %v6479 = vld [vmem:[#allocation4 + $0xe0] sm:$0xff]
          %v6480 = vld [vmem:[#allocation4 + $0xe8] sm:$0xff]
          %v6481 = vld [vmem:[#allocation4 + $0xf0] sm:$0xff]
          %v6482 = vld [vmem:[#allocation4 + $0xf8] sm:$0xff]
          %v6483 = vld [vmem:[%s20] sm:$0x3]
          %v6485 = vlaneseq
          %v6486 = vshrl.u32 %v6485, 7
          %v6487 = vsub.s32 0, %v6486
          %v6488 = vrot.slane %v6483, %v6487
          %v6489 = vlaneseq
          %v6490 = vshrl.u32 %v6489, 7
          %v6491 = vsub.s32 1, %v6490
          %v6492 = vrot.slane %v6483, %v6491
          %v6495 = vadd.f32 %v6451, %v6488
          %v6496 = vadd.f32 %v6452, %v6492
          %v6497 = vadd.f32 %v6453, %v6488
          %v6498 = vadd.f32 %v6454, %v6492
          %v6499 = vadd.f32 %v6455, %v6488
          %v6500 = vadd.f32 %v6456, %v6492
          %v6501 = vadd.f32 %v6457, %v6488
          %v6502 = vadd.f32 %v6458, %v6492
          %v6503 = vadd.f32 %v6459, %v6488
          %v6504 = vadd.f32 %v6460, %v6492
          %v6505 = vadd.f32 %v6461, %v6488
          %v6506 = vadd.f32 %v6462, %v6492
          %v6507 = vadd.f32 %v6463, %v6488
          %v6508 = vadd.f32 %v6464, %v6492
          %v6509 = vadd.f32 %v6465, %v6488
          %v6510 = vadd.f32 %v6466, %v6492
          %v6511 = vadd.f32 %v6467, %v6488
          %v6512 = vadd.f32 %v6468, %v6492
          %v6513 = vadd.f32 %v6469, %v6488
          %v6514 = vadd.f32 %v6470, %v6492
          %v6515 = vadd.f32 %v6471, %v6488
          %v6516 = vadd.f32 %v6472, %v6492
          %v6517 = vadd.f32 %v6473, %v6488
          %v6518 = vadd.f32 %v6474, %v6492
          %v6519 = vadd.f32 %v6475, %v6488
          %v6520 = vadd.f32 %v6476, %v6492
          %v6521 = vadd.f32 %v6477, %v6488
          %v6522 = vadd.f32 %v6478, %v6492
          %v6523 = vadd.f32 %v6479, %v6488
          %v6524 = vadd.f32 %v6480, %v6492
          %v6525 = vadd.f32 %v6481, %v6488
          %v6526 = vadd.f32 %v6482, %v6492
          %v6527 = vld [vmem:[#allocation2] sm:$0xff]
          %v6528 = vld [vmem:[#allocation2 + $0x8] sm:$0xff]
          %v6529 = vld [vmem:[#allocation2 + $0x10] sm:$0xff]
          %v6530 = vld [vmem:[#allocation2 + $0x18] sm:$0xff]
          %v6531 = vld [vmem:[#allocation2 + $0x20] sm:$0xff]
          %v6532 = vld [vmem:[#allocation2 + $0x28] sm:$0xff]
          %v6533 = vld [vmem:[#allocation2 + $0x30] sm:$0xff]
          %v6534 = vld [vmem:[#allocation2 + $0x38] sm:$0xff]
          %v6535 = vld [vmem:[#allocation2 + $0x40] sm:$0xff]
          %v6536 = vld [vmem:[#allocation2 + $0x48] sm:$0xff]
          %v6537 = vld [vmem:[#allocation2 + $0x50] sm:$0xff]
          %v6538 = vld [vmem:[#allocation2 + $0x58] sm:$0xff]
          %v6539 = vld [vmem:[#allocation2 + $0x60] sm:$0xff]
          %v6540 = vld [vmem:[#allocation2 + $0x68] sm:$0xff]
          %v6541 = vld [vmem:[#allocation2 + $0x70] sm:$0xff]
          %v6542 = vld [vmem:[#allocation2 + $0x78] sm:$0xff]
          %v6543 = vld [vmem:[#allocation2 + $0x80] sm:$0xff]
          %v6544 = vld [vmem:[#allocation2 + $0x88] sm:$0xff]
          %v6545 = vld [vmem:[#allocation2 + $0x90] sm:$0xff]
          %v6546 = vld [vmem:[#allocation2 + $0x98] sm:$0xff]
          %v6547 = vld [vmem:[#allocation2 + $0xa0] sm:$0xff]
          %v6548 = vld [vmem:[#allocation2 + $0xa8] sm:$0xff]
          %v6549 = vld [vmem:[#allocation2 + $0xb0] sm:$0xff]
          %v6550 = vld [vmem:[#allocation2 + $0xb8] sm:$0xff]
          %v6551 = vld [vmem:[#allocation2 + $0xc0] sm:$0xff]
          %v6552 = vld [vmem:[#allocation2 + $0xc8] sm:$0xff]
          %v6553 = vld [vmem:[#allocation2 + $0xd0] sm:$0xff]
          %v6554 = vld [vmem:[#allocation2 + $0xd8] sm:$0xff]
          %v6555 = vld [vmem:[#allocation2 + $0xe0] sm:$0xff]
          %v6556 = vld [vmem:[#allocation2 + $0xe8] sm:$0xff]
          %v6557 = vld [vmem:[#allocation2 + $0xf0] sm:$0xff]
          %v6558 = vld [vmem:[#allocation2 + $0xf8] sm:$0xff]
          %v6559 = vadd.f32 %v6527, %v6495
          %v6560 = vadd.f32 %v6528, %v6496
          %v6561 = vadd.f32 %v6529, %v6497
          %v6562 = vadd.f32 %v6530, %v6498
          %v6563 = vadd.f32 %v6531, %v6499
          %v6564 = vadd.f32 %v6532, %v6500
          %v6565 = vadd.f32 %v6533, %v6501
          %v6566 = vadd.f32 %v6534, %v6502
          %v6567 = vadd.f32 %v6535, %v6503
          %v6568 = vadd.f32 %v6536, %v6504
          %v6569 = vadd.f32 %v6537, %v6505
          %v6570 = vadd.f32 %v6538, %v6506
          %v6571 = vadd.f32 %v6539, %v6507
          %v6572 = vadd.f32 %v6540, %v6508
          %v6573 = vadd.f32 %v6541, %v6509
          %v6574 = vadd.f32 %v6542, %v6510
          %v6575 = vadd.f32 %v6543, %v6511
          %v6576 = vadd.f32 %v6544, %v6512
          %v6577 = vadd.f32 %v6545, %v6513
          %v6578 = vadd.f32 %v6546, %v6514
          %v6579 = vadd.f32 %v6547, %v6515
          %v6580 = vadd.f32 %v6548, %v6516
          %v6581 = vadd.f32 %v6549, %v6517
          %v6582 = vadd.f32 %v6550, %v6518
          %v6583 = vadd.f32 %v6551, %v6519
          %v6584 = vadd.f32 %v6552, %v6520
          %v6585 = vadd.f32 %v6553, %v6521
          %v6586 = vadd.f32 %v6554, %v6522
          %v6587 = vadd.f32 %v6555, %v6523
          %v6588 = vadd.f32 %v6556, %v6524
          %v6589 = vadd.f32 %v6557, %v6525
          %v6590 = vadd.f32 %v6558, %v6526
          %v6591 = vld [vmem:[%s21] sm:$0x3]
          %v6592 = vld [vmem:[%s22] sm:$0x3]
          %v6593 = vadd.f32 %v6559, %v6560
          %6594 = vadd.xlane.f32.xlu0 %v6593
          %v6595 = vpop.xlane.xlu0 %6594
          %v6596 = vadd.f32 %v6561, %v6562
          %6597 = vadd.xlane.f32.xlu0 %v6596
          %v6598 = vpop.xlane.xlu0 %6597
          %v6599 = vadd.f32 %v6563, %v6564
          %6600 = vadd.xlane.f32.xlu0 %v6599
          %v6601 = vpop.xlane.xlu0 %6600
          %v6602 = vadd.f32 %v6565, %v6566
          %6603 = vadd.xlane.f32.xlu0 %v6602
          %v6604 = vpop.xlane.xlu0 %6603
          %v6605 = vadd.f32 %v6567, %v6568
          %6606 = vadd.xlane.f32.xlu0 %v6605
          %v6607 = vpop.xlane.xlu0 %6606
          %v6608 = vadd.f32 %v6569, %v6570
          %6609 = vadd.xlane.f32.xlu0 %v6608
          %v6610 = vpop.xlane.xlu0 %6609
          %v6611 = vadd.f32 %v6571, %v6572
          %6612 = vadd.xlane.f32.xlu0 %v6611
          %v6613 = vpop.xlane.xlu0 %6612
          %v6614 = vadd.f32 %v6573, %v6574
          %6615 = vadd.xlane.f32.xlu0 %v6614
          %v6616 = vpop.xlane.xlu0 %6615
          %v6617 = vadd.f32 %v6575, %v6576
          %6618 = vadd.xlane.f32.xlu0 %v6617
          %v6619 = vpop.xlane.xlu0 %6618
          %v6620 = vadd.f32 %v6577, %v6578
          %6621 = vadd.xlane.f32.xlu0 %v6620
          %v6622 = vpop.xlane.xlu0 %6621
          %v6623 = vadd.f32 %v6579, %v6580
          %6624 = vadd.xlane.f32.xlu0 %v6623
          %v6625 = vpop.xlane.xlu0 %6624
          %v6626 = vadd.f32 %v6581, %v6582
          %6627 = vadd.xlane.f32.xlu0 %v6626
          %v6628 = vpop.xlane.xlu0 %6627
          %v6629 = vadd.f32 %v6583, %v6584
          %6630 = vadd.xlane.f32.xlu0 %v6629
          %v6631 = vpop.xlane.xlu0 %6630
          %v6632 = vadd.f32 %v6585, %v6586
          %6633 = vadd.xlane.f32.xlu0 %v6632
          %v6634 = vpop.xlane.xlu0 %6633
          %v6635 = vadd.f32 %v6587, %v6588
          %6636 = vadd.xlane.f32.xlu0 %v6635
          %v6637 = vpop.xlane.xlu0 %6636
          %v6638 = vadd.f32 %v6589, %v6590
          %6639 = vadd.xlane.f32.xlu0 %v6638
          %v6640 = vpop.xlane.xlu0 %6639
          %v6641 = vrcp.pop 256.0
          %v6642 = vmul.f32 %v6595, %v6641
          %v6643 = vmul.f32 %v6598, %v6641
          %v6644 = vmul.f32 %v6601, %v6641
          %v6645 = vmul.f32 %v6604, %v6641
          %v6646 = vmul.f32 %v6607, %v6641
          %v6647 = vmul.f32 %v6610, %v6641
          %v6648 = vmul.f32 %v6613, %v6641
          %v6649 = vmul.f32 %v6616, %v6641
          %v6650 = vmul.f32 %v6619, %v6641
          %v6651 = vmul.f32 %v6622, %v6641
          %v6652 = vmul.f32 %v6625, %v6641
          %v6653 = vmul.f32 %v6628, %v6641
          %v6654 = vmul.f32 %v6631, %v6641
          %v6655 = vmul.f32 %v6634, %v6641
          %v6656 = vmul.f32 %v6637, %v6641
          %v6657 = vmul.f32 %v6640, %v6641
          %v6658 = vsub.f32 %v6559, %v6642
          %v6659 = vsub.f32 %v6560, %v6642
          %v6660 = vsub.f32 %v6561, %v6643
          %v6661 = vsub.f32 %v6562, %v6643
          %v6662 = vsub.f32 %v6563, %v6644
          %v6663 = vsub.f32 %v6564, %v6644
          %v6664 = vsub.f32 %v6565, %v6645
          %v6665 = vsub.f32 %v6566, %v6645
          %v6666 = vsub.f32 %v6567, %v6646
          %v6667 = vsub.f32 %v6568, %v6646
          %v6668 = vsub.f32 %v6569, %v6647
          %v6669 = vsub.f32 %v6570, %v6647
          %v6670 = vsub.f32 %v6571, %v6648
          %v6671 = vsub.f32 %v6572, %v6648
          %v6672 = vsub.f32 %v6573, %v6649
          %v6673 = vsub.f32 %v6574, %v6649
          %v6674 = vsub.f32 %v6575, %v6650
          %v6675 = vsub.f32 %v6576, %v6650
          %v6676 = vsub.f32 %v6577, %v6651
          %v6677 = vsub.f32 %v6578, %v6651
          %v6678 = vsub.f32 %v6579, %v6652
          %v6679 = vsub.f32 %v6580, %v6652
          %v6680 = vsub.f32 %v6581, %v6653
          %v6681 = vsub.f32 %v6582, %v6653
          %v6682 = vsub.f32 %v6583, %v6654
          %v6683 = vsub.f32 %v6584, %v6654
          %v6684 = vsub.f32 %v6585, %v6655
          %v6685 = vsub.f32 %v6586, %v6655
          %v6686 = vsub.f32 %v6587, %v6656
          %v6687 = vsub.f32 %v6588, %v6656
          %v6688 = vsub.f32 %v6589, %v6657
          %v6689 = vsub.f32 %v6590, %v6657
          %v6690 = vmul.f32 %v6658, %v6658
          %v6691 = vmul.f32 %v6659, %v6659
          %v6692 = vmul.f32 %v6660, %v6660
          %v6693 = vmul.f32 %v6661, %v6661
          %v6694 = vmul.f32 %v6662, %v6662
          %v6695 = vmul.f32 %v6663, %v6663
          %v6696 = vmul.f32 %v6664, %v6664
          %v6697 = vmul.f32 %v6665, %v6665
          %v6698 = vmul.f32 %v6666, %v6666
          %v6699 = vmul.f32 %v6667, %v6667
          %v6700 = vmul.f32 %v6668, %v6668
          %v6701 = vmul.f32 %v6669, %v6669
          %v6702 = vmul.f32 %v6670, %v6670
          %v6703 = vmul.f32 %v6671, %v6671
          %v6704 = vmul.f32 %v6672, %v6672
          %v6705 = vmul.f32 %v6673, %v6673
          %v6706 = vmul.f32 %v6674, %v6674
          %v6707 = vmul.f32 %v6675, %v6675
          %v6708 = vmul.f32 %v6676, %v6676
          %v6709 = vmul.f32 %v6677, %v6677
          %v6710 = vmul.f32 %v6678, %v6678
          %v6711 = vmul.f32 %v6679, %v6679
          %v6712 = vmul.f32 %v6680, %v6680
          %v6713 = vmul.f32 %v6681, %v6681
          %v6714 = vmul.f32 %v6682, %v6682
          %v6715 = vmul.f32 %v6683, %v6683
          %v6716 = vmul.f32 %v6684, %v6684
          %v6717 = vmul.f32 %v6685, %v6685
          %v6718 = vmul.f32 %v6686, %v6686
          %v6719 = vmul.f32 %v6687, %v6687
          %v6720 = vmul.f32 %v6688, %v6688
          %v6721 = vmul.f32 %v6689, %v6689
          %v6722 = vadd.f32 %v6690, %v6691
          %6723 = vadd.xlane.f32.xlu0 %v6722
          %v6724 = vpop.xlane.xlu0 %6723
          %v6725 = vadd.f32 %v6692, %v6693
          %6726 = vadd.xlane.f32.xlu0 %v6725
          %v6727 = vpop.xlane.xlu0 %6726
          %v6728 = vadd.f32 %v6694, %v6695
          %6729 = vadd.xlane.f32.xlu0 %v6728
          %v6730 = vpop.xlane.xlu0 %6729
          %v6731 = vadd.f32 %v6696, %v6697
          %6732 = vadd.xlane.f32.xlu0 %v6731
          %v6733 = vpop.xlane.xlu0 %6732
          %v6734 = vadd.f32 %v6698, %v6699
          %6735 = vadd.xlane.f32.xlu0 %v6734
          %v6736 = vpop.xlane.xlu0 %6735
          %v6737 = vadd.f32 %v6700, %v6701
          %6738 = vadd.xlane.f32.xlu0 %v6737
          %v6739 = vpop.xlane.xlu0 %6738
          %v6740 = vadd.f32 %v6702, %v6703
          %6741 = vadd.xlane.f32.xlu0 %v6740
          %v6742 = vpop.xlane.xlu0 %6741
          %v6743 = vadd.f32 %v6704, %v6705
          %6744 = vadd.xlane.f32.xlu0 %v6743
          %v6745 = vpop.xlane.xlu0 %6744
          %v6746 = vadd.f32 %v6706, %v6707
          %6747 = vadd.xlane.f32.xlu0 %v6746
          %v6748 = vpop.xlane.xlu0 %6747
          %v6749 = vadd.f32 %v6708, %v6709
          %6750 = vadd.xlane.f32.xlu0 %v6749
          %v6751 = vpop.xlane.xlu0 %6750
          %v6752 = vadd.f32 %v6710, %v6711
          %6753 = vadd.xlane.f32.xlu0 %v6752
          %v6754 = vpop.xlane.xlu0 %6753
          %v6755 = vadd.f32 %v6712, %v6713
          %6756 = vadd.xlane.f32.xlu0 %v6755
          %v6757 = vpop.xlane.xlu0 %6756
          %v6758 = vadd.f32 %v6714, %v6715
          %6759 = vadd.xlane.f32.xlu0 %v6758
          %v6760 = vpop.xlane.xlu0 %6759
          %v6761 = vadd.f32 %v6716, %v6717
          %6762 = vadd.xlane.f32.xlu0 %v6761
          %v6763 = vpop.xlane.xlu0 %6762
          %v6764 = vadd.f32 %v6718, %v6719
          %6765 = vadd.xlane.f32.xlu0 %v6764
          %v6766 = vpop.xlane.xlu0 %6765
          %v6767 = vadd.f32 %v6720, %v6721
          %6768 = vadd.xlane.f32.xlu0 %v6767
          %v6769 = vpop.xlane.xlu0 %6768
          %v6770 = vmul.f32 %v6724, %v6641
          %v6771 = vmul.f32 %v6727, %v6641
          %v6772 = vmul.f32 %v6730, %v6641
          %v6773 = vmul.f32 %v6733, %v6641
          %v6774 = vmul.f32 %v6736, %v6641
          %v6775 = vmul.f32 %v6739, %v6641
          %v6776 = vmul.f32 %v6742, %v6641
          %v6777 = vmul.f32 %v6745, %v6641
          %v6778 = vmul.f32 %v6748, %v6641
          %v6779 = vmul.f32 %v6751, %v6641
          %v6780 = vmul.f32 %v6754, %v6641
          %v6781 = vmul.f32 %v6757, %v6641
          %v6782 = vmul.f32 %v6760, %v6641
          %v6783 = vmul.f32 %v6763, %v6641
          %v6784 = vmul.f32 %v6766, %v6641
          %v6785 = vmul.f32 %v6769, %v6641
          %v6786 = vadd.f32 %v6770, 1e-12
          %v6787 = vadd.f32 %v6771, 1e-12
          %v6788 = vadd.f32 %v6772, 1e-12
          %v6789 = vadd.f32 %v6773, 1e-12
          %v6790 = vadd.f32 %v6774, 1e-12
          %v6791 = vadd.f32 %v6775, 1e-12
          %v6792 = vadd.f32 %v6776, 1e-12
          %v6793 = vadd.f32 %v6777, 1e-12
          %v6794 = vadd.f32 %v6778, 1e-12
          %v6795 = vadd.f32 %v6779, 1e-12
          %v6796 = vadd.f32 %v6780, 1e-12
          %v6797 = vadd.f32 %v6781, 1e-12
          %v6798 = vadd.f32 %v6782, 1e-12
          %v6799 = vadd.f32 %v6783, 1e-12
          %v6800 = vadd.f32 %v6784, 1e-12
          %v6801 = vadd.f32 %v6785, 1e-12
          %v6802 = vrsqrt.pop %v6786
          %v6803 = vrsqrt.pop %v6787
          %v6804 = vrsqrt.pop %v6788
          %v6805 = vrsqrt.pop %v6789
          %v6806 = vrsqrt.pop %v6790
          %v6807 = vrsqrt.pop %v6791
          %v6808 = vrsqrt.pop %v6792
          %v6809 = vrsqrt.pop %v6793
          %v6810 = vrsqrt.pop %v6794
          %v6811 = vrsqrt.pop %v6795
          %v6812 = vrsqrt.pop %v6796
          %v6813 = vrsqrt.pop %v6797
          %v6814 = vrsqrt.pop %v6798
          %v6815 = vrsqrt.pop %v6799
          %v6816 = vrsqrt.pop %v6800
          %v6817 = vrsqrt.pop %v6801
          %v6818 = vmul.f32 %v6658, %v6802
          %v6819 = vmul.f32 %v6659, %v6802
          %v6820 = vmul.f32 %v6660, %v6803
          %v6821 = vmul.f32 %v6661, %v6803
          %v6822 = vmul.f32 %v6662, %v6804
          %v6823 = vmul.f32 %v6663, %v6804
          %v6824 = vmul.f32 %v6664, %v6805
          %v6825 = vmul.f32 %v6665, %v6805
          %v6826 = vmul.f32 %v6666, %v6806
          %v6827 = vmul.f32 %v6667, %v6806
          %v6828 = vmul.f32 %v6668, %v6807
          %v6829 = vmul.f32 %v6669, %v6807
          %v6830 = vmul.f32 %v6670, %v6808
          %v6831 = vmul.f32 %v6671, %v6808
          %v6832 = vmul.f32 %v6672, %v6809
          %v6833 = vmul.f32 %v6673, %v6809
          %v6834 = vmul.f32 %v6674, %v6810
          %v6835 = vmul.f32 %v6675, %v6810
          %v6836 = vmul.f32 %v6676, %v6811
          %v6837 = vmul.f32 %v6677, %v6811
          %v6838 = vmul.f32 %v6678, %v6812
          %v6839 = vmul.f32 %v6679, %v6812
          %v6840 = vmul.f32 %v6680, %v6813
          %v6841 = vmul.f32 %v6681, %v6813
          %v6842 = vmul.f32 %v6682, %v6814
          %v6843 = vmul.f32 %v6683, %v6814
          %v6844 = vmul.f32 %v6684, %v6815
          %v6845 = vmul.f32 %v6685, %v6815
          %v6846 = vmul.f32 %v6686, %v6816
          %v6847 = vmul.f32 %v6687, %v6816
          %v6848 = vmul.f32 %v6688, %v6817
          %v6849 = vmul.f32 %v6689, %v6817
          %v6851 = vlaneseq
          %v6852 = vshrl.u32 %v6851, 7
          %v6853 = vsub.s32 0, %v6852
          %v6854 = vrot.slane %v6591, %v6853
          %v6855 = vlaneseq
          %v6856 = vshrl.u32 %v6855, 7
          %v6857 = vsub.s32 1, %v6856
          %v6858 = vrot.slane %v6591, %v6857
          %v6861 = vmul.f32 %v6818, %v6854
          %v6862 = vmul.f32 %v6819, %v6858
          %v6863 = vmul.f32 %v6820, %v6854
          %v6864 = vmul.f32 %v6821, %v6858
          %v6865 = vmul.f32 %v6822, %v6854
          %v6866 = vmul.f32 %v6823, %v6858
          %v6867 = vmul.f32 %v6824, %v6854
          %v6868 = vmul.f32 %v6825, %v6858
          %v6869 = vmul.f32 %v6826, %v6854
          %v6870 = vmul.f32 %v6827, %v6858
          %v6871 = vmul.f32 %v6828, %v6854
          %v6872 = vmul.f32 %v6829, %v6858
          %v6873 = vmul.f32 %v6830, %v6854
          %v6874 = vmul.f32 %v6831, %v6858
          %v6875 = vmul.f32 %v6832, %v6854
          %v6876 = vmul.f32 %v6833, %v6858
          %v6877 = vmul.f32 %v6834, %v6854
          %v6878 = vmul.f32 %v6835, %v6858
          %v6879 = vmul.f32 %v6836, %v6854
          %v6880 = vmul.f32 %v6837, %v6858
          %v6881 = vmul.f32 %v6838, %v6854
          %v6882 = vmul.f32 %v6839, %v6858
          %v6883 = vmul.f32 %v6840, %v6854
          %v6884 = vmul.f32 %v6841, %v6858
          %v6885 = vmul.f32 %v6842, %v6854
          %v6886 = vmul.f32 %v6843, %v6858
          %v6887 = vmul.f32 %v6844, %v6854
          %v6888 = vmul.f32 %v6845, %v6858
          %v6889 = vmul.f32 %v6846, %v6854
          %v6890 = vmul.f32 %v6847, %v6858
          %v6891 = vmul.f32 %v6848, %v6854
          %v6892 = vmul.f32 %v6849, %v6858
          %v6894 = vlaneseq
          %v6895 = vshrl.u32 %v6894, 7
          %v6896 = vsub.s32 0, %v6895
          %v6897 = vrot.slane %v6592, %v6896
          %v6898 = vlaneseq
          %v6899 = vshrl.u32 %v6898, 7
          %v6900 = vsub.s32 1, %v6899
          %v6901 = vrot.slane %v6592, %v6900
          %v6904 = vadd.f32 %v6861, %v6897
          %v6905 = vadd.f32 %v6862, %v6901
          %v6906 = vadd.f32 %v6863, %v6897
          %v6907 = vadd.f32 %v6864, %v6901
          %v6908 = vadd.f32 %v6865, %v6897
          %v6909 = vadd.f32 %v6866, %v6901
          %v6910 = vadd.f32 %v6867, %v6897
          %v6911 = vadd.f32 %v6868, %v6901
          %v6912 = vadd.f32 %v6869, %v6897
          %v6913 = vadd.f32 %v6870, %v6901
          %v6914 = vadd.f32 %v6871, %v6897
          %v6915 = vadd.f32 %v6872, %v6901
          %v6916 = vadd.f32 %v6873, %v6897
          %v6917 = vadd.f32 %v6874, %v6901
          %v6918 = vadd.f32 %v6875, %v6897
          %v6919 = vadd.f32 %v6876, %v6901
          %v6920 = vadd.f32 %v6877, %v6897
          %v6921 = vadd.f32 %v6878, %v6901
          %v6922 = vadd.f32 %v6879, %v6897
          %v6923 = vadd.f32 %v6880, %v6901
          %v6924 = vadd.f32 %v6881, %v6897
          %v6925 = vadd.f32 %v6882, %v6901
          %v6926 = vadd.f32 %v6883, %v6897
          %v6927 = vadd.f32 %v6884, %v6901
          %v6928 = vadd.f32 %v6885, %v6897
          %v6929 = vadd.f32 %v6886, %v6901
          %v6930 = vadd.f32 %v6887, %v6897
          %v6931 = vadd.f32 %v6888, %v6901
          %v6932 = vadd.f32 %v6889, %v6897
          %v6933 = vadd.f32 %v6890, %v6901
          %v6934 = vadd.f32 %v6891, %v6897
          %v6935 = vadd.f32 %v6892, %v6901
          %6936 = vst [vmem:[%s1017] sm:$0xff] %v6904
          %6937 = vst [vmem:[%s1017 + $0x8] sm:$0xff] %v6905
          %6938 = vst [vmem:[%s1017 + $0x10] sm:$0xff] %v6906
          %6939 = vst [vmem:[%s1017 + $0x18] sm:$0xff] %v6907
          %6940 = vst [vmem:[%s1017 + $0x20] sm:$0xff] %v6908
          %6941 = vst [vmem:[%s1017 + $0x28] sm:$0xff] %v6909
          %6942 = vst [vmem:[%s1017 + $0x30] sm:$0xff] %v6910
          %6943 = vst [vmem:[%s1017 + $0x38] sm:$0xff] %v6911
          %6944 = vst [vmem:[%s1017 + $0x40] sm:$0xff] %v6912
          %6945 = vst [vmem:[%s1017 + $0x48] sm:$0xff] %v6913
          %6946 = vst [vmem:[%s1017 + $0x50] sm:$0xff] %v6914
          %6947 = vst [vmem:[%s1017 + $0x58] sm:$0xff] %v6915
          %6948 = vst [vmem:[%s1017 + $0x60] sm:$0xff] %v6916
          %6949 = vst [vmem:[%s1017 + $0x68] sm:$0xff] %v6917
          %6950 = vst [vmem:[%s1017 + $0x70] sm:$0xff] %v6918
          %6951 = vst [vmem:[%s1017 + $0x78] sm:$0xff] %v6919
          %6952 = vst [vmem:[%s1017 + $0x80] sm:$0xff] %v6920
          %6953 = vst [vmem:[%s1017 + $0x88] sm:$0xff] %v6921
          %6954 = vst [vmem:[%s1017 + $0x90] sm:$0xff] %v6922
          %6955 = vst [vmem:[%s1017 + $0x98] sm:$0xff] %v6923
          %6956 = vst [vmem:[%s1017 + $0xa0] sm:$0xff] %v6924
          %6957 = vst [vmem:[%s1017 + $0xa8] sm:$0xff] %v6925
          %6958 = vst [vmem:[%s1017 + $0xb0] sm:$0xff] %v6926
          %6959 = vst [vmem:[%s1017 + $0xb8] sm:$0xff] %v6927
          %6960 = vst [vmem:[%s1017 + $0xc0] sm:$0xff] %v6928
          %6961 = vst [vmem:[%s1017 + $0xc8] sm:$0xff] %v6929
          %6962 = vst [vmem:[%s1017 + $0xd0] sm:$0xff] %v6930
          %6963 = vst [vmem:[%s1017 + $0xd8] sm:$0xff] %v6931
          %6964 = vst [vmem:[%s1017 + $0xe0] sm:$0xff] %v6932
          %6965 = vst [vmem:[%s1017 + $0xe8] sm:$0xff] %v6933
          %6966 = vst [vmem:[%s1017 + $0xf0] sm:$0xff] %v6934
          %6967 = vst [vmem:[%s1017 + $0xf8] sm:$0xff] %v6935
        $region172: #{tpu_custom_call.1} parent=111 // pred_fallthru
          _
        %s6968 = sand.u32 %s583, 1
        %s6969 = scalar_lea.sflag [#allocation7], %s6968
        %s6970 = sand.u32 %s583, 1
        %s6971 = smul.addr %s6970, 256
        %s6972 = scalar_lea.vmem [#allocation26], %s6971
        // Predicated region
        $region173: #{tpu_custom_call.1} parent=111 // pred_check
          %p6973 = pneg %p593
        $region174: #{tpu_custom_call.1} parent=111 // pred_check_branch
          %6975 = sbr.rel (%p6973) target = $region176
        $region175: #{tpu_custom_call.1} parent=111 // pred_region
          %s6976 = smul.u32 16, %s54
          %s6978 = ssub.s32 4096, 4096
          %6979 = vsyncadd %s6969, %s6978
          %s6980 = smul.addr %s6976, 2
          %s6981 = smul.addr %s6980, 128
          %s6982 = scalar_lea.hbm %s23, %s6981
          %s6983 = sshll.u32 %s6972, 4
          %s6984 = int_to_ptr.vmem [resolvable:$true] %s6983
          %6989 = dma.vmem_to_hbm [thread:$0]  %s6984, 4096, %s6982, %s6969, 256, 256, 16
        $region176: #{tpu_custom_call.1} parent=111 // pred_fallthru
          _
      $region112: #{tpu_custom_call.1} parent=5 // pred_fallthru
        _
      %p6990 = scmp.le.s32.totalorder 2, %s45
      // Predicated region
      $region177: #{tpu_custom_call.1} parent=5 // pred_check
        %p6991 = pneg %p6990
      $region178: #{tpu_custom_call.1} parent=5 // pred_check_branch
        %6993 = sbr.rel (%p6991) target = $region180
      $region179: #{tpu_custom_call.1} parent=5 // pred_region
        %s6994 = ssub.s32 %s45, 2
        // Predicated region
        $region181: #{tpu_custom_call.1} parent=179 // pred_check
          %p6995 = pneg %p599
        $region182: #{tpu_custom_call.1} parent=179 // pred_check_branch
          %6997 = sbr.rel (%p6995) target = $region184
        $region183: #{tpu_custom_call.1} parent=179 // pred_region
          %s6998 = sand.u32 %s584, 1
          %s6999 = scalar_lea.sflag [#allocation7], %s6998
          %s7000 = sand.u32 %s584, 1
          %s7001 = smul.addr %s7000, 256
          %s7002 = scalar_lea.vmem [#allocation26], %s7001
          %7003 = dma.done %s6999, 4096
        $region184: #{tpu_custom_call.1} parent=179 // pred_fallthru
          _
      $region180: #{tpu_custom_call.1} parent=5 // pred_fallthru
        _
    $region6: #{tpu_custom_call.1} parent=1 // loop_footer
      %s49 = sadd.s32 1, %s45
    $region7: #{tpu_custom_call.1} parent=1 // loop_footer_branch
      %44 = sbr.rel target = $region3
    $region8: #{tpu_custom_call.1} parent=1 // loop_exit
      _
    %7004 = vsyncpa [#allocation6], 1
    %s7005 = scalar_lea.sflag [#allocation6], 1
    %7006 = vsyncpa %s7005, 1
    %7007 = vsyncpa [#allocation9], 1
    %7008 = vsyncpa [#allocation12], 1
    %7009 = vsyncpa [#allocation15], 1
    %7010 = vsyncpa [#allocation18], 1
    %s7011 = scalar_lea.sflag [#allocation18], 1
    %7012 = vsyncpa %s7011, 1
    %7013 = vsyncpa [#allocation21], 1
    %7014 = vsyncpa [#allocation24], 1
    %s7015 = scalar_lea.sflag [#allocation24], 1
    %7016 = vsyncpa %s7015, 1
    %7017 = vsyncpa [#allocation7], 1
    %s7018 = scalar_lea.sflag [#allocation7], 1
    %7019 = vsyncpa %s7018, 1

</llo_original>
